<compile_context>
chip_gen: v5e
topology: v5e:2x2
jax: 0.10.0
libtpu: 0.0.40
codegen_flags: <defaults>
</compile_context>

<pallas_src>
import functools

import jax
import jax.numpy as jnp
from jax import lax
from jax.experimental import pallas as pl
from jax.experimental.pallas import tpu as pltpu

_VMEM = pl.BlockSpec(memory_space=pltpu.MemorySpace.VMEM)
_EPS = 1e-5

# (conv1 kernel, conv1 stride, conv1 pad, maxpool window) per branch.
_BRANCHES = (
    (11, 1, 5, 150),
    (51, 5, 25, 30),
    (101, 10, 50, 15),
)


def _branch_lout(l_in, k, stride, pad):
    return (l_in + 2 * pad - k) // stride + 1


def _conv0_hw(t):
    """conv0 output spatial dims for a (96, T) single-channel image."""
    ho = (96 + 2 * 3 - 7) // 2 + 1
    wo = (t + 2 * 3 - 7) // 2 + 1
    return ho, wo


# ----------------------------------------------------------------------------
# Pallas kernels
# ----------------------------------------------------------------------------
def _front_kernel(pat1_ref, w11_ref, pat2_ref, w12_ref, pat3_ref, w13_ref,
                  bn_ref, w2_ref, w0_ref, o_ref, *, B, Ls, pools, T):
    """Three wave branches (conv1/BN1/ReLU/conv2/BN2/ReLU/MaxPool) + folded
    conv0.  Output: (B, NP*32) conv0 activation, single lane-dense store."""
    pats = (pat1_ref, pat2_ref, pat3_ref)
    w1s = (w11_ref, w12_ref, w13_ref)
    pooled = [[[None] * 3 for _ in range(T)] for _ in range(B)]

    for br in range(3):
        L, pool = Ls[br], pools[br]
        E = L + 2                       # per-batch extended rows (pos -1 .. L)
        R = B * E
        n = float(B * L)
        ridx = lax.broadcasted_iota(jnp.int32, (R, 32), 0)

        # Valid masks: valid1 = real conv1 output rows (pos 0..L-1, i.e. ext
        # rows 1..L per batch); valid2 = valid conv2 output rows (layout row
        # b*E + t, t in [0, L)).
        v1_terms, v2_terms = [], []
        for b in range(B):
            base = b * E
            v1_terms += [ridx != base, ridx != base + L + 1]
            v2_terms += [ridx != base + L, ridx != base + L + 1]
        valid1 = functools.reduce(jnp.logical_and, v1_terms)
        valid2 = functools.reduce(jnp.logical_and, v2_terms)

        # ---- conv1: one tall matmul over all batches & extended positions --
        y1 = jnp.dot(pats[br][...], w1s[br][...],
                     preferred_element_type=jnp.float32)          # (R, 32) f32

        # ---- BN1 (training-mode batch stats) folded to scale/shift ---------
        g1 = bn_ref[4 * br + 0:4 * br + 1, :]
        be1 = bn_ref[4 * br + 1:4 * br + 2, :]
        g2 = bn_ref[4 * br + 2:4 * br + 3, :]
        be2 = bn_ref[4 * br + 3:4 * br + 4, :]
        mean1 = jnp.sum(jnp.where(valid1, y1, 0.0), axis=0, keepdims=True) / n
        var1 = jnp.sum(jnp.where(valid1, jnp.square(y1 - mean1), 0.0),
                       axis=0, keepdims=True) / n
        sc1 = g1 * lax.rsqrt(var1 + _EPS)
        of1 = be1 - mean1 * sc1
        # Zero the two pad rows per batch == conv2's zero padding.
        v = jnp.where(valid1, jnp.maximum(y1 * sc1 + of1, 0.0), 0.0)

        # ---- conv2 (K=3, pad=1): lane-concat taps {r, r+1, r+2} -> one
        #      (R, 96) x (96, 32) matmul against the pre-stacked weight ------
        zrow = jnp.zeros((1, 32), jnp.float32)
        v_p1 = jnp.concatenate([v[1:, :], zrow], axis=0)
        v_p2 = jnp.concatenate([v[2:, :], zrow, zrow], axis=0)
        v96 = jnp.concatenate([v, v_p1, v_p2], axis=1).astype(jnp.bfloat16)
        y2 = jnp.dot(v96, w2_ref[96 * br:96 * (br + 1), :],
                     preferred_element_type=jnp.float32)          # (R, 32) f32

        # ---- BN2 (training-mode) over the B*L valid output rows ------------
        mean2 = jnp.sum(jnp.where(valid2, y2, 0.0), axis=0, keepdims=True) / n
        var2 = jnp.sum(jnp.where(valid2, jnp.square(y2 - mean2), 0.0),
                       axis=0, keepdims=True) / n
        sc2 = g2 * lax.rsqrt(var2 + _EPS)
        of2 = be2 - mean2 * sc2
        a = jnp.maximum(y2 * sc2 + of2, 0.0)                      # >= 0

        # ---- floor-mode max pool: window maxima stay in registers ----------
        # (post-ReLU values >= 0, so a 0.0 fill is exact for the window max;
        #  windows never touch the two junk rows per batch.)
        for b in range(B):
            for t in range(T):
                lo = b * E + t * pool
                sel = (ridx >= lo) & (ridx < lo + pool)
                pooled[b][t][br] = jnp.max(jnp.where(sel, a, 0.0),
                                           axis=0, keepdims=True)  # (1, 32)

    # ---- assemble (B, T*96) pooled image, lane order t*96 + br*32 + c ------
    rows = []
    for b in range(B):
        pieces = [pooled[b][t][br] for t in range(T) for br in range(3)]
        rows.append(jnp.concatenate(pieces, axis=1))               # (1, T*96)
    img = jnp.concatenate(rows, axis=0).astype(jnp.bfloat16)       # (B, T*96)

    # ---- conv0 (7x7 / s2 / p3, bias-free) folded into one dense matmul -----
    o_ref[...] = jnp.dot(img, w0_ref[...],
                         preferred_element_type=jnp.float32)       # (B, NP*32)


def _tail_kernel(y0_ref, wr_ref, br_ref, wf_ref, bf_ref, o_ref, *, B, NP):
    """resBlocks stand-in (1x1 conv + bias + ReLU) -> avgpool -> fc."""
    yr = jnp.dot(y0_ref[...], wr_ref[...],
                 preferred_element_type=jnp.float32) + br_ref[...]
    yr = jnp.maximum(yr, 0.0)                                      # (B*NP, 1280)
    # AdaptiveAvgPool2d(1): exact 0/1 block-sum matrix (bf16-exact), scale in f32.
    bi = lax.broadcasted_iota(jnp.int32, (B, B * NP), 0)
    ri = lax.broadcasted_iota(jnp.int32, (B, B * NP), 1)
    blk = ((ri >= bi * NP) & (ri < (bi + 1) * NP)).astype(jnp.bfloat16)
    pooled = jnp.dot(blk, yr.astype(jnp.bfloat16),
                     preferred_element_type=jnp.float32) * (1.0 / NP)  # (B,1280)
    o_ref[...] = jnp.dot(pooled.astype(jnp.bfloat16), wf_ref[...],
                         preferred_element_type=jnp.float32) + bf_ref[...]


# ----------------------------------------------------------------------------
# Patch construction (traced glue; tiny) and one-time parameter prep
# ----------------------------------------------------------------------------
def _conv1_ext_patches(sig, k, stride, pad):
    """Single-channel conv1 im2col windows at extended positions -1 .. L.

    sig: (B, L_in).  Returns ((B*(L+2), K), L) where per-batch block row j
    holds the conv1 window for output position j-1 (rows 0 and L+1 are the
    conv2 zero-pad taps; they are masked in-kernel)."""
    b, l_in = sig.shape
    l_out = _branch_lout(l_in, k, stride, pad)
    xp = jnp.pad(sig, ((0, 0), (pad + stride, pad + stride)))
    ext = l_out + 2
    cols = [xp[:, i:i + stride * (ext - 1) + 1:stride] for i in range(k)]
    pat = jnp.stack(cols, axis=-1).reshape(b * ext, k)
    return pat, l_out


def _im2col_2d_c1(img, kh, kw, stride, pad):
    """Single-channel 2-D im2col (prep-time only). img: (N, H, W)."""
    n, h, w = img.shape
    xp = jnp.pad(img, ((0, 0), (pad, pad), (pad, pad)))
    ho = (h + 2 * pad - kh) // stride + 1
    wo = (w + 2 * pad - kw) // stride + 1
    cols = []
    for i in range(kh):
        for j in range(kw):
            cols.append(xp[:, i:i + stride * (ho - 1) + 1:stride,
                              j:j + stride * (wo - 1) + 1:stride])
    patches = jnp.stack(cols, axis=-1)
    return patches.reshape(n * ho * wo, kh * kw), ho, wo


def prepare_params(p, seq_len):
    """One-time parameter prep (run once, outside the traced forward)."""
    prep = {}
    ts = []
    for i, (k, s, pad, pool) in enumerate(_BRANCHES, start=1):
        l_out = _branch_lout(seq_len, k, s, pad)
        ts.append(l_out // pool)
        prep[f"w1_{i}"] = p[f"conv1_{i}_w"].reshape(32, k).T.astype(jnp.bfloat16)
    assert len(set(ts)) == 1, f"branch pooled lengths must agree: {ts}"
    T = ts[0]

    bn_rows, w2_rows = [], []
    for i in (1, 2, 3):
        bn_rows += [p[f"bn1_{i}_g"], p[f"bn1_{i}_b"],
                    p[f"bn2_{i}_g"], p[f"bn2_{i}_b"]]
        # (Cout, Cin, 3) -> (3, Cin, Cout) -> (96, 32) tap-major.
        w2_rows.append(jnp.transpose(p[f"conv2_{i}_w"], (2, 1, 0)).reshape(96, 32))
    prep["bn"] = jnp.stack(bn_rows, axis=0).astype(jnp.float32)      # (12, 32)
    prep["w2"] = jnp.concatenate(w2_rows, axis=0).astype(jnp.bfloat16)  # (288, 32)

    # conv0 folded: dense operator from the flattened (96, T) pooled image to
    # the (Ho*Wo*32)-lane conv0 output, rows permuted to the kernel's
    # t*96 + branch*32 + channel assembly order.
    ho, wo = _conv0_hw(T)
    ht = 96 * T
    basis = jnp.eye(ht, dtype=jnp.float32).reshape(ht, 96, T)
    patches, _, _ = _im2col_2d_c1(basis, 7, 7, 2, 3)                 # (ht*NP, 49)
    w0 = p["conv0_w"].reshape(32, 49).T.astype(jnp.float32)          # (49, 32)
    w0_eff = (patches @ w0).reshape(ht, ho * wo * 32)                # row = h*T+w
    perm = jnp.array([h * T + t for t in range(T) for h in range(96)],
                     dtype=jnp.int32)
    prep["w0"] = w0_eff[perm, :].astype(jnp.bfloat16)                # (T*96, NP*32)

    prep["wr"] = p["res_w"].reshape(1280, 32).T.astype(jnp.bfloat16)
    prep["br"] = p["res_b"].reshape(1, 1280).astype(jnp.float32)
    prep["wf"] = p["fc_w"].T.astype(jnp.bfloat16)
    prep["bf"] = p["fc_b"].reshape(1, -1).astype(jnp.float32)
    return prep


# ----------------------------------------------------------------------------
# Forward
# ----------------------------------------------------------------------------
def mto_wave_cnn_forward(prep, x):
    """x: (B, 1, L) -> (B, num_classes)."""
    B, cin, _ = x.shape
    assert cin == 1
    sig = x[:, 0, :]

    inputs, Ls, pools = [], [], []
    for i, (k, s, pad, pool) in enumerate(_BRANCHES, start=1):
        pat, l_out = _conv1_ext_patches(sig, k, s, pad)
        Ls.append(l_out)
        pools.append(pool)
        inputs += [pat.astype(jnp.bfloat16), prep[f"w1_{i}"]]
    ts = [l // q for l, q in zip(Ls, pools)]
    assert len(set(ts)) == 1, f"branch pooled lengths must agree: {ts}"
    T = ts[0]
    ho, wo = _conv0_hw(T)
    NP = ho * wo
    nc = prep["wf"].shape[1]

    front = functools.partial(_front_kernel, B=B, Ls=tuple(Ls),
                              pools=tuple(pools), T=T)
    y0 = pl.pallas_call(
        front,
        out_shape=jax.ShapeDtypeStruct((B, NP * 32), jnp.float32),
        in_specs=[_VMEM] * 9,
        out_specs=_VMEM,
        compiler_params=pltpu.CompilerParams(
            vmem_limit_bytes=32 * 1024 * 1024),
    )(*inputs, prep["bn"], prep["w2"], prep["w0"])

    # Batch-rows -> pixel-rows relayout of a 6 KB tensor (only glue between
    # the two kernels).
    y0_rows = y0.reshape(B * NP, 32).astype(jnp.bfloat16)

    tail = functools.partial(_tail_kernel, B=B, NP=NP)
    return pl.pallas_call(
        tail,
        out_shape=jax.ShapeDtypeStruct((B, nc), jnp.float32),
        in_specs=[_VMEM] * 5,
        out_specs=_VMEM,
        compiler_params=pltpu.CompilerParams(
            vmem_limit_bytes=32 * 1024 * 1024),
    )(y0_rows, prep["wr"], prep["br"], prep["wf"], prep["bf"])


# ----------------------------------------------------------------------------
# Deterministic parameter init (synthetic; shapes from the module's __init__)
# ----------------------------------------------------------------------------
def init_params(key, num_classes=10):
    keys = iter(jax.random.split(key, 40))

    def nrm(shape, scale=0.1):
        return (scale * jax.random.normal(next(keys), shape)).astype(jnp.float32)

    p = {}
    # NOTE: conv1_*/conv2_* biases are kept for interface parity but are an
    # exact no-op under the training-mode BatchNorm that follows them.
    p["conv1_1_w"], p["conv1_1_b"] = nrm((32, 1, 11)), nrm((32,))
    p["conv1_2_w"], p["conv1_2_b"] = nrm((32, 1, 51)), nrm((32,))
    p["conv1_3_w"], p["conv1_3_b"] = nrm((32, 1, 101)), nrm((32,))
    for i in (1, 2, 3):
        p[f"bn1_{i}_g"] = 1.0 + nrm((32,))
        p[f"bn1_{i}_b"] = nrm((32,))
    for i in (1, 2, 3):
        p[f"conv2_{i}_w"], p[f"conv2_{i}_b"] = nrm((32, 32, 3)), nrm((32,))
        p[f"bn2_{i}_g"] = 1.0 + nrm((32,))
        p[f"bn2_{i}_b"] = nrm((32,))
    p["conv0_w"] = nrm((32, 1, 7, 7))
    p["res_w"], p["res_b"] = nrm((1280, 32, 1, 1)), nrm((1280,))
    p["fc_w"], p["fc_b"] = nrm((num_classes, 1280)), nrm((num_classes,))
    return p


if __name__ == "__main__":
    key = jax.random.PRNGKey(0)
    kx, kp = jax.random.split(key)
    # L=300 so all three branches pool to the same temporal length (T=2).
    x = jax.random.normal(kx, (2, 1, 300), dtype=jnp.float32)
    params = init_params(kp, num_classes=10)
    prep = prepare_params(params, seq_len=300)

    fwd = jax.jit(mto_wave_cnn_forward)
    out = fwd(prep, x)
    jax.block_until_ready(out)
    assert out.shape == (2, 10), out.shape
    assert bool(jnp.all(jnp.isfinite(out)))
    print("KERNEL_OK")
</pallas_src>

<mosaic_0001>
module attributes {stable_mosaic.version = 11 : i64} {
  func.func @_front_kernel(%arg0: memref<604x11xbf16, #tpu.memory_space<vmem>>, %arg1: memref<11x32xbf16, #tpu.memory_space<vmem>>, %arg2: memref<124x51xbf16, #tpu.memory_space<vmem>>, %arg3: memref<51x32xbf16, #tpu.memory_space<vmem>>, %arg4: memref<64x101xbf16, #tpu.memory_space<vmem>>, %arg5: memref<101x32xbf16, #tpu.memory_space<vmem>>, %arg6: memref<12x32xf32, #tpu.memory_space<vmem>>, %arg7: memref<288x32xbf16, #tpu.memory_space<vmem>>, %arg8: memref<192x1536xbf16, #tpu.memory_space<vmem>>, %arg9: memref<2x1536xf32, #tpu.memory_space<vmem>>) attributes {dimension_semantics = [], scalar_prefetch = 0 : i64, scratch_operands = 0 : i64, tpu.core_type = #tpu.core_type<tc>} {
    %0 = tpu.iota {dimensions = array<i32: 0>} : vector<604x32xi32>
    %c0_i32 = arith.constant 0 : i32
    %1 = vector.broadcast %c0_i32 : i32 to vector<604x32xi32>
    %2 = arith.cmpi ne, %0, %1 : vector<604x32xi32>
    %c301_i32 = arith.constant 301 : i32
    %3 = vector.broadcast %c301_i32 : i32 to vector<604x32xi32>
    %4 = arith.cmpi ne, %0, %3 : vector<604x32xi32>
    %c300_i32 = arith.constant 300 : i32
    %5 = vector.broadcast %c300_i32 : i32 to vector<604x32xi32>
    %6 = arith.cmpi ne, %0, %5 : vector<604x32xi32>
    %c301_i32_0 = arith.constant 301 : i32
    %7 = vector.broadcast %c301_i32_0 : i32 to vector<604x32xi32>
    %8 = arith.cmpi ne, %0, %7 : vector<604x32xi32>
    %c302_i32 = arith.constant 302 : i32
    %9 = vector.broadcast %c302_i32 : i32 to vector<604x32xi32>
    %10 = arith.cmpi ne, %0, %9 : vector<604x32xi32>
    %c603_i32 = arith.constant 603 : i32
    %11 = vector.broadcast %c603_i32 : i32 to vector<604x32xi32>
    %12 = arith.cmpi ne, %0, %11 : vector<604x32xi32>
    %c602_i32 = arith.constant 602 : i32
    %13 = vector.broadcast %c602_i32 : i32 to vector<604x32xi32>
    %14 = arith.cmpi ne, %0, %13 : vector<604x32xi32>
    %c603_i32_1 = arith.constant 603 : i32
    %15 = vector.broadcast %c603_i32_1 : i32 to vector<604x32xi32>
    %16 = arith.cmpi ne, %0, %15 : vector<604x32xi32>
    %17 = arith.andi %2, %4 : vector<604x32xi1>
    %18 = arith.andi %17, %10 : vector<604x32xi1>
    %19 = arith.andi %18, %12 : vector<604x32xi1>
    %20 = arith.andi %6, %8 : vector<604x32xi1>
    %21 = arith.andi %20, %14 : vector<604x32xi1>
    %22 = arith.andi %21, %16 : vector<604x32xi1>
    %c0 = arith.constant 0 : index
    %c0_2 = arith.constant 0 : index
    %23 = vector.load %arg0[%c0, %c0_2] : memref<604x11xbf16, #tpu.memory_space<vmem>>, vector<604x11xbf16>
    %c0_3 = arith.constant 0 : index
    %c0_4 = arith.constant 0 : index
    %24 = vector.load %arg1[%c0_3, %c0_4] : memref<11x32xbf16, #tpu.memory_space<vmem>>, vector<11x32xbf16>
    %cst = arith.constant dense<0.000000e+00> : vector<604x32xf32>
    %25 = tpu.matmul %23, %24, %cst {dimension_numbers = #tpu.dot_dimension_numbers<[1], [0], [0], [1], [0, 0, 1, 1], [], []>} : vector<604x11xbf16>, vector<11x32xbf16>, vector<604x32xf32> -> vector<604x32xf32>
    %c0_5 = arith.constant 0 : index
    %c0_6 = arith.constant 0 : index
    %26 = vector.load %arg6[%c0_5, %c0_6] : memref<12x32xf32, #tpu.memory_space<vmem>>, vector<1x32xf32>
    %c1 = arith.constant 1 : index
    %c0_7 = arith.constant 0 : index
    %27 = vector.load %arg6[%c1, %c0_7] : memref<12x32xf32, #tpu.memory_space<vmem>>, vector<1x32xf32>
    %c2 = arith.constant 2 : index
    %c0_8 = arith.constant 0 : index
    %28 = vector.load %arg6[%c2, %c0_8] : memref<12x32xf32, #tpu.memory_space<vmem>>, vector<1x32xf32>
    %c3 = arith.constant 3 : index
    %c0_9 = arith.constant 0 : index
    %29 = vector.load %arg6[%c3, %c0_9] : memref<12x32xf32, #tpu.memory_space<vmem>>, vector<1x32xf32>
    %cst_10 = arith.constant 0.000000e+00 : f32
    %30 = vector.broadcast %cst_10 : f32 to vector<604x32xf32>
    %31 = arith.select %19, %25, %30 : vector<604x32xi1>, vector<604x32xf32>
    %cst_11 = arith.constant dense<0.000000e+00> : vector<32xf32>
    %32 = vector.multi_reduction <add>, %31, %cst_11 [0] : vector<604x32xf32> to vector<32xf32>
    %33 = vector.shape_cast %32 : vector<32xf32> to vector<1x32xf32>
    %cst_12 = arith.constant 6.000000e+02 : f32
    %34 = vector.broadcast %cst_12 : f32 to vector<1x32xf32>
    %35 = arith.divf %33, %34 : vector<1x32xf32>
    %36 = vector.broadcast %35 : vector<1x32xf32> to vector<604x32xf32>
    %37 = arith.subf %25, %36 : vector<604x32xf32>
    %38 = arith.mulf %37, %37 : vector<604x32xf32>
    %cst_13 = arith.constant 0.000000e+00 : f32
    %39 = vector.broadcast %cst_13 : f32 to vector<604x32xf32>
    %40 = arith.select %19, %38, %39 : vector<604x32xi1>, vector<604x32xf32>
    %cst_14 = arith.constant dense<0.000000e+00> : vector<32xf32>
    %41 = vector.multi_reduction <add>, %40, %cst_14 [0] : vector<604x32xf32> to vector<32xf32>
    %42 = vector.shape_cast %41 : vector<32xf32> to vector<1x32xf32>
    %cst_15 = arith.constant 6.000000e+02 : f32
    %43 = vector.broadcast %cst_15 : f32 to vector<1x32xf32>
    %44 = arith.divf %42, %43 : vector<1x32xf32>
    %cst_16 = arith.constant 9.99999974E-6 : f32
    %45 = vector.broadcast %cst_16 : f32 to vector<1x32xf32>
    %46 = arith.addf %44, %45 : vector<1x32xf32>
    %47 = math.rsqrt %46 : vector<1x32xf32>
    %48 = arith.mulf %26, %47 : vector<1x32xf32>
    %49 = arith.mulf %35, %48 : vector<1x32xf32>
    %50 = arith.subf %27, %49 : vector<1x32xf32>
    %51 = vector.broadcast %48 : vector<1x32xf32> to vector<604x32xf32>
    %52 = arith.mulf %25, %51 : vector<604x32xf32>
    %53 = vector.broadcast %50 : vector<1x32xf32> to vector<604x32xf32>
    %54 = arith.addf %52, %53 : vector<604x32xf32>
    %cst_17 = arith.constant 0.000000e+00 : f32
    %55 = vector.broadcast %cst_17 : f32 to vector<604x32xf32>
    %56 = arith.maximumf %54, %55 : vector<604x32xf32>
    %cst_18 = arith.constant 0.000000e+00 : f32
    %57 = vector.broadcast %cst_18 : f32 to vector<604x32xf32>
    %58 = arith.select %19, %56, %57 : vector<604x32xi1>, vector<604x32xf32>
    %cst_19 = arith.constant 0.000000e+00 : f32
    %59 = vector.broadcast %cst_19 : f32 to vector<1x32xf32>
    %60 = vector.extract_strided_slice %58 {offsets = [1, 0], sizes = [603, 32], strides = [1, 1]} : vector<604x32xf32> to vector<603x32xf32>
    %61 = tpu.concatenate %60, %59 in 0 : vector<603x32xf32>, vector<1x32xf32> -> vector<604x32xf32>
    %62 = vector.extract_strided_slice %58 {offsets = [2, 0], sizes = [602, 32], strides = [1, 1]} : vector<604x32xf32> to vector<602x32xf32>
    %63 = tpu.concatenate %62, %59, %59 in 0 : vector<602x32xf32>, vector<1x32xf32>, vector<1x32xf32> -> vector<604x32xf32>
    %64 = tpu.concatenate %58, %61, %63 in 1 : vector<604x32xf32>, vector<604x32xf32>, vector<604x32xf32> -> vector<604x96xf32>
    %65 = arith.truncf %64 : vector<604x96xf32> to vector<604x96xbf16>
    %c0_20 = arith.constant 0 : index
    %c0_21 = arith.constant 0 : index
    %66 = vector.load %arg7[%c0_20, %c0_21] : memref<288x32xbf16, #tpu.memory_space<vmem>>, vector<96x32xbf16>
    %cst_22 = arith.constant dense<0.000000e+00> : vector<604x32xf32>
    %67 = tpu.matmul %65, %66, %cst_22 {dimension_numbers = #tpu.dot_dimension_numbers<[1], [0], [0], [1], [0, 0, 1, 1], [], []>} : vector<604x96xbf16>, vector<96x32xbf16>, vector<604x32xf32> -> vector<604x32xf32>
    %cst_23 = arith.constant 0.000000e+00 : f32
    %68 = vector.broadcast %cst_23 : f32 to vector<604x32xf32>
    %69 = arith.select %22, %67, %68 : vector<604x32xi1>, vector<604x32xf32>
    %cst_24 = arith.constant dense<0.000000e+00> : vector<32xf32>
    %70 = vector.multi_reduction <add>, %69, %cst_24 [0] : vector<604x32xf32> to vector<32xf32>
    %71 = vector.shape_cast %70 : vector<32xf32> to vector<1x32xf32>
    %cst_25 = arith.constant 6.000000e+02 : f32
    %72 = vector.broadcast %cst_25 : f32 to vector<1x32xf32>
    %73 = arith.divf %71, %72 : vector<1x32xf32>
    %74 = vector.broadcast %73 : vector<1x32xf32> to vector<604x32xf32>
    %75 = arith.subf %67, %74 : vector<604x32xf32>
    %76 = arith.mulf %75, %75 : vector<604x32xf32>
    %cst_26 = arith.constant 0.000000e+00 : f32
    %77 = vector.broadcast %cst_26 : f32 to vector<604x32xf32>
    %78 = arith.select %22, %76, %77 : vector<604x32xi1>, vector<604x32xf32>
    %cst_27 = arith.constant dense<0.000000e+00> : vector<32xf32>
    %79 = vector.multi_reduction <add>, %78, %cst_27 [0] : vector<604x32xf32> to vector<32xf32>
    %80 = vector.shape_cast %79 : vector<32xf32> to vector<1x32xf32>
    %cst_28 = arith.constant 6.000000e+02 : f32
    %81 = vector.broadcast %cst_28 : f32 to vector<1x32xf32>
    %82 = arith.divf %80, %81 : vector<1x32xf32>
    %cst_29 = arith.constant 9.99999974E-6 : f32
    %83 = vector.broadcast %cst_29 : f32 to vector<1x32xf32>
    %84 = arith.addf %82, %83 : vector<1x32xf32>
    %85 = math.rsqrt %84 : vector<1x32xf32>
    %86 = arith.mulf %28, %85 : vector<1x32xf32>
    %87 = arith.mulf %73, %86 : vector<1x32xf32>
    %88 = arith.subf %29, %87 : vector<1x32xf32>
    %89 = vector.broadcast %86 : vector<1x32xf32> to vector<604x32xf32>
    %90 = arith.mulf %67, %89 : vector<604x32xf32>
    %91 = vector.broadcast %88 : vector<1x32xf32> to vector<604x32xf32>
    %92 = arith.addf %90, %91 : vector<604x32xf32>
    %cst_30 = arith.constant 0.000000e+00 : f32
    %93 = vector.broadcast %cst_30 : f32 to vector<604x32xf32>
    %94 = arith.maximumf %92, %93 : vector<604x32xf32>
    %c0_i32_31 = arith.constant 0 : i32
    %95 = vector.broadcast %c0_i32_31 : i32 to vector<604x32xi32>
    %96 = arith.cmpi sge, %0, %95 : vector<604x32xi32>
    %c150_i32 = arith.constant 150 : i32
    %97 = vector.broadcast %c150_i32 : i32 to vector<604x32xi32>
    %98 = arith.cmpi slt, %0, %97 : vector<604x32xi32>
    %99 = arith.andi %96, %98 : vector<604x32xi1>
    %cst_32 = arith.constant 0.000000e+00 : f32
    %100 = vector.broadcast %cst_32 : f32 to vector<604x32xf32>
    %101 = arith.select %99, %94, %100 : vector<604x32xi1>, vector<604x32xf32>
    %cst_33 = arith.constant dense<0xFF800000> : vector<32xf32>
    %102 = vector.multi_reduction <maximumf>, %101, %cst_33 [0] : vector<604x32xf32> to vector<32xf32>
    %103 = vector.shape_cast %102 : vector<32xf32> to vector<1x32xf32>
    %c150_i32_34 = arith.constant 150 : i32
    %104 = vector.broadcast %c150_i32_34 : i32 to vector<604x32xi32>
    %105 = arith.cmpi sge, %0, %104 : vector<604x32xi32>
    %c300_i32_35 = arith.constant 300 : i32
    %106 = vector.broadcast %c300_i32_35 : i32 to vector<604x32xi32>
    %107 = arith.cmpi slt, %0, %106 : vector<604x32xi32>
    %108 = arith.andi %105, %107 : vector<604x32xi1>
    %cst_36 = arith.constant 0.000000e+00 : f32
    %109 = vector.broadcast %cst_36 : f32 to vector<604x32xf32>
    %110 = arith.select %108, %94, %109 : vector<604x32xi1>, vector<604x32xf32>
    %cst_37 = arith.constant dense<0xFF800000> : vector<32xf32>
    %111 = vector.multi_reduction <maximumf>, %110, %cst_37 [0] : vector<604x32xf32> to vector<32xf32>
    %112 = vector.shape_cast %111 : vector<32xf32> to vector<1x32xf32>
    %c302_i32_38 = arith.constant 302 : i32
    %113 = vector.broadcast %c302_i32_38 : i32 to vector<604x32xi32>
    %114 = arith.cmpi sge, %0, %113 : vector<604x32xi32>
    %c452_i32 = arith.constant 452 : i32
    %115 = vector.broadcast %c452_i32 : i32 to vector<604x32xi32>
    %116 = arith.cmpi slt, %0, %115 : vector<604x32xi32>
    %117 = arith.andi %114, %116 : vector<604x32xi1>
    %cst_39 = arith.constant 0.000000e+00 : f32
    %118 = vector.broadcast %cst_39 : f32 to vector<604x32xf32>
    %119 = arith.select %117, %94, %118 : vector<604x32xi1>, vector<604x32xf32>
    %cst_40 = arith.constant dense<0xFF800000> : vector<32xf32>
    %120 = vector.multi_reduction <maximumf>, %119, %cst_40 [0] : vector<604x32xf32> to vector<32xf32>
    %121 = vector.shape_cast %120 : vector<32xf32> to vector<1x32xf32>
    %c452_i32_41 = arith.constant 452 : i32
    %122 = vector.broadcast %c452_i32_41 : i32 to vector<604x32xi32>
    %123 = arith.cmpi sge, %0, %122 : vector<604x32xi32>
    %c602_i32_42 = arith.constant 602 : i32
    %124 = vector.broadcast %c602_i32_42 : i32 to vector<604x32xi32>
    %125 = arith.cmpi slt, %0, %124 : vector<604x32xi32>
    %126 = arith.andi %123, %125 : vector<604x32xi1>
    %cst_43 = arith.constant 0.000000e+00 : f32
    %127 = vector.broadcast %cst_43 : f32 to vector<604x32xf32>
    %128 = arith.select %126, %94, %127 : vector<604x32xi1>, vector<604x32xf32>
    %cst_44 = arith.constant dense<0xFF800000> : vector<32xf32>
    %129 = vector.multi_reduction <maximumf>, %128, %cst_44 [0] : vector<604x32xf32> to vector<32xf32>
    %130 = vector.shape_cast %129 : vector<32xf32> to vector<1x32xf32>
    %131 = tpu.iota {dimensions = array<i32: 0>} : vector<124x32xi32>
    %c0_i32_45 = arith.constant 0 : i32
    %132 = vector.broadcast %c0_i32_45 : i32 to vector<124x32xi32>
    %133 = arith.cmpi ne, %131, %132 : vector<124x32xi32>
    %c61_i32 = arith.constant 61 : i32
    %134 = vector.broadcast %c61_i32 : i32 to vector<124x32xi32>
    %135 = arith.cmpi ne, %131, %134 : vector<124x32xi32>
    %c60_i32 = arith.constant 60 : i32
    %136 = vector.broadcast %c60_i32 : i32 to vector<124x32xi32>
    %137 = arith.cmpi ne, %131, %136 : vector<124x32xi32>
    %c61_i32_46 = arith.constant 61 : i32
    %138 = vector.broadcast %c61_i32_46 : i32 to vector<124x32xi32>
    %139 = arith.cmpi ne, %131, %138 : vector<124x32xi32>
    %c62_i32 = arith.constant 62 : i32
    %140 = vector.broadcast %c62_i32 : i32 to vector<124x32xi32>
    %141 = arith.cmpi ne, %131, %140 : vector<124x32xi32>
    %c123_i32 = arith.constant 123 : i32
    %142 = vector.broadcast %c123_i32 : i32 to vector<124x32xi32>
    %143 = arith.cmpi ne, %131, %142 : vector<124x32xi32>
    %c122_i32 = arith.constant 122 : i32
    %144 = vector.broadcast %c122_i32 : i32 to vector<124x32xi32>
    %145 = arith.cmpi ne, %131, %144 : vector<124x32xi32>
    %c123_i32_47 = arith.constant 123 : i32
    %146 = vector.broadcast %c123_i32_47 : i32 to vector<124x32xi32>
    %147 = arith.cmpi ne, %131, %146 : vector<124x32xi32>
    %148 = arith.andi %133, %135 : vector<124x32xi1>
    %149 = arith.andi %148, %141 : vector<124x32xi1>
    %150 = arith.andi %149, %143 : vector<124x32xi1>
    %151 = arith.andi %137, %139 : vector<124x32xi1>
    %152 = arith.andi %151, %145 : vector<124x32xi1>
    %153 = arith.andi %152, %147 : vector<124x32xi1>
    %c0_48 = arith.constant 0 : index
    %c0_49 = arith.constant 0 : index
    %154 = vector.load %arg2[%c0_48, %c0_49] : memref<124x51xbf16, #tpu.memory_space<vmem>>, vector<124x51xbf16>
    %c0_50 = arith.constant 0 : index
    %c0_51 = arith.constant 0 : index
    %155 = vector.load %arg3[%c0_50, %c0_51] : memref<51x32xbf16, #tpu.memory_space<vmem>>, vector<51x32xbf16>
    %cst_52 = arith.constant dense<0.000000e+00> : vector<124x32xf32>
    %156 = tpu.matmul %154, %155, %cst_52 {dimension_numbers = #tpu.dot_dimension_numbers<[1], [0], [0], [1], [0, 0, 1, 1], [], []>} : vector<124x51xbf16>, vector<51x32xbf16>, vector<124x32xf32> -> vector<124x32xf32>
    %c4 = arith.constant 4 : index
    %c0_53 = arith.constant 0 : index
    %157 = vector.load %arg6[%c4, %c0_53] : memref<12x32xf32, #tpu.memory_space<vmem>>, vector<1x32xf32>
    %c5 = arith.constant 5 : index
    %c0_54 = arith.constant 0 : index
    %158 = vector.load %arg6[%c5, %c0_54] : memref<12x32xf32, #tpu.memory_space<vmem>>, vector<1x32xf32>
    %c6 = arith.constant 6 : index
    %c0_55 = arith.constant 0 : index
    %159 = vector.load %arg6[%c6, %c0_55] : memref<12x32xf32, #tpu.memory_space<vmem>>, vector<1x32xf32>
    %c7 = arith.constant 7 : index
    %c0_56 = arith.constant 0 : index
    %160 = vector.load %arg6[%c7, %c0_56] : memref<12x32xf32, #tpu.memory_space<vmem>>, vector<1x32xf32>
    %cst_57 = arith.constant 0.000000e+00 : f32
    %161 = vector.broadcast %cst_57 : f32 to vector<124x32xf32>
    %162 = arith.select %150, %156, %161 : vector<124x32xi1>, vector<124x32xf32>
    %cst_58 = arith.constant dense<0.000000e+00> : vector<32xf32>
    %163 = vector.multi_reduction <add>, %162, %cst_58 [0] : vector<124x32xf32> to vector<32xf32>
    %164 = vector.shape_cast %163 : vector<32xf32> to vector<1x32xf32>
    %cst_59 = arith.constant 1.200000e+02 : f32
    %165 = vector.broadcast %cst_59 : f32 to vector<1x32xf32>
    %166 = arith.divf %164, %165 : vector<1x32xf32>
    %167 = vector.broadcast %166 : vector<1x32xf32> to vector<124x32xf32>
    %168 = arith.subf %156, %167 : vector<124x32xf32>
    %169 = arith.mulf %168, %168 : vector<124x32xf32>
    %cst_60 = arith.constant 0.000000e+00 : f32
    %170 = vector.broadcast %cst_60 : f32 to vector<124x32xf32>
    %171 = arith.select %150, %169, %170 : vector<124x32xi1>, vector<124x32xf32>
    %cst_61 = arith.constant dense<0.000000e+00> : vector<32xf32>
    %172 = vector.multi_reduction <add>, %171, %cst_61 [0] : vector<124x32xf32> to vector<32xf32>
    %173 = vector.shape_cast %172 : vector<32xf32> to vector<1x32xf32>
    %cst_62 = arith.constant 1.200000e+02 : f32
    %174 = vector.broadcast %cst_62 : f32 to vector<1x32xf32>
    %175 = arith.divf %173, %174 : vector<1x32xf32>
    %cst_63 = arith.constant 9.99999974E-6 : f32
    %176 = vector.broadcast %cst_63 : f32 to vector<1x32xf32>
    %177 = arith.addf %175, %176 : vector<1x32xf32>
    %178 = math.rsqrt %177 : vector<1x32xf32>
    %179 = arith.mulf %157, %178 : vector<1x32xf32>
    %180 = arith.mulf %166, %179 : vector<1x32xf32>
    %181 = arith.subf %158, %180 : vector<1x32xf32>
    %182 = vector.broadcast %179 : vector<1x32xf32> to vector<124x32xf32>
    %183 = arith.mulf %156, %182 : vector<124x32xf32>
    %184 = vector.broadcast %181 : vector<1x32xf32> to vector<124x32xf32>
    %185 = arith.addf %183, %184 : vector<124x32xf32>
    %cst_64 = arith.constant 0.000000e+00 : f32
    %186 = vector.broadcast %cst_64 : f32 to vector<124x32xf32>
    %187 = arith.maximumf %185, %186 : vector<124x32xf32>
    %cst_65 = arith.constant 0.000000e+00 : f32
    %188 = vector.broadcast %cst_65 : f32 to vector<124x32xf32>
    %189 = arith.select %150, %187, %188 : vector<124x32xi1>, vector<124x32xf32>
    %cst_66 = arith.constant 0.000000e+00 : f32
    %190 = vector.broadcast %cst_66 : f32 to vector<1x32xf32>
    %191 = vector.extract_strided_slice %189 {offsets = [1, 0], sizes = [123, 32], strides = [1, 1]} : vector<124x32xf32> to vector<123x32xf32>
    %192 = tpu.concatenate %191, %190 in 0 : vector<123x32xf32>, vector<1x32xf32> -> vector<124x32xf32>
    %193 = vector.extract_strided_slice %189 {offsets = [2, 0], sizes = [122, 32], strides = [1, 1]} : vector<124x32xf32> to vector<122x32xf32>
    %194 = tpu.concatenate %193, %190, %190 in 0 : vector<122x32xf32>, vector<1x32xf32>, vector<1x32xf32> -> vector<124x32xf32>
    %195 = tpu.concatenate %189, %192, %194 in 1 : vector<124x32xf32>, vector<124x32xf32>, vector<124x32xf32> -> vector<124x96xf32>
    %196 = arith.truncf %195 : vector<124x96xf32> to vector<124x96xbf16>
    %c96 = arith.constant 96 : index
    %c0_67 = arith.constant 0 : index
    %197 = vector.load %arg7[%c96, %c0_67] : memref<288x32xbf16, #tpu.memory_space<vmem>>, vector<96x32xbf16>
    %cst_68 = arith.constant dense<0.000000e+00> : vector<124x32xf32>
    %198 = tpu.matmul %196, %197, %cst_68 {dimension_numbers = #tpu.dot_dimension_numbers<[1], [0], [0], [1], [0, 0, 1, 1], [], []>} : vector<124x96xbf16>, vector<96x32xbf16>, vector<124x32xf32> -> vector<124x32xf32>
    %cst_69 = arith.constant 0.000000e+00 : f32
    %199 = vector.broadcast %cst_69 : f32 to vector<124x32xf32>
    %200 = arith.select %153, %198, %199 : vector<124x32xi1>, vector<124x32xf32>
    %cst_70 = arith.constant dense<0.000000e+00> : vector<32xf32>
    %201 = vector.multi_reduction <add>, %200, %cst_70 [0] : vector<124x32xf32> to vector<32xf32>
    %202 = vector.shape_cast %201 : vector<32xf32> to vector<1x32xf32>
    %cst_71 = arith.constant 1.200000e+02 : f32
    %203 = vector.broadcast %cst_71 : f32 to vector<1x32xf32>
    %204 = arith.divf %202, %203 : vector<1x32xf32>
    %205 = vector.broadcast %204 : vector<1x32xf32> to vector<124x32xf32>
    %206 = arith.subf %198, %205 : vector<124x32xf32>
    %207 = arith.mulf %206, %206 : vector<124x32xf32>
    %cst_72 = arith.constant 0.000000e+00 : f32
    %208 = vector.broadcast %cst_72 : f32 to vector<124x32xf32>
    %209 = arith.select %153, %207, %208 : vector<124x32xi1>, vector<124x32xf32>
    %cst_73 = arith.constant dense<0.000000e+00> : vector<32xf32>
    %210 = vector.multi_reduction <add>, %209, %cst_73 [0] : vector<124x32xf32> to vector<32xf32>
    %211 = vector.shape_cast %210 : vector<32xf32> to vector<1x32xf32>
    %cst_74 = arith.constant 1.200000e+02 : f32
    %212 = vector.broadcast %cst_74 : f32 to vector<1x32xf32>
    %213 = arith.divf %211, %212 : vector<1x32xf32>
    %cst_75 = arith.constant 9.99999974E-6 : f32
    %214 = vector.broadcast %cst_75 : f32 to vector<1x32xf32>
    %215 = arith.addf %213, %214 : vector<1x32xf32>
    %216 = math.rsqrt %215 : vector<1x32xf32>
    %217 = arith.mulf %159, %216 : vector<1x32xf32>
    %218 = arith.mulf %204, %217 : vector<1x32xf32>
    %219 = arith.subf %160, %218 : vector<1x32xf32>
    %220 = vector.broadcast %217 : vector<1x32xf32> to vector<124x32xf32>
    %221 = arith.mulf %198, %220 : vector<124x32xf32>
    %222 = vector.broadcast %219 : vector<1x32xf32> to vector<124x32xf32>
    %223 = arith.addf %221, %222 : vector<124x32xf32>
    %cst_76 = arith.constant 0.000000e+00 : f32
    %224 = vector.broadcast %cst_76 : f32 to vector<124x32xf32>
    %225 = arith.maximumf %223, %224 : vector<124x32xf32>
    %c0_i32_77 = arith.constant 0 : i32
    %226 = vector.broadcast %c0_i32_77 : i32 to vector<124x32xi32>
    %227 = arith.cmpi sge, %131, %226 : vector<124x32xi32>
    %c30_i32 = arith.constant 30 : i32
    %228 = vector.broadcast %c30_i32 : i32 to vector<124x32xi32>
    %229 = arith.cmpi slt, %131, %228 : vector<124x32xi32>
    %230 = arith.andi %227, %229 : vector<124x32xi1>
    %cst_78 = arith.constant 0.000000e+00 : f32
    %231 = vector.broadcast %cst_78 : f32 to vector<124x32xf32>
    %232 = arith.select %230, %225, %231 : vector<124x32xi1>, vector<124x32xf32>
    %cst_79 = arith.constant dense<0xFF800000> : vector<32xf32>
    %233 = vector.multi_reduction <maximumf>, %232, %cst_79 [0] : vector<124x32xf32> to vector<32xf32>
    %234 = vector.shape_cast %233 : vector<32xf32> to vector<1x32xf32>
    %c30_i32_80 = arith.constant 30 : i32
    %235 = vector.broadcast %c30_i32_80 : i32 to vector<124x32xi32>
    %236 = arith.cmpi sge, %131, %235 : vector<124x32xi32>
    %c60_i32_81 = arith.constant 60 : i32
    %237 = vector.broadcast %c60_i32_81 : i32 to vector<124x32xi32>
    %238 = arith.cmpi slt, %131, %237 : vector<124x32xi32>
    %239 = arith.andi %236, %238 : vector<124x32xi1>
    %cst_82 = arith.constant 0.000000e+00 : f32
    %240 = vector.broadcast %cst_82 : f32 to vector<124x32xf32>
    %241 = arith.select %239, %225, %240 : vector<124x32xi1>, vector<124x32xf32>
    %cst_83 = arith.constant dense<0xFF800000> : vector<32xf32>
    %242 = vector.multi_reduction <maximumf>, %241, %cst_83 [0] : vector<124x32xf32> to vector<32xf32>
    %243 = vector.shape_cast %242 : vector<32xf32> to vector<1x32xf32>
    %c62_i32_84 = arith.constant 62 : i32
    %244 = vector.broadcast %c62_i32_84 : i32 to vector<124x32xi32>
    %245 = arith.cmpi sge, %131, %244 : vector<124x32xi32>
    %c92_i32 = arith.constant 92 : i32
    %246 = vector.broadcast %c92_i32 : i32 to vector<124x32xi32>
    %247 = arith.cmpi slt, %131, %246 : vector<124x32xi32>
    %248 = arith.andi %245, %247 : vector<124x32xi1>
    %cst_85 = arith.constant 0.000000e+00 : f32
    %249 = vector.broadcast %cst_85 : f32 to vector<124x32xf32>
    %250 = arith.select %248, %225, %249 : vector<124x32xi1>, vector<124x32xf32>
    %cst_86 = arith.constant dense<0xFF800000> : vector<32xf32>
    %251 = vector.multi_reduction <maximumf>, %250, %cst_86 [0] : vector<124x32xf32> to vector<32xf32>
    %252 = vector.shape_cast %251 : vector<32xf32> to vector<1x32xf32>
    %c92_i32_87 = arith.constant 92 : i32
    %253 = vector.broadcast %c92_i32_87 : i32 to vector<124x32xi32>
    %254 = arith.cmpi sge, %131, %253 : vector<124x32xi32>
    %c122_i32_88 = arith.constant 122 : i32
    %255 = vector.broadcast %c122_i32_88 : i32 to vector<124x32xi32>
    %256 = arith.cmpi slt, %131, %255 : vector<124x32xi32>
    %257 = arith.andi %254, %256 : vector<124x32xi1>
    %cst_89 = arith.constant 0.000000e+00 : f32
    %258 = vector.broadcast %cst_89 : f32 to vector<124x32xf32>
    %259 = arith.select %257, %225, %258 : vector<124x32xi1>, vector<124x32xf32>
    %cst_90 = arith.constant dense<0xFF800000> : vector<32xf32>
    %260 = vector.multi_reduction <maximumf>, %259, %cst_90 [0] : vector<124x32xf32> to vector<32xf32>
    %261 = vector.shape_cast %260 : vector<32xf32> to vector<1x32xf32>
    %262 = tpu.iota {dimensions = array<i32: 0>} : vector<64x32xi32>
    %c0_i32_91 = arith.constant 0 : i32
    %263 = vector.broadcast %c0_i32_91 : i32 to vector<64x32xi32>
    %264 = arith.cmpi ne, %262, %263 : vector<64x32xi32>
    %c31_i32 = arith.constant 31 : i32
    %265 = vector.broadcast %c31_i32 : i32 to vector<64x32xi32>
    %266 = arith.cmpi ne, %262, %265 : vector<64x32xi32>
    %c30_i32_92 = arith.constant 30 : i32
    %267 = vector.broadcast %c30_i32_92 : i32 to vector<64x32xi32>
    %268 = arith.cmpi ne, %262, %267 : vector<64x32xi32>
    %c31_i32_93 = arith.constant 31 : i32
    %269 = vector.broadcast %c31_i32_93 : i32 to vector<64x32xi32>
    %270 = arith.cmpi ne, %262, %269 : vector<64x32xi32>
    %c32_i32 = arith.constant 32 : i32
    %271 = vector.broadcast %c32_i32 : i32 to vector<64x32xi32>
    %272 = arith.cmpi ne, %262, %271 : vector<64x32xi32>
    %c63_i32 = arith.constant 63 : i32
    %273 = vector.broadcast %c63_i32 : i32 to vector<64x32xi32>
    %274 = arith.cmpi ne, %262, %273 : vector<64x32xi32>
    %c62_i32_94 = arith.constant 62 : i32
    %275 = vector.broadcast %c62_i32_94 : i32 to vector<64x32xi32>
    %276 = arith.cmpi ne, %262, %275 : vector<64x32xi32>
    %c63_i32_95 = arith.constant 63 : i32
    %277 = vector.broadcast %c63_i32_95 : i32 to vector<64x32xi32>
    %278 = arith.cmpi ne, %262, %277 : vector<64x32xi32>
    %279 = arith.andi %264, %266 : vector<64x32xi1>
    %280 = arith.andi %279, %272 : vector<64x32xi1>
    %281 = arith.andi %280, %274 : vector<64x32xi1>
    %282 = arith.andi %268, %270 : vector<64x32xi1>
    %283 = arith.andi %282, %276 : vector<64x32xi1>
    %284 = arith.andi %283, %278 : vector<64x32xi1>
    %c0_96 = arith.constant 0 : index
    %c0_97 = arith.constant 0 : index
    %285 = vector.load %arg4[%c0_96, %c0_97] : memref<64x101xbf16, #tpu.memory_space<vmem>>, vector<64x101xbf16>
    %c0_98 = arith.constant 0 : index
    %c0_99 = arith.constant 0 : index
    %286 = vector.load %arg5[%c0_98, %c0_99] : memref<101x32xbf16, #tpu.memory_space<vmem>>, vector<101x32xbf16>
    %cst_100 = arith.constant dense<0.000000e+00> : vector<64x32xf32>
    %287 = tpu.matmul %285, %286, %cst_100 {dimension_numbers = #tpu.dot_dimension_numbers<[1], [0], [0], [1], [0, 0, 1, 1], [], []>} : vector<64x101xbf16>, vector<101x32xbf16>, vector<64x32xf32> -> vector<64x32xf32>
    %c8 = arith.constant 8 : index
    %c0_101 = arith.constant 0 : index
    %288 = vector.load %arg6[%c8, %c0_101] : memref<12x32xf32, #tpu.memory_space<vmem>>, vector<1x32xf32>
    %c9 = arith.constant 9 : index
    %c0_102 = arith.constant 0 : index
    %289 = vector.load %arg6[%c9, %c0_102] : memref<12x32xf32, #tpu.memory_space<vmem>>, vector<1x32xf32>
    %c10 = arith.constant 10 : index
    %c0_103 = arith.constant 0 : index
    %290 = vector.load %arg6[%c10, %c0_103] : memref<12x32xf32, #tpu.memory_space<vmem>>, vector<1x32xf32>
    %c11 = arith.constant 11 : index
    %c0_104 = arith.constant 0 : index
    %291 = vector.load %arg6[%c11, %c0_104] : memref<12x32xf32, #tpu.memory_space<vmem>>, vector<1x32xf32>
    %cst_105 = arith.constant 0.000000e+00 : f32
    %292 = vector.broadcast %cst_105 : f32 to vector<64x32xf32>
    %293 = arith.select %281, %287, %292 : vector<64x32xi1>, vector<64x32xf32>
    %cst_106 = arith.constant dense<0.000000e+00> : vector<32xf32>
    %294 = vector.multi_reduction <add>, %293, %cst_106 [0] : vector<64x32xf32> to vector<32xf32>
    %295 = vector.shape_cast %294 : vector<32xf32> to vector<1x32xf32>
    %cst_107 = arith.constant 6.000000e+01 : f32
    %296 = vector.broadcast %cst_107 : f32 to vector<1x32xf32>
    %297 = arith.divf %295, %296 : vector<1x32xf32>
    %298 = vector.broadcast %297 : vector<1x32xf32> to vector<64x32xf32>
    %299 = arith.subf %287, %298 : vector<64x32xf32>
    %300 = arith.mulf %299, %299 : vector<64x32xf32>
    %cst_108 = arith.constant 0.000000e+00 : f32
    %301 = vector.broadcast %cst_108 : f32 to vector<64x32xf32>
    %302 = arith.select %281, %300, %301 : vector<64x32xi1>, vector<64x32xf32>
    %cst_109 = arith.constant dense<0.000000e+00> : vector<32xf32>
    %303 = vector.multi_reduction <add>, %302, %cst_109 [0] : vector<64x32xf32> to vector<32xf32>
    %304 = vector.shape_cast %303 : vector<32xf32> to vector<1x32xf32>
    %cst_110 = arith.constant 6.000000e+01 : f32
    %305 = vector.broadcast %cst_110 : f32 to vector<1x32xf32>
    %306 = arith.divf %304, %305 : vector<1x32xf32>
    %cst_111 = arith.constant 9.99999974E-6 : f32
    %307 = vector.broadcast %cst_111 : f32 to vector<1x32xf32>
    %308 = arith.addf %306, %307 : vector<1x32xf32>
    %309 = math.rsqrt %308 : vector<1x32xf32>
    %310 = arith.mulf %288, %309 : vector<1x32xf32>
    %311 = arith.mulf %297, %310 : vector<1x32xf32>
    %312 = arith.subf %289, %311 : vector<1x32xf32>
    %313 = vector.broadcast %310 : vector<1x32xf32> to vector<64x32xf32>
    %314 = arith.mulf %287, %313 : vector<64x32xf32>
    %315 = vector.broadcast %312 : vector<1x32xf32> to vector<64x32xf32>
    %316 = arith.addf %314, %315 : vector<64x32xf32>
    %cst_112 = arith.constant 0.000000e+00 : f32
    %317 = vector.broadcast %cst_112 : f32 to vector<64x32xf32>
    %318 = arith.maximumf %316, %317 : vector<64x32xf32>
    %cst_113 = arith.constant 0.000000e+00 : f32
    %319 = vector.broadcast %cst_113 : f32 to vector<64x32xf32>
    %320 = arith.select %281, %318, %319 : vector<64x32xi1>, vector<64x32xf32>
    %cst_114 = arith.constant 0.000000e+00 : f32
    %321 = vector.broadcast %cst_114 : f32 to vector<1x32xf32>
    %322 = vector.extract_strided_slice %320 {offsets = [1, 0], sizes = [63, 32], strides = [1, 1]} : vector<64x32xf32> to vector<63x32xf32>
    %323 = tpu.concatenate %322, %321 in 0 : vector<63x32xf32>, vector<1x32xf32> -> vector<64x32xf32>
    %324 = vector.extract_strided_slice %320 {offsets = [2, 0], sizes = [62, 32], strides = [1, 1]} : vector<64x32xf32> to vector<62x32xf32>
    %325 = tpu.concatenate %324, %321, %321 in 0 : vector<62x32xf32>, vector<1x32xf32>, vector<1x32xf32> -> vector<64x32xf32>
    %326 = tpu.concatenate %320, %323, %325 in 1 : vector<64x32xf32>, vector<64x32xf32>, vector<64x32xf32> -> vector<64x96xf32>
    %327 = arith.truncf %326 : vector<64x96xf32> to vector<64x96xbf16>
    %c192 = arith.constant 192 : index
    %c0_115 = arith.constant 0 : index
    %328 = vector.load %arg7[%c192, %c0_115] : memref<288x32xbf16, #tpu.memory_space<vmem>>, vector<96x32xbf16>
    %cst_116 = arith.constant dense<0.000000e+00> : vector<64x32xf32>
    %329 = tpu.matmul %327, %328, %cst_116 {dimension_numbers = #tpu.dot_dimension_numbers<[1], [0], [0], [1], [0, 0, 1, 1], [], []>} : vector<64x96xbf16>, vector<96x32xbf16>, vector<64x32xf32> -> vector<64x32xf32>
    %cst_117 = arith.constant 0.000000e+00 : f32
    %330 = vector.broadcast %cst_117 : f32 to vector<64x32xf32>
    %331 = arith.select %284, %329, %330 : vector<64x32xi1>, vector<64x32xf32>
    %cst_118 = arith.constant dense<0.000000e+00> : vector<32xf32>
    %332 = vector.multi_reduction <add>, %331, %cst_118 [0] : vector<64x32xf32> to vector<32xf32>
    %333 = vector.shape_cast %332 : vector<32xf32> to vector<1x32xf32>
    %cst_119 = arith.constant 6.000000e+01 : f32
    %334 = vector.broadcast %cst_119 : f32 to vector<1x32xf32>
    %335 = arith.divf %333, %334 : vector<1x32xf32>
    %336 = vector.broadcast %335 : vector<1x32xf32> to vector<64x32xf32>
    %337 = arith.subf %329, %336 : vector<64x32xf32>
    %338 = arith.mulf %337, %337 : vector<64x32xf32>
    %cst_120 = arith.constant 0.000000e+00 : f32
    %339 = vector.broadcast %cst_120 : f32 to vector<64x32xf32>
    %340 = arith.select %284, %338, %339 : vector<64x32xi1>, vector<64x32xf32>
    %cst_121 = arith.constant dense<0.000000e+00> : vector<32xf32>
    %341 = vector.multi_reduction <add>, %340, %cst_121 [0] : vector<64x32xf32> to vector<32xf32>
    %342 = vector.shape_cast %341 : vector<32xf32> to vector<1x32xf32>
    %cst_122 = arith.constant 6.000000e+01 : f32
    %343 = vector.broadcast %cst_122 : f32 to vector<1x32xf32>
    %344 = arith.divf %342, %343 : vector<1x32xf32>
    %cst_123 = arith.constant 9.99999974E-6 : f32
    %345 = vector.broadcast %cst_123 : f32 to vector<1x32xf32>
    %346 = arith.addf %344, %345 : vector<1x32xf32>
    %347 = math.rsqrt %346 : vector<1x32xf32>
    %348 = arith.mulf %290, %347 : vector<1x32xf32>
    %349 = arith.mulf %335, %348 : vector<1x32xf32>
    %350 = arith.subf %291, %349 : vector<1x32xf32>
    %351 = vector.broadcast %348 : vector<1x32xf32> to vector<64x32xf32>
    %352 = arith.mulf %329, %351 : vector<64x32xf32>
    %353 = vector.broadcast %350 : vector<1x32xf32> to vector<64x32xf32>
    %354 = arith.addf %352, %353 : vector<64x32xf32>
    %cst_124 = arith.constant 0.000000e+00 : f32
    %355 = vector.broadcast %cst_124 : f32 to vector<64x32xf32>
    %356 = arith.maximumf %354, %355 : vector<64x32xf32>
    %c0_i32_125 = arith.constant 0 : i32
    %357 = vector.broadcast %c0_i32_125 : i32 to vector<64x32xi32>
    %358 = arith.cmpi sge, %262, %357 : vector<64x32xi32>
    %c15_i32 = arith.constant 15 : i32
    %359 = vector.broadcast %c15_i32 : i32 to vector<64x32xi32>
    %360 = arith.cmpi slt, %262, %359 : vector<64x32xi32>
    %361 = arith.andi %358, %360 : vector<64x32xi1>
    %cst_126 = arith.constant 0.000000e+00 : f32
    %362 = vector.broadcast %cst_126 : f32 to vector<64x32xf32>
    %363 = arith.select %361, %356, %362 : vector<64x32xi1>, vector<64x32xf32>
    %cst_127 = arith.constant dense<0xFF800000> : vector<32xf32>
    %364 = vector.multi_reduction <maximumf>, %363, %cst_127 [0] : vector<64x32xf32> to vector<32xf32>
    %365 = vector.shape_cast %364 : vector<32xf32> to vector<1x32xf32>
    %c15_i32_128 = arith.constant 15 : i32
    %366 = vector.broadcast %c15_i32_128 : i32 to vector<64x32xi32>
    %367 = arith.cmpi sge, %262, %366 : vector<64x32xi32>
    %c30_i32_129 = arith.constant 30 : i32
    %368 = vector.broadcast %c30_i32_129 : i32 to vector<64x32xi32>
    %369 = arith.cmpi slt, %262, %368 : vector<64x32xi32>
    %370 = arith.andi %367, %369 : vector<64x32xi1>
    %cst_130 = arith.constant 0.000000e+00 : f32
    %371 = vector.broadcast %cst_130 : f32 to vector<64x32xf32>
    %372 = arith.select %370, %356, %371 : vector<64x32xi1>, vector<64x32xf32>
    %cst_131 = arith.constant dense<0xFF800000> : vector<32xf32>
    %373 = vector.multi_reduction <maximumf>, %372, %cst_131 [0] : vector<64x32xf32> to vector<32xf32>
    %374 = vector.shape_cast %373 : vector<32xf32> to vector<1x32xf32>
    %c32_i32_132 = arith.constant 32 : i32
    %375 = vector.broadcast %c32_i32_132 : i32 to vector<64x32xi32>
    %376 = arith.cmpi sge, %262, %375 : vector<64x32xi32>
    %c47_i32 = arith.constant 47 : i32
    %377 = vector.broadcast %c47_i32 : i32 to vector<64x32xi32>
    %378 = arith.cmpi slt, %262, %377 : vector<64x32xi32>
    %379 = arith.andi %376, %378 : vector<64x32xi1>
    %cst_133 = arith.constant 0.000000e+00 : f32
    %380 = vector.broadcast %cst_133 : f32 to vector<64x32xf32>
    %381 = arith.select %379, %356, %380 : vector<64x32xi1>, vector<64x32xf32>
    %cst_134 = arith.constant dense<0xFF800000> : vector<32xf32>
    %382 = vector.multi_reduction <maximumf>, %381, %cst_134 [0] : vector<64x32xf32> to vector<32xf32>
    %383 = vector.shape_cast %382 : vector<32xf32> to vector<1x32xf32>
    %c47_i32_135 = arith.constant 47 : i32
    %384 = vector.broadcast %c47_i32_135 : i32 to vector<64x32xi32>
    %385 = arith.cmpi sge, %262, %384 : vector<64x32xi32>
    %c62_i32_136 = arith.constant 62 : i32
    %386 = vector.broadcast %c62_i32_136 : i32 to vector<64x32xi32>
    %387 = arith.cmpi slt, %262, %386 : vector<64x32xi32>
    %388 = arith.andi %385, %387 : vector<64x32xi1>
    %cst_137 = arith.constant 0.000000e+00 : f32
    %389 = vector.broadcast %cst_137 : f32 to vector<64x32xf32>
    %390 = arith.select %388, %356, %389 : vector<64x32xi1>, vector<64x32xf32>
    %cst_138 = arith.constant dense<0xFF800000> : vector<32xf32>
    %391 = vector.multi_reduction <maximumf>, %390, %cst_138 [0] : vector<64x32xf32> to vector<32xf32>
    %392 = vector.shape_cast %391 : vector<32xf32> to vector<1x32xf32>
    %393 = tpu.concatenate %103, %234, %365, %112, %243, %374 in 1 : vector<1x32xf32>, vector<1x32xf32>, vector<1x32xf32>, vector<1x32xf32>, vector<1x32xf32>, vector<1x32xf32> -> vector<1x192xf32>
    %394 = tpu.concatenate %121, %252, %383, %130, %261, %392 in 1 : vector<1x32xf32>, vector<1x32xf32>, vector<1x32xf32>, vector<1x32xf32>, vector<1x32xf32>, vector<1x32xf32> -> vector<1x192xf32>
    %395 = tpu.concatenate %393, %394 in 0 : vector<1x192xf32>, vector<1x192xf32> -> vector<2x192xf32>
    %396 = arith.truncf %395 : vector<2x192xf32> to vector<2x192xbf16>
    %c0_139 = arith.constant 0 : index
    %c0_140 = arith.constant 0 : index
    %397 = vector.load %arg8[%c0_139, %c0_140] : memref<192x1536xbf16, #tpu.memory_space<vmem>>, vector<192x1536xbf16>
    %cst_141 = arith.constant dense<0.000000e+00> : vector<2x1536xf32>
    %398 = tpu.matmul %396, %397, %cst_141 {dimension_numbers = #tpu.dot_dimension_numbers<[1], [0], [0], [1], [0, 0, 1, 1], [], []>} : vector<2x192xbf16>, vector<192x1536xbf16>, vector<2x1536xf32> -> vector<2x1536xf32>
    %c0_142 = arith.constant 0 : index
    %c0_143 = arith.constant 0 : index
    %399 = vector.load %arg9[%c0_142, %c0_143] : memref<2x1536xf32, #tpu.memory_space<vmem>>, vector<2x1536xf32>
    tpu.vector_store %arg9[%c0_142, %c0_143], %398 {strides = array<i32>} : memref<2x1536xf32, #tpu.memory_space<vmem>>, vector<2x1536xf32>,
    return
  }
}

module attributes {stable_mosaic.version = 11 : i64} {
  func.func @_tail_kernel(%arg0: memref<96x32xbf16, #tpu.memory_space<vmem>>, %arg1: memref<32x1280xbf16, #tpu.memory_space<vmem>>, %arg2: memref<1x1280xf32, #tpu.memory_space<vmem>>, %arg3: memref<1280x10xbf16, #tpu.memory_space<vmem>>, %arg4: memref<1x10xf32, #tpu.memory_space<vmem>>, %arg5: memref<2x10xf32, #tpu.memory_space<vmem>>) attributes {dimension_semantics = [], scalar_prefetch = 0 : i64, scratch_operands = 0 : i64, tpu.core_type = #tpu.core_type<tc>} {
    %c0 = arith.constant 0 : index
    %c0_0 = arith.constant 0 : index
    %0 = vector.load %arg0[%c0, %c0_0] : memref<96x32xbf16, #tpu.memory_space<vmem>>, vector<96x32xbf16>
    %c0_1 = arith.constant 0 : index
    %c0_2 = arith.constant 0 : index
    %1 = vector.load %arg1[%c0_1, %c0_2] : memref<32x1280xbf16, #tpu.memory_space<vmem>>, vector<32x1280xbf16>
    %cst = arith.constant dense<0.000000e+00> : vector<96x1280xf32>
    %2 = tpu.matmul %0, %1, %cst {dimension_numbers = #tpu.dot_dimension_numbers<[1], [0], [0], [1], [0, 0, 1, 1], [], []>} : vector<96x32xbf16>, vector<32x1280xbf16>, vector<96x1280xf32> -> vector<96x1280xf32>
    %c0_3 = arith.constant 0 : index
    %c0_4 = arith.constant 0 : index
    %3 = vector.load %arg2[%c0_3, %c0_4] : memref<1x1280xf32, #tpu.memory_space<vmem>>, vector<1x1280xf32>
    %4 = vector.broadcast %3 : vector<1x1280xf32> to vector<96x1280xf32>
    %5 = arith.addf %2, %4 : vector<96x1280xf32>
    %cst_5 = arith.constant 0.000000e+00 : f32
    %6 = vector.broadcast %cst_5 : f32 to vector<96x1280xf32>
    %7 = arith.maximumf %5, %6 : vector<96x1280xf32>
    %8 = tpu.iota {dimensions = array<i32: 0>} : vector<2x96xi32>
    %9 = tpu.iota {dimensions = array<i32: 1>} : vector<2x96xi32>
    %c48_i32 = arith.constant 48 : i32
    %10 = vector.broadcast %c48_i32 : i32 to vector<2x96xi32>
    %11 = arith.muli %8, %10 : vector<2x96xi32>
    %12 = arith.cmpi sge, %9, %11 : vector<2x96xi32>
    %c1_i32 = arith.constant 1 : i32
    %13 = vector.broadcast %c1_i32 : i32 to vector<2x96xi32>
    %14 = arith.addi %8, %13 : vector<2x96xi32>
    %c48_i32_6 = arith.constant 48 : i32
    %15 = vector.broadcast %c48_i32_6 : i32 to vector<2x96xi32>
    %16 = arith.muli %14, %15 : vector<2x96xi32>
    %17 = arith.cmpi slt, %9, %16 : vector<2x96xi32>
    %18 = arith.andi %12, %17 : vector<2x96xi1>
    %19 = arith.extui %18 : vector<2x96xi1> to vector<2x96xi32>
    %20 = arith.sitofp %19 : vector<2x96xi32> to vector<2x96xf32>
    %21 = arith.truncf %20 : vector<2x96xf32> to vector<2x96xbf16>
    %22 = arith.truncf %7 : vector<96x1280xf32> to vector<96x1280xbf16>
    %cst_7 = arith.constant dense<0.000000e+00> : vector<2x1280xf32>
    %23 = tpu.matmul %21, %22, %cst_7 {dimension_numbers = #tpu.dot_dimension_numbers<[1], [0], [0], [1], [0, 0, 1, 1], [], []>} : vector<2x96xbf16>, vector<96x1280xbf16>, vector<2x1280xf32> -> vector<2x1280xf32>
    %cst_8 = arith.constant 0.020833334 : f32
    %24 = vector.broadcast %cst_8 : f32 to vector<2x1280xf32>
    %25 = arith.mulf %23, %24 : vector<2x1280xf32>
    %26 = arith.truncf %25 : vector<2x1280xf32> to vector<2x1280xbf16>
    %c0_9 = arith.constant 0 : index
    %c0_10 = arith.constant 0 : index
    %27 = vector.load %arg3[%c0_9, %c0_10] : memref<1280x10xbf16, #tpu.memory_space<vmem>>, vector<1280x10xbf16>
    %cst_11 = arith.constant dense<0.000000e+00> : vector<2x10xf32>
    %28 = tpu.matmul %26, %27, %cst_11 {dimension_numbers = #tpu.dot_dimension_numbers<[1], [0], [0], [1], [0, 0, 1, 1], [], []>} : vector<2x1280xbf16>, vector<1280x10xbf16>, vector<2x10xf32> -> vector<2x10xf32>
    %c0_12 = arith.constant 0 : index
    %c0_13 = arith.constant 0 : index
    %29 = vector.load %arg4[%c0_12, %c0_13] : memref<1x10xf32, #tpu.memory_space<vmem>>, vector<1x10xf32>
    %30 = vector.broadcast %29 : vector<1x10xf32> to vector<2x10xf32>
    %31 = arith.addf %28, %30 : vector<2x10xf32>
    %c0_14 = arith.constant 0 : index
    %c0_15 = arith.constant 0 : index
    %32 = vector.load %arg5[%c0_14, %c0_15] : memref<2x10xf32, #tpu.memory_space<vmem>>, vector<2x10xf32>
    tpu.vector_store %arg5[%c0_14, %c0_15], %31 {strides = array<i32>} : memref<2x10xf32, #tpu.memory_space<vmem>>, vector<2x10xf32>,
    return
  }
}

</mosaic_0001>

<llo_original>
// kernel: mto_wave_cnn_forward.3
$region0: #{mto_wave_cnn_forward.3}
  #allocation0 [shape = 'u32[]', space=smem, size = 0x4, offset = 0x4, fixed_abs, tag = 'smem constant byte address 0x4 - core index']
  #allocation1 [shape = 'u32[72,128]{1,0:T(1,128)}', space=vmem, size = 0x9000, scoped, tag = 'internal scratch']
  %s0 = inlined_call_operand.vmem [shape: bf16[96,32], index: 0, kind: input, shape index: {}]
  %s1 = inlined_call_operand.vmem [shape: bf16[32,1280], index: 1, kind: input, shape index: {}]
  %s2 = inlined_call_operand.vmem [shape: f32[1,1280], index: 2, kind: input, shape index: {}]
  %s3 = inlined_call_operand.vmem [shape: bf16[1280,10], index: 3, kind: input, shape index: {}]
  %s4 = inlined_call_operand.vmem [shape: f32[1,10], index: 4, kind: input, shape index: {}]
  %s5 = inlined_call_operand.hbm [shape: f32[2,10], index: 5, kind: output, shape index: {}]
  %s6 = sld [smem:[#allocation0]]
  $region30: #{mto_wave_cnn_forward.3} parent=0
    _
  %s8 = ssub.s32 1, %s6
  %s9 = scalar_select 0, %s8, %s6
  $region1: #{mto_wave_cnn_forward.3} parent=0
    #allocation2 [shape = 'u8[1024]{0}', space=vmem, size = 0x400, scoped, tag = 'output window, operand 0, single buffered']
    #allocation3 [shape = 's32[1]{0}', space=sflag, size = 0x4, scoped, tag = 'scoped memory for mto_wave_cnn_forward.3']
    %10 = vsyncpa [#allocation3], 0
    // Predicated region
    $region2: #{mto_wave_cnn_forward.3} parent=1 // pred_check
      _
    $region3: #{mto_wave_cnn_forward.3} parent=1 // pred_check_branch
      %12 = sbr.rel (0) target = $region5
    $region4: #{mto_wave_cnn_forward.3} parent=1 // pred_region
      _
    $region5: #{mto_wave_cnn_forward.3} parent=1 // pred_fallthru
      _
    // Predicated region
    $region6: #{mto_wave_cnn_forward.3} parent=1 // pred_check
      _
    $region7: #{mto_wave_cnn_forward.3} parent=1 // pred_check_branch
      %14 = sbr.rel (0) target = $region9
    $region8: #{mto_wave_cnn_forward.3} parent=1 // pred_region
      _
    $region9: #{mto_wave_cnn_forward.3} parent=1 // pred_fallthru
      _
    // Predicated region
    $region10: #{mto_wave_cnn_forward.3} parent=1 // pred_check
      _
    $region11: #{mto_wave_cnn_forward.3} parent=1 // pred_check_branch
      %16 = sbr.rel (0) target = $region13
    $region12: #{mto_wave_cnn_forward.3} parent=1 // pred_region
      _
    $region13: #{mto_wave_cnn_forward.3} parent=1 // pred_fallthru
      _
    // Predicated region
    $region14: #{mto_wave_cnn_forward.3} parent=1 // pred_check
      _
    $region15: #{mto_wave_cnn_forward.3} parent=1 // pred_check_branch
      %18 = sbr.rel (0) target = $region17
    $region16: #{mto_wave_cnn_forward.3} parent=1 // pred_region
      _
    $region17: #{mto_wave_cnn_forward.3} parent=1 // pred_fallthru
      _
    // Predicated region
    $region18: #{mto_wave_cnn_forward.3} parent=1 // pred_check
      _
    $region19: #{mto_wave_cnn_forward.3} parent=1 // pred_check_branch
      %20 = sbr.rel (0) target = $region21
    $region20: #{mto_wave_cnn_forward.3} parent=1 // pred_region
      _
    $region21: #{mto_wave_cnn_forward.3} parent=1 // pred_fallthru
      _
    %v22 = vld [vmem:[%s0] sm:$0xf]
    %v23 = vld [vmem:[%s0 + $0x4] sm:$0xf]
    %v24 = vld [vmem:[%s0 + $0x8] sm:$0xf]
    %v25 = vld [vmem:[%s0 + $0xc] sm:$0xf]
    %v26 = vld [vmem:[%s0 + $0x10] sm:$0xf]
    %v27 = vld [vmem:[%s0 + $0x14] sm:$0xf]
    %v28 = vld [vmem:[%s0 + $0x18] sm:$0xf]
    %v29 = vld [vmem:[%s0 + $0x1c] sm:$0xf]
    %v30 = vld [vmem:[%s0 + $0x20] sm:$0xf]
    %v31 = vld [vmem:[%s0 + $0x24] sm:$0xf]
    %v32 = vld [vmem:[%s0 + $0x28] sm:$0xf]
    %v33 = vld [vmem:[%s0 + $0x2c] sm:$0xf]
    %v34 = vld [vmem:[%s1] sm:$0xff]
    %v35 = vld [vmem:[%s1 + $0x8] sm:$0xff]
    %v36 = vld [vmem:[%s1 + $0x10] sm:$0xff]
    %v37 = vld [vmem:[%s1 + $0x18] sm:$0xff]
    %v38 = vld [vmem:[%s1 + $0x20] sm:$0xff]
    %v39 = vld [vmem:[%s1 + $0x28] sm:$0xff]
    %v40 = vld [vmem:[%s1 + $0x30] sm:$0xff]
    %v41 = vld [vmem:[%s1 + $0x38] sm:$0xff]
    %v42 = vld [vmem:[%s1 + $0x40] sm:$0xff]
    %v43 = vld [vmem:[%s1 + $0x48] sm:$0xff]
    %v44 = vld [vmem:[%s1 + $0x50] sm:$0xff]
    %v45 = vld [vmem:[%s1 + $0x58] sm:$0xff]
    %v46 = vld [vmem:[%s1 + $0x60] sm:$0xff]
    %v47 = vld [vmem:[%s1 + $0x68] sm:$0xff]
    %v48 = vld [vmem:[%s1 + $0x70] sm:$0xff]
    %v49 = vld [vmem:[%s1 + $0x78] sm:$0xff]
    %v50 = vld [vmem:[%s1 + $0x80] sm:$0xff]
    %v51 = vld [vmem:[%s1 + $0x88] sm:$0xff]
    %v52 = vld [vmem:[%s1 + $0x90] sm:$0xff]
    %v53 = vld [vmem:[%s1 + $0x98] sm:$0xff]
    %v54 = vld [vmem:[%s2] sm:$0xff]
    %v55 = vld [vmem:[%s2 + $0x8] sm:$0x3]
    %v58 = vperm.slane %v54, 0
    %v59 = vperm.slane %v54, 1
    %v60 = vperm.slane %v54, 2
    %v61 = vperm.slane %v54, 3
    %v62 = vperm.slane %v54, 4
    %v63 = vperm.slane %v54, 5
    %v64 = vperm.slane %v54, 6
    %v65 = vperm.slane %v54, 7
    %v66 = vperm.slane %v55, 0
    %v67 = vperm.slane %v55, 1
    %v90 = vunpack.c.l.b16 %v22
    %v91 = vunpack.c.l.b16 %v23
    %v92 = vunpack.c.l.b16 %v24
    %v93 = vunpack.c.l.b16 %v25
    %v94 = vunpack.c.l.b16 %v26
    %v95 = vunpack.c.l.b16 %v27
    %v96 = vunpack.c.l.b16 %v28
    %v97 = vunpack.c.l.b16 %v29
    %v98 = vunpack.c.l.b16 %v30
    %v99 = vunpack.c.l.b16 %v31
    %v100 = vunpack.c.l.b16 %v32
    %v101 = vunpack.c.l.b16 %v33
    %v102 = vpack.c.b16 %v91, %v90
    %v103 = vpack.c.b16 %v93, %v92
    %v104 = vpack.c.b16 %v95, %v94
    %v105 = vpack.c.b16 %v97, %v96
    %v106 = vpack.c.b16 %v99, %v98
    %v107 = vpack.c.b16 %v101, %v100
    %v128 = vunpack.c.l.b16 %v34
    %v129 = vunpack.c.h.b16 %v34
    %v130 = vunpack.c.l.b16 %v35
    %v131 = vunpack.c.h.b16 %v35
    %v132 = vunpack.c.l.b16 %v36
    %v133 = vunpack.c.h.b16 %v36
    %v134 = vunpack.c.l.b16 %v37
    %v135 = vunpack.c.h.b16 %v37
    %v136 = vunpack.c.l.b16 %v38
    %v137 = vunpack.c.h.b16 %v38
    %v138 = vunpack.c.l.b16 %v39
    %v139 = vunpack.c.h.b16 %v39
    %v140 = vunpack.c.l.b16 %v40
    %v141 = vunpack.c.h.b16 %v40
    %v142 = vunpack.c.l.b16 %v41
    %v143 = vunpack.c.h.b16 %v41
    %v144 = vunpack.c.l.b16 %v42
    %v145 = vunpack.c.h.b16 %v42
    %v146 = vunpack.c.l.b16 %v43
    %v147 = vunpack.c.h.b16 %v43
    %v148 = vunpack.c.l.b16 %v44
    %v149 = vunpack.c.h.b16 %v44
    %v150 = vunpack.c.l.b16 %v45
    %v151 = vunpack.c.h.b16 %v45
    %v152 = vunpack.c.l.b16 %v46
    %v153 = vunpack.c.h.b16 %v46
    %v154 = vunpack.c.l.b16 %v47
    %v155 = vunpack.c.h.b16 %v47
    %v156 = vunpack.c.l.b16 %v48
    %v157 = vunpack.c.h.b16 %v48
    %v158 = vunpack.c.l.b16 %v49
    %v159 = vunpack.c.h.b16 %v49
    %v160 = vunpack.c.l.b16 %v50
    %v161 = vunpack.c.h.b16 %v50
    %v162 = vunpack.c.l.b16 %v51
    %v163 = vunpack.c.h.b16 %v51
    %v164 = vunpack.c.l.b16 %v52
    %v165 = vunpack.c.h.b16 %v52
    %v166 = vunpack.c.l.b16 %v53
    %v167 = vunpack.c.h.b16 %v53
    %v168 = vpack.c.b16 %v138, %v128
    %v169 = vpack.c.b16 %v139, %v129
    %v170 = vpack.c.b16 %v140, %v130
    %v171 = vpack.c.b16 %v141, %v131
    %v172 = vpack.c.b16 %v142, %v132
    %v173 = vpack.c.b16 %v143, %v133
    %v174 = vpack.c.b16 %v144, %v134
    %v175 = vpack.c.b16 %v145, %v135
    %v176 = vpack.c.b16 %v146, %v136
    %v177 = vpack.c.b16 %v147, %v137
    %v178 = vpack.c.b16 %v158, %v148
    %v179 = vpack.c.b16 %v159, %v149
    %v180 = vpack.c.b16 %v160, %v150
    %v181 = vpack.c.b16 %v161, %v151
    %v182 = vpack.c.b16 %v162, %v152
    %v183 = vpack.c.b16 %v163, %v153
    %v184 = vpack.c.b16 %v164, %v154
    %v185 = vpack.c.b16 %v165, %v155
    %v186 = vpack.c.b16 %v166, %v156
    %v187 = vpack.c.b16 %v167, %v157
    %vm208 = vcmask 261120
    %v210 = vsel %vm208, %v102, 0
    %v213 = vsel %vm208, %v103, 0
    %v216 = vsel %vm208, %v104, 0
    %v219 = vsel %vm208, %v105, 0
    %v222 = vsel %vm208, %v106, 0
    %v225 = vsel %vm208, %v107, 0
    %227 = vmatpush.bf16.msra.mxu0 0
    %228 = vmatpush.bf16.msra.mxu0 0
    %229 = vmatpush.bf16.msra.mxu0 0
    %230 = vmatpush.bf16.msra.mxu0 0
    %231 = vmatpush.bf16.msra.mxu0 0
    %232 = vmatpush.bf16.msra.mxu0 0
    %233 = vmatpush.bf16.msra.mxu0 %v178
    %234 = vmatpush.bf16.msra.mxu0 %v168
    %235 = vmatmul.bf16.gmra.mxu0 %v210
    %v236 = vpop.f32.mrf.mxu0
    %v237 = vadd.f32 %v58, %v236
    %v238 = vpop.f32.mrf.mxu0
    %v239 = vadd.f32 %v58, %v238
    %240 = vmatmul.bf16.gmra.mxu0 %v213
    %v241 = vpop.f32.mrf.mxu0
    %v242 = vadd.f32 %v58, %v241
    %v243 = vpop.f32.mrf.mxu0
    %v244 = vadd.f32 %v58, %v243
    %245 = vmatmul.bf16.gmra.mxu0 %v216
    %v246 = vpop.f32.mrf.mxu0
    %v247 = vadd.f32 %v58, %v246
    %v248 = vpop.f32.mrf.mxu0
    %v249 = vadd.f32 %v58, %v248
    %250 = vmatmul.bf16.gmra.mxu0 %v219
    %v251 = vpop.f32.mrf.mxu0
    %v252 = vadd.f32 %v58, %v251
    %v253 = vpop.f32.mrf.mxu0
    %v254 = vadd.f32 %v58, %v253
    %255 = vmatmul.bf16.gmra.mxu0 %v222
    %v256 = vpop.f32.mrf.mxu0
    %v257 = vadd.f32 %v58, %v256
    %v258 = vpop.f32.mrf.mxu0
    %v259 = vadd.f32 %v58, %v258
    %260 = vmatmul.bf16.gmra.mxu0 %v225
    %v261 = vpop.f32.mrf.mxu0
    %v262 = vadd.f32 %v58, %v261
    %v263 = vpop.f32.mrf.mxu0
    %v264 = vadd.f32 %v58, %v263
    %265 = vdwg.mxu0
    %266 = vmatpush.bf16.msra.mxu0 0
    %267 = vmatpush.bf16.msra.mxu0 0
    %268 = vmatpush.bf16.msra.mxu0 0
    %269 = vmatpush.bf16.msra.mxu0 0
    %270 = vmatpush.bf16.msra.mxu0 0
    %271 = vmatpush.bf16.msra.mxu0 0
    %272 = vmatpush.bf16.msra.mxu0 %v179
    %273 = vmatpush.bf16.msra.mxu0 %v169
    %274 = vmatmul.bf16.gmra.mxu0 %v210
    %v275 = vpop.f32.mrf.mxu0
    %v276 = vadd.f32 %v59, %v275
    %v277 = vpop.f32.mrf.mxu0
    %v278 = vadd.f32 %v59, %v277
    %279 = vmatmul.bf16.gmra.mxu0 %v213
    %v280 = vpop.f32.mrf.mxu0
    %v281 = vadd.f32 %v59, %v280
    %v282 = vpop.f32.mrf.mxu0
    %v283 = vadd.f32 %v59, %v282
    %284 = vmatmul.bf16.gmra.mxu0 %v216
    %v285 = vpop.f32.mrf.mxu0
    %v286 = vadd.f32 %v59, %v285
    %v287 = vpop.f32.mrf.mxu0
    %v288 = vadd.f32 %v59, %v287
    %289 = vmatmul.bf16.gmra.mxu0 %v219
    %v290 = vpop.f32.mrf.mxu0
    %v291 = vadd.f32 %v59, %v290
    %v292 = vpop.f32.mrf.mxu0
    %v293 = vadd.f32 %v59, %v292
    %294 = vmatmul.bf16.gmra.mxu0 %v222
    %v295 = vpop.f32.mrf.mxu0
    %v296 = vadd.f32 %v59, %v295
    %v297 = vpop.f32.mrf.mxu0
    %v298 = vadd.f32 %v59, %v297
    %299 = vmatmul.bf16.gmra.mxu0 %v225
    %v300 = vpop.f32.mrf.mxu0
    %v301 = vadd.f32 %v59, %v300
    %v302 = vpop.f32.mrf.mxu0
    %v303 = vadd.f32 %v59, %v302
    %304 = vdwg.mxu0
    %305 = vmatpush.bf16.msra.mxu0 0
    %306 = vmatpush.bf16.msra.mxu0 0
    %307 = vmatpush.bf16.msra.mxu0 0
    %308 = vmatpush.bf16.msra.mxu0 0
    %309 = vmatpush.bf16.msra.mxu0 0
    %310 = vmatpush.bf16.msra.mxu0 0
    %311 = vmatpush.bf16.msra.mxu0 %v180
    %312 = vmatpush.bf16.msra.mxu0 %v170
    %313 = vmatmul.bf16.gmra.mxu0 %v210
    %v314 = vpop.f32.mrf.mxu0
    %v315 = vadd.f32 %v60, %v314
    %v316 = vpop.f32.mrf.mxu0
    %v317 = vadd.f32 %v60, %v316
    %318 = vmatmul.bf16.gmra.mxu0 %v213
    %v319 = vpop.f32.mrf.mxu0
    %v320 = vadd.f32 %v60, %v319
    %v321 = vpop.f32.mrf.mxu0
    %v322 = vadd.f32 %v60, %v321
    %323 = vmatmul.bf16.gmra.mxu0 %v216
    %v324 = vpop.f32.mrf.mxu0
    %v325 = vadd.f32 %v60, %v324
    %v326 = vpop.f32.mrf.mxu0
    %v327 = vadd.f32 %v60, %v326
    %328 = vmatmul.bf16.gmra.mxu0 %v219
    %v329 = vpop.f32.mrf.mxu0
    %v330 = vadd.f32 %v60, %v329
    %v331 = vpop.f32.mrf.mxu0
    %v332 = vadd.f32 %v60, %v331
    %333 = vmatmul.bf16.gmra.mxu0 %v222
    %v334 = vpop.f32.mrf.mxu0
    %v335 = vadd.f32 %v60, %v334
    %v336 = vpop.f32.mrf.mxu0
    %v337 = vadd.f32 %v60, %v336
    %338 = vmatmul.bf16.gmra.mxu0 %v225
    %v339 = vpop.f32.mrf.mxu0
    %v340 = vadd.f32 %v60, %v339
    %v341 = vpop.f32.mrf.mxu0
    %v342 = vadd.f32 %v60, %v341
    %343 = vdwg.mxu0
    %344 = vmatpush.bf16.msra.mxu0 0
    %345 = vmatpush.bf16.msra.mxu0 0
    %346 = vmatpush.bf16.msra.mxu0 0
    %347 = vmatpush.bf16.msra.mxu0 0
    %348 = vmatpush.bf16.msra.mxu0 0
    %349 = vmatpush.bf16.msra.mxu0 0
    %350 = vmatpush.bf16.msra.mxu0 %v181
    %351 = vmatpush.bf16.msra.mxu0 %v171
    %352 = vmatmul.bf16.gmra.mxu0 %v210
    %v353 = vpop.f32.mrf.mxu0
    %v354 = vadd.f32 %v61, %v353
    %v355 = vpop.f32.mrf.mxu0
    %v356 = vadd.f32 %v61, %v355
    %357 = vmatmul.bf16.gmra.mxu0 %v213
    %v358 = vpop.f32.mrf.mxu0
    %v359 = vadd.f32 %v61, %v358
    %v360 = vpop.f32.mrf.mxu0
    %v361 = vadd.f32 %v61, %v360
    %362 = vmatmul.bf16.gmra.mxu0 %v216
    %v363 = vpop.f32.mrf.mxu0
    %v364 = vadd.f32 %v61, %v363
    %v365 = vpop.f32.mrf.mxu0
    %v366 = vadd.f32 %v61, %v365
    %367 = vmatmul.bf16.gmra.mxu0 %v219
    %v368 = vpop.f32.mrf.mxu0
    %v369 = vadd.f32 %v61, %v368
    %v370 = vpop.f32.mrf.mxu0
    %v371 = vadd.f32 %v61, %v370
    %372 = vmatmul.bf16.gmra.mxu0 %v222
    %v373 = vpop.f32.mrf.mxu0
    %v374 = vadd.f32 %v61, %v373
    %v375 = vpop.f32.mrf.mxu0
    %v376 = vadd.f32 %v61, %v375
    %377 = vmatmul.bf16.gmra.mxu0 %v225
    %v378 = vpop.f32.mrf.mxu0
    %v379 = vadd.f32 %v61, %v378
    %v380 = vpop.f32.mrf.mxu0
    %v381 = vadd.f32 %v61, %v380
    %382 = vdwg.mxu0
    %383 = vmatpush.bf16.msra.mxu0 0
    %384 = vmatpush.bf16.msra.mxu0 0
    %385 = vmatpush.bf16.msra.mxu0 0
    %386 = vmatpush.bf16.msra.mxu0 0
    %387 = vmatpush.bf16.msra.mxu0 0
    %388 = vmatpush.bf16.msra.mxu0 0
    %389 = vmatpush.bf16.msra.mxu0 %v182
    %390 = vmatpush.bf16.msra.mxu0 %v172
    %391 = vmatmul.bf16.gmra.mxu0 %v210
    %v392 = vpop.f32.mrf.mxu0
    %v393 = vadd.f32 %v62, %v392
    %v394 = vpop.f32.mrf.mxu0
    %v395 = vadd.f32 %v62, %v394
    %396 = vmatmul.bf16.gmra.mxu0 %v213
    %v397 = vpop.f32.mrf.mxu0
    %v398 = vadd.f32 %v62, %v397
    %v399 = vpop.f32.mrf.mxu0
    %v400 = vadd.f32 %v62, %v399
    %401 = vmatmul.bf16.gmra.mxu0 %v216
    %v402 = vpop.f32.mrf.mxu0
    %v403 = vadd.f32 %v62, %v402
    %v404 = vpop.f32.mrf.mxu0
    %v405 = vadd.f32 %v62, %v404
    %406 = vmatmul.bf16.gmra.mxu0 %v219
    %v407 = vpop.f32.mrf.mxu0
    %v408 = vadd.f32 %v62, %v407
    %v409 = vpop.f32.mrf.mxu0
    %v410 = vadd.f32 %v62, %v409
    %411 = vmatmul.bf16.gmra.mxu0 %v222
    %v412 = vpop.f32.mrf.mxu0
    %v413 = vadd.f32 %v62, %v412
    %v414 = vpop.f32.mrf.mxu0
    %v415 = vadd.f32 %v62, %v414
    %416 = vmatmul.bf16.gmra.mxu0 %v225
    %v417 = vpop.f32.mrf.mxu0
    %v418 = vadd.f32 %v62, %v417
    %v419 = vpop.f32.mrf.mxu0
    %v420 = vadd.f32 %v62, %v419
    %421 = vdwg.mxu0
    %422 = vmatpush.bf16.msra.mxu0 0
    %423 = vmatpush.bf16.msra.mxu0 0
    %424 = vmatpush.bf16.msra.mxu0 0
    %425 = vmatpush.bf16.msra.mxu0 0
    %426 = vmatpush.bf16.msra.mxu0 0
    %427 = vmatpush.bf16.msra.mxu0 0
    %428 = vmatpush.bf16.msra.mxu0 %v183
    %429 = vmatpush.bf16.msra.mxu0 %v173
    %430 = vmatmul.bf16.gmra.mxu0 %v210
    %v431 = vpop.f32.mrf.mxu0
    %v432 = vadd.f32 %v63, %v431
    %v433 = vpop.f32.mrf.mxu0
    %v434 = vadd.f32 %v63, %v433
    %435 = vmatmul.bf16.gmra.mxu0 %v213
    %v436 = vpop.f32.mrf.mxu0
    %v437 = vadd.f32 %v63, %v436
    %v438 = vpop.f32.mrf.mxu0
    %v439 = vadd.f32 %v63, %v438
    %440 = vmatmul.bf16.gmra.mxu0 %v216
    %v441 = vpop.f32.mrf.mxu0
    %v442 = vadd.f32 %v63, %v441
    %v443 = vpop.f32.mrf.mxu0
    %v444 = vadd.f32 %v63, %v443
    %445 = vmatmul.bf16.gmra.mxu0 %v219
    %v446 = vpop.f32.mrf.mxu0
    %v447 = vadd.f32 %v63, %v446
    %v448 = vpop.f32.mrf.mxu0
    %v449 = vadd.f32 %v63, %v448
    %450 = vmatmul.bf16.gmra.mxu0 %v222
    %v451 = vpop.f32.mrf.mxu0
    %v452 = vadd.f32 %v63, %v451
    %v453 = vpop.f32.mrf.mxu0
    %v454 = vadd.f32 %v63, %v453
    %455 = vmatmul.bf16.gmra.mxu0 %v225
    %v456 = vpop.f32.mrf.mxu0
    %v457 = vadd.f32 %v63, %v456
    %v458 = vpop.f32.mrf.mxu0
    %v459 = vadd.f32 %v63, %v458
    %460 = vdwg.mxu0
    %461 = vmatpush.bf16.msra.mxu0 0
    %462 = vmatpush.bf16.msra.mxu0 0
    %463 = vmatpush.bf16.msra.mxu0 0
    %464 = vmatpush.bf16.msra.mxu0 0
    %465 = vmatpush.bf16.msra.mxu0 0
    %466 = vmatpush.bf16.msra.mxu0 0
    %467 = vmatpush.bf16.msra.mxu0 %v184
    %468 = vmatpush.bf16.msra.mxu0 %v174
    %469 = vmatmul.bf16.gmra.mxu0 %v210
    %v470 = vpop.f32.mrf.mxu0
    %v471 = vadd.f32 %v64, %v470
    %v472 = vpop.f32.mrf.mxu0
    %v473 = vadd.f32 %v64, %v472
    %474 = vmatmul.bf16.gmra.mxu0 %v213
    %v475 = vpop.f32.mrf.mxu0
    %v476 = vadd.f32 %v64, %v475
    %v477 = vpop.f32.mrf.mxu0
    %v478 = vadd.f32 %v64, %v477
    %479 = vmatmul.bf16.gmra.mxu0 %v216
    %v480 = vpop.f32.mrf.mxu0
    %v481 = vadd.f32 %v64, %v480
    %v482 = vpop.f32.mrf.mxu0
    %v483 = vadd.f32 %v64, %v482
    %484 = vmatmul.bf16.gmra.mxu0 %v219
    %v485 = vpop.f32.mrf.mxu0
    %v486 = vadd.f32 %v64, %v485
    %v487 = vpop.f32.mrf.mxu0
    %v488 = vadd.f32 %v64, %v487
    %489 = vmatmul.bf16.gmra.mxu0 %v222
    %v490 = vpop.f32.mrf.mxu0
    %v491 = vadd.f32 %v64, %v490
    %v492 = vpop.f32.mrf.mxu0
    %v493 = vadd.f32 %v64, %v492
    %494 = vmatmul.bf16.gmra.mxu0 %v225
    %v495 = vpop.f32.mrf.mxu0
    %v496 = vadd.f32 %v64, %v495
    %v497 = vpop.f32.mrf.mxu0
    %v498 = vadd.f32 %v64, %v497
    %499 = vdwg.mxu0
    %500 = vmatpush.bf16.msra.mxu0 0
    %501 = vmatpush.bf16.msra.mxu0 0
    %502 = vmatpush.bf16.msra.mxu0 0
    %503 = vmatpush.bf16.msra.mxu0 0
    %504 = vmatpush.bf16.msra.mxu0 0
    %505 = vmatpush.bf16.msra.mxu0 0
    %506 = vmatpush.bf16.msra.mxu0 %v185
    %507 = vmatpush.bf16.msra.mxu0 %v175
    %508 = vmatmul.bf16.gmra.mxu0 %v210
    %v509 = vpop.f32.mrf.mxu0
    %v510 = vadd.f32 %v65, %v509
    %v511 = vpop.f32.mrf.mxu0
    %v512 = vadd.f32 %v65, %v511
    %513 = vmatmul.bf16.gmra.mxu0 %v213
    %v514 = vpop.f32.mrf.mxu0
    %v515 = vadd.f32 %v65, %v514
    %v516 = vpop.f32.mrf.mxu0
    %v517 = vadd.f32 %v65, %v516
    %518 = vmatmul.bf16.gmra.mxu0 %v216
    %v519 = vpop.f32.mrf.mxu0
    %v520 = vadd.f32 %v65, %v519
    %v521 = vpop.f32.mrf.mxu0
    %v522 = vadd.f32 %v65, %v521
    %523 = vmatmul.bf16.gmra.mxu0 %v219
    %v524 = vpop.f32.mrf.mxu0
    %v525 = vadd.f32 %v65, %v524
    %v526 = vpop.f32.mrf.mxu0
    %v527 = vadd.f32 %v65, %v526
    %528 = vmatmul.bf16.gmra.mxu0 %v222
    %v529 = vpop.f32.mrf.mxu0
    %v530 = vadd.f32 %v65, %v529
    %v531 = vpop.f32.mrf.mxu0
    %v532 = vadd.f32 %v65, %v531
    %533 = vmatmul.bf16.gmra.mxu0 %v225
    %v534 = vpop.f32.mrf.mxu0
    %v535 = vadd.f32 %v65, %v534
    %v536 = vpop.f32.mrf.mxu0
    %v537 = vadd.f32 %v65, %v536
    %538 = vdwg.mxu0
    %539 = vmatpush.bf16.msra.mxu0 0
    %540 = vmatpush.bf16.msra.mxu0 0
    %541 = vmatpush.bf16.msra.mxu0 0
    %542 = vmatpush.bf16.msra.mxu0 0
    %543 = vmatpush.bf16.msra.mxu0 0
    %544 = vmatpush.bf16.msra.mxu0 0
    %545 = vmatpush.bf16.msra.mxu0 %v186
    %546 = vmatpush.bf16.msra.mxu0 %v176
    %547 = vmatmul.bf16.gmra.mxu0 %v210
    %v548 = vpop.f32.mrf.mxu0
    %v549 = vadd.f32 %v66, %v548
    %v550 = vpop.f32.mrf.mxu0
    %v551 = vadd.f32 %v66, %v550
    %552 = vmatmul.bf16.gmra.mxu0 %v213
    %v553 = vpop.f32.mrf.mxu0
    %v554 = vadd.f32 %v66, %v553
    %v555 = vpop.f32.mrf.mxu0
    %v556 = vadd.f32 %v66, %v555
    %557 = vmatmul.bf16.gmra.mxu0 %v216
    %v558 = vpop.f32.mrf.mxu0
    %v559 = vadd.f32 %v66, %v558
    %v560 = vpop.f32.mrf.mxu0
    %v561 = vadd.f32 %v66, %v560
    %562 = vmatmul.bf16.gmra.mxu0 %v219
    %v563 = vpop.f32.mrf.mxu0
    %v564 = vadd.f32 %v66, %v563
    %v565 = vpop.f32.mrf.mxu0
    %v566 = vadd.f32 %v66, %v565
    %567 = vmatmul.bf16.gmra.mxu0 %v222
    %v568 = vpop.f32.mrf.mxu0
    %v569 = vadd.f32 %v66, %v568
    %v570 = vpop.f32.mrf.mxu0
    %v571 = vadd.f32 %v66, %v570
    %572 = vmatmul.bf16.gmra.mxu0 %v225
    %v573 = vpop.f32.mrf.mxu0
    %v574 = vadd.f32 %v66, %v573
    %v575 = vpop.f32.mrf.mxu0
    %v576 = vadd.f32 %v66, %v575
    %577 = vdwg.mxu0
    %578 = vmatpush.bf16.msra.mxu0 0
    %579 = vmatpush.bf16.msra.mxu0 0
    %580 = vmatpush.bf16.msra.mxu0 0
    %581 = vmatpush.bf16.msra.mxu0 0
    %582 = vmatpush.bf16.msra.mxu0 0
    %583 = vmatpush.bf16.msra.mxu0 0
    %584 = vmatpush.bf16.msra.mxu0 %v187
    %585 = vmatpush.bf16.msra.mxu0 %v177
    %586 = vmatmul.bf16.gmra.mxu0 %v210
    %v587 = vpop.f32.mrf.mxu0
    %v588 = vadd.f32 %v67, %v587
    %v589 = vpop.f32.mrf.mxu0
    %v590 = vadd.f32 %v67, %v589
    %591 = vmatmul.bf16.gmra.mxu0 %v213
    %v592 = vpop.f32.mrf.mxu0
    %v593 = vadd.f32 %v67, %v592
    %v594 = vpop.f32.mrf.mxu0
    %v595 = vadd.f32 %v67, %v594
    %596 = vmatmul.bf16.gmra.mxu0 %v216
    %v597 = vpop.f32.mrf.mxu0
    %v598 = vadd.f32 %v67, %v597
    %v599 = vpop.f32.mrf.mxu0
    %v600 = vadd.f32 %v67, %v599
    %601 = vmatmul.bf16.gmra.mxu0 %v219
    %v602 = vpop.f32.mrf.mxu0
    %v603 = vadd.f32 %v67, %v602
    %v604 = vpop.f32.mrf.mxu0
    %v605 = vadd.f32 %v67, %v604
    %606 = vmatmul.bf16.gmra.mxu0 %v222
    %v607 = vpop.f32.mrf.mxu0
    %v608 = vadd.f32 %v67, %v607
    %v609 = vpop.f32.mrf.mxu0
    %v610 = vadd.f32 %v67, %v609
    %611 = vmatmul.bf16.gmra.mxu0 %v225
    %v612 = vpop.f32.mrf.mxu0
    %v613 = vadd.f32 %v67, %v612
    %v614 = vpop.f32.mrf.mxu0
    %v615 = vadd.f32 %v67, %v614
    %616 = vdwg.mxu0
    %v617 = vmax.f32 %v237, 0.0
    %v618 = vmax.f32 %v276, 0.0
    %v619 = vmax.f32 %v315, 0.0
    %v620 = vmax.f32 %v354, 0.0
    %v621 = vmax.f32 %v393, 0.0
    %v622 = vmax.f32 %v432, 0.0
    %v623 = vmax.f32 %v471, 0.0
    %v624 = vmax.f32 %v510, 0.0
    %v625 = vmax.f32 %v549, 0.0
    %v626 = vmax.f32 %v588, 0.0
    %v627 = vmax.f32 %v239, 0.0
    %v628 = vmax.f32 %v278, 0.0
    %v629 = vmax.f32 %v317, 0.0
    %v630 = vmax.f32 %v356, 0.0
    %v631 = vmax.f32 %v395, 0.0
    %v632 = vmax.f32 %v434, 0.0
    %v633 = vmax.f32 %v473, 0.0
    %v634 = vmax.f32 %v512, 0.0
    %v635 = vmax.f32 %v551, 0.0
    %v636 = vmax.f32 %v590, 0.0
    %v637 = vmax.f32 %v242, 0.0
    %v638 = vmax.f32 %v281, 0.0
    %v639 = vmax.f32 %v320, 0.0
    %v640 = vmax.f32 %v359, 0.0
    %v641 = vmax.f32 %v398, 0.0
    %v642 = vmax.f32 %v437, 0.0
    %v643 = vmax.f32 %v476, 0.0
    %v644 = vmax.f32 %v515, 0.0
    %v645 = vmax.f32 %v554, 0.0
    %v646 = vmax.f32 %v593, 0.0
    %v647 = vmax.f32 %v244, 0.0
    %v648 = vmax.f32 %v283, 0.0
    %v649 = vmax.f32 %v322, 0.0
    %v650 = vmax.f32 %v361, 0.0
    %v651 = vmax.f32 %v400, 0.0
    %v652 = vmax.f32 %v439, 0.0
    %v653 = vmax.f32 %v478, 0.0
    %v654 = vmax.f32 %v517, 0.0
    %v655 = vmax.f32 %v556, 0.0
    %v656 = vmax.f32 %v595, 0.0
    %v657 = vmax.f32 %v247, 0.0
    %v658 = vmax.f32 %v286, 0.0
    %v659 = vmax.f32 %v325, 0.0
    %v660 = vmax.f32 %v364, 0.0
    %v661 = vmax.f32 %v403, 0.0
    %v662 = vmax.f32 %v442, 0.0
    %v663 = vmax.f32 %v481, 0.0
    %v664 = vmax.f32 %v520, 0.0
    %v665 = vmax.f32 %v559, 0.0
    %v666 = vmax.f32 %v598, 0.0
    %v667 = vmax.f32 %v249, 0.0
    %v668 = vmax.f32 %v288, 0.0
    %v669 = vmax.f32 %v327, 0.0
    %v670 = vmax.f32 %v366, 0.0
    %v671 = vmax.f32 %v405, 0.0
    %v672 = vmax.f32 %v444, 0.0
    %v673 = vmax.f32 %v483, 0.0
    %v674 = vmax.f32 %v522, 0.0
    %v675 = vmax.f32 %v561, 0.0
    %v676 = vmax.f32 %v600, 0.0
    %v677 = vmax.f32 %v252, 0.0
    %v678 = vmax.f32 %v291, 0.0
    %v679 = vmax.f32 %v330, 0.0
    %v680 = vmax.f32 %v369, 0.0
    %v681 = vmax.f32 %v408, 0.0
    %v682 = vmax.f32 %v447, 0.0
    %v683 = vmax.f32 %v486, 0.0
    %v684 = vmax.f32 %v525, 0.0
    %v685 = vmax.f32 %v564, 0.0
    %v686 = vmax.f32 %v603, 0.0
    %v687 = vmax.f32 %v254, 0.0
    %v688 = vmax.f32 %v293, 0.0
    %v689 = vmax.f32 %v332, 0.0
    %v690 = vmax.f32 %v371, 0.0
    %v691 = vmax.f32 %v410, 0.0
    %v692 = vmax.f32 %v449, 0.0
    %v693 = vmax.f32 %v488, 0.0
    %v694 = vmax.f32 %v527, 0.0
    %v695 = vmax.f32 %v566, 0.0
    %v696 = vmax.f32 %v605, 0.0
    %v697 = vmax.f32 %v257, 0.0
    %v698 = vmax.f32 %v296, 0.0
    %v699 = vmax.f32 %v335, 0.0
    %v700 = vmax.f32 %v374, 0.0
    %v701 = vmax.f32 %v413, 0.0
    %v702 = vmax.f32 %v452, 0.0
    %v703 = vmax.f32 %v491, 0.0
    %v704 = vmax.f32 %v530, 0.0
    %v705 = vmax.f32 %v569, 0.0
    %v706 = vmax.f32 %v608, 0.0
    %v707 = vmax.f32 %v259, 0.0
    %v708 = vmax.f32 %v298, 0.0
    %v709 = vmax.f32 %v337, 0.0
    %v710 = vmax.f32 %v376, 0.0
    %v711 = vmax.f32 %v415, 0.0
    %v712 = vmax.f32 %v454, 0.0
    %v713 = vmax.f32 %v493, 0.0
    %v714 = vmax.f32 %v532, 0.0
    %v715 = vmax.f32 %v571, 0.0
    %v716 = vmax.f32 %v610, 0.0
    %v717 = vmax.f32 %v262, 0.0
    %v718 = vmax.f32 %v301, 0.0
    %v719 = vmax.f32 %v340, 0.0
    %v720 = vmax.f32 %v379, 0.0
    %v721 = vmax.f32 %v418, 0.0
    %v722 = vmax.f32 %v457, 0.0
    %v723 = vmax.f32 %v496, 0.0
    %v724 = vmax.f32 %v535, 0.0
    %v725 = vmax.f32 %v574, 0.0
    %v726 = vmax.f32 %v613, 0.0
    %v727 = vmax.f32 %v264, 0.0
    %v728 = vmax.f32 %v303, 0.0
    %v729 = vmax.f32 %v342, 0.0
    %v730 = vmax.f32 %v381, 0.0
    %v731 = vmax.f32 %v420, 0.0
    %v732 = vmax.f32 %v459, 0.0
    %v733 = vmax.f32 %v498, 0.0
    %v734 = vmax.f32 %v537, 0.0
    %v735 = vmax.f32 %v576, 0.0
    %v736 = vmax.f32 %v615, 0.0
    %v737 = vlaneseq
    %v738 = vshrl.u32 %v737, 7
    %v739 = vlaneseq
    %v740 = vand.u32 %v739, 127
    %v741 = vmul.u32 %v738, 48
    %vm742 = vcmp.ge.s32.totalorder %v740, %v741
    %v743 = vadd.s32 %v738, 1
    %v744 = vmul.u32 %v743, 48
    %vm745 = vcmp.lt.s32.totalorder %v740, %v744
    %vm746 = vmand %vm742, %vm745
    %v747 = vsel %vm746, 1, 0
    %v748 = vcvt.s32.f32 %v747
    %v749 = vpack.c.bf16 %v748, %v748
    %v750 = vpack.c.bf16 %v627, %v617
    %v751 = vpack.c.bf16 %v628, %v618
    %v752 = vpack.c.bf16 %v629, %v619
    %v753 = vpack.c.bf16 %v630, %v620
    %v754 = vpack.c.bf16 %v631, %v621
    %v755 = vpack.c.bf16 %v632, %v622
    %v756 = vpack.c.bf16 %v633, %v623
    %v757 = vpack.c.bf16 %v634, %v624
    %v758 = vpack.c.bf16 %v635, %v625
    %v759 = vpack.c.bf16 %v636, %v626
    %v760 = vpack.c.bf16 %v647, %v637
    %v761 = vpack.c.bf16 %v648, %v638
    %v762 = vpack.c.bf16 %v649, %v639
    %v763 = vpack.c.bf16 %v650, %v640
    %v764 = vpack.c.bf16 %v651, %v641
    %v765 = vpack.c.bf16 %v652, %v642
    %v766 = vpack.c.bf16 %v653, %v643
    %v767 = vpack.c.bf16 %v654, %v644
    %v768 = vpack.c.bf16 %v655, %v645
    %v769 = vpack.c.bf16 %v656, %v646
    %v770 = vpack.c.bf16 %v667, %v657
    %v771 = vpack.c.bf16 %v668, %v658
    %v772 = vpack.c.bf16 %v669, %v659
    %v773 = vpack.c.bf16 %v670, %v660
    %v774 = vpack.c.bf16 %v671, %v661
    %v775 = vpack.c.bf16 %v672, %v662
    %v776 = vpack.c.bf16 %v673, %v663
    %v777 = vpack.c.bf16 %v674, %v664
    %v778 = vpack.c.bf16 %v675, %v665
    %v779 = vpack.c.bf16 %v676, %v666
    %v780 = vpack.c.bf16 %v687, %v677
    %v781 = vpack.c.bf16 %v688, %v678
    %v782 = vpack.c.bf16 %v689, %v679
    %v783 = vpack.c.bf16 %v690, %v680
    %v784 = vpack.c.bf16 %v691, %v681
    %v785 = vpack.c.bf16 %v692, %v682
    %v786 = vpack.c.bf16 %v693, %v683
    %v787 = vpack.c.bf16 %v694, %v684
    %v788 = vpack.c.bf16 %v695, %v685
    %v789 = vpack.c.bf16 %v696, %v686
    %v790 = vpack.c.bf16 %v707, %v697
    %v791 = vpack.c.bf16 %v708, %v698
    %v792 = vpack.c.bf16 %v709, %v699
    %v793 = vpack.c.bf16 %v710, %v700
    %v794 = vpack.c.bf16 %v711, %v701
    %v795 = vpack.c.bf16 %v712, %v702
    %v796 = vpack.c.bf16 %v713, %v703
    %v797 = vpack.c.bf16 %v714, %v704
    %v798 = vpack.c.bf16 %v715, %v705
    %v799 = vpack.c.bf16 %v716, %v706
    %v800 = vpack.c.bf16 %v727, %v717
    %v801 = vpack.c.bf16 %v728, %v718
    %v802 = vpack.c.bf16 %v729, %v719
    %v803 = vpack.c.bf16 %v730, %v720
    %v804 = vpack.c.bf16 %v731, %v721
    %v805 = vpack.c.bf16 %v732, %v722
    %v806 = vpack.c.bf16 %v733, %v723
    %v807 = vpack.c.bf16 %v734, %v724
    %v808 = vpack.c.bf16 %v735, %v725
    %v809 = vpack.c.bf16 %v736, %v726
    %vm810 = vcmask 785408
    %v812 = vsel %vm810, %v749, 0
    %814 = vmatpush.bf16.msra.mxu0 0
    %815 = vmatpush.bf16.msra.mxu0 0
    %816 = vmatpush.bf16.msra.mxu0 %v800
    %817 = vmatpush.bf16.msra.mxu0 %v790
    %818 = vmatpush.bf16.msra.mxu0 %v780
    %819 = vmatpush.bf16.msra.mxu0 %v770
    %820 = vmatpush.bf16.msra.mxu0 %v760
    %821 = vmatpush.bf16.msra.mxu0 %v750
    %822 = vmatmul.bf16.gmra.mxu0 %v812
    %v823 = vpop.f32.mrf.mxu0
    %v824 = vadd.f32 0.0, %v823
    %v825 = vpop.f32.mrf.mxu0
    %826 = vdwg.mxu0
    %827 = vmatpush.bf16.msra.mxu0 0
    %828 = vmatpush.bf16.msra.mxu0 0
    %829 = vmatpush.bf16.msra.mxu0 %v801
    %830 = vmatpush.bf16.msra.mxu0 %v791
    %831 = vmatpush.bf16.msra.mxu0 %v781
    %832 = vmatpush.bf16.msra.mxu0 %v771
    %833 = vmatpush.bf16.msra.mxu0 %v761
    %834 = vmatpush.bf16.msra.mxu0 %v751
    %835 = vmatmul.bf16.gmra.mxu0 %v812
    %v836 = vpop.f32.mrf.mxu0
    %v837 = vadd.f32 0.0, %v836
    %v838 = vpop.f32.mrf.mxu0
    %839 = vdwg.mxu0
    %840 = vmatpush.bf16.msra.mxu0 0
    %841 = vmatpush.bf16.msra.mxu0 0
    %842 = vmatpush.bf16.msra.mxu0 %v802
    %843 = vmatpush.bf16.msra.mxu0 %v792
    %844 = vmatpush.bf16.msra.mxu0 %v782
    %845 = vmatpush.bf16.msra.mxu0 %v772
    %846 = vmatpush.bf16.msra.mxu0 %v762
    %847 = vmatpush.bf16.msra.mxu0 %v752
    %848 = vmatmul.bf16.gmra.mxu0 %v812
    %v849 = vpop.f32.mrf.mxu0
    %v850 = vadd.f32 0.0, %v849
    %v851 = vpop.f32.mrf.mxu0
    %852 = vdwg.mxu0
    %853 = vmatpush.bf16.msra.mxu0 0
    %854 = vmatpush.bf16.msra.mxu0 0
    %855 = vmatpush.bf16.msra.mxu0 %v803
    %856 = vmatpush.bf16.msra.mxu0 %v793
    %857 = vmatpush.bf16.msra.mxu0 %v783
    %858 = vmatpush.bf16.msra.mxu0 %v773
    %859 = vmatpush.bf16.msra.mxu0 %v763
    %860 = vmatpush.bf16.msra.mxu0 %v753
    %861 = vmatmul.bf16.gmra.mxu0 %v812
    %v862 = vpop.f32.mrf.mxu0
    %v863 = vadd.f32 0.0, %v862
    %v864 = vpop.f32.mrf.mxu0
    %865 = vdwg.mxu0
    %866 = vmatpush.bf16.msra.mxu0 0
    %867 = vmatpush.bf16.msra.mxu0 0
    %868 = vmatpush.bf16.msra.mxu0 %v804
    %869 = vmatpush.bf16.msra.mxu0 %v794
    %870 = vmatpush.bf16.msra.mxu0 %v784
    %871 = vmatpush.bf16.msra.mxu0 %v774
    %872 = vmatpush.bf16.msra.mxu0 %v764
    %873 = vmatpush.bf16.msra.mxu0 %v754
    %874 = vmatmul.bf16.gmra.mxu0 %v812
    %v875 = vpop.f32.mrf.mxu0
    %v876 = vadd.f32 0.0, %v875
    %v877 = vpop.f32.mrf.mxu0
    %878 = vdwg.mxu0
    %879 = vmatpush.bf16.msra.mxu0 0
    %880 = vmatpush.bf16.msra.mxu0 0
    %881 = vmatpush.bf16.msra.mxu0 %v805
    %882 = vmatpush.bf16.msra.mxu0 %v795
    %883 = vmatpush.bf16.msra.mxu0 %v785
    %884 = vmatpush.bf16.msra.mxu0 %v775
    %885 = vmatpush.bf16.msra.mxu0 %v765
    %886 = vmatpush.bf16.msra.mxu0 %v755
    %887 = vmatmul.bf16.gmra.mxu0 %v812
    %v888 = vpop.f32.mrf.mxu0
    %v889 = vadd.f32 0.0, %v888
    %v890 = vpop.f32.mrf.mxu0
    %891 = vdwg.mxu0
    %892 = vmatpush.bf16.msra.mxu0 0
    %893 = vmatpush.bf16.msra.mxu0 0
    %894 = vmatpush.bf16.msra.mxu0 %v806
    %895 = vmatpush.bf16.msra.mxu0 %v796
    %896 = vmatpush.bf16.msra.mxu0 %v786
    %897 = vmatpush.bf16.msra.mxu0 %v776
    %898 = vmatpush.bf16.msra.mxu0 %v766
    %899 = vmatpush.bf16.msra.mxu0 %v756
    %900 = vmatmul.bf16.gmra.mxu0 %v812
    %v901 = vpop.f32.mrf.mxu0
    %v902 = vadd.f32 0.0, %v901
    %v903 = vpop.f32.mrf.mxu0
    %904 = vdwg.mxu0
    %905 = vmatpush.bf16.msra.mxu0 0
    %906 = vmatpush.bf16.msra.mxu0 0
    %907 = vmatpush.bf16.msra.mxu0 %v807
    %908 = vmatpush.bf16.msra.mxu0 %v797
    %909 = vmatpush.bf16.msra.mxu0 %v787
    %910 = vmatpush.bf16.msra.mxu0 %v777
    %911 = vmatpush.bf16.msra.mxu0 %v767
    %912 = vmatpush.bf16.msra.mxu0 %v757
    %913 = vmatmul.bf16.gmra.mxu0 %v812
    %v914 = vpop.f32.mrf.mxu0
    %v915 = vadd.f32 0.0, %v914
    %v916 = vpop.f32.mrf.mxu0
    %917 = vdwg.mxu0
    %918 = vmatpush.bf16.msra.mxu0 0
    %919 = vmatpush.bf16.msra.mxu0 0
    %920 = vmatpush.bf16.msra.mxu0 %v808
    %921 = vmatpush.bf16.msra.mxu0 %v798
    %922 = vmatpush.bf16.msra.mxu0 %v788
    %923 = vmatpush.bf16.msra.mxu0 %v778
    %924 = vmatpush.bf16.msra.mxu0 %v768
    %925 = vmatpush.bf16.msra.mxu0 %v758
    %926 = vmatmul.bf16.gmra.mxu0 %v812
    %v927 = vpop.f32.mrf.mxu0
    %v928 = vadd.f32 0.0, %v927
    %v929 = vpop.f32.mrf.mxu0
    %930 = vdwg.mxu0
    %931 = vmatpush.bf16.msra.mxu0 0
    %932 = vmatpush.bf16.msra.mxu0 0
    %933 = vmatpush.bf16.msra.mxu0 %v809
    %934 = vmatpush.bf16.msra.mxu0 %v799
    %935 = vmatpush.bf16.msra.mxu0 %v789
    %936 = vmatpush.bf16.msra.mxu0 %v779
    %937 = vmatpush.bf16.msra.mxu0 %v769
    %938 = vmatpush.bf16.msra.mxu0 %v759
    %939 = vmatmul.bf16.gmra.mxu0 %v812
    %v940 = vpop.f32.mrf.mxu0
    %v941 = vadd.f32 0.0, %v940
    %v942 = vpop.f32.mrf.mxu0
    %943 = vdwg.mxu0
    %v944 = vmul.f32 %v824, 0.020833334
    %v945 = vmul.f32 %v837, 0.020833334
    %v946 = vmul.f32 %v850, 0.020833334
    %v947 = vmul.f32 %v863, 0.020833334
    %v948 = vmul.f32 %v876, 0.020833334
    %v949 = vmul.f32 %v889, 0.020833334
    %v950 = vmul.f32 %v902, 0.020833334
    %v951 = vmul.f32 %v915, 0.020833334
    %v952 = vmul.f32 %v928, 0.020833334
    %v953 = vmul.f32 %v941, 0.020833334
    %v954 = vpack.c.bf16 %v944, %v944
    %v955 = vpack.c.bf16 %v945, %v945
    %v956 = vpack.c.bf16 %v946, %v946
    %v957 = vpack.c.bf16 %v947, %v947
    %v958 = vpack.c.bf16 %v948, %v948
    %v959 = vpack.c.bf16 %v949, %v949
    %v960 = vpack.c.bf16 %v950, %v950
    %v961 = vpack.c.bf16 %v951, %v951
    %v962 = vpack.c.bf16 %v952, %v952
    %v963 = vpack.c.bf16 %v953, %v953
    %v964 = vld [vmem:[%s3] sm:$0xf]
    %v965 = vld [vmem:[%s3 + $0x4] sm:$0xf]
    %v966 = vld [vmem:[%s3 + $0x8] sm:$0xf]
    %v967 = vld [vmem:[%s3 + $0xc] sm:$0xf]
    %v968 = vld [vmem:[%s3 + $0x10] sm:$0xf]
    %v969 = vld [vmem:[%s3 + $0x14] sm:$0xf]
    %v970 = vld [vmem:[%s3 + $0x18] sm:$0xf]
    %v971 = vld [vmem:[%s3 + $0x1c] sm:$0xf]
    %v972 = vld [vmem:[%s3 + $0x20] sm:$0xf]
    %v973 = vld [vmem:[%s3 + $0x24] sm:$0xf]
    %v974 = vld [vmem:[%s3 + $0x28] sm:$0xf]
    %v975 = vld [vmem:[%s3 + $0x2c] sm:$0xf]
    %v976 = vld [vmem:[%s3 + $0x30] sm:$0xf]
    %v977 = vld [vmem:[%s3 + $0x34] sm:$0xf]
    %v978 = vld [vmem:[%s3 + $0x38] sm:$0xf]
    %v979 = vld [vmem:[%s3 + $0x3c] sm:$0xf]
    %v980 = vld [vmem:[%s3 + $0x40] sm:$0xf]
    %v981 = vld [vmem:[%s3 + $0x44] sm:$0xf]
    %v982 = vld [vmem:[%s3 + $0x48] sm:$0xf]
    %v983 = vld [vmem:[%s3 + $0x4c] sm:$0xf]
    %v984 = vld [vmem:[%s3 + $0x50] sm:$0xf]
    %v985 = vld [vmem:[%s3 + $0x54] sm:$0xf]
    %v986 = vld [vmem:[%s3 + $0x58] sm:$0xf]
    %v987 = vld [vmem:[%s3 + $0x5c] sm:$0xf]
    %v988 = vld [vmem:[%s3 + $0x60] sm:$0xf]
    %v989 = vld [vmem:[%s3 + $0x64] sm:$0xf]
    %v990 = vld [vmem:[%s3 + $0x68] sm:$0xf]
    %v991 = vld [vmem:[%s3 + $0x6c] sm:$0xf]
    %v992 = vld [vmem:[%s3 + $0x70] sm:$0xf]
    %v993 = vld [vmem:[%s3 + $0x74] sm:$0xf]
    %v994 = vld [vmem:[%s3 + $0x78] sm:$0xf]
    %v995 = vld [vmem:[%s3 + $0x7c] sm:$0xf]
    %v996 = vld [vmem:[%s3 + $0x80] sm:$0xf]
    %v997 = vld [vmem:[%s3 + $0x84] sm:$0xf]
    %v998 = vld [vmem:[%s3 + $0x88] sm:$0xf]
    %v999 = vld [vmem:[%s3 + $0x8c] sm:$0xf]
    %v1000 = vld [vmem:[%s3 + $0x90] sm:$0xf]
    %v1001 = vld [vmem:[%s3 + $0x94] sm:$0xf]
    %v1002 = vld [vmem:[%s3 + $0x98] sm:$0xf]
    %v1003 = vld [vmem:[%s3 + $0x9c] sm:$0xf]
    %v1004 = vld [vmem:[%s3 + $0xa0] sm:$0xf]
    %v1005 = vld [vmem:[%s3 + $0xa4] sm:$0xf]
    %v1006 = vld [vmem:[%s3 + $0xa8] sm:$0xf]
    %v1007 = vld [vmem:[%s3 + $0xac] sm:$0xf]
    %v1008 = vld [vmem:[%s3 + $0xb0] sm:$0xf]
    %v1009 = vld [vmem:[%s3 + $0xb4] sm:$0xf]
    %v1010 = vld [vmem:[%s3 + $0xb8] sm:$0xf]
    %v1011 = vld [vmem:[%s3 + $0xbc] sm:$0xf]
    %v1012 = vld [vmem:[%s3 + $0xc0] sm:$0xf]
    %v1013 = vld [vmem:[%s3 + $0xc4] sm:$0xf]
    %v1014 = vld [vmem:[%s3 + $0xc8] sm:$0xf]
    %v1015 = vld [vmem:[%s3 + $0xcc] sm:$0xf]
    %v1016 = vld [vmem:[%s3 + $0xd0] sm:$0xf]
    %v1017 = vld [vmem:[%s3 + $0xd4] sm:$0xf]
    %v1018 = vld [vmem:[%s3 + $0xd8] sm:$0xf]
    %v1019 = vld [vmem:[%s3 + $0xdc] sm:$0xf]
    %v1020 = vld [vmem:[%s3 + $0xe0] sm:$0xf]
    %v1021 = vld [vmem:[%s3 + $0xe4] sm:$0xf]
    %v1022 = vld [vmem:[%s3 + $0xe8] sm:$0xf]
    %v1023 = vld [vmem:[%s3 + $0xec] sm:$0xf]
    %v1024 = vld [vmem:[%s3 + $0xf0] sm:$0xf]
    %v1025 = vld [vmem:[%s3 + $0xf4] sm:$0xf]
    %v1026 = vld [vmem:[%s3 + $0xf8] sm:$0xf]
    %v1027 = vld [vmem:[%s3 + $0xfc] sm:$0xf]
    %v1028 = vld [vmem:[%s3 + $0x100] sm:$0xf]
    %v1029 = vld [vmem:[%s3 + $0x104] sm:$0xf]
    %v1030 = vld [vmem:[%s3 + $0x108] sm:$0xf]
    %v1031 = vld [vmem:[%s3 + $0x10c] sm:$0xf]
    %v1032 = vld [vmem:[%s3 + $0x110] sm:$0xf]
    %v1033 = vld [vmem:[%s3 + $0x114] sm:$0xf]
    %v1034 = vld [vmem:[%s3 + $0x118] sm:$0xf]
    %v1035 = vld [vmem:[%s3 + $0x11c] sm:$0xf]
    %v1036 = vld [vmem:[%s3 + $0x120] sm:$0xf]
    %v1037 = vld [vmem:[%s3 + $0x124] sm:$0xf]
    %v1038 = vld [vmem:[%s3 + $0x128] sm:$0xf]
    %v1039 = vld [vmem:[%s3 + $0x12c] sm:$0xf]
    %v1040 = vld [vmem:[%s3 + $0x130] sm:$0xf]
    %v1041 = vld [vmem:[%s3 + $0x134] sm:$0xf]
    %v1042 = vld [vmem:[%s3 + $0x138] sm:$0xf]
    %v1043 = vld [vmem:[%s3 + $0x13c] sm:$0xf]
    %v1044 = vld [vmem:[%s3 + $0x140] sm:$0xf]
    %v1045 = vld [vmem:[%s3 + $0x144] sm:$0xf]
    %v1046 = vld [vmem:[%s3 + $0x148] sm:$0xf]
    %v1047 = vld [vmem:[%s3 + $0x14c] sm:$0xf]
    %v1048 = vld [vmem:[%s3 + $0x150] sm:$0xf]
    %v1049 = vld [vmem:[%s3 + $0x154] sm:$0xf]
    %v1050 = vld [vmem:[%s3 + $0x158] sm:$0xf]
    %v1051 = vld [vmem:[%s3 + $0x15c] sm:$0xf]
    %v1052 = vld [vmem:[%s3 + $0x160] sm:$0xf]
    %v1053 = vld [vmem:[%s3 + $0x164] sm:$0xf]
    %v1054 = vld [vmem:[%s3 + $0x168] sm:$0xf]
    %v1055 = vld [vmem:[%s3 + $0x16c] sm:$0xf]
    %v1056 = vld [vmem:[%s3 + $0x170] sm:$0xf]
    %v1057 = vld [vmem:[%s3 + $0x174] sm:$0xf]
    %v1058 = vld [vmem:[%s3 + $0x178] sm:$0xf]
    %v1059 = vld [vmem:[%s3 + $0x17c] sm:$0xf]
    %v1060 = vld [vmem:[%s3 + $0x180] sm:$0xf]
    %v1061 = vld [vmem:[%s3 + $0x184] sm:$0xf]
    %v1062 = vld [vmem:[%s3 + $0x188] sm:$0xf]
    %v1063 = vld [vmem:[%s3 + $0x18c] sm:$0xf]
    %v1064 = vld [vmem:[%s3 + $0x190] sm:$0xf]
    %v1065 = vld [vmem:[%s3 + $0x194] sm:$0xf]
    %v1066 = vld [vmem:[%s3 + $0x198] sm:$0xf]
    %v1067 = vld [vmem:[%s3 + $0x19c] sm:$0xf]
    %v1068 = vld [vmem:[%s3 + $0x1a0] sm:$0xf]
    %v1069 = vld [vmem:[%s3 + $0x1a4] sm:$0xf]
    %v1070 = vld [vmem:[%s3 + $0x1a8] sm:$0xf]
    %v1071 = vld [vmem:[%s3 + $0x1ac] sm:$0xf]
    %v1072 = vld [vmem:[%s3 + $0x1b0] sm:$0xf]
    %v1073 = vld [vmem:[%s3 + $0x1b4] sm:$0xf]
    %v1074 = vld [vmem:[%s3 + $0x1b8] sm:$0xf]
    %v1075 = vld [vmem:[%s3 + $0x1bc] sm:$0xf]
    %v1076 = vld [vmem:[%s3 + $0x1c0] sm:$0xf]
    %v1077 = vld [vmem:[%s3 + $0x1c4] sm:$0xf]
    %v1078 = vld [vmem:[%s3 + $0x1c8] sm:$0xf]
    %v1079 = vld [vmem:[%s3 + $0x1cc] sm:$0xf]
    %v1080 = vld [vmem:[%s3 + $0x1d0] sm:$0xf]
    %v1081 = vld [vmem:[%s3 + $0x1d4] sm:$0xf]
    %v1082 = vld [vmem:[%s3 + $0x1d8] sm:$0xf]
    %v1083 = vld [vmem:[%s3 + $0x1dc] sm:$0xf]
    %v1084 = vld [vmem:[%s3 + $0x1e0] sm:$0xf]
    %v1085 = vld [vmem:[%s3 + $0x1e4] sm:$0xf]
    %v1086 = vld [vmem:[%s3 + $0x1e8] sm:$0xf]
    %v1087 = vld [vmem:[%s3 + $0x1ec] sm:$0xf]
    %v1088 = vld [vmem:[%s3 + $0x1f0] sm:$0xf]
    %v1089 = vld [vmem:[%s3 + $0x1f4] sm:$0xf]
    %v1090 = vld [vmem:[%s3 + $0x1f8] sm:$0xf]
    %v1091 = vld [vmem:[%s3 + $0x1fc] sm:$0xf]
    %v1092 = vld [vmem:[%s3 + $0x200] sm:$0xf]
    %v1093 = vld [vmem:[%s3 + $0x204] sm:$0xf]
    %v1094 = vld [vmem:[%s3 + $0x208] sm:$0xf]
    %v1095 = vld [vmem:[%s3 + $0x20c] sm:$0xf]
    %v1096 = vld [vmem:[%s3 + $0x210] sm:$0xf]
    %v1097 = vld [vmem:[%s3 + $0x214] sm:$0xf]
    %v1098 = vld [vmem:[%s3 + $0x218] sm:$0xf]
    %v1099 = vld [vmem:[%s3 + $0x21c] sm:$0xf]
    %v1100 = vld [vmem:[%s3 + $0x220] sm:$0xf]
    %v1101 = vld [vmem:[%s3 + $0x224] sm:$0xf]
    %v1102 = vld [vmem:[%s3 + $0x228] sm:$0xf]
    %v1103 = vld [vmem:[%s3 + $0x22c] sm:$0xf]
    %v1104 = vld [vmem:[%s3 + $0x230] sm:$0xf]
    %v1105 = vld [vmem:[%s3 + $0x234] sm:$0xf]
    %v1106 = vld [vmem:[%s3 + $0x238] sm:$0xf]
    %v1107 = vld [vmem:[%s3 + $0x23c] sm:$0xf]
    %v1108 = vld [vmem:[%s3 + $0x240] sm:$0xf]
    %v1109 = vld [vmem:[%s3 + $0x244] sm:$0xf]
    %v1110 = vld [vmem:[%s3 + $0x248] sm:$0xf]
    %v1111 = vld [vmem:[%s3 + $0x24c] sm:$0xf]
    %v1112 = vld [vmem:[%s3 + $0x250] sm:$0xf]
    %v1113 = vld [vmem:[%s3 + $0x254] sm:$0xf]
    %v1114 = vld [vmem:[%s3 + $0x258] sm:$0xf]
    %v1115 = vld [vmem:[%s3 + $0x25c] sm:$0xf]
    %v1116 = vld [vmem:[%s3 + $0x260] sm:$0xf]
    %v1117 = vld [vmem:[%s3 + $0x264] sm:$0xf]
    %v1118 = vld [vmem:[%s3 + $0x268] sm:$0xf]
    %v1119 = vld [vmem:[%s3 + $0x26c] sm:$0xf]
    %v1120 = vld [vmem:[%s3 + $0x270] sm:$0xf]
    %v1121 = vld [vmem:[%s3 + $0x274] sm:$0xf]
    %v1122 = vld [vmem:[%s3 + $0x278] sm:$0xf]
    %v1123 = vld [vmem:[%s3 + $0x27c] sm:$0xf]
    %v1124 = vld [vmem:[%s4] sm:$0x1]
    %v1126 = vperm.slane %v1124, 0
    %v1288 = vunpack.c.l.b16 %v964
    %v1289 = vunpack.c.l.b16 %v965
    %v1290 = vunpack.c.l.b16 %v966
    %v1291 = vunpack.c.l.b16 %v967
    %v1292 = vunpack.c.l.b16 %v968
    %v1293 = vunpack.c.l.b16 %v969
    %v1294 = vunpack.c.l.b16 %v970
    %v1295 = vunpack.c.l.b16 %v971
    %v1296 = vunpack.c.l.b16 %v972
    %v1297 = vunpack.c.l.b16 %v973
    %v1298 = vunpack.c.l.b16 %v974
    %v1299 = vunpack.c.l.b16 %v975
    %v1300 = vunpack.c.l.b16 %v976
    %v1301 = vunpack.c.l.b16 %v977
    %v1302 = vunpack.c.l.b16 %v978
    %v1303 = vunpack.c.l.b16 %v979
    %v1304 = vunpack.c.l.b16 %v980
    %v1305 = vunpack.c.l.b16 %v981
    %v1306 = vunpack.c.l.b16 %v982
    %v1307 = vunpack.c.l.b16 %v983
    %v1308 = vunpack.c.l.b16 %v984
    %v1309 = vunpack.c.l.b16 %v985
    %v1310 = vunpack.c.l.b16 %v986
    %v1311 = vunpack.c.l.b16 %v987
    %v1312 = vunpack.c.l.b16 %v988
    %v1313 = vunpack.c.l.b16 %v989
    %v1314 = vunpack.c.l.b16 %v990
    %v1315 = vunpack.c.l.b16 %v991
    %v1316 = vunpack.c.l.b16 %v992
    %v1317 = vunpack.c.l.b16 %v993
    %v1318 = vunpack.c.l.b16 %v994
    %v1319 = vunpack.c.l.b16 %v995
    %v1320 = vunpack.c.l.b16 %v996
    %v1321 = vunpack.c.l.b16 %v997
    %v1322 = vunpack.c.l.b16 %v998
    %v1323 = vunpack.c.l.b16 %v999
    %v1324 = vunpack.c.l.b16 %v1000
    %v1325 = vunpack.c.l.b16 %v1001
    %v1326 = vunpack.c.l.b16 %v1002
    %v1327 = vunpack.c.l.b16 %v1003
    %v1328 = vunpack.c.l.b16 %v1004
    %v1329 = vunpack.c.l.b16 %v1005
    %v1330 = vunpack.c.l.b16 %v1006
    %v1331 = vunpack.c.l.b16 %v1007
    %v1332 = vunpack.c.l.b16 %v1008
    %v1333 = vunpack.c.l.b16 %v1009
    %v1334 = vunpack.c.l.b16 %v1010
    %v1335 = vunpack.c.l.b16 %v1011
    %v1336 = vunpack.c.l.b16 %v1012
    %v1337 = vunpack.c.l.b16 %v1013
    %v1338 = vunpack.c.l.b16 %v1014
    %v1339 = vunpack.c.l.b16 %v1015
    %v1340 = vunpack.c.l.b16 %v1016
    %v1341 = vunpack.c.l.b16 %v1017
    %v1342 = vunpack.c.l.b16 %v1018
    %v1343 = vunpack.c.l.b16 %v1019
    %v1344 = vunpack.c.l.b16 %v1020
    %v1345 = vunpack.c.l.b16 %v1021
    %v1346 = vunpack.c.l.b16 %v1022
    %v1347 = vunpack.c.l.b16 %v1023
    %v1348 = vunpack.c.l.b16 %v1024
    %v1349 = vunpack.c.l.b16 %v1025
    %v1350 = vunpack.c.l.b16 %v1026
    %v1351 = vunpack.c.l.b16 %v1027
    %v1352 = vunpack.c.l.b16 %v1028
    %v1353 = vunpack.c.l.b16 %v1029
    %v1354 = vunpack.c.l.b16 %v1030
    %v1355 = vunpack.c.l.b16 %v1031
    %v1356 = vunpack.c.l.b16 %v1032
    %v1357 = vunpack.c.l.b16 %v1033
    %v1358 = vunpack.c.l.b16 %v1034
    %v1359 = vunpack.c.l.b16 %v1035
    %v1360 = vunpack.c.l.b16 %v1036
    %v1361 = vunpack.c.l.b16 %v1037
    %v1362 = vunpack.c.l.b16 %v1038
    %v1363 = vunpack.c.l.b16 %v1039
    %v1364 = vunpack.c.l.b16 %v1040
    %v1365 = vunpack.c.l.b16 %v1041
    %v1366 = vunpack.c.l.b16 %v1042
    %v1367 = vunpack.c.l.b16 %v1043
    %v1368 = vunpack.c.l.b16 %v1044
    %v1369 = vunpack.c.l.b16 %v1045
    %v1370 = vunpack.c.l.b16 %v1046
    %v1371 = vunpack.c.l.b16 %v1047
    %v1372 = vunpack.c.l.b16 %v1048
    %v1373 = vunpack.c.l.b16 %v1049
    %v1374 = vunpack.c.l.b16 %v1050
    %v1375 = vunpack.c.l.b16 %v1051
    %v1376 = vunpack.c.l.b16 %v1052
    %v1377 = vunpack.c.l.b16 %v1053
    %v1378 = vunpack.c.l.b16 %v1054
    %v1379 = vunpack.c.l.b16 %v1055
    %v1380 = vunpack.c.l.b16 %v1056
    %v1381 = vunpack.c.l.b16 %v1057
    %v1382 = vunpack.c.l.b16 %v1058
    %v1383 = vunpack.c.l.b16 %v1059
    %v1384 = vunpack.c.l.b16 %v1060
    %v1385 = vunpack.c.l.b16 %v1061
    %v1386 = vunpack.c.l.b16 %v1062
    %v1387 = vunpack.c.l.b16 %v1063
    %v1388 = vunpack.c.l.b16 %v1064
    %v1389 = vunpack.c.l.b16 %v1065
    %v1390 = vunpack.c.l.b16 %v1066
    %v1391 = vunpack.c.l.b16 %v1067
    %v1392 = vunpack.c.l.b16 %v1068
    %v1393 = vunpack.c.l.b16 %v1069
    %v1394 = vunpack.c.l.b16 %v1070
    %v1395 = vunpack.c.l.b16 %v1071
    %v1396 = vunpack.c.l.b16 %v1072
    %v1397 = vunpack.c.l.b16 %v1073
    %v1398 = vunpack.c.l.b16 %v1074
    %v1399 = vunpack.c.l.b16 %v1075
    %v1400 = vunpack.c.l.b16 %v1076
    %v1401 = vunpack.c.l.b16 %v1077
    %v1402 = vunpack.c.l.b16 %v1078
    %v1403 = vunpack.c.l.b16 %v1079
    %v1404 = vunpack.c.l.b16 %v1080
    %v1405 = vunpack.c.l.b16 %v1081
    %v1406 = vunpack.c.l.b16 %v1082
    %v1407 = vunpack.c.l.b16 %v1083
    %v1408 = vunpack.c.l.b16 %v1084
    %v1409 = vunpack.c.l.b16 %v1085
    %v1410 = vunpack.c.l.b16 %v1086
    %v1411 = vunpack.c.l.b16 %v1087
    %v1412 = vunpack.c.l.b16 %v1088
    %v1413 = vunpack.c.l.b16 %v1089
    %v1414 = vunpack.c.l.b16 %v1090
    %v1415 = vunpack.c.l.b16 %v1091
    %v1416 = vunpack.c.l.b16 %v1092
    %v1417 = vunpack.c.l.b16 %v1093
    %v1418 = vunpack.c.l.b16 %v1094
    %v1419 = vunpack.c.l.b16 %v1095
    %v1420 = vunpack.c.l.b16 %v1096
    %v1421 = vunpack.c.l.b16 %v1097
    %v1422 = vunpack.c.l.b16 %v1098
    %v1423 = vunpack.c.l.b16 %v1099
    %v1424 = vunpack.c.l.b16 %v1100
    %v1425 = vunpack.c.l.b16 %v1101
    %v1426 = vunpack.c.l.b16 %v1102
    %v1427 = vunpack.c.l.b16 %v1103
    %v1428 = vunpack.c.l.b16 %v1104
    %v1429 = vunpack.c.l.b16 %v1105
    %v1430 = vunpack.c.l.b16 %v1106
    %v1431 = vunpack.c.l.b16 %v1107
    %v1432 = vunpack.c.l.b16 %v1108
    %v1433 = vunpack.c.l.b16 %v1109
    %v1434 = vunpack.c.l.b16 %v1110
    %v1435 = vunpack.c.l.b16 %v1111
    %v1436 = vunpack.c.l.b16 %v1112
    %v1437 = vunpack.c.l.b16 %v1113
    %v1438 = vunpack.c.l.b16 %v1114
    %v1439 = vunpack.c.l.b16 %v1115
    %v1440 = vunpack.c.l.b16 %v1116
    %v1441 = vunpack.c.l.b16 %v1117
    %v1442 = vunpack.c.l.b16 %v1118
    %v1443 = vunpack.c.l.b16 %v1119
    %v1444 = vunpack.c.l.b16 %v1120
    %v1445 = vunpack.c.l.b16 %v1121
    %v1446 = vunpack.c.l.b16 %v1122
    %v1447 = vunpack.c.l.b16 %v1123
    %v1448 = vpack.c.b16 %v1289, %v1288
    %v1449 = vpack.c.b16 %v1291, %v1290
    %v1450 = vpack.c.b16 %v1293, %v1292
    %v1451 = vpack.c.b16 %v1295, %v1294
    %v1452 = vpack.c.b16 %v1297, %v1296
    %v1453 = vpack.c.b16 %v1299, %v1298
    %v1454 = vpack.c.b16 %v1301, %v1300
    %v1455 = vpack.c.b16 %v1303, %v1302
    %v1456 = vpack.c.b16 %v1305, %v1304
    %v1457 = vpack.c.b16 %v1307, %v1306
    %v1458 = vpack.c.b16 %v1309, %v1308
    %v1459 = vpack.c.b16 %v1311, %v1310
    %v1460 = vpack.c.b16 %v1313, %v1312
    %v1461 = vpack.c.b16 %v1315, %v1314
    %v1462 = vpack.c.b16 %v1317, %v1316
    %v1463 = vpack.c.b16 %v1319, %v1318
    %v1464 = vpack.c.b16 %v1321, %v1320
    %v1465 = vpack.c.b16 %v1323, %v1322
    %v1466 = vpack.c.b16 %v1325, %v1324
    %v1467 = vpack.c.b16 %v1327, %v1326
    %v1468 = vpack.c.b16 %v1329, %v1328
    %v1469 = vpack.c.b16 %v1331, %v1330
    %v1470 = vpack.c.b16 %v1333, %v1332
    %v1471 = vpack.c.b16 %v1335, %v1334
    %v1472 = vpack.c.b16 %v1337, %v1336
    %v1473 = vpack.c.b16 %v1339, %v1338
    %v1474 = vpack.c.b16 %v1341, %v1340
    %v1475 = vpack.c.b16 %v1343, %v1342
    %v1476 = vpack.c.b16 %v1345, %v1344
    %v1477 = vpack.c.b16 %v1347, %v1346
    %v1478 = vpack.c.b16 %v1349, %v1348
    %v1479 = vpack.c.b16 %v1351, %v1350
    %v1480 = vpack.c.b16 %v1353, %v1352
    %v1481 = vpack.c.b16 %v1355, %v1354
    %v1482 = vpack.c.b16 %v1357, %v1356
    %v1483 = vpack.c.b16 %v1359, %v1358
    %v1484 = vpack.c.b16 %v1361, %v1360
    %v1485 = vpack.c.b16 %v1363, %v1362
    %v1486 = vpack.c.b16 %v1365, %v1364
    %v1487 = vpack.c.b16 %v1367, %v1366
    %v1488 = vpack.c.b16 %v1369, %v1368
    %v1489 = vpack.c.b16 %v1371, %v1370
    %v1490 = vpack.c.b16 %v1373, %v1372
    %v1491 = vpack.c.b16 %v1375, %v1374
    %v1492 = vpack.c.b16 %v1377, %v1376
    %v1493 = vpack.c.b16 %v1379, %v1378
    %v1494 = vpack.c.b16 %v1381, %v1380
    %v1495 = vpack.c.b16 %v1383, %v1382
    %v1496 = vpack.c.b16 %v1385, %v1384
    %v1497 = vpack.c.b16 %v1387, %v1386
    %v1498 = vpack.c.b16 %v1389, %v1388
    %v1499 = vpack.c.b16 %v1391, %v1390
    %v1500 = vpack.c.b16 %v1393, %v1392
    %v1501 = vpack.c.b16 %v1395, %v1394
    %v1502 = vpack.c.b16 %v1397, %v1396
    %v1503 = vpack.c.b16 %v1399, %v1398
    %v1504 = vpack.c.b16 %v1401, %v1400
    %v1505 = vpack.c.b16 %v1403, %v1402
    %v1506 = vpack.c.b16 %v1405, %v1404
    %v1507 = vpack.c.b16 %v1407, %v1406
    %v1508 = vpack.c.b16 %v1409, %v1408
    %v1509 = vpack.c.b16 %v1411, %v1410
    %v1510 = vpack.c.b16 %v1413, %v1412
    %v1511 = vpack.c.b16 %v1415, %v1414
    %v1512 = vpack.c.b16 %v1417, %v1416
    %v1513 = vpack.c.b16 %v1419, %v1418
    %v1514 = vpack.c.b16 %v1421, %v1420
    %v1515 = vpack.c.b16 %v1423, %v1422
    %v1516 = vpack.c.b16 %v1425, %v1424
    %v1517 = vpack.c.b16 %v1427, %v1426
    %v1518 = vpack.c.b16 %v1429, %v1428
    %v1519 = vpack.c.b16 %v1431, %v1430
    %v1520 = vpack.c.b16 %v1433, %v1432
    %v1521 = vpack.c.b16 %v1435, %v1434
    %v1522 = vpack.c.b16 %v1437, %v1436
    %v1523 = vpack.c.b16 %v1439, %v1438
    %v1524 = vpack.c.b16 %v1441, %v1440
    %v1525 = vpack.c.b16 %v1443, %v1442
    %v1526 = vpack.c.b16 %v1445, %v1444
    %v1527 = vpack.c.b16 %v1447, %v1446
    %1608 = vmatpush.bf16.msra.mxu0 %v1455
    %1609 = vmatpush.bf16.msra.mxu0 %v1454
    %1610 = vmatpush.bf16.msra.mxu0 %v1453
    %1611 = vmatpush.bf16.msra.mxu0 %v1452
    %1612 = vmatpush.bf16.msra.mxu0 %v1451
    %1613 = vmatpush.bf16.msra.mxu0 %v1450
    %1614 = vmatpush.bf16.msra.mxu0 %v1449
    %1615 = vmatpush.bf16.msra.mxu0 %v1448
    %1616 = vmatmul.bf16.gmra.mxu0 %v954
    %v1617 = vpop.f32.mrf.mxu0
    %v1618 = vadd.f32 %v1126, %v1617
    %v1619 = vpop.f32.mrf.mxu0
    %1620 = vdwg.mxu0
    %1621 = vmatpush.bf16.msra.mxu0 %v1463
    %1622 = vmatpush.bf16.msra.mxu0 %v1462
    %1623 = vmatpush.bf16.msra.mxu0 %v1461
    %1624 = vmatpush.bf16.msra.mxu0 %v1460
    %1625 = vmatpush.bf16.msra.mxu0 %v1459
    %1626 = vmatpush.bf16.msra.mxu0 %v1458
    %1627 = vmatpush.bf16.msra.mxu0 %v1457
    %1628 = vmatpush.bf16.msra.mxu0 %v1456
    %1629 = vmatmul.bf16.gmra.mxu0 %v955
    %v1630 = vpop.f32.mrf.mxu0
    %v1631 = vadd.f32 %v1618, %v1630
    %v1632 = vpop.f32.mrf.mxu0
    %1633 = vdwg.mxu0
    %1634 = vmatpush.bf16.msra.mxu0 %v1471
    %1635 = vmatpush.bf16.msra.mxu0 %v1470
    %1636 = vmatpush.bf16.msra.mxu0 %v1469
    %1637 = vmatpush.bf16.msra.mxu0 %v1468
    %1638 = vmatpush.bf16.msra.mxu0 %v1467
    %1639 = vmatpush.bf16.msra.mxu0 %v1466
    %1640 = vmatpush.bf16.msra.mxu0 %v1465
    %1641 = vmatpush.bf16.msra.mxu0 %v1464
    %1642 = vmatmul.bf16.gmra.mxu0 %v956
    %v1643 = vpop.f32.mrf.mxu0
    %v1644 = vadd.f32 %v1631, %v1643
    %v1645 = vpop.f32.mrf.mxu0
    %1646 = vdwg.mxu0
    %1647 = vmatpush.bf16.msra.mxu0 %v1479
    %1648 = vmatpush.bf16.msra.mxu0 %v1478
    %1649 = vmatpush.bf16.msra.mxu0 %v1477
    %1650 = vmatpush.bf16.msra.mxu0 %v1476
    %1651 = vmatpush.bf16.msra.mxu0 %v1475
    %1652 = vmatpush.bf16.msra.mxu0 %v1474
    %1653 = vmatpush.bf16.msra.mxu0 %v1473
    %1654 = vmatpush.bf16.msra.mxu0 %v1472
    %1655 = vmatmul.bf16.gmra.mxu0 %v957
    %v1656 = vpop.f32.mrf.mxu0
    %v1657 = vadd.f32 %v1644, %v1656
    %v1658 = vpop.f32.mrf.mxu0
    %1659 = vdwg.mxu0
    %1660 = vmatpush.bf16.msra.mxu0 %v1487
    %1661 = vmatpush.bf16.msra.mxu0 %v1486
    %1662 = vmatpush.bf16.msra.mxu0 %v1485
    %1663 = vmatpush.bf16.msra.mxu0 %v1484
    %1664 = vmatpush.bf16.msra.mxu0 %v1483
    %1665 = vmatpush.bf16.msra.mxu0 %v1482
    %1666 = vmatpush.bf16.msra.mxu0 %v1481
    %1667 = vmatpush.bf16.msra.mxu0 %v1480
    %1668 = vmatmul.bf16.gmra.mxu0 %v958
    %v1669 = vpop.f32.mrf.mxu0
    %v1670 = vadd.f32 %v1657, %v1669
    %v1671 = vpop.f32.mrf.mxu0
    %1672 = vdwg.mxu0
    %1673 = vmatpush.bf16.msra.mxu0 %v1495
    %1674 = vmatpush.bf16.msra.mxu0 %v1494
    %1675 = vmatpush.bf16.msra.mxu0 %v1493
    %1676 = vmatpush.bf16.msra.mxu0 %v1492
    %1677 = vmatpush.bf16.msra.mxu0 %v1491
    %1678 = vmatpush.bf16.msra.mxu0 %v1490
    %1679 = vmatpush.bf16.msra.mxu0 %v1489
    %1680 = vmatpush.bf16.msra.mxu0 %v1488
    %1681 = vmatmul.bf16.gmra.mxu0 %v959
    %v1682 = vpop.f32.mrf.mxu0
    %v1683 = vadd.f32 %v1670, %v1682
    %v1684 = vpop.f32.mrf.mxu0
    %1685 = vdwg.mxu0
    %1686 = vmatpush.bf16.msra.mxu0 %v1503
    %1687 = vmatpush.bf16.msra.mxu0 %v1502
    %1688 = vmatpush.bf16.msra.mxu0 %v1501
    %1689 = vmatpush.bf16.msra.mxu0 %v1500
    %1690 = vmatpush.bf16.msra.mxu0 %v1499
    %1691 = vmatpush.bf16.msra.mxu0 %v1498
    %1692 = vmatpush.bf16.msra.mxu0 %v1497
    %1693 = vmatpush.bf16.msra.mxu0 %v1496
    %1694 = vmatmul.bf16.gmra.mxu0 %v960
    %v1695 = vpop.f32.mrf.mxu0
    %v1696 = vadd.f32 %v1683, %v1695
    %v1697 = vpop.f32.mrf.mxu0
    %1698 = vdwg.mxu0
    %1699 = vmatpush.bf16.msra.mxu0 %v1511
    %1700 = vmatpush.bf16.msra.mxu0 %v1510
    %1701 = vmatpush.bf16.msra.mxu0 %v1509
    %1702 = vmatpush.bf16.msra.mxu0 %v1508
    %1703 = vmatpush.bf16.msra.mxu0 %v1507
    %1704 = vmatpush.bf16.msra.mxu0 %v1506
    %1705 = vmatpush.bf16.msra.mxu0 %v1505
    %1706 = vmatpush.bf16.msra.mxu0 %v1504
    %1707 = vmatmul.bf16.gmra.mxu0 %v961
    %v1708 = vpop.f32.mrf.mxu0
    %v1709 = vadd.f32 %v1696, %v1708
    %v1710 = vpop.f32.mrf.mxu0
    %1711 = vdwg.mxu0
    %1712 = vmatpush.bf16.msra.mxu0 %v1519
    %1713 = vmatpush.bf16.msra.mxu0 %v1518
    %1714 = vmatpush.bf16.msra.mxu0 %v1517
    %1715 = vmatpush.bf16.msra.mxu0 %v1516
    %1716 = vmatpush.bf16.msra.mxu0 %v1515
    %1717 = vmatpush.bf16.msra.mxu0 %v1514
    %1718 = vmatpush.bf16.msra.mxu0 %v1513
    %1719 = vmatpush.bf16.msra.mxu0 %v1512
    %1720 = vmatmul.bf16.gmra.mxu0 %v962
    %v1721 = vpop.f32.mrf.mxu0
    %v1722 = vadd.f32 %v1709, %v1721
    %v1723 = vpop.f32.mrf.mxu0
    %1724 = vdwg.mxu0
    %1725 = vmatpush.bf16.msra.mxu0 %v1527
    %1726 = vmatpush.bf16.msra.mxu0 %v1526
    %1727 = vmatpush.bf16.msra.mxu0 %v1525
    %1728 = vmatpush.bf16.msra.mxu0 %v1524
    %1729 = vmatpush.bf16.msra.mxu0 %v1523
    %1730 = vmatpush.bf16.msra.mxu0 %v1522
    %1731 = vmatpush.bf16.msra.mxu0 %v1521
    %1732 = vmatpush.bf16.msra.mxu0 %v1520
    %1733 = vmatmul.bf16.gmra.mxu0 %v963
    %v1734 = vpop.f32.mrf.mxu0
    %v1735 = vadd.f32 %v1722, %v1734
    %v1736 = vpop.f32.mrf.mxu0
    %1737 = vdwg.mxu0
    %vm1738 = vcmask 74752
    %1739 = vst.msk [vmem:[#allocation2] sm:$0x3] %vm1738, %v1735
    // Predicated region
    $region22: #{mto_wave_cnn_forward.3} parent=1 // pred_check
      _
    $region23: #{mto_wave_cnn_forward.3} parent=1 // pred_check_branch
      %1741 = sbr.rel (0) target = $region25
    $region24: #{mto_wave_cnn_forward.3} parent=1 // pred_region
      %1743 = vsyncadd [#allocation3], 0
      %s1745 = sshll.u32 [#allocation2], 4
      %s1746 = int_to_ptr.vmem [resolvable:$true] %s1745
      %s1747 = sshll.u32 %s5, 4
      %s1748 = int_to_ptr.hbm [resolvable:$true] %s1747
      %1750 = dma.vmem_to_hbm [thread:$0]  %s1746, 32, %s1748, [#allocation3]
    $region25: #{mto_wave_cnn_forward.3} parent=1 // pred_fallthru
      _
    // Predicated region
    $region26: #{mto_wave_cnn_forward.3} parent=1 // pred_check
      _
    $region27: #{mto_wave_cnn_forward.3} parent=1 // pred_check_branch
      %1752 = sbr.rel (0) target = $region29
    $region28: #{mto_wave_cnn_forward.3} parent=1 // pred_region
      %1754 = dma.done [#allocation3], 32
    $region29: #{mto_wave_cnn_forward.3} parent=1 // pred_fallthru
      _
    %1755 = vsyncpa [#allocation3], 1

// kernel: mto_wave_cnn_forward.2
$region0: #{mto_wave_cnn_forward.2}
  #allocation0 [shape = 'u32[]', space=smem, size = 0x4, offset = 0x4, fixed_abs, tag = 'smem constant byte address 0x4 - core index']
  #allocation1 [shape = 'u32[72,128]{1,0:T(1,128)}', space=vmem, size = 0x9000, scoped, tag = 'internal scratch']
  %s0 = inlined_call_operand.vmem [shape: bf16[604,11], index: 0, kind: input, shape index: {}]
  %s1 = inlined_call_operand.vmem [shape: bf16[11,32], index: 1, kind: input, shape index: {}]
  %s2 = inlined_call_operand.vmem [shape: bf16[124,51], index: 2, kind: input, shape index: {}]
  %s3 = inlined_call_operand.vmem [shape: bf16[51,32], index: 3, kind: input, shape index: {}]
  %s4 = inlined_call_operand.vmem [shape: bf16[64,101], index: 4, kind: input, shape index: {}]
  %s5 = inlined_call_operand.vmem [shape: bf16[101,32], index: 5, kind: input, shape index: {}]
  %s6 = inlined_call_operand.vmem [shape: f32[12,32], index: 6, kind: input, shape index: {}]
  %s7 = inlined_call_operand.vmem [shape: bf16[288,32], index: 7, kind: input, shape index: {}]
  %s8 = inlined_call_operand.vmem [shape: bf16[192,1536], index: 8, kind: input, shape index: {}]
  %s9 = inlined_call_operand.vmem [shape: f32[2,1536], index: 9, kind: output, shape index: {}]
  %s10 = sld [smem:[#allocation0]]
  $region46: #{mto_wave_cnn_forward.2} parent=0
    _
  %s12 = ssub.s32 1, %s10
  %s13 = scalar_select 0, %s12, %s10
  // Predicated region
  $region2: #{mto_wave_cnn_forward.2} parent=0 // pred_check
    _
  $region3: #{mto_wave_cnn_forward.2} parent=0 // pred_check_branch
    %15 = sbr.rel (0) target = $region5
  $region4: #{mto_wave_cnn_forward.2} parent=0 // pred_region
    _
  $region5: #{mto_wave_cnn_forward.2} parent=0 // pred_fallthru
    _
  // Predicated region
  $region6: #{mto_wave_cnn_forward.2} parent=0 // pred_check
    _
  $region7: #{mto_wave_cnn_forward.2} parent=0 // pred_check_branch
    %17 = sbr.rel (0) target = $region9
  $region8: #{mto_wave_cnn_forward.2} parent=0 // pred_region
    _
  $region9: #{mto_wave_cnn_forward.2} parent=0 // pred_fallthru
    _
  // Predicated region
  $region10: #{mto_wave_cnn_forward.2} parent=0 // pred_check
    _
  $region11: #{mto_wave_cnn_forward.2} parent=0 // pred_check_branch
    %19 = sbr.rel (0) target = $region13
  $region12: #{mto_wave_cnn_forward.2} parent=0 // pred_region
    _
  $region13: #{mto_wave_cnn_forward.2} parent=0 // pred_fallthru
    _
  // Predicated region
  $region14: #{mto_wave_cnn_forward.2} parent=0 // pred_check
    _
  $region15: #{mto_wave_cnn_forward.2} parent=0 // pred_check_branch
    %21 = sbr.rel (0) target = $region17
  $region16: #{mto_wave_cnn_forward.2} parent=0 // pred_region
    _
  $region17: #{mto_wave_cnn_forward.2} parent=0 // pred_fallthru
    _
  // Predicated region
  $region18: #{mto_wave_cnn_forward.2} parent=0 // pred_check
    _
  $region19: #{mto_wave_cnn_forward.2} parent=0 // pred_check_branch
    %23 = sbr.rel (0) target = $region21
  $region20: #{mto_wave_cnn_forward.2} parent=0 // pred_region
    _
  $region21: #{mto_wave_cnn_forward.2} parent=0 // pred_fallthru
    _
  // Predicated region
  $region22: #{mto_wave_cnn_forward.2} parent=0 // pred_check
    _
  $region23: #{mto_wave_cnn_forward.2} parent=0 // pred_check_branch
    %25 = sbr.rel (0) target = $region25
  $region24: #{mto_wave_cnn_forward.2} parent=0 // pred_region
    _
  $region25: #{mto_wave_cnn_forward.2} parent=0 // pred_fallthru
    _
  // Predicated region
  $region26: #{mto_wave_cnn_forward.2} parent=0 // pred_check
    _
  $region27: #{mto_wave_cnn_forward.2} parent=0 // pred_check_branch
    %27 = sbr.rel (0) target = $region29
  $region28: #{mto_wave_cnn_forward.2} parent=0 // pred_region
    _
  $region29: #{mto_wave_cnn_forward.2} parent=0 // pred_fallthru
    _
  // Predicated region
  $region30: #{mto_wave_cnn_forward.2} parent=0 // pred_check
    _
  $region31: #{mto_wave_cnn_forward.2} parent=0 // pred_check_branch
    %29 = sbr.rel (0) target = $region33
  $region32: #{mto_wave_cnn_forward.2} parent=0 // pred_region
    _
  $region33: #{mto_wave_cnn_forward.2} parent=0 // pred_fallthru
    _
  // Predicated region
  $region34: #{mto_wave_cnn_forward.2} parent=0 // pred_check
    _
  $region35: #{mto_wave_cnn_forward.2} parent=0 // pred_check_branch
    %31 = sbr.rel (0) target = $region37
  $region36: #{mto_wave_cnn_forward.2} parent=0 // pred_region
    _
  $region37: #{mto_wave_cnn_forward.2} parent=0 // pred_fallthru
    _
  %v33 = vlaneseq
  %v34 = vshrl.u32 %v33, 7
  %v35 = vadd.s32 %v34, 8
  %v36 = vadd.s32 %v34, 16
  %v37 = vadd.s32 %v34, 24
  %v38 = vadd.s32 %v34, 32
  %v39 = vadd.s32 %v34, 40
  %v40 = vadd.s32 %v34, 48
  %v41 = vadd.s32 %v34, 56
  %v42 = vadd.s32 %v34, 64
  %v43 = vadd.s32 %v34, 72
  %v44 = vadd.s32 %v34, 80
  %v45 = vadd.s32 %v34, 88
  %v46 = vadd.s32 %v34, 96
  %v47 = vadd.s32 %v34, 104
  %v48 = vadd.s32 %v34, 112
  %v49 = vadd.s32 %v34, 120
  %v50 = vadd.s32 %v34, 128
  %v51 = vadd.s32 %v34, 136
  %v52 = vadd.s32 %v34, 144
  %v53 = vadd.s32 %v34, 152
  %v54 = vadd.s32 %v34, 160
  %v55 = vadd.s32 %v34, 168
  %v56 = vadd.s32 %v34, 176
  %v57 = vadd.s32 %v34, 184
  %v58 = vadd.s32 %v34, 192
  %v59 = vadd.s32 %v34, 200
  %v60 = vadd.s32 %v34, 208
  %v61 = vadd.s32 %v34, 216
  %v62 = vadd.s32 %v34, 224
  %v63 = vadd.s32 %v34, 232
  %v64 = vadd.s32 %v34, 240
  %v65 = vadd.s32 %v34, 248
  %v66 = vadd.s32 %v34, 256
  %v67 = vadd.s32 %v34, 264
  %v68 = vadd.s32 %v34, 272
  %v69 = vadd.s32 %v34, 280
  %v70 = vadd.s32 %v34, 288
  %v71 = vadd.s32 %v34, 296
  %v72 = vadd.s32 %v34, 304
  %v73 = vadd.s32 %v34, 312
  %v74 = vadd.s32 %v34, 320
  %v75 = vadd.s32 %v34, 328
  %v76 = vadd.s32 %v34, 336
  %v77 = vadd.s32 %v34, 344
  %v78 = vadd.s32 %v34, 352
  %v79 = vadd.s32 %v34, 360
  %v80 = vadd.s32 %v34, 368
  %v81 = vadd.s32 %v34, 376
  %v82 = vadd.s32 %v34, 384
  %v83 = vadd.s32 %v34, 392
  %v84 = vadd.s32 %v34, 400
  %v85 = vadd.s32 %v34, 408
  %v86 = vadd.s32 %v34, 416
  %v87 = vadd.s32 %v34, 424
  %v88 = vadd.s32 %v34, 432
  %v89 = vadd.s32 %v34, 440
  %v90 = vadd.s32 %v34, 448
  %v91 = vadd.s32 %v34, 456
  %v92 = vadd.s32 %v34, 464
  %v93 = vadd.s32 %v34, 472
  %v94 = vadd.s32 %v34, 480
  %v95 = vadd.s32 %v34, 488
  %v96 = vadd.s32 %v34, 496
  %v97 = vadd.s32 %v34, 504
  %v98 = vadd.s32 %v34, 512
  %v99 = vadd.s32 %v34, 520
  %v100 = vadd.s32 %v34, 528
  %v101 = vadd.s32 %v34, 536
  %v102 = vadd.s32 %v34, 544
  %v103 = vadd.s32 %v34, 552
  %v104 = vadd.s32 %v34, 560
  %v105 = vadd.s32 %v34, 568
  %v106 = vadd.s32 %v34, 576
  %v107 = vadd.s32 %v34, 584
  %v108 = vadd.s32 %v34, 592
  %v109 = vadd.s32 %v34, 600
  %vm110 = vcmp.ne.s32.totalorder %v34, 0
  %vm111 = vcmp.ne.s32.totalorder %v35, 0
  %vm112 = vcmp.ne.s32.totalorder %v36, 0
  %vm113 = vcmp.ne.s32.totalorder %v37, 0
  %vm114 = vcmp.ne.s32.totalorder %v38, 0
  %vm115 = vcmp.ne.s32.totalorder %v39, 0
  %vm116 = vcmp.ne.s32.totalorder %v40, 0
  %vm117 = vcmp.ne.s32.totalorder %v41, 0
  %vm118 = vcmp.ne.s32.totalorder %v42, 0
  %vm119 = vcmp.ne.s32.totalorder %v43, 0
  %vm120 = vcmp.ne.s32.totalorder %v44, 0
  %vm121 = vcmp.ne.s32.totalorder %v45, 0
  %vm122 = vcmp.ne.s32.totalorder %v46, 0
  %vm123 = vcmp.ne.s32.totalorder %v47, 0
  %vm124 = vcmp.ne.s32.totalorder %v48, 0
  %vm125 = vcmp.ne.s32.totalorder %v49, 0
  %vm126 = vcmp.ne.s32.totalorder %v50, 0
  %vm127 = vcmp.ne.s32.totalorder %v51, 0
  %vm128 = vcmp.ne.s32.totalorder %v52, 0
  %vm129 = vcmp.ne.s32.totalorder %v53, 0
  %vm130 = vcmp.ne.s32.totalorder %v54, 0
  %vm131 = vcmp.ne.s32.totalorder %v55, 0
  %vm132 = vcmp.ne.s32.totalorder %v56, 0
  %vm133 = vcmp.ne.s32.totalorder %v57, 0
  %vm134 = vcmp.ne.s32.totalorder %v58, 0
  %vm135 = vcmp.ne.s32.totalorder %v59, 0
  %vm136 = vcmp.ne.s32.totalorder %v60, 0
  %vm137 = vcmp.ne.s32.totalorder %v61, 0
  %vm138 = vcmp.ne.s32.totalorder %v62, 0
  %vm139 = vcmp.ne.s32.totalorder %v63, 0
  %vm140 = vcmp.ne.s32.totalorder %v64, 0
  %vm141 = vcmp.ne.s32.totalorder %v65, 0
  %vm142 = vcmp.ne.s32.totalorder %v66, 0
  %vm143 = vcmp.ne.s32.totalorder %v67, 0
  %vm144 = vcmp.ne.s32.totalorder %v68, 0
  %vm145 = vcmp.ne.s32.totalorder %v69, 0
  %vm146 = vcmp.ne.s32.totalorder %v70, 0
  %vm147 = vcmp.ne.s32.totalorder %v71, 0
  %vm148 = vcmp.ne.s32.totalorder %v72, 0
  %vm149 = vcmp.ne.s32.totalorder %v73, 0
  %vm150 = vcmp.ne.s32.totalorder %v74, 0
  %vm151 = vcmp.ne.s32.totalorder %v75, 0
  %vm152 = vcmp.ne.s32.totalorder %v76, 0
  %vm153 = vcmp.ne.s32.totalorder %v77, 0
  %vm154 = vcmp.ne.s32.totalorder %v78, 0
  %vm155 = vcmp.ne.s32.totalorder %v79, 0
  %vm156 = vcmp.ne.s32.totalorder %v80, 0
  %vm157 = vcmp.ne.s32.totalorder %v81, 0
  %vm158 = vcmp.ne.s32.totalorder %v82, 0
  %vm159 = vcmp.ne.s32.totalorder %v83, 0
  %vm160 = vcmp.ne.s32.totalorder %v84, 0
  %vm161 = vcmp.ne.s32.totalorder %v85, 0
  %vm162 = vcmp.ne.s32.totalorder %v86, 0
  %vm163 = vcmp.ne.s32.totalorder %v87, 0
  %vm164 = vcmp.ne.s32.totalorder %v88, 0
  %vm165 = vcmp.ne.s32.totalorder %v89, 0
  %vm166 = vcmp.ne.s32.totalorder %v90, 0
  %vm167 = vcmp.ne.s32.totalorder %v91, 0
  %vm168 = vcmp.ne.s32.totalorder %v92, 0
  %vm169 = vcmp.ne.s32.totalorder %v93, 0
  %vm170 = vcmp.ne.s32.totalorder %v94, 0
  %vm171 = vcmp.ne.s32.totalorder %v95, 0
  %vm172 = vcmp.ne.s32.totalorder %v96, 0
  %vm173 = vcmp.ne.s32.totalorder %v97, 0
  %vm174 = vcmp.ne.s32.totalorder %v98, 0
  %vm175 = vcmp.ne.s32.totalorder %v99, 0
  %vm176 = vcmp.ne.s32.totalorder %v100, 0
  %vm177 = vcmp.ne.s32.totalorder %v101, 0
  %vm178 = vcmp.ne.s32.totalorder %v102, 0
  %vm179 = vcmp.ne.s32.totalorder %v103, 0
  %vm180 = vcmp.ne.s32.totalorder %v104, 0
  %vm181 = vcmp.ne.s32.totalorder %v105, 0
  %vm182 = vcmp.ne.s32.totalorder %v106, 0
  %vm183 = vcmp.ne.s32.totalorder %v107, 0
  %vm184 = vcmp.ne.s32.totalorder %v108, 0
  %vm185 = vcmp.ne.s32.totalorder %v109, 0
  %vm186 = vcmp.ne.s32.totalorder %v34, 301
  %vm187 = vcmp.ne.s32.totalorder %v35, 301
  %vm188 = vcmp.ne.s32.totalorder %v36, 301
  %vm189 = vcmp.ne.s32.totalorder %v37, 301
  %vm190 = vcmp.ne.s32.totalorder %v38, 301
  %vm191 = vcmp.ne.s32.totalorder %v39, 301
  %vm192 = vcmp.ne.s32.totalorder %v40, 301
  %vm193 = vcmp.ne.s32.totalorder %v41, 301
  %vm194 = vcmp.ne.s32.totalorder %v42, 301
  %vm195 = vcmp.ne.s32.totalorder %v43, 301
  %vm196 = vcmp.ne.s32.totalorder %v44, 301
  %vm197 = vcmp.ne.s32.totalorder %v45, 301
  %vm198 = vcmp.ne.s32.totalorder %v46, 301
  %vm199 = vcmp.ne.s32.totalorder %v47, 301
  %vm200 = vcmp.ne.s32.totalorder %v48, 301
  %vm201 = vcmp.ne.s32.totalorder %v49, 301
  %vm202 = vcmp.ne.s32.totalorder %v50, 301
  %vm203 = vcmp.ne.s32.totalorder %v51, 301
  %vm204 = vcmp.ne.s32.totalorder %v52, 301
  %vm205 = vcmp.ne.s32.totalorder %v53, 301
  %vm206 = vcmp.ne.s32.totalorder %v54, 301
  %vm207 = vcmp.ne.s32.totalorder %v55, 301
  %vm208 = vcmp.ne.s32.totalorder %v56, 301
  %vm209 = vcmp.ne.s32.totalorder %v57, 301
  %vm210 = vcmp.ne.s32.totalorder %v58, 301
  %vm211 = vcmp.ne.s32.totalorder %v59, 301
  %vm212 = vcmp.ne.s32.totalorder %v60, 301
  %vm213 = vcmp.ne.s32.totalorder %v61, 301
  %vm214 = vcmp.ne.s32.totalorder %v62, 301
  %vm215 = vcmp.ne.s32.totalorder %v63, 301
  %vm216 = vcmp.ne.s32.totalorder %v64, 301
  %vm217 = vcmp.ne.s32.totalorder %v65, 301
  %vm218 = vcmp.ne.s32.totalorder %v66, 301
  %vm219 = vcmp.ne.s32.totalorder %v67, 301
  %vm220 = vcmp.ne.s32.totalorder %v68, 301
  %vm221 = vcmp.ne.s32.totalorder %v69, 301
  %vm222 = vcmp.ne.s32.totalorder %v70, 301
  %vm223 = vcmp.ne.s32.totalorder %v71, 301
  %vm224 = vcmp.ne.s32.totalorder %v72, 301
  %vm225 = vcmp.ne.s32.totalorder %v73, 301
  %vm226 = vcmp.ne.s32.totalorder %v74, 301
  %vm227 = vcmp.ne.s32.totalorder %v75, 301
  %vm228 = vcmp.ne.s32.totalorder %v76, 301
  %vm229 = vcmp.ne.s32.totalorder %v77, 301
  %vm230 = vcmp.ne.s32.totalorder %v78, 301
  %vm231 = vcmp.ne.s32.totalorder %v79, 301
  %vm232 = vcmp.ne.s32.totalorder %v80, 301
  %vm233 = vcmp.ne.s32.totalorder %v81, 301
  %vm234 = vcmp.ne.s32.totalorder %v82, 301
  %vm235 = vcmp.ne.s32.totalorder %v83, 301
  %vm236 = vcmp.ne.s32.totalorder %v84, 301
  %vm237 = vcmp.ne.s32.totalorder %v85, 301
  %vm238 = vcmp.ne.s32.totalorder %v86, 301
  %vm239 = vcmp.ne.s32.totalorder %v87, 301
  %vm240 = vcmp.ne.s32.totalorder %v88, 301
  %vm241 = vcmp.ne.s32.totalorder %v89, 301
  %vm242 = vcmp.ne.s32.totalorder %v90, 301
  %vm243 = vcmp.ne.s32.totalorder %v91, 301
  %vm244 = vcmp.ne.s32.totalorder %v92, 301
  %vm245 = vcmp.ne.s32.totalorder %v93, 301
  %vm246 = vcmp.ne.s32.totalorder %v94, 301
  %vm247 = vcmp.ne.s32.totalorder %v95, 301
  %vm248 = vcmp.ne.s32.totalorder %v96, 301
  %vm249 = vcmp.ne.s32.totalorder %v97, 301
  %vm250 = vcmp.ne.s32.totalorder %v98, 301
  %vm251 = vcmp.ne.s32.totalorder %v99, 301
  %vm252 = vcmp.ne.s32.totalorder %v100, 301
  %vm253 = vcmp.ne.s32.totalorder %v101, 301
  %vm254 = vcmp.ne.s32.totalorder %v102, 301
  %vm255 = vcmp.ne.s32.totalorder %v103, 301
  %vm256 = vcmp.ne.s32.totalorder %v104, 301
  %vm257 = vcmp.ne.s32.totalorder %v105, 301
  %vm258 = vcmp.ne.s32.totalorder %v106, 301
  %vm259 = vcmp.ne.s32.totalorder %v107, 301
  %vm260 = vcmp.ne.s32.totalorder %v108, 301
  %vm261 = vcmp.ne.s32.totalorder %v109, 301
  %vm262 = vcmp.ne.s32.totalorder %v34, 300
  %vm263 = vcmp.ne.s32.totalorder %v35, 300
  %vm264 = vcmp.ne.s32.totalorder %v36, 300
  %vm265 = vcmp.ne.s32.totalorder %v37, 300
  %vm266 = vcmp.ne.s32.totalorder %v38, 300
  %vm267 = vcmp.ne.s32.totalorder %v39, 300
  %vm268 = vcmp.ne.s32.totalorder %v40, 300
  %vm269 = vcmp.ne.s32.totalorder %v41, 300
  %vm270 = vcmp.ne.s32.totalorder %v42, 300
  %vm271 = vcmp.ne.s32.totalorder %v43, 300
  %vm272 = vcmp.ne.s32.totalorder %v44, 300
  %vm273 = vcmp.ne.s32.totalorder %v45, 300
  %vm274 = vcmp.ne.s32.totalorder %v46, 300
  %vm275 = vcmp.ne.s32.totalorder %v47, 300
  %vm276 = vcmp.ne.s32.totalorder %v48, 300
  %vm277 = vcmp.ne.s32.totalorder %v49, 300
  %vm278 = vcmp.ne.s32.totalorder %v50, 300
  %vm279 = vcmp.ne.s32.totalorder %v51, 300
  %vm280 = vcmp.ne.s32.totalorder %v52, 300
  %vm281 = vcmp.ne.s32.totalorder %v53, 300
  %vm282 = vcmp.ne.s32.totalorder %v54, 300
  %vm283 = vcmp.ne.s32.totalorder %v55, 300
  %vm284 = vcmp.ne.s32.totalorder %v56, 300
  %vm285 = vcmp.ne.s32.totalorder %v57, 300
  %vm286 = vcmp.ne.s32.totalorder %v58, 300
  %vm287 = vcmp.ne.s32.totalorder %v59, 300
  %vm288 = vcmp.ne.s32.totalorder %v60, 300
  %vm289 = vcmp.ne.s32.totalorder %v61, 300
  %vm290 = vcmp.ne.s32.totalorder %v62, 300
  %vm291 = vcmp.ne.s32.totalorder %v63, 300
  %vm292 = vcmp.ne.s32.totalorder %v64, 300
  %vm293 = vcmp.ne.s32.totalorder %v65, 300
  %vm294 = vcmp.ne.s32.totalorder %v66, 300
  %vm295 = vcmp.ne.s32.totalorder %v67, 300
  %vm296 = vcmp.ne.s32.totalorder %v68, 300
  %vm297 = vcmp.ne.s32.totalorder %v69, 300
  %vm298 = vcmp.ne.s32.totalorder %v70, 300
  %vm299 = vcmp.ne.s32.totalorder %v71, 300
  %vm300 = vcmp.ne.s32.totalorder %v72, 300
  %vm301 = vcmp.ne.s32.totalorder %v73, 300
  %vm302 = vcmp.ne.s32.totalorder %v74, 300
  %vm303 = vcmp.ne.s32.totalorder %v75, 300
  %vm304 = vcmp.ne.s32.totalorder %v76, 300
  %vm305 = vcmp.ne.s32.totalorder %v77, 300
  %vm306 = vcmp.ne.s32.totalorder %v78, 300
  %vm307 = vcmp.ne.s32.totalorder %v79, 300
  %vm308 = vcmp.ne.s32.totalorder %v80, 300
  %vm309 = vcmp.ne.s32.totalorder %v81, 300
  %vm310 = vcmp.ne.s32.totalorder %v82, 300
  %vm311 = vcmp.ne.s32.totalorder %v83, 300
  %vm312 = vcmp.ne.s32.totalorder %v84, 300
  %vm313 = vcmp.ne.s32.totalorder %v85, 300
  %vm314 = vcmp.ne.s32.totalorder %v86, 300
  %vm315 = vcmp.ne.s32.totalorder %v87, 300
  %vm316 = vcmp.ne.s32.totalorder %v88, 300
  %vm317 = vcmp.ne.s32.totalorder %v89, 300
  %vm318 = vcmp.ne.s32.totalorder %v90, 300
  %vm319 = vcmp.ne.s32.totalorder %v91, 300
  %vm320 = vcmp.ne.s32.totalorder %v92, 300
  %vm321 = vcmp.ne.s32.totalorder %v93, 300
  %vm322 = vcmp.ne.s32.totalorder %v94, 300
  %vm323 = vcmp.ne.s32.totalorder %v95, 300
  %vm324 = vcmp.ne.s32.totalorder %v96, 300
  %vm325 = vcmp.ne.s32.totalorder %v97, 300
  %vm326 = vcmp.ne.s32.totalorder %v98, 300
  %vm327 = vcmp.ne.s32.totalorder %v99, 300
  %vm328 = vcmp.ne.s32.totalorder %v100, 300
  %vm329 = vcmp.ne.s32.totalorder %v101, 300
  %vm330 = vcmp.ne.s32.totalorder %v102, 300
  %vm331 = vcmp.ne.s32.totalorder %v103, 300
  %vm332 = vcmp.ne.s32.totalorder %v104, 300
  %vm333 = vcmp.ne.s32.totalorder %v105, 300
  %vm334 = vcmp.ne.s32.totalorder %v106, 300
  %vm335 = vcmp.ne.s32.totalorder %v107, 300
  %vm336 = vcmp.ne.s32.totalorder %v108, 300
  %vm337 = vcmp.ne.s32.totalorder %v109, 300
  %vm338 = vcmp.ne.s32.totalorder %v34, 302
  %vm339 = vcmp.ne.s32.totalorder %v35, 302
  %vm340 = vcmp.ne.s32.totalorder %v36, 302
  %vm341 = vcmp.ne.s32.totalorder %v37, 302
  %vm342 = vcmp.ne.s32.totalorder %v38, 302
  %vm343 = vcmp.ne.s32.totalorder %v39, 302
  %vm344 = vcmp.ne.s32.totalorder %v40, 302
  %vm345 = vcmp.ne.s32.totalorder %v41, 302
  %vm346 = vcmp.ne.s32.totalorder %v42, 302
  %vm347 = vcmp.ne.s32.totalorder %v43, 302
  %vm348 = vcmp.ne.s32.totalorder %v44, 302
  %vm349 = vcmp.ne.s32.totalorder %v45, 302
  %vm350 = vcmp.ne.s32.totalorder %v46, 302
  %vm351 = vcmp.ne.s32.totalorder %v47, 302
  %vm352 = vcmp.ne.s32.totalorder %v48, 302
  %vm353 = vcmp.ne.s32.totalorder %v49, 302
  %vm354 = vcmp.ne.s32.totalorder %v50, 302
  %vm355 = vcmp.ne.s32.totalorder %v51, 302
  %vm356 = vcmp.ne.s32.totalorder %v52, 302
  %vm357 = vcmp.ne.s32.totalorder %v53, 302
  %vm358 = vcmp.ne.s32.totalorder %v54, 302
  %vm359 = vcmp.ne.s32.totalorder %v55, 302
  %vm360 = vcmp.ne.s32.totalorder %v56, 302
  %vm361 = vcmp.ne.s32.totalorder %v57, 302
  %vm362 = vcmp.ne.s32.totalorder %v58, 302
  %vm363 = vcmp.ne.s32.totalorder %v59, 302
  %vm364 = vcmp.ne.s32.totalorder %v60, 302
  %vm365 = vcmp.ne.s32.totalorder %v61, 302
  %vm366 = vcmp.ne.s32.totalorder %v62, 302
  %vm367 = vcmp.ne.s32.totalorder %v63, 302
  %vm368 = vcmp.ne.s32.totalorder %v64, 302
  %vm369 = vcmp.ne.s32.totalorder %v65, 302
  %vm370 = vcmp.ne.s32.totalorder %v66, 302
  %vm371 = vcmp.ne.s32.totalorder %v67, 302
  %vm372 = vcmp.ne.s32.totalorder %v68, 302
  %vm373 = vcmp.ne.s32.totalorder %v69, 302
  %vm374 = vcmp.ne.s32.totalorder %v70, 302
  %vm375 = vcmp.ne.s32.totalorder %v71, 302
  %vm376 = vcmp.ne.s32.totalorder %v72, 302
  %vm377 = vcmp.ne.s32.totalorder %v73, 302
  %vm378 = vcmp.ne.s32.totalorder %v74, 302
  %vm379 = vcmp.ne.s32.totalorder %v75, 302
  %vm380 = vcmp.ne.s32.totalorder %v76, 302
  %vm381 = vcmp.ne.s32.totalorder %v77, 302
  %vm382 = vcmp.ne.s32.totalorder %v78, 302
  %vm383 = vcmp.ne.s32.totalorder %v79, 302
  %vm384 = vcmp.ne.s32.totalorder %v80, 302
  %vm385 = vcmp.ne.s32.totalorder %v81, 302
  %vm386 = vcmp.ne.s32.totalorder %v82, 302
  %vm387 = vcmp.ne.s32.totalorder %v83, 302
  %vm388 = vcmp.ne.s32.totalorder %v84, 302
  %vm389 = vcmp.ne.s32.totalorder %v85, 302
  %vm390 = vcmp.ne.s32.totalorder %v86, 302
  %vm391 = vcmp.ne.s32.totalorder %v87, 302
  %vm392 = vcmp.ne.s32.totalorder %v88, 302
  %vm393 = vcmp.ne.s32.totalorder %v89, 302
  %vm394 = vcmp.ne.s32.totalorder %v90, 302
  %vm395 = vcmp.ne.s32.totalorder %v91, 302
  %vm396 = vcmp.ne.s32.totalorder %v92, 302
  %vm397 = vcmp.ne.s32.totalorder %v93, 302
  %vm398 = vcmp.ne.s32.totalorder %v94, 302
  %vm399 = vcmp.ne.s32.totalorder %v95, 302
  %vm400 = vcmp.ne.s32.totalorder %v96, 302
  %vm401 = vcmp.ne.s32.totalorder %v97, 302
  %vm402 = vcmp.ne.s32.totalorder %v98, 302
  %vm403 = vcmp.ne.s32.totalorder %v99, 302
  %vm404 = vcmp.ne.s32.totalorder %v100, 302
  %vm405 = vcmp.ne.s32.totalorder %v101, 302
  %vm406 = vcmp.ne.s32.totalorder %v102, 302
  %vm407 = vcmp.ne.s32.totalorder %v103, 302
  %vm408 = vcmp.ne.s32.totalorder %v104, 302
  %vm409 = vcmp.ne.s32.totalorder %v105, 302
  %vm410 = vcmp.ne.s32.totalorder %v106, 302
  %vm411 = vcmp.ne.s32.totalorder %v107, 302
  %vm412 = vcmp.ne.s32.totalorder %v108, 302
  %vm413 = vcmp.ne.s32.totalorder %v109, 302
  %vm414 = vcmp.ne.s32.totalorder %v34, 603
  %vm415 = vcmp.ne.s32.totalorder %v35, 603
  %vm416 = vcmp.ne.s32.totalorder %v36, 603
  %vm417 = vcmp.ne.s32.totalorder %v37, 603
  %vm418 = vcmp.ne.s32.totalorder %v38, 603
  %vm419 = vcmp.ne.s32.totalorder %v39, 603
  %vm420 = vcmp.ne.s32.totalorder %v40, 603
  %vm421 = vcmp.ne.s32.totalorder %v41, 603
  %vm422 = vcmp.ne.s32.totalorder %v42, 603
  %vm423 = vcmp.ne.s32.totalorder %v43, 603
  %vm424 = vcmp.ne.s32.totalorder %v44, 603
  %vm425 = vcmp.ne.s32.totalorder %v45, 603
  %vm426 = vcmp.ne.s32.totalorder %v46, 603
  %vm427 = vcmp.ne.s32.totalorder %v47, 603
  %vm428 = vcmp.ne.s32.totalorder %v48, 603
  %vm429 = vcmp.ne.s32.totalorder %v49, 603
  %vm430 = vcmp.ne.s32.totalorder %v50, 603
  %vm431 = vcmp.ne.s32.totalorder %v51, 603
  %vm432 = vcmp.ne.s32.totalorder %v52, 603
  %vm433 = vcmp.ne.s32.totalorder %v53, 603
  %vm434 = vcmp.ne.s32.totalorder %v54, 603
  %vm435 = vcmp.ne.s32.totalorder %v55, 603
  %vm436 = vcmp.ne.s32.totalorder %v56, 603
  %vm437 = vcmp.ne.s32.totalorder %v57, 603
  %vm438 = vcmp.ne.s32.totalorder %v58, 603
  %vm439 = vcmp.ne.s32.totalorder %v59, 603
  %vm440 = vcmp.ne.s32.totalorder %v60, 603
  %vm441 = vcmp.ne.s32.totalorder %v61, 603
  %vm442 = vcmp.ne.s32.totalorder %v62, 603
  %vm443 = vcmp.ne.s32.totalorder %v63, 603
  %vm444 = vcmp.ne.s32.totalorder %v64, 603
  %vm445 = vcmp.ne.s32.totalorder %v65, 603
  %vm446 = vcmp.ne.s32.totalorder %v66, 603
  %vm447 = vcmp.ne.s32.totalorder %v67, 603
  %vm448 = vcmp.ne.s32.totalorder %v68, 603
  %vm449 = vcmp.ne.s32.totalorder %v69, 603
  %vm450 = vcmp.ne.s32.totalorder %v70, 603
  %vm451 = vcmp.ne.s32.totalorder %v71, 603
  %vm452 = vcmp.ne.s32.totalorder %v72, 603
  %vm453 = vcmp.ne.s32.totalorder %v73, 603
  %vm454 = vcmp.ne.s32.totalorder %v74, 603
  %vm455 = vcmp.ne.s32.totalorder %v75, 603
  %vm456 = vcmp.ne.s32.totalorder %v76, 603
  %vm457 = vcmp.ne.s32.totalorder %v77, 603
  %vm458 = vcmp.ne.s32.totalorder %v78, 603
  %vm459 = vcmp.ne.s32.totalorder %v79, 603
  %vm460 = vcmp.ne.s32.totalorder %v80, 603
  %vm461 = vcmp.ne.s32.totalorder %v81, 603
  %vm462 = vcmp.ne.s32.totalorder %v82, 603
  %vm463 = vcmp.ne.s32.totalorder %v83, 603
  %vm464 = vcmp.ne.s32.totalorder %v84, 603
  %vm465 = vcmp.ne.s32.totalorder %v85, 603
  %vm466 = vcmp.ne.s32.totalorder %v86, 603
  %vm467 = vcmp.ne.s32.totalorder %v87, 603
  %vm468 = vcmp.ne.s32.totalorder %v88, 603
  %vm469 = vcmp.ne.s32.totalorder %v89, 603
  %vm470 = vcmp.ne.s32.totalorder %v90, 603
  %vm471 = vcmp.ne.s32.totalorder %v91, 603
  %vm472 = vcmp.ne.s32.totalorder %v92, 603
  %vm473 = vcmp.ne.s32.totalorder %v93, 603
  %vm474 = vcmp.ne.s32.totalorder %v94, 603
  %vm475 = vcmp.ne.s32.totalorder %v95, 603
  %vm476 = vcmp.ne.s32.totalorder %v96, 603
  %vm477 = vcmp.ne.s32.totalorder %v97, 603
  %vm478 = vcmp.ne.s32.totalorder %v98, 603
  %vm479 = vcmp.ne.s32.totalorder %v99, 603
  %vm480 = vcmp.ne.s32.totalorder %v100, 603
  %vm481 = vcmp.ne.s32.totalorder %v101, 603
  %vm482 = vcmp.ne.s32.totalorder %v102, 603
  %vm483 = vcmp.ne.s32.totalorder %v103, 603
  %vm484 = vcmp.ne.s32.totalorder %v104, 603
  %vm485 = vcmp.ne.s32.totalorder %v105, 603
  %vm486 = vcmp.ne.s32.totalorder %v106, 603
  %vm487 = vcmp.ne.s32.totalorder %v107, 603
  %vm488 = vcmp.ne.s32.totalorder %v108, 603
  %vm489 = vcmp.ne.s32.totalorder %v109, 603
  %vm490 = vcmp.ne.s32.totalorder %v34, 602
  %vm491 = vcmp.ne.s32.totalorder %v35, 602
  %vm492 = vcmp.ne.s32.totalorder %v36, 602
  %vm493 = vcmp.ne.s32.totalorder %v37, 602
  %vm494 = vcmp.ne.s32.totalorder %v38, 602
  %vm495 = vcmp.ne.s32.totalorder %v39, 602
  %vm496 = vcmp.ne.s32.totalorder %v40, 602
  %vm497 = vcmp.ne.s32.totalorder %v41, 602
  %vm498 = vcmp.ne.s32.totalorder %v42, 602
  %vm499 = vcmp.ne.s32.totalorder %v43, 602
  %vm500 = vcmp.ne.s32.totalorder %v44, 602
  %vm501 = vcmp.ne.s32.totalorder %v45, 602
  %vm502 = vcmp.ne.s32.totalorder %v46, 602
  %vm503 = vcmp.ne.s32.totalorder %v47, 602
  %vm504 = vcmp.ne.s32.totalorder %v48, 602
  %vm505 = vcmp.ne.s32.totalorder %v49, 602
  %vm506 = vcmp.ne.s32.totalorder %v50, 602
  %vm507 = vcmp.ne.s32.totalorder %v51, 602
  %vm508 = vcmp.ne.s32.totalorder %v52, 602
  %vm509 = vcmp.ne.s32.totalorder %v53, 602
  %vm510 = vcmp.ne.s32.totalorder %v54, 602
  %vm511 = vcmp.ne.s32.totalorder %v55, 602
  %vm512 = vcmp.ne.s32.totalorder %v56, 602
  %vm513 = vcmp.ne.s32.totalorder %v57, 602
  %vm514 = vcmp.ne.s32.totalorder %v58, 602
  %vm515 = vcmp.ne.s32.totalorder %v59, 602
  %vm516 = vcmp.ne.s32.totalorder %v60, 602
  %vm517 = vcmp.ne.s32.totalorder %v61, 602
  %vm518 = vcmp.ne.s32.totalorder %v62, 602
  %vm519 = vcmp.ne.s32.totalorder %v63, 602
  %vm520 = vcmp.ne.s32.totalorder %v64, 602
  %vm521 = vcmp.ne.s32.totalorder %v65, 602
  %vm522 = vcmp.ne.s32.totalorder %v66, 602
  %vm523 = vcmp.ne.s32.totalorder %v67, 602
  %vm524 = vcmp.ne.s32.totalorder %v68, 602
  %vm525 = vcmp.ne.s32.totalorder %v69, 602
  %vm526 = vcmp.ne.s32.totalorder %v70, 602
  %vm527 = vcmp.ne.s32.totalorder %v71, 602
  %vm528 = vcmp.ne.s32.totalorder %v72, 602
  %vm529 = vcmp.ne.s32.totalorder %v73, 602
  %vm530 = vcmp.ne.s32.totalorder %v74, 602
  %vm531 = vcmp.ne.s32.totalorder %v75, 602
  %vm532 = vcmp.ne.s32.totalorder %v76, 602
  %vm533 = vcmp.ne.s32.totalorder %v77, 602
  %vm534 = vcmp.ne.s32.totalorder %v78, 602
  %vm535 = vcmp.ne.s32.totalorder %v79, 602
  %vm536 = vcmp.ne.s32.totalorder %v80, 602
  %vm537 = vcmp.ne.s32.totalorder %v81, 602
  %vm538 = vcmp.ne.s32.totalorder %v82, 602
  %vm539 = vcmp.ne.s32.totalorder %v83, 602
  %vm540 = vcmp.ne.s32.totalorder %v84, 602
  %vm541 = vcmp.ne.s32.totalorder %v85, 602
  %vm542 = vcmp.ne.s32.totalorder %v86, 602
  %vm543 = vcmp.ne.s32.totalorder %v87, 602
  %vm544 = vcmp.ne.s32.totalorder %v88, 602
  %vm545 = vcmp.ne.s32.totalorder %v89, 602
  %vm546 = vcmp.ne.s32.totalorder %v90, 602
  %vm547 = vcmp.ne.s32.totalorder %v91, 602
  %vm548 = vcmp.ne.s32.totalorder %v92, 602
  %vm549 = vcmp.ne.s32.totalorder %v93, 602
  %vm550 = vcmp.ne.s32.totalorder %v94, 602
  %vm551 = vcmp.ne.s32.totalorder %v95, 602
  %vm552 = vcmp.ne.s32.totalorder %v96, 602
  %vm553 = vcmp.ne.s32.totalorder %v97, 602
  %vm554 = vcmp.ne.s32.totalorder %v98, 602
  %vm555 = vcmp.ne.s32.totalorder %v99, 602
  %vm556 = vcmp.ne.s32.totalorder %v100, 602
  %vm557 = vcmp.ne.s32.totalorder %v101, 602
  %vm558 = vcmp.ne.s32.totalorder %v102, 602
  %vm559 = vcmp.ne.s32.totalorder %v103, 602
  %vm560 = vcmp.ne.s32.totalorder %v104, 602
  %vm561 = vcmp.ne.s32.totalorder %v105, 602
  %vm562 = vcmp.ne.s32.totalorder %v106, 602
  %vm563 = vcmp.ne.s32.totalorder %v107, 602
  %vm564 = vcmp.ne.s32.totalorder %v108, 602
  %vm565 = vcmp.ne.s32.totalorder %v109, 602
  %vm566 = vmand %vm110, %vm186
  %vm567 = vmand %vm111, %vm187
  %vm568 = vmand %vm112, %vm188
  %vm569 = vmand %vm113, %vm189
  %vm570 = vmand %vm114, %vm190
  %vm571 = vmand %vm115, %vm191
  %vm572 = vmand %vm116, %vm192
  %vm573 = vmand %vm117, %vm193
  %vm574 = vmand %vm118, %vm194
  %vm575 = vmand %vm119, %vm195
  %vm576 = vmand %vm120, %vm196
  %vm577 = vmand %vm121, %vm197
  %vm578 = vmand %vm122, %vm198
  %vm579 = vmand %vm123, %vm199
  %vm580 = vmand %vm124, %vm200
  %vm581 = vmand %vm125, %vm201
  %vm582 = vmand %vm126, %vm202
  %vm583 = vmand %vm127, %vm203
  %vm584 = vmand %vm128, %vm204
  %vm585 = vmand %vm129, %vm205
  %vm586 = vmand %vm130, %vm206
  %vm587 = vmand %vm131, %vm207
  %vm588 = vmand %vm132, %vm208
  %vm589 = vmand %vm133, %vm209
  %vm590 = vmand %vm134, %vm210
  %vm591 = vmand %vm135, %vm211
  %vm592 = vmand %vm136, %vm212
  %vm593 = vmand %vm137, %vm213
  %vm594 = vmand %vm138, %vm214
  %vm595 = vmand %vm139, %vm215
  %vm596 = vmand %vm140, %vm216
  %vm597 = vmand %vm141, %vm217
  %vm598 = vmand %vm142, %vm218
  %vm599 = vmand %vm143, %vm219
  %vm600 = vmand %vm144, %vm220
  %vm601 = vmand %vm145, %vm221
  %vm602 = vmand %vm146, %vm222
  %vm603 = vmand %vm147, %vm223
  %vm604 = vmand %vm148, %vm224
  %vm605 = vmand %vm149, %vm225
  %vm606 = vmand %vm150, %vm226
  %vm607 = vmand %vm151, %vm227
  %vm608 = vmand %vm152, %vm228
  %vm609 = vmand %vm153, %vm229
  %vm610 = vmand %vm154, %vm230
  %vm611 = vmand %vm155, %vm231
  %vm612 = vmand %vm156, %vm232
  %vm613 = vmand %vm157, %vm233
  %vm614 = vmand %vm158, %vm234
  %vm615 = vmand %vm159, %vm235
  %vm616 = vmand %vm160, %vm236
  %vm617 = vmand %vm161, %vm237
  %vm618 = vmand %vm162, %vm238
  %vm619 = vmand %vm163, %vm239
  %vm620 = vmand %vm164, %vm240
  %vm621 = vmand %vm165, %vm241
  %vm622 = vmand %vm166, %vm242
  %vm623 = vmand %vm167, %vm243
  %vm624 = vmand %vm168, %vm244
  %vm625 = vmand %vm169, %vm245
  %vm626 = vmand %vm170, %vm246
  %vm627 = vmand %vm171, %vm247
  %vm628 = vmand %vm172, %vm248
  %vm629 = vmand %vm173, %vm249
  %vm630 = vmand %vm174, %vm250
  %vm631 = vmand %vm175, %vm251
  %vm632 = vmand %vm176, %vm252
  %vm633 = vmand %vm177, %vm253
  %vm634 = vmand %vm178, %vm254
  %vm635 = vmand %vm179, %vm255
  %vm636 = vmand %vm180, %vm256
  %vm637 = vmand %vm181, %vm257
  %vm638 = vmand %vm182, %vm258
  %vm639 = vmand %vm183, %vm259
  %vm640 = vmand %vm184, %vm260
  %vm641 = vmand %vm185, %vm261
  %vm642 = vmand %vm566, %vm338
  %vm643 = vmand %vm567, %vm339
  %vm644 = vmand %vm568, %vm340
  %vm645 = vmand %vm569, %vm341
  %vm646 = vmand %vm570, %vm342
  %vm647 = vmand %vm571, %vm343
  %vm648 = vmand %vm572, %vm344
  %vm649 = vmand %vm573, %vm345
  %vm650 = vmand %vm574, %vm346
  %vm651 = vmand %vm575, %vm347
  %vm652 = vmand %vm576, %vm348
  %vm653 = vmand %vm577, %vm349
  %vm654 = vmand %vm578, %vm350
  %vm655 = vmand %vm579, %vm351
  %vm656 = vmand %vm580, %vm352
  %vm657 = vmand %vm581, %vm353
  %vm658 = vmand %vm582, %vm354
  %vm659 = vmand %vm583, %vm355
  %vm660 = vmand %vm584, %vm356
  %vm661 = vmand %vm585, %vm357
  %vm662 = vmand %vm586, %vm358
  %vm663 = vmand %vm587, %vm359
  %vm664 = vmand %vm588, %vm360
  %vm665 = vmand %vm589, %vm361
  %vm666 = vmand %vm590, %vm362
  %vm667 = vmand %vm591, %vm363
  %vm668 = vmand %vm592, %vm364
  %vm669 = vmand %vm593, %vm365
  %vm670 = vmand %vm594, %vm366
  %vm671 = vmand %vm595, %vm367
  %vm672 = vmand %vm596, %vm368
  %vm673 = vmand %vm597, %vm369
  %vm674 = vmand %vm598, %vm370
  %vm675 = vmand %vm599, %vm371
  %vm676 = vmand %vm600, %vm372
  %vm677 = vmand %vm601, %vm373
  %vm678 = vmand %vm602, %vm374
  %vm679 = vmand %vm603, %vm375
  %vm680 = vmand %vm604, %vm376
  %vm681 = vmand %vm605, %vm377
  %vm682 = vmand %vm606, %vm378
  %vm683 = vmand %vm607, %vm379
  %vm684 = vmand %vm608, %vm380
  %vm685 = vmand %vm609, %vm381
  %vm686 = vmand %vm610, %vm382
  %vm687 = vmand %vm611, %vm383
  %vm688 = vmand %vm612, %vm384
  %vm689 = vmand %vm613, %vm385
  %vm690 = vmand %vm614, %vm386
  %vm691 = vmand %vm615, %vm387
  %vm692 = vmand %vm616, %vm388
  %vm693 = vmand %vm617, %vm389
  %vm694 = vmand %vm618, %vm390
  %vm695 = vmand %vm619, %vm391
  %vm696 = vmand %vm620, %vm392
  %vm697 = vmand %vm621, %vm393
  %vm698 = vmand %vm622, %vm394
  %vm699 = vmand %vm623, %vm395
  %vm700 = vmand %vm624, %vm396
  %vm701 = vmand %vm625, %vm397
  %vm702 = vmand %vm626, %vm398
  %vm703 = vmand %vm627, %vm399
  %vm704 = vmand %vm628, %vm400
  %vm705 = vmand %vm629, %vm401
  %vm706 = vmand %vm630, %vm402
  %vm707 = vmand %vm631, %vm403
  %vm708 = vmand %vm632, %vm404
  %vm709 = vmand %vm633, %vm405
  %vm710 = vmand %vm634, %vm406
  %vm711 = vmand %vm635, %vm407
  %vm712 = vmand %vm636, %vm408
  %vm713 = vmand %vm637, %vm409
  %vm714 = vmand %vm638, %vm410
  %vm715 = vmand %vm639, %vm411
  %vm716 = vmand %vm640, %vm412
  %vm717 = vmand %vm641, %vm413
  %vm718 = vmand %vm642, %vm414
  %vm719 = vmand %vm643, %vm415
  %vm720 = vmand %vm644, %vm416
  %vm721 = vmand %vm645, %vm417
  %vm722 = vmand %vm646, %vm418
  %vm723 = vmand %vm647, %vm419
  %vm724 = vmand %vm648, %vm420
  %vm725 = vmand %vm649, %vm421
  %vm726 = vmand %vm650, %vm422
  %vm727 = vmand %vm651, %vm423
  %vm728 = vmand %vm652, %vm424
  %vm729 = vmand %vm653, %vm425
  %vm730 = vmand %vm654, %vm426
  %vm731 = vmand %vm655, %vm427
  %vm732 = vmand %vm656, %vm428
  %vm733 = vmand %vm657, %vm429
  %vm734 = vmand %vm658, %vm430
  %vm735 = vmand %vm659, %vm431
  %vm736 = vmand %vm660, %vm432
  %vm737 = vmand %vm661, %vm433
  %vm738 = vmand %vm662, %vm434
  %vm739 = vmand %vm663, %vm435
  %vm740 = vmand %vm664, %vm436
  %vm741 = vmand %vm665, %vm437
  %vm742 = vmand %vm666, %vm438
  %vm743 = vmand %vm667, %vm439
  %vm744 = vmand %vm668, %vm440
  %vm745 = vmand %vm669, %vm441
  %vm746 = vmand %vm670, %vm442
  %vm747 = vmand %vm671, %vm443
  %vm748 = vmand %vm672, %vm444
  %vm749 = vmand %vm673, %vm445
  %vm750 = vmand %vm674, %vm446
  %vm751 = vmand %vm675, %vm447
  %vm752 = vmand %vm676, %vm448
  %vm753 = vmand %vm677, %vm449
  %vm754 = vmand %vm678, %vm450
  %vm755 = vmand %vm679, %vm451
  %vm756 = vmand %vm680, %vm452
  %vm757 = vmand %vm681, %vm453
  %vm758 = vmand %vm682, %vm454
  %vm759 = vmand %vm683, %vm455
  %vm760 = vmand %vm684, %vm456
  %vm761 = vmand %vm685, %vm457
  %vm762 = vmand %vm686, %vm458
  %vm763 = vmand %vm687, %vm459
  %vm764 = vmand %vm688, %vm460
  %vm765 = vmand %vm689, %vm461
  %vm766 = vmand %vm690, %vm462
  %vm767 = vmand %vm691, %vm463
  %vm768 = vmand %vm692, %vm464
  %vm769 = vmand %vm693, %vm465
  %vm770 = vmand %vm694, %vm466
  %vm771 = vmand %vm695, %vm467
  %vm772 = vmand %vm696, %vm468
  %vm773 = vmand %vm697, %vm469
  %vm774 = vmand %vm698, %vm470
  %vm775 = vmand %vm699, %vm471
  %vm776 = vmand %vm700, %vm472
  %vm777 = vmand %vm701, %vm473
  %vm778 = vmand %vm702, %vm474
  %vm779 = vmand %vm703, %vm475
  %vm780 = vmand %vm704, %vm476
  %vm781 = vmand %vm705, %vm477
  %vm782 = vmand %vm706, %vm478
  %vm783 = vmand %vm707, %vm479
  %vm784 = vmand %vm708, %vm480
  %vm785 = vmand %vm709, %vm481
  %vm786 = vmand %vm710, %vm482
  %vm787 = vmand %vm711, %vm483
  %vm788 = vmand %vm712, %vm484
  %vm789 = vmand %vm713, %vm485
  %vm790 = vmand %vm714, %vm486
  %vm791 = vmand %vm715, %vm487
  %vm792 = vmand %vm716, %vm488
  %vm793 = vmand %vm717, %vm489
  %vm794 = vmand %vm262, %vm186
  %vm795 = vmand %vm263, %vm187
  %vm796 = vmand %vm264, %vm188
  %vm797 = vmand %vm265, %vm189
  %vm798 = vmand %vm266, %vm190
  %vm799 = vmand %vm267, %vm191
  %vm800 = vmand %vm268, %vm192
  %vm801 = vmand %vm269, %vm193
  %vm802 = vmand %vm270, %vm194
  %vm803 = vmand %vm271, %vm195
  %vm804 = vmand %vm272, %vm196
  %vm805 = vmand %vm273, %vm197
  %vm806 = vmand %vm274, %vm198
  %vm807 = vmand %vm275, %vm199
  %vm808 = vmand %vm276, %vm200
  %vm809 = vmand %vm277, %vm201
  %vm810 = vmand %vm278, %vm202
  %vm811 = vmand %vm279, %vm203
  %vm812 = vmand %vm280, %vm204
  %vm813 = vmand %vm281, %vm205
  %vm814 = vmand %vm282, %vm206
  %vm815 = vmand %vm283, %vm207
  %vm816 = vmand %vm284, %vm208
  %vm817 = vmand %vm285, %vm209
  %vm818 = vmand %vm286, %vm210
  %vm819 = vmand %vm287, %vm211
  %vm820 = vmand %vm288, %vm212
  %vm821 = vmand %vm289, %vm213
  %vm822 = vmand %vm290, %vm214
  %vm823 = vmand %vm291, %vm215
  %vm824 = vmand %vm292, %vm216
  %vm825 = vmand %vm293, %vm217
  %vm826 = vmand %vm294, %vm218
  %vm827 = vmand %vm295, %vm219
  %vm828 = vmand %vm296, %vm220
  %vm829 = vmand %vm297, %vm221
  %vm830 = vmand %vm298, %vm222
  %vm831 = vmand %vm299, %vm223
  %vm832 = vmand %vm300, %vm224
  %vm833 = vmand %vm301, %vm225
  %vm834 = vmand %vm302, %vm226
  %vm835 = vmand %vm303, %vm227
  %vm836 = vmand %vm304, %vm228
  %vm837 = vmand %vm305, %vm229
  %vm838 = vmand %vm306, %vm230
  %vm839 = vmand %vm307, %vm231
  %vm840 = vmand %vm308, %vm232
  %vm841 = vmand %vm309, %vm233
  %vm842 = vmand %vm310, %vm234
  %vm843 = vmand %vm311, %vm235
  %vm844 = vmand %vm312, %vm236
  %vm845 = vmand %vm313, %vm237
  %vm846 = vmand %vm314, %vm238
  %vm847 = vmand %vm315, %vm239
  %vm848 = vmand %vm316, %vm240
  %vm849 = vmand %vm317, %vm241
  %vm850 = vmand %vm318, %vm242
  %vm851 = vmand %vm319, %vm243
  %vm852 = vmand %vm320, %vm244
  %vm853 = vmand %vm321, %vm245
  %vm854 = vmand %vm322, %vm246
  %vm855 = vmand %vm323, %vm247
  %vm856 = vmand %vm324, %vm248
  %vm857 = vmand %vm325, %vm249
  %vm858 = vmand %vm326, %vm250
  %vm859 = vmand %vm327, %vm251
  %vm860 = vmand %vm328, %vm252
  %vm861 = vmand %vm329, %vm253
  %vm862 = vmand %vm330, %vm254
  %vm863 = vmand %vm331, %vm255
  %vm864 = vmand %vm332, %vm256
  %vm865 = vmand %vm333, %vm257
  %vm866 = vmand %vm334, %vm258
  %vm867 = vmand %vm335, %vm259
  %vm868 = vmand %vm336, %vm260
  %vm869 = vmand %vm337, %vm261
  %vm870 = vmand %vm794, %vm490
  %vm871 = vmand %vm795, %vm491
  %vm872 = vmand %vm796, %vm492
  %vm873 = vmand %vm797, %vm493
  %vm874 = vmand %vm798, %vm494
  %vm875 = vmand %vm799, %vm495
  %vm876 = vmand %vm800, %vm496
  %vm877 = vmand %vm801, %vm497
  %vm878 = vmand %vm802, %vm498
  %vm879 = vmand %vm803, %vm499
  %vm880 = vmand %vm804, %vm500
  %vm881 = vmand %vm805, %vm501
  %vm882 = vmand %vm806, %vm502
  %vm883 = vmand %vm807, %vm503
  %vm884 = vmand %vm808, %vm504
  %vm885 = vmand %vm809, %vm505
  %vm886 = vmand %vm810, %vm506
  %vm887 = vmand %vm811, %vm507
  %vm888 = vmand %vm812, %vm508
  %vm889 = vmand %vm813, %vm509
  %vm890 = vmand %vm814, %vm510
  %vm891 = vmand %vm815, %vm511
  %vm892 = vmand %vm816, %vm512
  %vm893 = vmand %vm817, %vm513
  %vm894 = vmand %vm818, %vm514
  %vm895 = vmand %vm819, %vm515
  %vm896 = vmand %vm820, %vm516
  %vm897 = vmand %vm821, %vm517
  %vm898 = vmand %vm822, %vm518
  %vm899 = vmand %vm823, %vm519
  %vm900 = vmand %vm824, %vm520
  %vm901 = vmand %vm825, %vm521
  %vm902 = vmand %vm826, %vm522
  %vm903 = vmand %vm827, %vm523
  %vm904 = vmand %vm828, %vm524
  %vm905 = vmand %vm829, %vm525
  %vm906 = vmand %vm830, %vm526
  %vm907 = vmand %vm831, %vm527
  %vm908 = vmand %vm832, %vm528
  %vm909 = vmand %vm833, %vm529
  %vm910 = vmand %vm834, %vm530
  %vm911 = vmand %vm835, %vm531
  %vm912 = vmand %vm836, %vm532
  %vm913 = vmand %vm837, %vm533
  %vm914 = vmand %vm838, %vm534
  %vm915 = vmand %vm839, %vm535
  %vm916 = vmand %vm840, %vm536
  %vm917 = vmand %vm841, %vm537
  %vm918 = vmand %vm842, %vm538
  %vm919 = vmand %vm843, %vm539
  %vm920 = vmand %vm844, %vm540
  %vm921 = vmand %vm845, %vm541
  %vm922 = vmand %vm846, %vm542
  %vm923 = vmand %vm847, %vm543
  %vm924 = vmand %vm848, %vm544
  %vm925 = vmand %vm849, %vm545
  %vm926 = vmand %vm850, %vm546
  %vm927 = vmand %vm851, %vm547
  %vm928 = vmand %vm852, %vm548
  %vm929 = vmand %vm853, %vm549
  %vm930 = vmand %vm854, %vm550
  %vm931 = vmand %vm855, %vm551
  %vm932 = vmand %vm856, %vm552
  %vm933 = vmand %vm857, %vm553
  %vm934 = vmand %vm858, %vm554
  %vm935 = vmand %vm859, %vm555
  %vm936 = vmand %vm860, %vm556
  %vm937 = vmand %vm861, %vm557
  %vm938 = vmand %vm862, %vm558
  %vm939 = vmand %vm863, %vm559
  %vm940 = vmand %vm864, %vm560
  %vm941 = vmand %vm865, %vm561
  %vm942 = vmand %vm866, %vm562
  %vm943 = vmand %vm867, %vm563
  %vm944 = vmand %vm868, %vm564
  %vm945 = vmand %vm869, %vm565
  %vm946 = vmand %vm870, %vm414
  %vm947 = vmand %vm871, %vm415
  %vm948 = vmand %vm872, %vm416
  %vm949 = vmand %vm873, %vm417
  %vm950 = vmand %vm874, %vm418
  %vm951 = vmand %vm875, %vm419
  %vm952 = vmand %vm876, %vm420
  %vm953 = vmand %vm877, %vm421
  %vm954 = vmand %vm878, %vm422
  %vm955 = vmand %vm879, %vm423
  %vm956 = vmand %vm880, %vm424
  %vm957 = vmand %vm881, %vm425
  %vm958 = vmand %vm882, %vm426
  %vm959 = vmand %vm883, %vm427
  %vm960 = vmand %vm884, %vm428
  %vm961 = vmand %vm885, %vm429
  %vm962 = vmand %vm886, %vm430
  %vm963 = vmand %vm887, %vm431
  %vm964 = vmand %vm888, %vm432
  %vm965 = vmand %vm889, %vm433
  %vm966 = vmand %vm890, %vm434
  %vm967 = vmand %vm891, %vm435
  %vm968 = vmand %vm892, %vm436
  %vm969 = vmand %vm893, %vm437
  %vm970 = vmand %vm894, %vm438
  %vm971 = vmand %vm895, %vm439
  %vm972 = vmand %vm896, %vm440
  %vm973 = vmand %vm897, %vm441
  %vm974 = vmand %vm898, %vm442
  %vm975 = vmand %vm899, %vm443
  %vm976 = vmand %vm900, %vm444
  %vm977 = vmand %vm901, %vm445
  %vm978 = vmand %vm902, %vm446
  %vm979 = vmand %vm903, %vm447
  %vm980 = vmand %vm904, %vm448
  %vm981 = vmand %vm905, %vm449
  %vm982 = vmand %vm906, %vm450
  %vm983 = vmand %vm907, %vm451
  %vm984 = vmand %vm908, %vm452
  %vm985 = vmand %vm909, %vm453
  %vm986 = vmand %vm910, %vm454
  %vm987 = vmand %vm911, %vm455
  %vm988 = vmand %vm912, %vm456
  %vm989 = vmand %vm913, %vm457
  %vm990 = vmand %vm914, %vm458
  %vm991 = vmand %vm915, %vm459
  %vm992 = vmand %vm916, %vm460
  %vm993 = vmand %vm917, %vm461
  %vm994 = vmand %vm918, %vm462
  %vm995 = vmand %vm919, %vm463
  %vm996 = vmand %vm920, %vm464
  %vm997 = vmand %vm921, %vm465
  %vm998 = vmand %vm922, %vm466
  %vm999 = vmand %vm923, %vm467
  %vm1000 = vmand %vm924, %vm468
  %vm1001 = vmand %vm925, %vm469
  %vm1002 = vmand %vm926, %vm470
  %vm1003 = vmand %vm927, %vm471
  %vm1004 = vmand %vm928, %vm472
  %vm1005 = vmand %vm929, %vm473
  %vm1006 = vmand %vm930, %vm474
  %vm1007 = vmand %vm931, %vm475
  %vm1008 = vmand %vm932, %vm476
  %vm1009 = vmand %vm933, %vm477
  %vm1010 = vmand %vm934, %vm478
  %vm1011 = vmand %vm935, %vm479
  %vm1012 = vmand %vm936, %vm480
  %vm1013 = vmand %vm937, %vm481
  %vm1014 = vmand %vm938, %vm482
  %vm1015 = vmand %vm939, %vm483
  %vm1016 = vmand %vm940, %vm484
  %vm1017 = vmand %vm941, %vm485
  %vm1018 = vmand %vm942, %vm486
  %vm1019 = vmand %vm943, %vm487
  %vm1020 = vmand %vm944, %vm488
  %vm1021 = vmand %vm945, %vm489
  %v1022 = vld [vmem:[%s0] sm:$0xf]
  %v1023 = vld [vmem:[%s0 + $0x4] sm:$0xf]
  %v1024 = vld [vmem:[%s0 + $0x8] sm:$0xf]
  %v1025 = vld [vmem:[%s0 + $0xc] sm:$0xf]
  %v1026 = vld [vmem:[%s0 + $0x10] sm:$0xf]
  %v1027 = vld [vmem:[%s0 + $0x14] sm:$0xf]
  %v1028 = vld [vmem:[%s0 + $0x18] sm:$0xf]
  %v1029 = vld [vmem:[%s0 + $0x1c] sm:$0xf]
  %v1030 = vld [vmem:[%s0 + $0x20] sm:$0xf]
  %v1031 = vld [vmem:[%s0 + $0x24] sm:$0xf]
  %v1032 = vld [vmem:[%s0 + $0x28] sm:$0xf]
  %v1033 = vld [vmem:[%s0 + $0x2c] sm:$0xf]
  %v1034 = vld [vmem:[%s0 + $0x30] sm:$0xf]
  %v1035 = vld [vmem:[%s0 + $0x34] sm:$0xf]
  %v1036 = vld [vmem:[%s0 + $0x38] sm:$0xf]
  %v1037 = vld [vmem:[%s0 + $0x3c] sm:$0xf]
  %v1038 = vld [vmem:[%s0 + $0x40] sm:$0xf]
  %v1039 = vld [vmem:[%s0 + $0x44] sm:$0xf]
  %v1040 = vld [vmem:[%s0 + $0x48] sm:$0xf]
  %v1041 = vld [vmem:[%s0 + $0x4c] sm:$0xf]
  %v1042 = vld [vmem:[%s0 + $0x50] sm:$0xf]
  %v1043 = vld [vmem:[%s0 + $0x54] sm:$0xf]
  %v1044 = vld [vmem:[%s0 + $0x58] sm:$0xf]
  %v1045 = vld [vmem:[%s0 + $0x5c] sm:$0xf]
  %v1046 = vld [vmem:[%s0 + $0x60] sm:$0xf]
  %v1047 = vld [vmem:[%s0 + $0x64] sm:$0xf]
  %v1048 = vld [vmem:[%s0 + $0x68] sm:$0xf]
  %v1049 = vld [vmem:[%s0 + $0x6c] sm:$0xf]
  %v1050 = vld [vmem:[%s0 + $0x70] sm:$0xf]
  %v1051 = vld [vmem:[%s0 + $0x74] sm:$0xf]
  %v1052 = vld [vmem:[%s0 + $0x78] sm:$0xf]
  %v1053 = vld [vmem:[%s0 + $0x7c] sm:$0xf]
  %v1054 = vld [vmem:[%s0 + $0x80] sm:$0xf]
  %v1055 = vld [vmem:[%s0 + $0x84] sm:$0xf]
  %v1056 = vld [vmem:[%s0 + $0x88] sm:$0xf]
  %v1057 = vld [vmem:[%s0 + $0x8c] sm:$0xf]
  %v1058 = vld [vmem:[%s0 + $0x90] sm:$0xf]
  %v1059 = vld [vmem:[%s0 + $0x94] sm:$0xf]
  %v1060 = vld [vmem:[%s0 + $0x98] sm:$0xf]
  %v1061 = vld [vmem:[%s0 + $0x9c] sm:$0xf]
  %v1062 = vld [vmem:[%s0 + $0xa0] sm:$0xf]
  %v1063 = vld [vmem:[%s0 + $0xa4] sm:$0xf]
  %v1064 = vld [vmem:[%s0 + $0xa8] sm:$0xf]
  %v1065 = vld [vmem:[%s0 + $0xac] sm:$0xf]
  %v1066 = vld [vmem:[%s0 + $0xb0] sm:$0xf]
  %v1067 = vld [vmem:[%s0 + $0xb4] sm:$0xf]
  %v1068 = vld [vmem:[%s0 + $0xb8] sm:$0xf]
  %v1069 = vld [vmem:[%s0 + $0xbc] sm:$0xf]
  %v1070 = vld [vmem:[%s0 + $0xc0] sm:$0xf]
  %v1071 = vld [vmem:[%s0 + $0xc4] sm:$0xf]
  %v1072 = vld [vmem:[%s0 + $0xc8] sm:$0xf]
  %v1073 = vld [vmem:[%s0 + $0xcc] sm:$0xf]
  %v1074 = vld [vmem:[%s0 + $0xd0] sm:$0xf]
  %v1075 = vld [vmem:[%s0 + $0xd4] sm:$0xf]
  %v1076 = vld [vmem:[%s0 + $0xd8] sm:$0xf]
  %v1077 = vld [vmem:[%s0 + $0xdc] sm:$0xf]
  %v1078 = vld [vmem:[%s0 + $0xe0] sm:$0xf]
  %v1079 = vld [vmem:[%s0 + $0xe4] sm:$0xf]
  %v1080 = vld [vmem:[%s0 + $0xe8] sm:$0xf]
  %v1081 = vld [vmem:[%s0 + $0xec] sm:$0xf]
  %v1082 = vld [vmem:[%s0 + $0xf0] sm:$0xf]
  %v1083 = vld [vmem:[%s0 + $0xf4] sm:$0xf]
  %v1084 = vld [vmem:[%s0 + $0xf8] sm:$0xf]
  %v1085 = vld [vmem:[%s0 + $0xfc] sm:$0xf]
  %v1086 = vld [vmem:[%s0 + $0x100] sm:$0xf]
  %v1087 = vld [vmem:[%s0 + $0x104] sm:$0xf]
  %v1088 = vld [vmem:[%s0 + $0x108] sm:$0xf]
  %v1089 = vld [vmem:[%s0 + $0x10c] sm:$0xf]
  %v1090 = vld [vmem:[%s0 + $0x110] sm:$0xf]
  %v1091 = vld [vmem:[%s0 + $0x114] sm:$0xf]
  %v1092 = vld [vmem:[%s0 + $0x118] sm:$0xf]
  %v1093 = vld [vmem:[%s0 + $0x11c] sm:$0xf]
  %v1094 = vld [vmem:[%s0 + $0x120] sm:$0xf]
  %v1095 = vld [vmem:[%s0 + $0x124] sm:$0xf]
  %v1096 = vld [vmem:[%s0 + $0x128] sm:$0xf]
  %v1097 = vld [vmem:[%s0 + $0x12c] sm:$0x3]
  %v1098 = vld [vmem:[%s1] sm:$0xf]
  %v1099 = vld [vmem:[%s1 + $0x4] sm:$0x3]
  %v1176 = vunpack.c.l.b16 %v1022
  %v1177 = vunpack.c.l.b16 %v1023
  %v1178 = vunpack.c.l.b16 %v1024
  %v1179 = vunpack.c.l.b16 %v1025
  %v1180 = vunpack.c.l.b16 %v1026
  %v1181 = vunpack.c.l.b16 %v1027
  %v1182 = vunpack.c.l.b16 %v1028
  %v1183 = vunpack.c.l.b16 %v1029
  %v1184 = vunpack.c.l.b16 %v1030
  %v1185 = vunpack.c.l.b16 %v1031
  %v1186 = vunpack.c.l.b16 %v1032
  %v1187 = vunpack.c.l.b16 %v1033
  %v1188 = vunpack.c.l.b16 %v1034
  %v1189 = vunpack.c.l.b16 %v1035
  %v1190 = vunpack.c.l.b16 %v1036
  %v1191 = vunpack.c.l.b16 %v1037
  %v1192 = vunpack.c.l.b16 %v1038
  %v1193 = vunpack.c.l.b16 %v1039
  %v1194 = vunpack.c.l.b16 %v1040
  %v1195 = vunpack.c.l.b16 %v1041
  %v1196 = vunpack.c.l.b16 %v1042
  %v1197 = vunpack.c.l.b16 %v1043
  %v1198 = vunpack.c.l.b16 %v1044
  %v1199 = vunpack.c.l.b16 %v1045
  %v1200 = vunpack.c.l.b16 %v1046
  %v1201 = vunpack.c.l.b16 %v1047
  %v1202 = vunpack.c.l.b16 %v1048
  %v1203 = vunpack.c.l.b16 %v1049
  %v1204 = vunpack.c.l.b16 %v1050
  %v1205 = vunpack.c.l.b16 %v1051
  %v1206 = vunpack.c.l.b16 %v1052
  %v1207 = vunpack.c.l.b16 %v1053
  %v1208 = vunpack.c.l.b16 %v1054
  %v1209 = vunpack.c.l.b16 %v1055
  %v1210 = vunpack.c.l.b16 %v1056
  %v1211 = vunpack.c.l.b16 %v1057
  %v1212 = vunpack.c.l.b16 %v1058
  %v1213 = vunpack.c.l.b16 %v1059
  %v1214 = vunpack.c.l.b16 %v1060
  %v1215 = vunpack.c.l.b16 %v1061
  %v1216 = vunpack.c.l.b16 %v1062
  %v1217 = vunpack.c.l.b16 %v1063
  %v1218 = vunpack.c.l.b16 %v1064
  %v1219 = vunpack.c.l.b16 %v1065
  %v1220 = vunpack.c.l.b16 %v1066
  %v1221 = vunpack.c.l.b16 %v1067
  %v1222 = vunpack.c.l.b16 %v1068
  %v1223 = vunpack.c.l.b16 %v1069
  %v1224 = vunpack.c.l.b16 %v1070
  %v1225 = vunpack.c.l.b16 %v1071
  %v1226 = vunpack.c.l.b16 %v1072
  %v1227 = vunpack.c.l.b16 %v1073
  %v1228 = vunpack.c.l.b16 %v1074
  %v1229 = vunpack.c.l.b16 %v1075
  %v1230 = vunpack.c.l.b16 %v1076
  %v1231 = vunpack.c.l.b16 %v1077
  %v1232 = vunpack.c.l.b16 %v1078
  %v1233 = vunpack.c.l.b16 %v1079
  %v1234 = vunpack.c.l.b16 %v1080
  %v1235 = vunpack.c.l.b16 %v1081
  %v1236 = vunpack.c.l.b16 %v1082
  %v1237 = vunpack.c.l.b16 %v1083
  %v1238 = vunpack.c.l.b16 %v1084
  %v1239 = vunpack.c.l.b16 %v1085
  %v1240 = vunpack.c.l.b16 %v1086
  %v1241 = vunpack.c.l.b16 %v1087
  %v1242 = vunpack.c.l.b16 %v1088
  %v1243 = vunpack.c.l.b16 %v1089
  %v1244 = vunpack.c.l.b16 %v1090
  %v1245 = vunpack.c.l.b16 %v1091
  %v1246 = vunpack.c.l.b16 %v1092
  %v1247 = vunpack.c.l.b16 %v1093
  %v1248 = vunpack.c.l.b16 %v1094
  %v1249 = vunpack.c.l.b16 %v1095
  %v1250 = vunpack.c.l.b16 %v1096
  %v1251 = vunpack.c.l.b16 %v1097
  %v1252 = vpack.c.b16 %v1177, %v1176
  %v1253 = vpack.c.b16 %v1179, %v1178
  %v1254 = vpack.c.b16 %v1181, %v1180
  %v1255 = vpack.c.b16 %v1183, %v1182
  %v1256 = vpack.c.b16 %v1185, %v1184
  %v1257 = vpack.c.b16 %v1187, %v1186
  %v1258 = vpack.c.b16 %v1189, %v1188
  %v1259 = vpack.c.b16 %v1191, %v1190
  %v1260 = vpack.c.b16 %v1193, %v1192
  %v1261 = vpack.c.b16 %v1195, %v1194
  %v1262 = vpack.c.b16 %v1197, %v1196
  %v1263 = vpack.c.b16 %v1199, %v1198
  %v1264 = vpack.c.b16 %v1201, %v1200
  %v1265 = vpack.c.b16 %v1203, %v1202
  %v1266 = vpack.c.b16 %v1205, %v1204
  %v1267 = vpack.c.b16 %v1207, %v1206
  %v1268 = vpack.c.b16 %v1209, %v1208
  %v1269 = vpack.c.b16 %v1211, %v1210
  %v1270 = vpack.c.b16 %v1213, %v1212
  %v1271 = vpack.c.b16 %v1215, %v1214
  %v1272 = vpack.c.b16 %v1217, %v1216
  %v1273 = vpack.c.b16 %v1219, %v1218
  %v1274 = vpack.c.b16 %v1221, %v1220
  %v1275 = vpack.c.b16 %v1223, %v1222
  %v1276 = vpack.c.b16 %v1225, %v1224
  %v1277 = vpack.c.b16 %v1227, %v1226
  %v1278 = vpack.c.b16 %v1229, %v1228
  %v1279 = vpack.c.b16 %v1231, %v1230
  %v1280 = vpack.c.b16 %v1233, %v1232
  %v1281 = vpack.c.b16 %v1235, %v1234
  %v1282 = vpack.c.b16 %v1237, %v1236
  %v1283 = vpack.c.b16 %v1239, %v1238
  %v1284 = vpack.c.b16 %v1241, %v1240
  %v1285 = vpack.c.b16 %v1243, %v1242
  %v1286 = vpack.c.b16 %v1245, %v1244
  %v1287 = vpack.c.b16 %v1247, %v1246
  %v1288 = vpack.c.b16 %v1249, %v1248
  %v1289 = vpack.c.b16 %v1251, %v1250
  %v1292 = vunpack.c.l.b16 %v1098
  %v1293 = vunpack.c.l.b16 %v1099
  %v1294 = vpack.c.b16 %v1293, %v1292
  %vm1295 = vcmask 89088
  %v1297 = vsel %vm1295, %v1252, 0
  %v1300 = vsel %vm1295, %v1253, 0
  %v1303 = vsel %vm1295, %v1254, 0
  %v1306 = vsel %vm1295, %v1255, 0
  %v1309 = vsel %vm1295, %v1256, 0
  %v1312 = vsel %vm1295, %v1257, 0
  %v1315 = vsel %vm1295, %v1258, 0
  %v1318 = vsel %vm1295, %v1259, 0
  %v1321 = vsel %vm1295, %v1260, 0
  %v1324 = vsel %vm1295, %v1261, 0
  %v1327 = vsel %vm1295, %v1262, 0
  %v1330 = vsel %vm1295, %v1263, 0
  %v1333 = vsel %vm1295, %v1264, 0
  %v1336 = vsel %vm1295, %v1265, 0
  %v1339 = vsel %vm1295, %v1266, 0
  %v1342 = vsel %vm1295, %v1267, 0
  %v1345 = vsel %vm1295, %v1268, 0
  %v1348 = vsel %vm1295, %v1269, 0
  %v1351 = vsel %vm1295, %v1270, 0
  %v1354 = vsel %vm1295, %v1271, 0
  %v1357 = vsel %vm1295, %v1272, 0
  %v1360 = vsel %vm1295, %v1273, 0
  %v1363 = vsel %vm1295, %v1274, 0
  %v1366 = vsel %vm1295, %v1275, 0
  %v1369 = vsel %vm1295, %v1276, 0
  %v1372 = vsel %vm1295, %v1277, 0
  %v1375 = vsel %vm1295, %v1278, 0
  %v1378 = vsel %vm1295, %v1279, 0
  %v1381 = vsel %vm1295, %v1280, 0
  %v1384 = vsel %vm1295, %v1281, 0
  %v1387 = vsel %vm1295, %v1282, 0
  %v1390 = vsel %vm1295, %v1283, 0
  %v1393 = vsel %vm1295, %v1284, 0
  %v1396 = vsel %vm1295, %v1285, 0
  %v1399 = vsel %vm1295, %v1286, 0
  %v1402 = vsel %vm1295, %v1287, 0
  %v1405 = vsel %vm1295, %v1288, 0
  %v1408 = vsel %vm1295, %v1289, 0
  %vm1410 = vcmask 1044480
  %vm1411 = vcmask 1045504
  %v1412 = vsel %vm1410, 4294967295, 65535
  %v1413 = vsel %vm1411, %v1412, 0
  %v1415 = vand.u32 %v1294, %v1413
  %1417 = vmatpush.bf16.msra.mxu0 0
  %1418 = vmatpush.bf16.msra.mxu0 0
  %1419 = vmatpush.bf16.msra.mxu0 0
  %1420 = vmatpush.bf16.msra.mxu0 0
  %1421 = vmatpush.bf16.msra.mxu0 0
  %1422 = vmatpush.bf16.msra.mxu0 0
  %1423 = vmatpush.bf16.msra.mxu0 0
  %1424 = vmatpush.bf16.msra.mxu0 %v1415
  %1425 = vmatmul.bf16.gmra.mxu0 %v1297
  %v1426 = vpop.f32.mrf.mxu0
  %v1427 = vadd.f32 0.0, %v1426
  %v1428 = vpop.f32.mrf.mxu0
  %v1429 = vadd.f32 0.0, %v1428
  %1430 = vmatmul.bf16.gmra.mxu0 %v1300
  %v1431 = vpop.f32.mrf.mxu0
  %v1432 = vadd.f32 0.0, %v1431
  %v1433 = vpop.f32.mrf.mxu0
  %v1434 = vadd.f32 0.0, %v1433
  %1435 = vmatmul.bf16.gmra.mxu0 %v1303
  %v1436 = vpop.f32.mrf.mxu0
  %v1437 = vadd.f32 0.0, %v1436
  %v1438 = vpop.f32.mrf.mxu0
  %v1439 = vadd.f32 0.0, %v1438
  %1440 = vmatmul.bf16.gmra.mxu0 %v1306
  %v1441 = vpop.f32.mrf.mxu0
  %v1442 = vadd.f32 0.0, %v1441
  %v1443 = vpop.f32.mrf.mxu0
  %v1444 = vadd.f32 0.0, %v1443
  %1445 = vmatmul.bf16.gmra.mxu0 %v1309
  %v1446 = vpop.f32.mrf.mxu0
  %v1447 = vadd.f32 0.0, %v1446
  %v1448 = vpop.f32.mrf.mxu0
  %v1449 = vadd.f32 0.0, %v1448
  %1450 = vmatmul.bf16.gmra.mxu0 %v1312
  %v1451 = vpop.f32.mrf.mxu0
  %v1452 = vadd.f32 0.0, %v1451
  %v1453 = vpop.f32.mrf.mxu0
  %v1454 = vadd.f32 0.0, %v1453
  %1455 = vmatmul.bf16.gmra.mxu0 %v1315
  %v1456 = vpop.f32.mrf.mxu0
  %v1457 = vadd.f32 0.0, %v1456
  %v1458 = vpop.f32.mrf.mxu0
  %v1459 = vadd.f32 0.0, %v1458
  %1460 = vmatmul.bf16.gmra.mxu0 %v1318
  %v1461 = vpop.f32.mrf.mxu0
  %v1462 = vadd.f32 0.0, %v1461
  %v1463 = vpop.f32.mrf.mxu0
  %v1464 = vadd.f32 0.0, %v1463
  %1465 = vmatmul.bf16.gmra.mxu0 %v1321
  %v1466 = vpop.f32.mrf.mxu0
  %v1467 = vadd.f32 0.0, %v1466
  %v1468 = vpop.f32.mrf.mxu0
  %v1469 = vadd.f32 0.0, %v1468
  %1470 = vmatmul.bf16.gmra.mxu0 %v1324
  %v1471 = vpop.f32.mrf.mxu0
  %v1472 = vadd.f32 0.0, %v1471
  %v1473 = vpop.f32.mrf.mxu0
  %v1474 = vadd.f32 0.0, %v1473
  %1475 = vmatmul.bf16.gmra.mxu0 %v1327
  %v1476 = vpop.f32.mrf.mxu0
  %v1477 = vadd.f32 0.0, %v1476
  %v1478 = vpop.f32.mrf.mxu0
  %v1479 = vadd.f32 0.0, %v1478
  %1480 = vmatmul.bf16.gmra.mxu0 %v1330
  %v1481 = vpop.f32.mrf.mxu0
  %v1482 = vadd.f32 0.0, %v1481
  %v1483 = vpop.f32.mrf.mxu0
  %v1484 = vadd.f32 0.0, %v1483
  %1485 = vmatmul.bf16.gmra.mxu0 %v1333
  %v1486 = vpop.f32.mrf.mxu0
  %v1487 = vadd.f32 0.0, %v1486
  %v1488 = vpop.f32.mrf.mxu0
  %v1489 = vadd.f32 0.0, %v1488
  %1490 = vmatmul.bf16.gmra.mxu0 %v1336
  %v1491 = vpop.f32.mrf.mxu0
  %v1492 = vadd.f32 0.0, %v1491
  %v1493 = vpop.f32.mrf.mxu0
  %v1494 = vadd.f32 0.0, %v1493
  %1495 = vmatmul.bf16.gmra.mxu0 %v1339
  %v1496 = vpop.f32.mrf.mxu0
  %v1497 = vadd.f32 0.0, %v1496
  %v1498 = vpop.f32.mrf.mxu0
  %v1499 = vadd.f32 0.0, %v1498
  %1500 = vmatmul.bf16.gmra.mxu0 %v1342
  %v1501 = vpop.f32.mrf.mxu0
  %v1502 = vadd.f32 0.0, %v1501
  %v1503 = vpop.f32.mrf.mxu0
  %v1504 = vadd.f32 0.0, %v1503
  %1505 = vmatmul.bf16.gmra.mxu0 %v1345
  %v1506 = vpop.f32.mrf.mxu0
  %v1507 = vadd.f32 0.0, %v1506
  %v1508 = vpop.f32.mrf.mxu0
  %v1509 = vadd.f32 0.0, %v1508
  %1510 = vmatmul.bf16.gmra.mxu0 %v1348
  %v1511 = vpop.f32.mrf.mxu0
  %v1512 = vadd.f32 0.0, %v1511
  %v1513 = vpop.f32.mrf.mxu0
  %v1514 = vadd.f32 0.0, %v1513
  %1515 = vmatmul.bf16.gmra.mxu0 %v1351
  %v1516 = vpop.f32.mrf.mxu0
  %v1517 = vadd.f32 0.0, %v1516
  %v1518 = vpop.f32.mrf.mxu0
  %v1519 = vadd.f32 0.0, %v1518
  %1520 = vmatmul.bf16.gmra.mxu0 %v1354
  %v1521 = vpop.f32.mrf.mxu0
  %v1522 = vadd.f32 0.0, %v1521
  %v1523 = vpop.f32.mrf.mxu0
  %v1524 = vadd.f32 0.0, %v1523
  %1525 = vmatmul.bf16.gmra.mxu0 %v1357
  %v1526 = vpop.f32.mrf.mxu0
  %v1527 = vadd.f32 0.0, %v1526
  %v1528 = vpop.f32.mrf.mxu0
  %v1529 = vadd.f32 0.0, %v1528
  %1530 = vmatmul.bf16.gmra.mxu0 %v1360
  %v1531 = vpop.f32.mrf.mxu0
  %v1532 = vadd.f32 0.0, %v1531
  %v1533 = vpop.f32.mrf.mxu0
  %v1534 = vadd.f32 0.0, %v1533
  %1535 = vmatmul.bf16.gmra.mxu0 %v1363
  %v1536 = vpop.f32.mrf.mxu0
  %v1537 = vadd.f32 0.0, %v1536
  %v1538 = vpop.f32.mrf.mxu0
  %v1539 = vadd.f32 0.0, %v1538
  %1540 = vmatmul.bf16.gmra.mxu0 %v1366
  %v1541 = vpop.f32.mrf.mxu0
  %v1542 = vadd.f32 0.0, %v1541
  %v1543 = vpop.f32.mrf.mxu0
  %v1544 = vadd.f32 0.0, %v1543
  %1545 = vmatmul.bf16.gmra.mxu0 %v1369
  %v1546 = vpop.f32.mrf.mxu0
  %v1547 = vadd.f32 0.0, %v1546
  %v1548 = vpop.f32.mrf.mxu0
  %v1549 = vadd.f32 0.0, %v1548
  %1550 = vmatmul.bf16.gmra.mxu0 %v1372
  %v1551 = vpop.f32.mrf.mxu0
  %v1552 = vadd.f32 0.0, %v1551
  %v1553 = vpop.f32.mrf.mxu0
  %v1554 = vadd.f32 0.0, %v1553
  %1555 = vmatmul.bf16.gmra.mxu0 %v1375
  %v1556 = vpop.f32.mrf.mxu0
  %v1557 = vadd.f32 0.0, %v1556
  %v1558 = vpop.f32.mrf.mxu0
  %v1559 = vadd.f32 0.0, %v1558
  %1560 = vmatmul.bf16.gmra.mxu0 %v1378
  %v1561 = vpop.f32.mrf.mxu0
  %v1562 = vadd.f32 0.0, %v1561
  %v1563 = vpop.f32.mrf.mxu0
  %v1564 = vadd.f32 0.0, %v1563
  %1565 = vmatmul.bf16.gmra.mxu0 %v1381
  %v1566 = vpop.f32.mrf.mxu0
  %v1567 = vadd.f32 0.0, %v1566
  %v1568 = vpop.f32.mrf.mxu0
  %v1569 = vadd.f32 0.0, %v1568
  %1570 = vmatmul.bf16.gmra.mxu0 %v1384
  %v1571 = vpop.f32.mrf.mxu0
  %v1572 = vadd.f32 0.0, %v1571
  %v1573 = vpop.f32.mrf.mxu0
  %v1574 = vadd.f32 0.0, %v1573
  %1575 = vmatmul.bf16.gmra.mxu0 %v1387
  %v1576 = vpop.f32.mrf.mxu0
  %v1577 = vadd.f32 0.0, %v1576
  %v1578 = vpop.f32.mrf.mxu0
  %v1579 = vadd.f32 0.0, %v1578
  %1580 = vmatmul.bf16.gmra.mxu0 %v1390
  %v1581 = vpop.f32.mrf.mxu0
  %v1582 = vadd.f32 0.0, %v1581
  %v1583 = vpop.f32.mrf.mxu0
  %v1584 = vadd.f32 0.0, %v1583
  %1585 = vmatmul.bf16.gmra.mxu0 %v1393
  %v1586 = vpop.f32.mrf.mxu0
  %v1587 = vadd.f32 0.0, %v1586
  %v1588 = vpop.f32.mrf.mxu0
  %v1589 = vadd.f32 0.0, %v1588
  %1590 = vmatmul.bf16.gmra.mxu0 %v1396
  %v1591 = vpop.f32.mrf.mxu0
  %v1592 = vadd.f32 0.0, %v1591
  %v1593 = vpop.f32.mrf.mxu0
  %v1594 = vadd.f32 0.0, %v1593
  %1595 = vmatmul.bf16.gmra.mxu0 %v1399
  %v1596 = vpop.f32.mrf.mxu0
  %v1597 = vadd.f32 0.0, %v1596
  %v1598 = vpop.f32.mrf.mxu0
  %v1599 = vadd.f32 0.0, %v1598
  %1600 = vmatmul.bf16.gmra.mxu0 %v1402
  %v1601 = vpop.f32.mrf.mxu0
  %v1602 = vadd.f32 0.0, %v1601
  %v1603 = vpop.f32.mrf.mxu0
  %v1604 = vadd.f32 0.0, %v1603
  %1605 = vmatmul.bf16.gmra.mxu0 %v1405
  %v1606 = vpop.f32.mrf.mxu0
  %v1607 = vadd.f32 0.0, %v1606
  %v1608 = vpop.f32.mrf.mxu0
  %v1609 = vadd.f32 0.0, %v1608
  %1610 = vmatmul.bf16.gmra.mxu0 %v1408
  %v1611 = vpop.f32.mrf.mxu0
  %v1612 = vadd.f32 0.0, %v1611
  %v1613 = vpop.f32.mrf.mxu0
  %v1614 = vadd.f32 0.0, %v1613
  %1615 = vdwg.mxu0
  %v1616 = vld [vmem:[%s6] sm:$0x1]
  %v1617 = vld [vmem:[%s6 + $0x1] sm:$0x1]
  %v1618 = vld [vmem:[%s6 + $0x2] sm:$0x1]
  %v1619 = vld [vmem:[%s6 + $0x3] sm:$0x1]
  %v1620 = vsel %vm718, %v1427, 0.0
  %v1621 = vsel %vm719, %v1429, 0.0
  %v1622 = vsel %vm720, %v1432, 0.0
  %v1623 = vsel %vm721, %v1434, 0.0
  %v1624 = vsel %vm722, %v1437, 0.0
  %v1625 = vsel %vm723, %v1439, 0.0
  %v1626 = vsel %vm724, %v1442, 0.0
  %v1627 = vsel %vm725, %v1444, 0.0
  %v1628 = vsel %vm726, %v1447, 0.0
  %v1629 = vsel %vm727, %v1449, 0.0
  %v1630 = vsel %vm728, %v1452, 0.0
  %v1631 = vsel %vm729, %v1454, 0.0
  %v1632 = vsel %vm730, %v1457, 0.0
  %v1633 = vsel %vm731, %v1459, 0.0
  %v1634 = vsel %vm732, %v1462, 0.0
  %v1635 = vsel %vm733, %v1464, 0.0
  %v1636 = vsel %vm734, %v1467, 0.0
  %v1637 = vsel %vm735, %v1469, 0.0
  %v1638 = vsel %vm736, %v1472, 0.0
  %v1639 = vsel %vm737, %v1474, 0.0
  %v1640 = vsel %vm738, %v1477, 0.0
  %v1641 = vsel %vm739, %v1479, 0.0
  %v1642 = vsel %vm740, %v1482, 0.0
  %v1643 = vsel %vm741, %v1484, 0.0
  %v1644 = vsel %vm742, %v1487, 0.0
  %v1645 = vsel %vm743, %v1489, 0.0
  %v1646 = vsel %vm744, %v1492, 0.0
  %v1647 = vsel %vm745, %v1494, 0.0
  %v1648 = vsel %vm746, %v1497, 0.0
  %v1649 = vsel %vm747, %v1499, 0.0
  %v1650 = vsel %vm748, %v1502, 0.0
  %v1651 = vsel %vm749, %v1504, 0.0
  %v1652 = vsel %vm750, %v1507, 0.0
  %v1653 = vsel %vm751, %v1509, 0.0
  %v1654 = vsel %vm752, %v1512, 0.0
  %v1655 = vsel %vm753, %v1514, 0.0
  %v1656 = vsel %vm754, %v1517, 0.0
  %v1657 = vsel %vm755, %v1519, 0.0
  %v1658 = vsel %vm756, %v1522, 0.0
  %v1659 = vsel %vm757, %v1524, 0.0
  %v1660 = vsel %vm758, %v1527, 0.0
  %v1661 = vsel %vm759, %v1529, 0.0
  %v1662 = vsel %vm760, %v1532, 0.0
  %v1663 = vsel %vm761, %v1534, 0.0
  %v1664 = vsel %vm762, %v1537, 0.0
  %v1665 = vsel %vm763, %v1539, 0.0
  %v1666 = vsel %vm764, %v1542, 0.0
  %v1667 = vsel %vm765, %v1544, 0.0
  %v1668 = vsel %vm766, %v1547, 0.0
  %v1669 = vsel %vm767, %v1549, 0.0
  %v1670 = vsel %vm768, %v1552, 0.0
  %v1671 = vsel %vm769, %v1554, 0.0
  %v1672 = vsel %vm770, %v1557, 0.0
  %v1673 = vsel %vm771, %v1559, 0.0
  %v1674 = vsel %vm772, %v1562, 0.0
  %v1675 = vsel %vm773, %v1564, 0.0
  %v1676 = vsel %vm774, %v1567, 0.0
  %v1677 = vsel %vm775, %v1569, 0.0
  %v1678 = vsel %vm776, %v1572, 0.0
  %v1679 = vsel %vm777, %v1574, 0.0
  %v1680 = vsel %vm778, %v1577, 0.0
  %v1681 = vsel %vm779, %v1579, 0.0
  %v1682 = vsel %vm780, %v1582, 0.0
  %v1683 = vsel %vm781, %v1584, 0.0
  %v1684 = vsel %vm782, %v1587, 0.0
  %v1685 = vsel %vm783, %v1589, 0.0
  %v1686 = vsel %vm784, %v1592, 0.0
  %v1687 = vsel %vm785, %v1594, 0.0
  %v1688 = vsel %vm786, %v1597, 0.0
  %v1689 = vsel %vm787, %v1599, 0.0
  %v1690 = vsel %vm788, %v1602, 0.0
  %v1691 = vsel %vm789, %v1604, 0.0
  %v1692 = vsel %vm790, %v1607, 0.0
  %v1693 = vsel %vm791, %v1609, 0.0
  %v1694 = vsel %vm792, %v1612, 0.0
  %v1695 = vsel %vm793, %v1614, 0.0
  %vm1696 = vcmask 261120
  %v1697 = vsel %vm1696, %v1620, 0.0
  %v1698 = vsel %vm1696, %v1621, 0.0
  %v1699 = vadd.f32 %v1697, %v1698
  %v1700 = vsel %vm1696, %v1622, 0.0
  %v1701 = vadd.f32 %v1699, %v1700
  %v1702 = vsel %vm1696, %v1623, 0.0
  %v1703 = vadd.f32 %v1701, %v1702
  %v1704 = vsel %vm1696, %v1624, 0.0
  %v1705 = vadd.f32 %v1703, %v1704
  %v1706 = vsel %vm1696, %v1625, 0.0
  %v1707 = vadd.f32 %v1705, %v1706
  %v1708 = vsel %vm1696, %v1626, 0.0
  %v1709 = vadd.f32 %v1707, %v1708
  %v1710 = vsel %vm1696, %v1627, 0.0
  %v1711 = vadd.f32 %v1709, %v1710
  %v1712 = vsel %vm1696, %v1628, 0.0
  %v1713 = vadd.f32 %v1711, %v1712
  %v1714 = vsel %vm1696, %v1629, 0.0
  %v1715 = vadd.f32 %v1713, %v1714
  %v1716 = vsel %vm1696, %v1630, 0.0
  %v1717 = vadd.f32 %v1715, %v1716
  %v1718 = vsel %vm1696, %v1631, 0.0
  %v1719 = vadd.f32 %v1717, %v1718
  %v1720 = vsel %vm1696, %v1632, 0.0
  %v1721 = vadd.f32 %v1719, %v1720
  %v1722 = vsel %vm1696, %v1633, 0.0
  %v1723 = vadd.f32 %v1721, %v1722
  %v1724 = vsel %vm1696, %v1634, 0.0
  %v1725 = vadd.f32 %v1723, %v1724
  %v1726 = vsel %vm1696, %v1635, 0.0
  %v1727 = vadd.f32 %v1725, %v1726
  %v1728 = vsel %vm1696, %v1636, 0.0
  %v1729 = vadd.f32 %v1727, %v1728
  %v1730 = vsel %vm1696, %v1637, 0.0
  %v1731 = vadd.f32 %v1729, %v1730
  %v1732 = vsel %vm1696, %v1638, 0.0
  %v1733 = vadd.f32 %v1731, %v1732
  %v1734 = vsel %vm1696, %v1639, 0.0
  %v1735 = vadd.f32 %v1733, %v1734
  %v1736 = vsel %vm1696, %v1640, 0.0
  %v1737 = vadd.f32 %v1735, %v1736
  %v1738 = vsel %vm1696, %v1641, 0.0
  %v1739 = vadd.f32 %v1737, %v1738
  %v1740 = vsel %vm1696, %v1642, 0.0
  %v1741 = vadd.f32 %v1739, %v1740
  %v1742 = vsel %vm1696, %v1643, 0.0
  %v1743 = vadd.f32 %v1741, %v1742
  %v1744 = vsel %vm1696, %v1644, 0.0
  %v1745 = vadd.f32 %v1743, %v1744
  %v1746 = vsel %vm1696, %v1645, 0.0
  %v1747 = vadd.f32 %v1745, %v1746
  %v1748 = vsel %vm1696, %v1646, 0.0
  %v1749 = vadd.f32 %v1747, %v1748
  %v1750 = vsel %vm1696, %v1647, 0.0
  %v1751 = vadd.f32 %v1749, %v1750
  %v1752 = vsel %vm1696, %v1648, 0.0
  %v1753 = vadd.f32 %v1751, %v1752
  %v1754 = vsel %vm1696, %v1649, 0.0
  %v1755 = vadd.f32 %v1753, %v1754
  %v1756 = vsel %vm1696, %v1650, 0.0
  %v1757 = vadd.f32 %v1755, %v1756
  %v1758 = vsel %vm1696, %v1651, 0.0
  %v1759 = vadd.f32 %v1757, %v1758
  %v1760 = vsel %vm1696, %v1652, 0.0
  %v1761 = vadd.f32 %v1759, %v1760
  %v1762 = vsel %vm1696, %v1653, 0.0
  %v1763 = vadd.f32 %v1761, %v1762
  %v1764 = vsel %vm1696, %v1654, 0.0
  %v1765 = vadd.f32 %v1763, %v1764
  %v1766 = vsel %vm1696, %v1655, 0.0
  %v1767 = vadd.f32 %v1765, %v1766
  %v1768 = vsel %vm1696, %v1656, 0.0
  %v1769 = vadd.f32 %v1767, %v1768
  %v1770 = vsel %vm1696, %v1657, 0.0
  %v1771 = vadd.f32 %v1769, %v1770
  %v1772 = vsel %vm1696, %v1658, 0.0
  %v1773 = vadd.f32 %v1771, %v1772
  %v1774 = vsel %vm1696, %v1659, 0.0
  %v1775 = vadd.f32 %v1773, %v1774
  %v1776 = vsel %vm1696, %v1660, 0.0
  %v1777 = vadd.f32 %v1775, %v1776
  %v1778 = vsel %vm1696, %v1661, 0.0
  %v1779 = vadd.f32 %v1777, %v1778
  %v1780 = vsel %vm1696, %v1662, 0.0
  %v1781 = vadd.f32 %v1779, %v1780
  %v1782 = vsel %vm1696, %v1663, 0.0
  %v1783 = vadd.f32 %v1781, %v1782
  %v1784 = vsel %vm1696, %v1664, 0.0
  %v1785 = vadd.f32 %v1783, %v1784
  %v1786 = vsel %vm1696, %v1665, 0.0
  %v1787 = vadd.f32 %v1785, %v1786
  %v1788 = vsel %vm1696, %v1666, 0.0
  %v1789 = vadd.f32 %v1787, %v1788
  %v1790 = vsel %vm1696, %v1667, 0.0
  %v1791 = vadd.f32 %v1789, %v1790
  %v1792 = vsel %vm1696, %v1668, 0.0
  %v1793 = vadd.f32 %v1791, %v1792
  %v1794 = vsel %vm1696, %v1669, 0.0
  %v1795 = vadd.f32 %v1793, %v1794
  %v1796 = vsel %vm1696, %v1670, 0.0
  %v1797 = vadd.f32 %v1795, %v1796
  %v1798 = vsel %vm1696, %v1671, 0.0
  %v1799 = vadd.f32 %v1797, %v1798
  %v1800 = vsel %vm1696, %v1672, 0.0
  %v1801 = vadd.f32 %v1799, %v1800
  %v1802 = vsel %vm1696, %v1673, 0.0
  %v1803 = vadd.f32 %v1801, %v1802
  %v1804 = vsel %vm1696, %v1674, 0.0
  %v1805 = vadd.f32 %v1803, %v1804
  %v1806 = vsel %vm1696, %v1675, 0.0
  %v1807 = vadd.f32 %v1805, %v1806
  %v1808 = vsel %vm1696, %v1676, 0.0
  %v1809 = vadd.f32 %v1807, %v1808
  %v1810 = vsel %vm1696, %v1677, 0.0
  %v1811 = vadd.f32 %v1809, %v1810
  %v1812 = vsel %vm1696, %v1678, 0.0
  %v1813 = vadd.f32 %v1811, %v1812
  %v1814 = vsel %vm1696, %v1679, 0.0
  %v1815 = vadd.f32 %v1813, %v1814
  %v1816 = vsel %vm1696, %v1680, 0.0
  %v1817 = vadd.f32 %v1815, %v1816
  %v1818 = vsel %vm1696, %v1681, 0.0
  %v1819 = vadd.f32 %v1817, %v1818
  %v1820 = vsel %vm1696, %v1682, 0.0
  %v1821 = vadd.f32 %v1819, %v1820
  %v1822 = vsel %vm1696, %v1683, 0.0
  %v1823 = vadd.f32 %v1821, %v1822
  %v1824 = vsel %vm1696, %v1684, 0.0
  %v1825 = vadd.f32 %v1823, %v1824
  %v1826 = vsel %vm1696, %v1685, 0.0
  %v1827 = vadd.f32 %v1825, %v1826
  %v1828 = vsel %vm1696, %v1686, 0.0
  %v1829 = vadd.f32 %v1827, %v1828
  %v1830 = vsel %vm1696, %v1687, 0.0
  %v1831 = vadd.f32 %v1829, %v1830
  %v1832 = vsel %vm1696, %v1688, 0.0
  %v1833 = vadd.f32 %v1831, %v1832
  %v1834 = vsel %vm1696, %v1689, 0.0
  %v1835 = vadd.f32 %v1833, %v1834
  %v1836 = vsel %vm1696, %v1690, 0.0
  %v1837 = vadd.f32 %v1835, %v1836
  %v1838 = vsel %vm1696, %v1691, 0.0
  %v1839 = vadd.f32 %v1837, %v1838
  %v1840 = vsel %vm1696, %v1692, 0.0
  %v1841 = vadd.f32 %v1839, %v1840
  %v1842 = vsel %vm1696, %v1693, 0.0
  %v1843 = vadd.f32 %v1841, %v1842
  %v1844 = vsel %vm1696, %v1694, 0.0
  %v1845 = vadd.f32 %v1843, %v1844
  %vm1846 = vcmask 257024
  %v1847 = vsel %vm1846, %v1695, 0.0
  %v1848 = vadd.f32 %v1845, %v1847
  %v1849 = vrot.slane %v1848, 4
  %v1850 = vadd.f32 %v1848, %v1849
  %v1851 = vrot.slane %v1850, 2
  %v1852 = vadd.f32 %v1850, %v1851
  %v1853 = vrot.slane %v1852, 1
  %v1854 = vadd.f32 %v1852, %v1853
  %v1855 = vrcp.pop 600.0
  %v1856 = vmul.f32 600.0, %v1855
  %v1857 = vsub.f32 1.0, %v1856
  %v1858 = vmul.f32 %v1855, %v1857
  %v1859 = vadd.f32 %v1855, %v1858
  %vm1860 = vweird.f32 %v1855
  %v1861 = vsel %vm1860, %v1855, %v1859
  %v1862 = vmul.f32 %v1854, %v1861
  %v1863 = vsub.f32 %v1427, %v1862
  %v1864 = vsub.f32 %v1429, %v1862
  %v1865 = vsub.f32 %v1432, %v1862
  %v1866 = vsub.f32 %v1434, %v1862
  %v1867 = vsub.f32 %v1437, %v1862
  %v1868 = vsub.f32 %v1439, %v1862
  %v1869 = vsub.f32 %v1442, %v1862
  %v1870 = vsub.f32 %v1444, %v1862
  %v1871 = vsub.f32 %v1447, %v1862
  %v1872 = vsub.f32 %v1449, %v1862
  %v1873 = vsub.f32 %v1452, %v1862
  %v1874 = vsub.f32 %v1454, %v1862
  %v1875 = vsub.f32 %v1457, %v1862
  %v1876 = vsub.f32 %v1459, %v1862
  %v1877 = vsub.f32 %v1462, %v1862
  %v1878 = vsub.f32 %v1464, %v1862
  %v1879 = vsub.f32 %v1467, %v1862
  %v1880 = vsub.f32 %v1469, %v1862
  %v1881 = vsub.f32 %v1472, %v1862
  %v1882 = vsub.f32 %v1474, %v1862
  %v1883 = vsub.f32 %v1477, %v1862
  %v1884 = vsub.f32 %v1479, %v1862
  %v1885 = vsub.f32 %v1482, %v1862
  %v1886 = vsub.f32 %v1484, %v1862
  %v1887 = vsub.f32 %v1487, %v1862
  %v1888 = vsub.f32 %v1489, %v1862
  %v1889 = vsub.f32 %v1492, %v1862
  %v1890 = vsub.f32 %v1494, %v1862
  %v1891 = vsub.f32 %v1497, %v1862
  %v1892 = vsub.f32 %v1499, %v1862
  %v1893 = vsub.f32 %v1502, %v1862
  %v1894 = vsub.f32 %v1504, %v1862
  %v1895 = vsub.f32 %v1507, %v1862
  %v1896 = vsub.f32 %v1509, %v1862
  %v1897 = vsub.f32 %v1512, %v1862
  %v1898 = vsub.f32 %v1514, %v1862
  %v1899 = vsub.f32 %v1517, %v1862
  %v1900 = vsub.f32 %v1519, %v1862
  %v1901 = vsub.f32 %v1522, %v1862
  %v1902 = vsub.f32 %v1524, %v1862
  %v1903 = vsub.f32 %v1527, %v1862
  %v1904 = vsub.f32 %v1529, %v1862
  %v1905 = vsub.f32 %v1532, %v1862
  %v1906 = vsub.f32 %v1534, %v1862
  %v1907 = vsub.f32 %v1537, %v1862
  %v1908 = vsub.f32 %v1539, %v1862
  %v1909 = vsub.f32 %v1542, %v1862
  %v1910 = vsub.f32 %v1544, %v1862
  %v1911 = vsub.f32 %v1547, %v1862
  %v1912 = vsub.f32 %v1549, %v1862
  %v1913 = vsub.f32 %v1552, %v1862
  %v1914 = vsub.f32 %v1554, %v1862
  %v1915 = vsub.f32 %v1557, %v1862
  %v1916 = vsub.f32 %v1559, %v1862
  %v1917 = vsub.f32 %v1562, %v1862
  %v1918 = vsub.f32 %v1564, %v1862
  %v1919 = vsub.f32 %v1567, %v1862
  %v1920 = vsub.f32 %v1569, %v1862
  %v1921 = vsub.f32 %v1572, %v1862
  %v1922 = vsub.f32 %v1574, %v1862
  %v1923 = vsub.f32 %v1577, %v1862
  %v1924 = vsub.f32 %v1579, %v1862
  %v1925 = vsub.f32 %v1582, %v1862
  %v1926 = vsub.f32 %v1584, %v1862
  %v1927 = vsub.f32 %v1587, %v1862
  %v1928 = vsub.f32 %v1589, %v1862
  %v1929 = vsub.f32 %v1592, %v1862
  %v1930 = vsub.f32 %v1594, %v1862
  %v1931 = vsub.f32 %v1597, %v1862
  %v1932 = vsub.f32 %v1599, %v1862
  %v1933 = vsub.f32 %v1602, %v1862
  %v1934 = vsub.f32 %v1604, %v1862
  %v1935 = vsub.f32 %v1607, %v1862
  %v1936 = vsub.f32 %v1609, %v1862
  %v1937 = vsub.f32 %v1612, %v1862
  %v1938 = vsub.f32 %v1614, %v1862
  %v1939 = vmul.f32 %v1863, %v1863
  %v1940 = vmul.f32 %v1864, %v1864
  %v1941 = vmul.f32 %v1865, %v1865
  %v1942 = vmul.f32 %v1866, %v1866
  %v1943 = vmul.f32 %v1867, %v1867
  %v1944 = vmul.f32 %v1868, %v1868
  %v1945 = vmul.f32 %v1869, %v1869
  %v1946 = vmul.f32 %v1870, %v1870
  %v1947 = vmul.f32 %v1871, %v1871
  %v1948 = vmul.f32 %v1872, %v1872
  %v1949 = vmul.f32 %v1873, %v1873
  %v1950 = vmul.f32 %v1874, %v1874
  %v1951 = vmul.f32 %v1875, %v1875
  %v1952 = vmul.f32 %v1876, %v1876
  %v1953 = vmul.f32 %v1877, %v1877
  %v1954 = vmul.f32 %v1878, %v1878
  %v1955 = vmul.f32 %v1879, %v1879
  %v1956 = vmul.f32 %v1880, %v1880
  %v1957 = vmul.f32 %v1881, %v1881
  %v1958 = vmul.f32 %v1882, %v1882
  %v1959 = vmul.f32 %v1883, %v1883
  %v1960 = vmul.f32 %v1884, %v1884
  %v1961 = vmul.f32 %v1885, %v1885
  %v1962 = vmul.f32 %v1886, %v1886
  %v1963 = vmul.f32 %v1887, %v1887
  %v1964 = vmul.f32 %v1888, %v1888
  %v1965 = vmul.f32 %v1889, %v1889
  %v1966 = vmul.f32 %v1890, %v1890
  %v1967 = vmul.f32 %v1891, %v1891
  %v1968 = vmul.f32 %v1892, %v1892
  %v1969 = vmul.f32 %v1893, %v1893
  %v1970 = vmul.f32 %v1894, %v1894
  %v1971 = vmul.f32 %v1895, %v1895
  %v1972 = vmul.f32 %v1896, %v1896
  %v1973 = vmul.f32 %v1897, %v1897
  %v1974 = vmul.f32 %v1898, %v1898
  %v1975 = vmul.f32 %v1899, %v1899
  %v1976 = vmul.f32 %v1900, %v1900
  %v1977 = vmul.f32 %v1901, %v1901
  %v1978 = vmul.f32 %v1902, %v1902
  %v1979 = vmul.f32 %v1903, %v1903
  %v1980 = vmul.f32 %v1904, %v1904
  %v1981 = vmul.f32 %v1905, %v1905
  %v1982 = vmul.f32 %v1906, %v1906
  %v1983 = vmul.f32 %v1907, %v1907
  %v1984 = vmul.f32 %v1908, %v1908
  %v1985 = vmul.f32 %v1909, %v1909
  %v1986 = vmul.f32 %v1910, %v1910
  %v1987 = vmul.f32 %v1911, %v1911
  %v1988 = vmul.f32 %v1912, %v1912
  %v1989 = vmul.f32 %v1913, %v1913
  %v1990 = vmul.f32 %v1914, %v1914
  %v1991 = vmul.f32 %v1915, %v1915
  %v1992 = vmul.f32 %v1916, %v1916
  %v1993 = vmul.f32 %v1917, %v1917
  %v1994 = vmul.f32 %v1918, %v1918
  %v1995 = vmul.f32 %v1919, %v1919
  %v1996 = vmul.f32 %v1920, %v1920
  %v1997 = vmul.f32 %v1921, %v1921
  %v1998 = vmul.f32 %v1922, %v1922
  %v1999 = vmul.f32 %v1923, %v1923
  %v2000 = vmul.f32 %v1924, %v1924
  %v2001 = vmul.f32 %v1925, %v1925
  %v2002 = vmul.f32 %v1926, %v1926
  %v2003 = vmul.f32 %v1927, %v1927
  %v2004 = vmul.f32 %v1928, %v1928
  %v2005 = vmul.f32 %v1929, %v1929
  %v2006 = vmul.f32 %v1930, %v1930
  %v2007 = vmul.f32 %v1931, %v1931
  %v2008 = vmul.f32 %v1932, %v1932
  %v2009 = vmul.f32 %v1933, %v1933
  %v2010 = vmul.f32 %v1934, %v1934
  %v2011 = vmul.f32 %v1935, %v1935
  %v2012 = vmul.f32 %v1936, %v1936
  %v2013 = vmul.f32 %v1937, %v1937
  %v2014 = vmul.f32 %v1938, %v1938
  %v2015 = vsel %vm718, %v1939, 0.0
  %v2016 = vsel %vm719, %v1940, 0.0
  %v2017 = vsel %vm720, %v1941, 0.0
  %v2018 = vsel %vm721, %v1942, 0.0
  %v2019 = vsel %vm722, %v1943, 0.0
  %v2020 = vsel %vm723, %v1944, 0.0
  %v2021 = vsel %vm724, %v1945, 0.0
  %v2022 = vsel %vm725, %v1946, 0.0
  %v2023 = vsel %vm726, %v1947, 0.0
  %v2024 = vsel %vm727, %v1948, 0.0
  %v2025 = vsel %vm728, %v1949, 0.0
  %v2026 = vsel %vm729, %v1950, 0.0
  %v2027 = vsel %vm730, %v1951, 0.0
  %v2028 = vsel %vm731, %v1952, 0.0
  %v2029 = vsel %vm732, %v1953, 0.0
  %v2030 = vsel %vm733, %v1954, 0.0
  %v2031 = vsel %vm734, %v1955, 0.0
  %v2032 = vsel %vm735, %v1956, 0.0
  %v2033 = vsel %vm736, %v1957, 0.0
  %v2034 = vsel %vm737, %v1958, 0.0
  %v2035 = vsel %vm738, %v1959, 0.0
  %v2036 = vsel %vm739, %v1960, 0.0
  %v2037 = vsel %vm740, %v1961, 0.0
  %v2038 = vsel %vm741, %v1962, 0.0
  %v2039 = vsel %vm742, %v1963, 0.0
  %v2040 = vsel %vm743, %v1964, 0.0
  %v2041 = vsel %vm744, %v1965, 0.0
  %v2042 = vsel %vm745, %v1966, 0.0
  %v2043 = vsel %vm746, %v1967, 0.0
  %v2044 = vsel %vm747, %v1968, 0.0
  %v2045 = vsel %vm748, %v1969, 0.0
  %v2046 = vsel %vm749, %v1970, 0.0
  %v2047 = vsel %vm750, %v1971, 0.0
  %v2048 = vsel %vm751, %v1972, 0.0
  %v2049 = vsel %vm752, %v1973, 0.0
  %v2050 = vsel %vm753, %v1974, 0.0
  %v2051 = vsel %vm754, %v1975, 0.0
  %v2052 = vsel %vm755, %v1976, 0.0
  %v2053 = vsel %vm756, %v1977, 0.0
  %v2054 = vsel %vm757, %v1978, 0.0
  %v2055 = vsel %vm758, %v1979, 0.0
  %v2056 = vsel %vm759, %v1980, 0.0
  %v2057 = vsel %vm760, %v1981, 0.0
  %v2058 = vsel %vm761, %v1982, 0.0
  %v2059 = vsel %vm762, %v1983, 0.0
  %v2060 = vsel %vm763, %v1984, 0.0
  %v2061 = vsel %vm764, %v1985, 0.0
  %v2062 = vsel %vm765, %v1986, 0.0
  %v2063 = vsel %vm766, %v1987, 0.0
  %v2064 = vsel %vm767, %v1988, 0.0
  %v2065 = vsel %vm768, %v1989, 0.0
  %v2066 = vsel %vm769, %v1990, 0.0
  %v2067 = vsel %vm770, %v1991, 0.0
  %v2068 = vsel %vm771, %v1992, 0.0
  %v2069 = vsel %vm772, %v1993, 0.0
  %v2070 = vsel %vm773, %v1994, 0.0
  %v2071 = vsel %vm774, %v1995, 0.0
  %v2072 = vsel %vm775, %v1996, 0.0
  %v2073 = vsel %vm776, %v1997, 0.0
  %v2074 = vsel %vm777, %v1998, 0.0
  %v2075 = vsel %vm778, %v1999, 0.0
  %v2076 = vsel %vm779, %v2000, 0.0
  %v2077 = vsel %vm780, %v2001, 0.0
  %v2078 = vsel %vm781, %v2002, 0.0
  %v2079 = vsel %vm782, %v2003, 0.0
  %v2080 = vsel %vm783, %v2004, 0.0
  %v2081 = vsel %vm784, %v2005, 0.0
  %v2082 = vsel %vm785, %v2006, 0.0
  %v2083 = vsel %vm786, %v2007, 0.0
  %v2084 = vsel %vm787, %v2008, 0.0
  %v2085 = vsel %vm788, %v2009, 0.0
  %v2086 = vsel %vm789, %v2010, 0.0
  %v2087 = vsel %vm790, %v2011, 0.0
  %v2088 = vsel %vm791, %v2012, 0.0
  %v2089 = vsel %vm792, %v2013, 0.0
  %v2090 = vsel %vm793, %v2014, 0.0
  %v2091 = vsel %vm1696, %v2015, 0.0
  %v2092 = vsel %vm1696, %v2016, 0.0
  %v2093 = vadd.f32 %v2091, %v2092
  %v2094 = vsel %vm1696, %v2017, 0.0
  %v2095 = vadd.f32 %v2093, %v2094
  %v2096 = vsel %vm1696, %v2018, 0.0
  %v2097 = vadd.f32 %v2095, %v2096
  %v2098 = vsel %vm1696, %v2019, 0.0
  %v2099 = vadd.f32 %v2097, %v2098
  %v2100 = vsel %vm1696, %v2020, 0.0
  %v2101 = vadd.f32 %v2099, %v2100
  %v2102 = vsel %vm1696, %v2021, 0.0
  %v2103 = vadd.f32 %v2101, %v2102
  %v2104 = vsel %vm1696, %v2022, 0.0
  %v2105 = vadd.f32 %v2103, %v2104
  %v2106 = vsel %vm1696, %v2023, 0.0
  %v2107 = vadd.f32 %v2105, %v2106
  %v2108 = vsel %vm1696, %v2024, 0.0
  %v2109 = vadd.f32 %v2107, %v2108
  %v2110 = vsel %vm1696, %v2025, 0.0
  %v2111 = vadd.f32 %v2109, %v2110
  %v2112 = vsel %vm1696, %v2026, 0.0
  %v2113 = vadd.f32 %v2111, %v2112
  %v2114 = vsel %vm1696, %v2027, 0.0
  %v2115 = vadd.f32 %v2113, %v2114
  %v2116 = vsel %vm1696, %v2028, 0.0
  %v2117 = vadd.f32 %v2115, %v2116
  %v2118 = vsel %vm1696, %v2029, 0.0
  %v2119 = vadd.f32 %v2117, %v2118
  %v2120 = vsel %vm1696, %v2030, 0.0
  %v2121 = vadd.f32 %v2119, %v2120
  %v2122 = vsel %vm1696, %v2031, 0.0
  %v2123 = vadd.f32 %v2121, %v2122
  %v2124 = vsel %vm1696, %v2032, 0.0
  %v2125 = vadd.f32 %v2123, %v2124
  %v2126 = vsel %vm1696, %v2033, 0.0
  %v2127 = vadd.f32 %v2125, %v2126
  %v2128 = vsel %vm1696, %v2034, 0.0
  %v2129 = vadd.f32 %v2127, %v2128
  %v2130 = vsel %vm1696, %v2035, 0.0
  %v2131 = vadd.f32 %v2129, %v2130
  %v2132 = vsel %vm1696, %v2036, 0.0
  %v2133 = vadd.f32 %v2131, %v2132
  %v2134 = vsel %vm1696, %v2037, 0.0
  %v2135 = vadd.f32 %v2133, %v2134
  %v2136 = vsel %vm1696, %v2038, 0.0
  %v2137 = vadd.f32 %v2135, %v2136
  %v2138 = vsel %vm1696, %v2039, 0.0
  %v2139 = vadd.f32 %v2137, %v2138
  %v2140 = vsel %vm1696, %v2040, 0.0
  %v2141 = vadd.f32 %v2139, %v2140
  %v2142 = vsel %vm1696, %v2041, 0.0
  %v2143 = vadd.f32 %v2141, %v2142
  %v2144 = vsel %vm1696, %v2042, 0.0
  %v2145 = vadd.f32 %v2143, %v2144
  %v2146 = vsel %vm1696, %v2043, 0.0
  %v2147 = vadd.f32 %v2145, %v2146
  %v2148 = vsel %vm1696, %v2044, 0.0
  %v2149 = vadd.f32 %v2147, %v2148
  %v2150 = vsel %vm1696, %v2045, 0.0
  %v2151 = vadd.f32 %v2149, %v2150
  %v2152 = vsel %vm1696, %v2046, 0.0
  %v2153 = vadd.f32 %v2151, %v2152
  %v2154 = vsel %vm1696, %v2047, 0.0
  %v2155 = vadd.f32 %v2153, %v2154
  %v2156 = vsel %vm1696, %v2048, 0.0
  %v2157 = vadd.f32 %v2155, %v2156
  %v2158 = vsel %vm1696, %v2049, 0.0
  %v2159 = vadd.f32 %v2157, %v2158
  %v2160 = vsel %vm1696, %v2050, 0.0
  %v2161 = vadd.f32 %v2159, %v2160
  %v2162 = vsel %vm1696, %v2051, 0.0
  %v2163 = vadd.f32 %v2161, %v2162
  %v2164 = vsel %vm1696, %v2052, 0.0
  %v2165 = vadd.f32 %v2163, %v2164
  %v2166 = vsel %vm1696, %v2053, 0.0
  %v2167 = vadd.f32 %v2165, %v2166
  %v2168 = vsel %vm1696, %v2054, 0.0
  %v2169 = vadd.f32 %v2167, %v2168
  %v2170 = vsel %vm1696, %v2055, 0.0
  %v2171 = vadd.f32 %v2169, %v2170
  %v2172 = vsel %vm1696, %v2056, 0.0
  %v2173 = vadd.f32 %v2171, %v2172
  %v2174 = vsel %vm1696, %v2057, 0.0
  %v2175 = vadd.f32 %v2173, %v2174
  %v2176 = vsel %vm1696, %v2058, 0.0
  %v2177 = vadd.f32 %v2175, %v2176
  %v2178 = vsel %vm1696, %v2059, 0.0
  %v2179 = vadd.f32 %v2177, %v2178
  %v2180 = vsel %vm1696, %v2060, 0.0
  %v2181 = vadd.f32 %v2179, %v2180
  %v2182 = vsel %vm1696, %v2061, 0.0
  %v2183 = vadd.f32 %v2181, %v2182
  %v2184 = vsel %vm1696, %v2062, 0.0
  %v2185 = vadd.f32 %v2183, %v2184
  %v2186 = vsel %vm1696, %v2063, 0.0
  %v2187 = vadd.f32 %v2185, %v2186
  %v2188 = vsel %vm1696, %v2064, 0.0
  %v2189 = vadd.f32 %v2187, %v2188
  %v2190 = vsel %vm1696, %v2065, 0.0
  %v2191 = vadd.f32 %v2189, %v2190
  %v2192 = vsel %vm1696, %v2066, 0.0
  %v2193 = vadd.f32 %v2191, %v2192
  %v2194 = vsel %vm1696, %v2067, 0.0
  %v2195 = vadd.f32 %v2193, %v2194
  %v2196 = vsel %vm1696, %v2068, 0.0
  %v2197 = vadd.f32 %v2195, %v2196
  %v2198 = vsel %vm1696, %v2069, 0.0
  %v2199 = vadd.f32 %v2197, %v2198
  %v2200 = vsel %vm1696, %v2070, 0.0
  %v2201 = vadd.f32 %v2199, %v2200
  %v2202 = vsel %vm1696, %v2071, 0.0
  %v2203 = vadd.f32 %v2201, %v2202
  %v2204 = vsel %vm1696, %v2072, 0.0
  %v2205 = vadd.f32 %v2203, %v2204
  %v2206 = vsel %vm1696, %v2073, 0.0
  %v2207 = vadd.f32 %v2205, %v2206
  %v2208 = vsel %vm1696, %v2074, 0.0
  %v2209 = vadd.f32 %v2207, %v2208
  %v2210 = vsel %vm1696, %v2075, 0.0
  %v2211 = vadd.f32 %v2209, %v2210
  %v2212 = vsel %vm1696, %v2076, 0.0
  %v2213 = vadd.f32 %v2211, %v2212
  %v2214 = vsel %vm1696, %v2077, 0.0
  %v2215 = vadd.f32 %v2213, %v2214
  %v2216 = vsel %vm1696, %v2078, 0.0
  %v2217 = vadd.f32 %v2215, %v2216
  %v2218 = vsel %vm1696, %v2079, 0.0
  %v2219 = vadd.f32 %v2217, %v2218
  %v2220 = vsel %vm1696, %v2080, 0.0
  %v2221 = vadd.f32 %v2219, %v2220
  %v2222 = vsel %vm1696, %v2081, 0.0
  %v2223 = vadd.f32 %v2221, %v2222
  %v2224 = vsel %vm1696, %v2082, 0.0
  %v2225 = vadd.f32 %v2223, %v2224
  %v2226 = vsel %vm1696, %v2083, 0.0
  %v2227 = vadd.f32 %v2225, %v2226
  %v2228 = vsel %vm1696, %v2084, 0.0
  %v2229 = vadd.f32 %v2227, %v2228
  %v2230 = vsel %vm1696, %v2085, 0.0
  %v2231 = vadd.f32 %v2229, %v2230
  %v2232 = vsel %vm1696, %v2086, 0.0
  %v2233 = vadd.f32 %v2231, %v2232
  %v2234 = vsel %vm1696, %v2087, 0.0
  %v2235 = vadd.f32 %v2233, %v2234
  %v2236 = vsel %vm1696, %v2088, 0.0
  %v2237 = vadd.f32 %v2235, %v2236
  %v2238 = vsel %vm1696, %v2089, 0.0
  %v2239 = vadd.f32 %v2237, %v2238
  %v2240 = vsel %vm1846, %v2090, 0.0
  %v2241 = vadd.f32 %v2239, %v2240
  %v2242 = vrot.slane %v2241, 4
  %v2243 = vadd.f32 %v2241, %v2242
  %v2244 = vrot.slane %v2243, 2
  %v2245 = vadd.f32 %v2243, %v2244
  %v2246 = vrot.slane %v2245, 1
  %v2247 = vadd.f32 %v2245, %v2246
  %v2248 = vmul.f32 %v2247, %v1861
  %v2249 = vadd.f32 %v2248, 1e-05
  %v2250 = vrsqrt.pop %v2249
  %v2251 = vmul.f32 %v2250, %v2249
  %v2252 = vmul.f32 %v2251, %v2250
  %v2253 = vmul.f32 0.5, %v2252
  %v2254 = vsub.f32 1.5, %v2253
  %v2255 = vmul.f32 %v2250, %v2254
  %vm2256 = vweird.f32 %v2249
  %vm2257 = vweird.f32 %v2250
  %vm2258 = vmor %vm2256, %vm2257
  %v2259 = vsel %vm2258, %v2250, %v2255
  %v2260 = vmul.f32 %v1616, %v2259
  %v2261 = vmul.f32 %v1862, %v2260
  %v2262 = vsub.f32 %v1617, %v2261
  %v2263 = vperm.slane %v2260, 0
  %v2264 = vmul.f32 %v1427, %v2263
  %v2265 = vmul.f32 %v1429, %v2263
  %v2266 = vmul.f32 %v1432, %v2263
  %v2267 = vmul.f32 %v1434, %v2263
  %v2268 = vmul.f32 %v1437, %v2263
  %v2269 = vmul.f32 %v1439, %v2263
  %v2270 = vmul.f32 %v1442, %v2263
  %v2271 = vmul.f32 %v1444, %v2263
  %v2272 = vmul.f32 %v1447, %v2263
  %v2273 = vmul.f32 %v1449, %v2263
  %v2274 = vmul.f32 %v1452, %v2263
  %v2275 = vmul.f32 %v1454, %v2263
  %v2276 = vmul.f32 %v1457, %v2263
  %v2277 = vmul.f32 %v1459, %v2263
  %v2278 = vmul.f32 %v1462, %v2263
  %v2279 = vmul.f32 %v1464, %v2263
  %v2280 = vmul.f32 %v1467, %v2263
  %v2281 = vmul.f32 %v1469, %v2263
  %v2282 = vmul.f32 %v1472, %v2263
  %v2283 = vmul.f32 %v1474, %v2263
  %v2284 = vmul.f32 %v1477, %v2263
  %v2285 = vmul.f32 %v1479, %v2263
  %v2286 = vmul.f32 %v1482, %v2263
  %v2287 = vmul.f32 %v1484, %v2263
  %v2288 = vmul.f32 %v1487, %v2263
  %v2289 = vmul.f32 %v1489, %v2263
  %v2290 = vmul.f32 %v1492, %v2263
  %v2291 = vmul.f32 %v1494, %v2263
  %v2292 = vmul.f32 %v1497, %v2263
  %v2293 = vmul.f32 %v1499, %v2263
  %v2294 = vmul.f32 %v1502, %v2263
  %v2295 = vmul.f32 %v1504, %v2263
  %v2296 = vmul.f32 %v1507, %v2263
  %v2297 = vmul.f32 %v1509, %v2263
  %v2298 = vmul.f32 %v1512, %v2263
  %v2299 = vmul.f32 %v1514, %v2263
  %v2300 = vmul.f32 %v1517, %v2263
  %v2301 = vmul.f32 %v1519, %v2263
  %v2302 = vmul.f32 %v1522, %v2263
  %v2303 = vmul.f32 %v1524, %v2263
  %v2304 = vmul.f32 %v1527, %v2263
  %v2305 = vmul.f32 %v1529, %v2263
  %v2306 = vmul.f32 %v1532, %v2263
  %v2307 = vmul.f32 %v1534, %v2263
  %v2308 = vmul.f32 %v1537, %v2263
  %v2309 = vmul.f32 %v1539, %v2263
  %v2310 = vmul.f32 %v1542, %v2263
  %v2311 = vmul.f32 %v1544, %v2263
  %v2312 = vmul.f32 %v1547, %v2263
  %v2313 = vmul.f32 %v1549, %v2263
  %v2314 = vmul.f32 %v1552, %v2263
  %v2315 = vmul.f32 %v1554, %v2263
  %v2316 = vmul.f32 %v1557, %v2263
  %v2317 = vmul.f32 %v1559, %v2263
  %v2318 = vmul.f32 %v1562, %v2263
  %v2319 = vmul.f32 %v1564, %v2263
  %v2320 = vmul.f32 %v1567, %v2263
  %v2321 = vmul.f32 %v1569, %v2263
  %v2322 = vmul.f32 %v1572, %v2263
  %v2323 = vmul.f32 %v1574, %v2263
  %v2324 = vmul.f32 %v1577, %v2263
  %v2325 = vmul.f32 %v1579, %v2263
  %v2326 = vmul.f32 %v1582, %v2263
  %v2327 = vmul.f32 %v1584, %v2263
  %v2328 = vmul.f32 %v1587, %v2263
  %v2329 = vmul.f32 %v1589, %v2263
  %v2330 = vmul.f32 %v1592, %v2263
  %v2331 = vmul.f32 %v1594, %v2263
  %v2332 = vmul.f32 %v1597, %v2263
  %v2333 = vmul.f32 %v1599, %v2263
  %v2334 = vmul.f32 %v1602, %v2263
  %v2335 = vmul.f32 %v1604, %v2263
  %v2336 = vmul.f32 %v1607, %v2263
  %v2337 = vmul.f32 %v1609, %v2263
  %v2338 = vmul.f32 %v1612, %v2263
  %v2339 = vmul.f32 %v1614, %v2263
  %v2340 = vperm.slane %v2262, 0
  %v2341 = vadd.f32 %v2264, %v2340
  %v2342 = vadd.f32 %v2265, %v2340
  %v2343 = vadd.f32 %v2266, %v2340
  %v2344 = vadd.f32 %v2267, %v2340
  %v2345 = vadd.f32 %v2268, %v2340
  %v2346 = vadd.f32 %v2269, %v2340
  %v2347 = vadd.f32 %v2270, %v2340
  %v2348 = vadd.f32 %v2271, %v2340
  %v2349 = vadd.f32 %v2272, %v2340
  %v2350 = vadd.f32 %v2273, %v2340
  %v2351 = vadd.f32 %v2274, %v2340
  %v2352 = vadd.f32 %v2275, %v2340
  %v2353 = vadd.f32 %v2276, %v2340
  %v2354 = vadd.f32 %v2277, %v2340
  %v2355 = vadd.f32 %v2278, %v2340
  %v2356 = vadd.f32 %v2279, %v2340
  %v2357 = vadd.f32 %v2280, %v2340
  %v2358 = vadd.f32 %v2281, %v2340
  %v2359 = vadd.f32 %v2282, %v2340
  %v2360 = vadd.f32 %v2283, %v2340
  %v2361 = vadd.f32 %v2284, %v2340
  %v2362 = vadd.f32 %v2285, %v2340
  %v2363 = vadd.f32 %v2286, %v2340
  %v2364 = vadd.f32 %v2287, %v2340
  %v2365 = vadd.f32 %v2288, %v2340
  %v2366 = vadd.f32 %v2289, %v2340
  %v2367 = vadd.f32 %v2290, %v2340
  %v2368 = vadd.f32 %v2291, %v2340
  %v2369 = vadd.f32 %v2292, %v2340
  %v2370 = vadd.f32 %v2293, %v2340
  %v2371 = vadd.f32 %v2294, %v2340
  %v2372 = vadd.f32 %v2295, %v2340
  %v2373 = vadd.f32 %v2296, %v2340
  %v2374 = vadd.f32 %v2297, %v2340
  %v2375 = vadd.f32 %v2298, %v2340
  %v2376 = vadd.f32 %v2299, %v2340
  %v2377 = vadd.f32 %v2300, %v2340
  %v2378 = vadd.f32 %v2301, %v2340
  %v2379 = vadd.f32 %v2302, %v2340
  %v2380 = vadd.f32 %v2303, %v2340
  %v2381 = vadd.f32 %v2304, %v2340
  %v2382 = vadd.f32 %v2305, %v2340
  %v2383 = vadd.f32 %v2306, %v2340
  %v2384 = vadd.f32 %v2307, %v2340
  %v2385 = vadd.f32 %v2308, %v2340
  %v2386 = vadd.f32 %v2309, %v2340
  %v2387 = vadd.f32 %v2310, %v2340
  %v2388 = vadd.f32 %v2311, %v2340
  %v2389 = vadd.f32 %v2312, %v2340
  %v2390 = vadd.f32 %v2313, %v2340
  %v2391 = vadd.f32 %v2314, %v2340
  %v2392 = vadd.f32 %v2315, %v2340
  %v2393 = vadd.f32 %v2316, %v2340
  %v2394 = vadd.f32 %v2317, %v2340
  %v2395 = vadd.f32 %v2318, %v2340
  %v2396 = vadd.f32 %v2319, %v2340
  %v2397 = vadd.f32 %v2320, %v2340
  %v2398 = vadd.f32 %v2321, %v2340
  %v2399 = vadd.f32 %v2322, %v2340
  %v2400 = vadd.f32 %v2323, %v2340
  %v2401 = vadd.f32 %v2324, %v2340
  %v2402 = vadd.f32 %v2325, %v2340
  %v2403 = vadd.f32 %v2326, %v2340
  %v2404 = vadd.f32 %v2327, %v2340
  %v2405 = vadd.f32 %v2328, %v2340
  %v2406 = vadd.f32 %v2329, %v2340
  %v2407 = vadd.f32 %v2330, %v2340
  %v2408 = vadd.f32 %v2331, %v2340
  %v2409 = vadd.f32 %v2332, %v2340
  %v2410 = vadd.f32 %v2333, %v2340
  %v2411 = vadd.f32 %v2334, %v2340
  %v2412 = vadd.f32 %v2335, %v2340
  %v2413 = vadd.f32 %v2336, %v2340
  %v2414 = vadd.f32 %v2337, %v2340
  %v2415 = vadd.f32 %v2338, %v2340
  %v2416 = vadd.f32 %v2339, %v2340
  %v2417 = vmax.f32 %v2341, 0.0
  %v2418 = vmax.f32 %v2342, 0.0
  %v2419 = vmax.f32 %v2343, 0.0
  %v2420 = vmax.f32 %v2344, 0.0
  %v2421 = vmax.f32 %v2345, 0.0
  %v2422 = vmax.f32 %v2346, 0.0
  %v2423 = vmax.f32 %v2347, 0.0
  %v2424 = vmax.f32 %v2348, 0.0
  %v2425 = vmax.f32 %v2349, 0.0
  %v2426 = vmax.f32 %v2350, 0.0
  %v2427 = vmax.f32 %v2351, 0.0
  %v2428 = vmax.f32 %v2352, 0.0
  %v2429 = vmax.f32 %v2353, 0.0
  %v2430 = vmax.f32 %v2354, 0.0
  %v2431 = vmax.f32 %v2355, 0.0
  %v2432 = vmax.f32 %v2356, 0.0
  %v2433 = vmax.f32 %v2357, 0.0
  %v2434 = vmax.f32 %v2358, 0.0
  %v2435 = vmax.f32 %v2359, 0.0
  %v2436 = vmax.f32 %v2360, 0.0
  %v2437 = vmax.f32 %v2361, 0.0
  %v2438 = vmax.f32 %v2362, 0.0
  %v2439 = vmax.f32 %v2363, 0.0
  %v2440 = vmax.f32 %v2364, 0.0
  %v2441 = vmax.f32 %v2365, 0.0
  %v2442 = vmax.f32 %v2366, 0.0
  %v2443 = vmax.f32 %v2367, 0.0
  %v2444 = vmax.f32 %v2368, 0.0
  %v2445 = vmax.f32 %v2369, 0.0
  %v2446 = vmax.f32 %v2370, 0.0
  %v2447 = vmax.f32 %v2371, 0.0
  %v2448 = vmax.f32 %v2372, 0.0
  %v2449 = vmax.f32 %v2373, 0.0
  %v2450 = vmax.f32 %v2374, 0.0
  %v2451 = vmax.f32 %v2375, 0.0
  %v2452 = vmax.f32 %v2376, 0.0
  %v2453 = vmax.f32 %v2377, 0.0
  %v2454 = vmax.f32 %v2378, 0.0
  %v2455 = vmax.f32 %v2379, 0.0
  %v2456 = vmax.f32 %v2380, 0.0
  %v2457 = vmax.f32 %v2381, 0.0
  %v2458 = vmax.f32 %v2382, 0.0
  %v2459 = vmax.f32 %v2383, 0.0
  %v2460 = vmax.f32 %v2384, 0.0
  %v2461 = vmax.f32 %v2385, 0.0
  %v2462 = vmax.f32 %v2386, 0.0
  %v2463 = vmax.f32 %v2387, 0.0
  %v2464 = vmax.f32 %v2388, 0.0
  %v2465 = vmax.f32 %v2389, 0.0
  %v2466 = vmax.f32 %v2390, 0.0
  %v2467 = vmax.f32 %v2391, 0.0
  %v2468 = vmax.f32 %v2392, 0.0
  %v2469 = vmax.f32 %v2393, 0.0
  %v2470 = vmax.f32 %v2394, 0.0
  %v2471 = vmax.f32 %v2395, 0.0
  %v2472 = vmax.f32 %v2396, 0.0
  %v2473 = vmax.f32 %v2397, 0.0
  %v2474 = vmax.f32 %v2398, 0.0
  %v2475 = vmax.f32 %v2399, 0.0
  %v2476 = vmax.f32 %v2400, 0.0
  %v2477 = vmax.f32 %v2401, 0.0
  %v2478 = vmax.f32 %v2402, 0.0
  %v2479 = vmax.f32 %v2403, 0.0
  %v2480 = vmax.f32 %v2404, 0.0
  %v2481 = vmax.f32 %v2405, 0.0
  %v2482 = vmax.f32 %v2406, 0.0
  %v2483 = vmax.f32 %v2407, 0.0
  %v2484 = vmax.f32 %v2408, 0.0
  %v2485 = vmax.f32 %v2409, 0.0
  %v2486 = vmax.f32 %v2410, 0.0
  %v2487 = vmax.f32 %v2411, 0.0
  %v2488 = vmax.f32 %v2412, 0.0
  %v2489 = vmax.f32 %v2413, 0.0
  %v2490 = vmax.f32 %v2414, 0.0
  %v2491 = vmax.f32 %v2415, 0.0
  %v2492 = vmax.f32 %v2416, 0.0
  %v2493 = vsel %vm718, %v2417, 0.0
  %v2494 = vsel %vm719, %v2418, 0.0
  %v2495 = vsel %vm720, %v2419, 0.0
  %v2496 = vsel %vm721, %v2420, 0.0
  %v2497 = vsel %vm722, %v2421, 0.0
  %v2498 = vsel %vm723, %v2422, 0.0
  %v2499 = vsel %vm724, %v2423, 0.0
  %v2500 = vsel %vm725, %v2424, 0.0
  %v2501 = vsel %vm726, %v2425, 0.0
  %v2502 = vsel %vm727, %v2426, 0.0
  %v2503 = vsel %vm728, %v2427, 0.0
  %v2504 = vsel %vm729, %v2428, 0.0
  %v2505 = vsel %vm730, %v2429, 0.0
  %v2506 = vsel %vm731, %v2430, 0.0
  %v2507 = vsel %vm732, %v2431, 0.0
  %v2508 = vsel %vm733, %v2432, 0.0
  %v2509 = vsel %vm734, %v2433, 0.0
  %v2510 = vsel %vm735, %v2434, 0.0
  %v2511 = vsel %vm736, %v2435, 0.0
  %v2512 = vsel %vm737, %v2436, 0.0
  %v2513 = vsel %vm738, %v2437, 0.0
  %v2514 = vsel %vm739, %v2438, 0.0
  %v2515 = vsel %vm740, %v2439, 0.0
  %v2516 = vsel %vm741, %v2440, 0.0
  %v2517 = vsel %vm742, %v2441, 0.0
  %v2518 = vsel %vm743, %v2442, 0.0
  %v2519 = vsel %vm744, %v2443, 0.0
  %v2520 = vsel %vm745, %v2444, 0.0
  %v2521 = vsel %vm746, %v2445, 0.0
  %v2522 = vsel %vm747, %v2446, 0.0
  %v2523 = vsel %vm748, %v2447, 0.0
  %v2524 = vsel %vm749, %v2448, 0.0
  %v2525 = vsel %vm750, %v2449, 0.0
  %v2526 = vsel %vm751, %v2450, 0.0
  %v2527 = vsel %vm752, %v2451, 0.0
  %v2528 = vsel %vm753, %v2452, 0.0
  %v2529 = vsel %vm754, %v2453, 0.0
  %v2530 = vsel %vm755, %v2454, 0.0
  %v2531 = vsel %vm756, %v2455, 0.0
  %v2532 = vsel %vm757, %v2456, 0.0
  %v2533 = vsel %vm758, %v2457, 0.0
  %v2534 = vsel %vm759, %v2458, 0.0
  %v2535 = vsel %vm760, %v2459, 0.0
  %v2536 = vsel %vm761, %v2460, 0.0
  %v2537 = vsel %vm762, %v2461, 0.0
  %v2538 = vsel %vm763, %v2462, 0.0
  %v2539 = vsel %vm764, %v2463, 0.0
  %v2540 = vsel %vm765, %v2464, 0.0
  %v2541 = vsel %vm766, %v2465, 0.0
  %v2542 = vsel %vm767, %v2466, 0.0
  %v2543 = vsel %vm768, %v2467, 0.0
  %v2544 = vsel %vm769, %v2468, 0.0
  %v2545 = vsel %vm770, %v2469, 0.0
  %v2546 = vsel %vm771, %v2470, 0.0
  %v2547 = vsel %vm772, %v2471, 0.0
  %v2548 = vsel %vm773, %v2472, 0.0
  %v2549 = vsel %vm774, %v2473, 0.0
  %v2550 = vsel %vm775, %v2474, 0.0
  %v2551 = vsel %vm776, %v2475, 0.0
  %v2552 = vsel %vm777, %v2476, 0.0
  %v2553 = vsel %vm778, %v2477, 0.0
  %v2554 = vsel %vm779, %v2478, 0.0
  %v2555 = vsel %vm780, %v2479, 0.0
  %v2556 = vsel %vm781, %v2480, 0.0
  %v2557 = vsel %vm782, %v2481, 0.0
  %v2558 = vsel %vm783, %v2482, 0.0
  %v2559 = vsel %vm784, %v2483, 0.0
  %v2560 = vsel %vm785, %v2484, 0.0
  %v2561 = vsel %vm786, %v2485, 0.0
  %v2562 = vsel %vm787, %v2486, 0.0
  %v2563 = vsel %vm788, %v2487, 0.0
  %v2564 = vsel %vm789, %v2488, 0.0
  %v2565 = vsel %vm790, %v2489, 0.0
  %v2566 = vsel %vm791, %v2490, 0.0
  %v2567 = vsel %vm792, %v2491, 0.0
  %v2568 = vsel %vm793, %v2492, 0.0
  %vm2645 = vcmask 1046528
  %v2646 = vrot.slane %v2493, 1
  %v2647 = vrot.slane %v2494, 1
  %v2648 = vsel %vm2645, %v2646, %v2647
  %v2649 = vrot.slane %v2495, 1
  %v2650 = vsel %vm2645, %v2647, %v2649
  %v2651 = vrot.slane %v2496, 1
  %v2652 = vsel %vm2645, %v2649, %v2651
  %v2653 = vrot.slane %v2497, 1
  %v2654 = vsel %vm2645, %v2651, %v2653
  %v2655 = vrot.slane %v2498, 1
  %v2656 = vsel %vm2645, %v2653, %v2655
  %v2657 = vrot.slane %v2499, 1
  %v2658 = vsel %vm2645, %v2655, %v2657
  %v2659 = vrot.slane %v2500, 1
  %v2660 = vsel %vm2645, %v2657, %v2659
  %v2661 = vrot.slane %v2501, 1
  %v2662 = vsel %vm2645, %v2659, %v2661
  %v2663 = vrot.slane %v2502, 1
  %v2664 = vsel %vm2645, %v2661, %v2663
  %v2665 = vrot.slane %v2503, 1
  %v2666 = vsel %vm2645, %v2663, %v2665
  %v2667 = vrot.slane %v2504, 1
  %v2668 = vsel %vm2645, %v2665, %v2667
  %v2669 = vrot.slane %v2505, 1
  %v2670 = vsel %vm2645, %v2667, %v2669
  %v2671 = vrot.slane %v2506, 1
  %v2672 = vsel %vm2645, %v2669, %v2671
  %v2673 = vrot.slane %v2507, 1
  %v2674 = vsel %vm2645, %v2671, %v2673
  %v2675 = vrot.slane %v2508, 1
  %v2676 = vsel %vm2645, %v2673, %v2675
  %v2677 = vrot.slane %v2509, 1
  %v2678 = vsel %vm2645, %v2675, %v2677
  %v2679 = vrot.slane %v2510, 1
  %v2680 = vsel %vm2645, %v2677, %v2679
  %v2681 = vrot.slane %v2511, 1
  %v2682 = vsel %vm2645, %v2679, %v2681
  %v2683 = vrot.slane %v2512, 1
  %v2684 = vsel %vm2645, %v2681, %v2683
  %v2685 = vrot.slane %v2513, 1
  %v2686 = vsel %vm2645, %v2683, %v2685
  %v2687 = vrot.slane %v2514, 1
  %v2688 = vsel %vm2645, %v2685, %v2687
  %v2689 = vrot.slane %v2515, 1
  %v2690 = vsel %vm2645, %v2687, %v2689
  %v2691 = vrot.slane %v2516, 1
  %v2692 = vsel %vm2645, %v2689, %v2691
  %v2693 = vrot.slane %v2517, 1
  %v2694 = vsel %vm2645, %v2691, %v2693
  %v2695 = vrot.slane %v2518, 1
  %v2696 = vsel %vm2645, %v2693, %v2695
  %v2697 = vrot.slane %v2519, 1
  %v2698 = vsel %vm2645, %v2695, %v2697
  %v2699 = vrot.slane %v2520, 1
  %v2700 = vsel %vm2645, %v2697, %v2699
  %v2701 = vrot.slane %v2521, 1
  %v2702 = vsel %vm2645, %v2699, %v2701
  %v2703 = vrot.slane %v2522, 1
  %v2704 = vsel %vm2645, %v2701, %v2703
  %v2705 = vrot.slane %v2523, 1
  %v2706 = vsel %vm2645, %v2703, %v2705
  %v2707 = vrot.slane %v2524, 1
  %v2708 = vsel %vm2645, %v2705, %v2707
  %v2709 = vrot.slane %v2525, 1
  %v2710 = vsel %vm2645, %v2707, %v2709
  %v2711 = vrot.slane %v2526, 1
  %v2712 = vsel %vm2645, %v2709, %v2711
  %v2713 = vrot.slane %v2527, 1
  %v2714 = vsel %vm2645, %v2711, %v2713
  %v2715 = vrot.slane %v2528, 1
  %v2716 = vsel %vm2645, %v2713, %v2715
  %v2717 = vrot.slane %v2529, 1
  %v2718 = vsel %vm2645, %v2715, %v2717
  %v2719 = vrot.slane %v2530, 1
  %v2720 = vsel %vm2645, %v2717, %v2719
  %v2721 = vrot.slane %v2531, 1
  %v2722 = vsel %vm2645, %v2719, %v2721
  %v2723 = vrot.slane %v2532, 1
  %v2724 = vsel %vm2645, %v2721, %v2723
  %v2725 = vrot.slane %v2533, 1
  %v2726 = vsel %vm2645, %v2723, %v2725
  %v2727 = vrot.slane %v2534, 1
  %v2728 = vsel %vm2645, %v2725, %v2727
  %v2729 = vrot.slane %v2535, 1
  %v2730 = vsel %vm2645, %v2727, %v2729
  %v2731 = vrot.slane %v2536, 1
  %v2732 = vsel %vm2645, %v2729, %v2731
  %v2733 = vrot.slane %v2537, 1
  %v2734 = vsel %vm2645, %v2731, %v2733
  %v2735 = vrot.slane %v2538, 1
  %v2736 = vsel %vm2645, %v2733, %v2735
  %v2737 = vrot.slane %v2539, 1
  %v2738 = vsel %vm2645, %v2735, %v2737
  %v2739 = vrot.slane %v2540, 1
  %v2740 = vsel %vm2645, %v2737, %v2739
  %v2741 = vrot.slane %v2541, 1
  %v2742 = vsel %vm2645, %v2739, %v2741
  %v2743 = vrot.slane %v2542, 1
  %v2744 = vsel %vm2645, %v2741, %v2743
  %v2745 = vrot.slane %v2543, 1
  %v2746 = vsel %vm2645, %v2743, %v2745
  %v2747 = vrot.slane %v2544, 1
  %v2748 = vsel %vm2645, %v2745, %v2747
  %v2749 = vrot.slane %v2545, 1
  %v2750 = vsel %vm2645, %v2747, %v2749
  %v2751 = vrot.slane %v2546, 1
  %v2752 = vsel %vm2645, %v2749, %v2751
  %v2753 = vrot.slane %v2547, 1
  %v2754 = vsel %vm2645, %v2751, %v2753
  %v2755 = vrot.slane %v2548, 1
  %v2756 = vsel %vm2645, %v2753, %v2755
  %v2757 = vrot.slane %v2549, 1
  %v2758 = vsel %vm2645, %v2755, %v2757
  %v2759 = vrot.slane %v2550, 1
  %v2760 = vsel %vm2645, %v2757, %v2759
  %v2761 = vrot.slane %v2551, 1
  %v2762 = vsel %vm2645, %v2759, %v2761
  %v2763 = vrot.slane %v2552, 1
  %v2764 = vsel %vm2645, %v2761, %v2763
  %v2765 = vrot.slane %v2553, 1
  %v2766 = vsel %vm2645, %v2763, %v2765
  %v2767 = vrot.slane %v2554, 1
  %v2768 = vsel %vm2645, %v2765, %v2767
  %v2769 = vrot.slane %v2555, 1
  %v2770 = vsel %vm2645, %v2767, %v2769
  %v2771 = vrot.slane %v2556, 1
  %v2772 = vsel %vm2645, %v2769, %v2771
  %v2773 = vrot.slane %v2557, 1
  %v2774 = vsel %vm2645, %v2771, %v2773
  %v2775 = vrot.slane %v2558, 1
  %v2776 = vsel %vm2645, %v2773, %v2775
  %v2777 = vrot.slane %v2559, 1
  %v2778 = vsel %vm2645, %v2775, %v2777
  %v2779 = vrot.slane %v2560, 1
  %v2780 = vsel %vm2645, %v2777, %v2779
  %v2781 = vrot.slane %v2561, 1
  %v2782 = vsel %vm2645, %v2779, %v2781
  %v2783 = vrot.slane %v2562, 1
  %v2784 = vsel %vm2645, %v2781, %v2783
  %v2785 = vrot.slane %v2563, 1
  %v2786 = vsel %vm2645, %v2783, %v2785
  %v2787 = vrot.slane %v2564, 1
  %v2788 = vsel %vm2645, %v2785, %v2787
  %v2789 = vrot.slane %v2565, 1
  %v2790 = vsel %vm2645, %v2787, %v2789
  %v2791 = vrot.slane %v2566, 1
  %v2792 = vsel %vm2645, %v2789, %v2791
  %v2793 = vrot.slane %v2567, 1
  %v2794 = vsel %vm2645, %v2791, %v2793
  %v2795 = vrot.slane %v2568, 1
  %v2796 = vsel %vm2645, %v2793, %v2795
  %vm2798 = vcmask 1042432
  %v2799 = vsel %vm2798, %v2795, 0.0
  %v2800 = vrot.slane %v2493, 2
  %v2801 = vrot.slane %v2494, 2
  %v2802 = vsel %vm1411, %v2800, %v2801
  %v2803 = vrot.slane %v2495, 2
  %v2804 = vsel %vm1411, %v2801, %v2803
  %v2805 = vrot.slane %v2496, 2
  %v2806 = vsel %vm1411, %v2803, %v2805
  %v2807 = vrot.slane %v2497, 2
  %v2808 = vsel %vm1411, %v2805, %v2807
  %v2809 = vrot.slane %v2498, 2
  %v2810 = vsel %vm1411, %v2807, %v2809
  %v2811 = vrot.slane %v2499, 2
  %v2812 = vsel %vm1411, %v2809, %v2811
  %v2813 = vrot.slane %v2500, 2
  %v2814 = vsel %vm1411, %v2811, %v2813
  %v2815 = vrot.slane %v2501, 2
  %v2816 = vsel %vm1411, %v2813, %v2815
  %v2817 = vrot.slane %v2502, 2
  %v2818 = vsel %vm1411, %v2815, %v2817
  %v2819 = vrot.slane %v2503, 2
  %v2820 = vsel %vm1411, %v2817, %v2819
  %v2821 = vrot.slane %v2504, 2
  %v2822 = vsel %vm1411, %v2819, %v2821
  %v2823 = vrot.slane %v2505, 2
  %v2824 = vsel %vm1411, %v2821, %v2823
  %v2825 = vrot.slane %v2506, 2
  %v2826 = vsel %vm1411, %v2823, %v2825
  %v2827 = vrot.slane %v2507, 2
  %v2828 = vsel %vm1411, %v2825, %v2827
  %v2829 = vrot.slane %v2508, 2
  %v2830 = vsel %vm1411, %v2827, %v2829
  %v2831 = vrot.slane %v2509, 2
  %v2832 = vsel %vm1411, %v2829, %v2831
  %v2833 = vrot.slane %v2510, 2
  %v2834 = vsel %vm1411, %v2831, %v2833
  %v2835 = vrot.slane %v2511, 2
  %v2836 = vsel %vm1411, %v2833, %v2835
  %v2837 = vrot.slane %v2512, 2
  %v2838 = vsel %vm1411, %v2835, %v2837
  %v2839 = vrot.slane %v2513, 2
  %v2840 = vsel %vm1411, %v2837, %v2839
  %v2841 = vrot.slane %v2514, 2
  %v2842 = vsel %vm1411, %v2839, %v2841
  %v2843 = vrot.slane %v2515, 2
  %v2844 = vsel %vm1411, %v2841, %v2843
  %v2845 = vrot.slane %v2516, 2
  %v2846 = vsel %vm1411, %v2843, %v2845
  %v2847 = vrot.slane %v2517, 2
  %v2848 = vsel %vm1411, %v2845, %v2847
  %v2849 = vrot.slane %v2518, 2
  %v2850 = vsel %vm1411, %v2847, %v2849
  %v2851 = vrot.slane %v2519, 2
  %v2852 = vsel %vm1411, %v2849, %v2851
  %v2853 = vrot.slane %v2520, 2
  %v2854 = vsel %vm1411, %v2851, %v2853
  %v2855 = vrot.slane %v2521, 2
  %v2856 = vsel %vm1411, %v2853, %v2855
  %v2857 = vrot.slane %v2522, 2
  %v2858 = vsel %vm1411, %v2855, %v2857
  %v2859 = vrot.slane %v2523, 2
  %v2860 = vsel %vm1411, %v2857, %v2859
  %v2861 = vrot.slane %v2524, 2
  %v2862 = vsel %vm1411, %v2859, %v2861
  %v2863 = vrot.slane %v2525, 2
  %v2864 = vsel %vm1411, %v2861, %v2863
  %v2865 = vrot.slane %v2526, 2
  %v2866 = vsel %vm1411, %v2863, %v2865
  %v2867 = vrot.slane %v2527, 2
  %v2868 = vsel %vm1411, %v2865, %v2867
  %v2869 = vrot.slane %v2528, 2
  %v2870 = vsel %vm1411, %v2867, %v2869
  %v2871 = vrot.slane %v2529, 2
  %v2872 = vsel %vm1411, %v2869, %v2871
  %v2873 = vrot.slane %v2530, 2
  %v2874 = vsel %vm1411, %v2871, %v2873
  %v2875 = vrot.slane %v2531, 2
  %v2876 = vsel %vm1411, %v2873, %v2875
  %v2877 = vrot.slane %v2532, 2
  %v2878 = vsel %vm1411, %v2875, %v2877
  %v2879 = vrot.slane %v2533, 2
  %v2880 = vsel %vm1411, %v2877, %v2879
  %v2881 = vrot.slane %v2534, 2
  %v2882 = vsel %vm1411, %v2879, %v2881
  %v2883 = vrot.slane %v2535, 2
  %v2884 = vsel %vm1411, %v2881, %v2883
  %v2885 = vrot.slane %v2536, 2
  %v2886 = vsel %vm1411, %v2883, %v2885
  %v2887 = vrot.slane %v2537, 2
  %v2888 = vsel %vm1411, %v2885, %v2887
  %v2889 = vrot.slane %v2538, 2
  %v2890 = vsel %vm1411, %v2887, %v2889
  %v2891 = vrot.slane %v2539, 2
  %v2892 = vsel %vm1411, %v2889, %v2891
  %v2893 = vrot.slane %v2540, 2
  %v2894 = vsel %vm1411, %v2891, %v2893
  %v2895 = vrot.slane %v2541, 2
  %v2896 = vsel %vm1411, %v2893, %v2895
  %v2897 = vrot.slane %v2542, 2
  %v2898 = vsel %vm1411, %v2895, %v2897
  %v2899 = vrot.slane %v2543, 2
  %v2900 = vsel %vm1411, %v2897, %v2899
  %v2901 = vrot.slane %v2544, 2
  %v2902 = vsel %vm1411, %v2899, %v2901
  %v2903 = vrot.slane %v2545, 2
  %v2904 = vsel %vm1411, %v2901, %v2903
  %v2905 = vrot.slane %v2546, 2
  %v2906 = vsel %vm1411, %v2903, %v2905
  %v2907 = vrot.slane %v2547, 2
  %v2908 = vsel %vm1411, %v2905, %v2907
  %v2909 = vrot.slane %v2548, 2
  %v2910 = vsel %vm1411, %v2907, %v2909
  %v2911 = vrot.slane %v2549, 2
  %v2912 = vsel %vm1411, %v2909, %v2911
  %v2913 = vrot.slane %v2550, 2
  %v2914 = vsel %vm1411, %v2911, %v2913
  %v2915 = vrot.slane %v2551, 2
  %v2916 = vsel %vm1411, %v2913, %v2915
  %v2917 = vrot.slane %v2552, 2
  %v2918 = vsel %vm1411, %v2915, %v2917
  %v2919 = vrot.slane %v2553, 2
  %v2920 = vsel %vm1411, %v2917, %v2919
  %v2921 = vrot.slane %v2554, 2
  %v2922 = vsel %vm1411, %v2919, %v2921
  %v2923 = vrot.slane %v2555, 2
  %v2924 = vsel %vm1411, %v2921, %v2923
  %v2925 = vrot.slane %v2556, 2
  %v2926 = vsel %vm1411, %v2923, %v2925
  %v2927 = vrot.slane %v2557, 2
  %v2928 = vsel %vm1411, %v2925, %v2927
  %v2929 = vrot.slane %v2558, 2
  %v2930 = vsel %vm1411, %v2927, %v2929
  %v2931 = vrot.slane %v2559, 2
  %v2932 = vsel %vm1411, %v2929, %v2931
  %v2933 = vrot.slane %v2560, 2
  %v2934 = vsel %vm1411, %v2931, %v2933
  %v2935 = vrot.slane %v2561, 2
  %v2936 = vsel %vm1411, %v2933, %v2935
  %v2937 = vrot.slane %v2562, 2
  %v2938 = vsel %vm1411, %v2935, %v2937
  %v2939 = vrot.slane %v2563, 2
  %v2940 = vsel %vm1411, %v2937, %v2939
  %v2941 = vrot.slane %v2564, 2
  %v2942 = vsel %vm1411, %v2939, %v2941
  %v2943 = vrot.slane %v2565, 2
  %v2944 = vsel %vm1411, %v2941, %v2943
  %v2945 = vrot.slane %v2566, 2
  %v2946 = vsel %vm1411, %v2943, %v2945
  %v2947 = vrot.slane %v2567, 2
  %v2948 = vsel %vm1411, %v2945, %v2947
  %v2949 = vrot.slane %v2568, 2
  %v2950 = vsel %vm1411, %v2947, %v2949
  %vm2952 = vcmask 1041408
  %v2953 = vsel %vm2952, %v2949, 0.0
  %v2954 = vsel %vm2798, %v2953, 0.0
  %2956 = vrot.lane.b32.xlu0 %v2648, 32
  %v2957 = vpop.permute.xlu0 %2956
  %2958 = vrot.lane.b32.xlu0 %v2650, 32
  %v2959 = vpop.permute.xlu0 %2958
  %2960 = vrot.lane.b32.xlu0 %v2652, 32
  %v2961 = vpop.permute.xlu0 %2960
  %2962 = vrot.lane.b32.xlu0 %v2654, 32
  %v2963 = vpop.permute.xlu0 %2962
  %2964 = vrot.lane.b32.xlu0 %v2656, 32
  %v2965 = vpop.permute.xlu0 %2964
  %2966 = vrot.lane.b32.xlu0 %v2658, 32
  %v2967 = vpop.permute.xlu0 %2966
  %2968 = vrot.lane.b32.xlu0 %v2660, 32
  %v2969 = vpop.permute.xlu0 %2968
  %2970 = vrot.lane.b32.xlu0 %v2662, 32
  %v2971 = vpop.permute.xlu0 %2970
  %2972 = vrot.lane.b32.xlu0 %v2664, 32
  %v2973 = vpop.permute.xlu0 %2972
  %2974 = vrot.lane.b32.xlu0 %v2666, 32
  %v2975 = vpop.permute.xlu0 %2974
  %2976 = vrot.lane.b32.xlu0 %v2668, 32
  %v2977 = vpop.permute.xlu0 %2976
  %2978 = vrot.lane.b32.xlu0 %v2670, 32
  %v2979 = vpop.permute.xlu0 %2978
  %2980 = vrot.lane.b32.xlu0 %v2672, 32
  %v2981 = vpop.permute.xlu0 %2980
  %2982 = vrot.lane.b32.xlu0 %v2674, 32
  %v2983 = vpop.permute.xlu0 %2982
  %2984 = vrot.lane.b32.xlu0 %v2676, 32
  %v2985 = vpop.permute.xlu0 %2984
  %2986 = vrot.lane.b32.xlu0 %v2678, 32
  %v2987 = vpop.permute.xlu0 %2986
  %2988 = vrot.lane.b32.xlu0 %v2680, 32
  %v2989 = vpop.permute.xlu0 %2988
  %2990 = vrot.lane.b32.xlu0 %v2682, 32
  %v2991 = vpop.permute.xlu0 %2990
  %2992 = vrot.lane.b32.xlu0 %v2684, 32
  %v2993 = vpop.permute.xlu0 %2992
  %2994 = vrot.lane.b32.xlu0 %v2686, 32
  %v2995 = vpop.permute.xlu0 %2994
  %2996 = vrot.lane.b32.xlu0 %v2688, 32
  %v2997 = vpop.permute.xlu0 %2996
  %2998 = vrot.lane.b32.xlu0 %v2690, 32
  %v2999 = vpop.permute.xlu0 %2998
  %3000 = vrot.lane.b32.xlu0 %v2692, 32
  %v3001 = vpop.permute.xlu0 %3000
  %3002 = vrot.lane.b32.xlu0 %v2694, 32
  %v3003 = vpop.permute.xlu0 %3002
  %3004 = vrot.lane.b32.xlu0 %v2696, 32
  %v3005 = vpop.permute.xlu0 %3004
  %3006 = vrot.lane.b32.xlu0 %v2698, 32
  %v3007 = vpop.permute.xlu0 %3006
  %3008 = vrot.lane.b32.xlu0 %v2700, 32
  %v3009 = vpop.permute.xlu0 %3008
  %3010 = vrot.lane.b32.xlu0 %v2702, 32
  %v3011 = vpop.permute.xlu0 %3010
  %3012 = vrot.lane.b32.xlu0 %v2704, 32
  %v3013 = vpop.permute.xlu0 %3012
  %3014 = vrot.lane.b32.xlu0 %v2706, 32
  %v3015 = vpop.permute.xlu0 %3014
  %3016 = vrot.lane.b32.xlu0 %v2708, 32
  %v3017 = vpop.permute.xlu0 %3016
  %3018 = vrot.lane.b32.xlu0 %v2710, 32
  %v3019 = vpop.permute.xlu0 %3018
  %3020 = vrot.lane.b32.xlu0 %v2712, 32
  %v3021 = vpop.permute.xlu0 %3020
  %3022 = vrot.lane.b32.xlu0 %v2714, 32
  %v3023 = vpop.permute.xlu0 %3022
  %3024 = vrot.lane.b32.xlu0 %v2716, 32
  %v3025 = vpop.permute.xlu0 %3024
  %3026 = vrot.lane.b32.xlu0 %v2718, 32
  %v3027 = vpop.permute.xlu0 %3026
  %3028 = vrot.lane.b32.xlu0 %v2720, 32
  %v3029 = vpop.permute.xlu0 %3028
  %3030 = vrot.lane.b32.xlu0 %v2722, 32
  %v3031 = vpop.permute.xlu0 %3030
  %3032 = vrot.lane.b32.xlu0 %v2724, 32
  %v3033 = vpop.permute.xlu0 %3032
  %3034 = vrot.lane.b32.xlu0 %v2726, 32
  %v3035 = vpop.permute.xlu0 %3034
  %3036 = vrot.lane.b32.xlu0 %v2728, 32
  %v3037 = vpop.permute.xlu0 %3036
  %3038 = vrot.lane.b32.xlu0 %v2730, 32
  %v3039 = vpop.permute.xlu0 %3038
  %3040 = vrot.lane.b32.xlu0 %v2732, 32
  %v3041 = vpop.permute.xlu0 %3040
  %3042 = vrot.lane.b32.xlu0 %v2734, 32
  %v3043 = vpop.permute.xlu0 %3042
  %3044 = vrot.lane.b32.xlu0 %v2736, 32
  %v3045 = vpop.permute.xlu0 %3044
  %3046 = vrot.lane.b32.xlu0 %v2738, 32
  %v3047 = vpop.permute.xlu0 %3046
  %3048 = vrot.lane.b32.xlu0 %v2740, 32
  %v3049 = vpop.permute.xlu0 %3048
  %3050 = vrot.lane.b32.xlu0 %v2742, 32
  %v3051 = vpop.permute.xlu0 %3050
  %3052 = vrot.lane.b32.xlu0 %v2744, 32
  %v3053 = vpop.permute.xlu0 %3052
  %3054 = vrot.lane.b32.xlu0 %v2746, 32
  %v3055 = vpop.permute.xlu0 %3054
  %3056 = vrot.lane.b32.xlu0 %v2748, 32
  %v3057 = vpop.permute.xlu0 %3056
  %3058 = vrot.lane.b32.xlu0 %v2750, 32
  %v3059 = vpop.permute.xlu0 %3058
  %3060 = vrot.lane.b32.xlu0 %v2752, 32
  %v3061 = vpop.permute.xlu0 %3060
  %3062 = vrot.lane.b32.xlu0 %v2754, 32
  %v3063 = vpop.permute.xlu0 %3062
  %3064 = vrot.lane.b32.xlu0 %v2756, 32
  %v3065 = vpop.permute.xlu0 %3064
  %3066 = vrot.lane.b32.xlu0 %v2758, 32
  %v3067 = vpop.permute.xlu0 %3066
  %3068 = vrot.lane.b32.xlu0 %v2760, 32
  %v3069 = vpop.permute.xlu0 %3068
  %3070 = vrot.lane.b32.xlu0 %v2762, 32
  %v3071 = vpop.permute.xlu0 %3070
  %3072 = vrot.lane.b32.xlu0 %v2764, 32
  %v3073 = vpop.permute.xlu0 %3072
  %3074 = vrot.lane.b32.xlu0 %v2766, 32
  %v3075 = vpop.permute.xlu0 %3074
  %3076 = vrot.lane.b32.xlu0 %v2768, 32
  %v3077 = vpop.permute.xlu0 %3076
  %3078 = vrot.lane.b32.xlu0 %v2770, 32
  %v3079 = vpop.permute.xlu0 %3078
  %3080 = vrot.lane.b32.xlu0 %v2772, 32
  %v3081 = vpop.permute.xlu0 %3080
  %3082 = vrot.lane.b32.xlu0 %v2774, 32
  %v3083 = vpop.permute.xlu0 %3082
  %3084 = vrot.lane.b32.xlu0 %v2776, 32
  %v3085 = vpop.permute.xlu0 %3084
  %3086 = vrot.lane.b32.xlu0 %v2778, 32
  %v3087 = vpop.permute.xlu0 %3086
  %3088 = vrot.lane.b32.xlu0 %v2780, 32
  %v3089 = vpop.permute.xlu0 %3088
  %3090 = vrot.lane.b32.xlu0 %v2782, 32
  %v3091 = vpop.permute.xlu0 %3090
  %3092 = vrot.lane.b32.xlu0 %v2784, 32
  %v3093 = vpop.permute.xlu0 %3092
  %3094 = vrot.lane.b32.xlu0 %v2786, 32
  %v3095 = vpop.permute.xlu0 %3094
  %3096 = vrot.lane.b32.xlu0 %v2788, 32
  %v3097 = vpop.permute.xlu0 %3096
  %3098 = vrot.lane.b32.xlu0 %v2790, 32
  %v3099 = vpop.permute.xlu0 %3098
  %3100 = vrot.lane.b32.xlu0 %v2792, 32
  %v3101 = vpop.permute.xlu0 %3100
  %3102 = vrot.lane.b32.xlu0 %v2794, 32
  %v3103 = vpop.permute.xlu0 %3102
  %3104 = vrot.lane.b32.xlu0 %v2796, 32
  %v3105 = vpop.permute.xlu0 %3104
  %3106 = vrot.lane.b32.xlu0 %v2799, 32
  %v3107 = vpop.permute.xlu0 %3106
  %3185 = vrot.lane.b32.xlu0 %v2802, 64
  %v3186 = vpop.permute.xlu0 %3185
  %3187 = vrot.lane.b32.xlu0 %v2804, 64
  %v3188 = vpop.permute.xlu0 %3187
  %3189 = vrot.lane.b32.xlu0 %v2806, 64
  %v3190 = vpop.permute.xlu0 %3189
  %3191 = vrot.lane.b32.xlu0 %v2808, 64
  %v3192 = vpop.permute.xlu0 %3191
  %3193 = vrot.lane.b32.xlu0 %v2810, 64
  %v3194 = vpop.permute.xlu0 %3193
  %3195 = vrot.lane.b32.xlu0 %v2812, 64
  %v3196 = vpop.permute.xlu0 %3195
  %3197 = vrot.lane.b32.xlu0 %v2814, 64
  %v3198 = vpop.permute.xlu0 %3197
  %3199 = vrot.lane.b32.xlu0 %v2816, 64
  %v3200 = vpop.permute.xlu0 %3199
  %3201 = vrot.lane.b32.xlu0 %v2818, 64
  %v3202 = vpop.permute.xlu0 %3201
  %3203 = vrot.lane.b32.xlu0 %v2820, 64
  %v3204 = vpop.permute.xlu0 %3203
  %3205 = vrot.lane.b32.xlu0 %v2822, 64
  %v3206 = vpop.permute.xlu0 %3205
  %3207 = vrot.lane.b32.xlu0 %v2824, 64
  %v3208 = vpop.permute.xlu0 %3207
  %3209 = vrot.lane.b32.xlu0 %v2826, 64
  %v3210 = vpop.permute.xlu0 %3209
  %3211 = vrot.lane.b32.xlu0 %v2828, 64
  %v3212 = vpop.permute.xlu0 %3211
  %3213 = vrot.lane.b32.xlu0 %v2830, 64
  %v3214 = vpop.permute.xlu0 %3213
  %3215 = vrot.lane.b32.xlu0 %v2832, 64
  %v3216 = vpop.permute.xlu0 %3215
  %3217 = vrot.lane.b32.xlu0 %v2834, 64
  %v3218 = vpop.permute.xlu0 %3217
  %3219 = vrot.lane.b32.xlu0 %v2836, 64
  %v3220 = vpop.permute.xlu0 %3219
  %3221 = vrot.lane.b32.xlu0 %v2838, 64
  %v3222 = vpop.permute.xlu0 %3221
  %3223 = vrot.lane.b32.xlu0 %v2840, 64
  %v3224 = vpop.permute.xlu0 %3223
  %3225 = vrot.lane.b32.xlu0 %v2842, 64
  %v3226 = vpop.permute.xlu0 %3225
  %3227 = vrot.lane.b32.xlu0 %v2844, 64
  %v3228 = vpop.permute.xlu0 %3227
  %3229 = vrot.lane.b32.xlu0 %v2846, 64
  %v3230 = vpop.permute.xlu0 %3229
  %3231 = vrot.lane.b32.xlu0 %v2848, 64
  %v3232 = vpop.permute.xlu0 %3231
  %3233 = vrot.lane.b32.xlu0 %v2850, 64
  %v3234 = vpop.permute.xlu0 %3233
  %3235 = vrot.lane.b32.xlu0 %v2852, 64
  %v3236 = vpop.permute.xlu0 %3235
  %3237 = vrot.lane.b32.xlu0 %v2854, 64
  %v3238 = vpop.permute.xlu0 %3237
  %3239 = vrot.lane.b32.xlu0 %v2856, 64
  %v3240 = vpop.permute.xlu0 %3239
  %3241 = vrot.lane.b32.xlu0 %v2858, 64
  %v3242 = vpop.permute.xlu0 %3241
  %3243 = vrot.lane.b32.xlu0 %v2860, 64
  %v3244 = vpop.permute.xlu0 %3243
  %3245 = vrot.lane.b32.xlu0 %v2862, 64
  %v3246 = vpop.permute.xlu0 %3245
  %3247 = vrot.lane.b32.xlu0 %v2864, 64
  %v3248 = vpop.permute.xlu0 %3247
  %3249 = vrot.lane.b32.xlu0 %v2866, 64
  %v3250 = vpop.permute.xlu0 %3249
  %3251 = vrot.lane.b32.xlu0 %v2868, 64
  %v3252 = vpop.permute.xlu0 %3251
  %3253 = vrot.lane.b32.xlu0 %v2870, 64
  %v3254 = vpop.permute.xlu0 %3253
  %3255 = vrot.lane.b32.xlu0 %v2872, 64
  %v3256 = vpop.permute.xlu0 %3255
  %3257 = vrot.lane.b32.xlu0 %v2874, 64
  %v3258 = vpop.permute.xlu0 %3257
  %3259 = vrot.lane.b32.xlu0 %v2876, 64
  %v3260 = vpop.permute.xlu0 %3259
  %3261 = vrot.lane.b32.xlu0 %v2878, 64
  %v3262 = vpop.permute.xlu0 %3261
  %3263 = vrot.lane.b32.xlu0 %v2880, 64
  %v3264 = vpop.permute.xlu0 %3263
  %3265 = vrot.lane.b32.xlu0 %v2882, 64
  %v3266 = vpop.permute.xlu0 %3265
  %3267 = vrot.lane.b32.xlu0 %v2884, 64
  %v3268 = vpop.permute.xlu0 %3267
  %3269 = vrot.lane.b32.xlu0 %v2886, 64
  %v3270 = vpop.permute.xlu0 %3269
  %3271 = vrot.lane.b32.xlu0 %v2888, 64
  %v3272 = vpop.permute.xlu0 %3271
  %3273 = vrot.lane.b32.xlu0 %v2890, 64
  %v3274 = vpop.permute.xlu0 %3273
  %3275 = vrot.lane.b32.xlu0 %v2892, 64
  %v3276 = vpop.permute.xlu0 %3275
  %3277 = vrot.lane.b32.xlu0 %v2894, 64
  %v3278 = vpop.permute.xlu0 %3277
  %3279 = vrot.lane.b32.xlu0 %v2896, 64
  %v3280 = vpop.permute.xlu0 %3279
  %3281 = vrot.lane.b32.xlu0 %v2898, 64
  %v3282 = vpop.permute.xlu0 %3281
  %3283 = vrot.lane.b32.xlu0 %v2900, 64
  %v3284 = vpop.permute.xlu0 %3283
  %3285 = vrot.lane.b32.xlu0 %v2902, 64
  %v3286 = vpop.permute.xlu0 %3285
  %3287 = vrot.lane.b32.xlu0 %v2904, 64
  %v3288 = vpop.permute.xlu0 %3287
  %3289 = vrot.lane.b32.xlu0 %v2906, 64
  %v3290 = vpop.permute.xlu0 %3289
  %3291 = vrot.lane.b32.xlu0 %v2908, 64
  %v3292 = vpop.permute.xlu0 %3291
  %3293 = vrot.lane.b32.xlu0 %v2910, 64
  %v3294 = vpop.permute.xlu0 %3293
  %3295 = vrot.lane.b32.xlu0 %v2912, 64
  %v3296 = vpop.permute.xlu0 %3295
  %3297 = vrot.lane.b32.xlu0 %v2914, 64
  %v3298 = vpop.permute.xlu0 %3297
  %3299 = vrot.lane.b32.xlu0 %v2916, 64
  %v3300 = vpop.permute.xlu0 %3299
  %3301 = vrot.lane.b32.xlu0 %v2918, 64
  %v3302 = vpop.permute.xlu0 %3301
  %3303 = vrot.lane.b32.xlu0 %v2920, 64
  %v3304 = vpop.permute.xlu0 %3303
  %3305 = vrot.lane.b32.xlu0 %v2922, 64
  %v3306 = vpop.permute.xlu0 %3305
  %3307 = vrot.lane.b32.xlu0 %v2924, 64
  %v3308 = vpop.permute.xlu0 %3307
  %3309 = vrot.lane.b32.xlu0 %v2926, 64
  %v3310 = vpop.permute.xlu0 %3309
  %3311 = vrot.lane.b32.xlu0 %v2928, 64
  %v3312 = vpop.permute.xlu0 %3311
  %3313 = vrot.lane.b32.xlu0 %v2930, 64
  %v3314 = vpop.permute.xlu0 %3313
  %3315 = vrot.lane.b32.xlu0 %v2932, 64
  %v3316 = vpop.permute.xlu0 %3315
  %3317 = vrot.lane.b32.xlu0 %v2934, 64
  %v3318 = vpop.permute.xlu0 %3317
  %3319 = vrot.lane.b32.xlu0 %v2936, 64
  %v3320 = vpop.permute.xlu0 %3319
  %3321 = vrot.lane.b32.xlu0 %v2938, 64
  %v3322 = vpop.permute.xlu0 %3321
  %3323 = vrot.lane.b32.xlu0 %v2940, 64
  %v3324 = vpop.permute.xlu0 %3323
  %3325 = vrot.lane.b32.xlu0 %v2942, 64
  %v3326 = vpop.permute.xlu0 %3325
  %3327 = vrot.lane.b32.xlu0 %v2944, 64
  %v3328 = vpop.permute.xlu0 %3327
  %3329 = vrot.lane.b32.xlu0 %v2946, 64
  %v3330 = vpop.permute.xlu0 %3329
  %3331 = vrot.lane.b32.xlu0 %v2948, 64
  %v3332 = vpop.permute.xlu0 %3331
  %3333 = vrot.lane.b32.xlu0 %v2950, 64
  %v3334 = vpop.permute.xlu0 %3333
  %3335 = vrot.lane.b32.xlu0 %v2954, 64
  %v3336 = vpop.permute.xlu0 %3335
  %v3413 = vsel %vm1696, %v2493, %v2957
  %v3414 = vsel %vm1696, %v2494, %v2959
  %v3415 = vsel %vm1696, %v2495, %v2961
  %v3416 = vsel %vm1696, %v2496, %v2963
  %v3417 = vsel %vm1696, %v2497, %v2965
  %v3418 = vsel %vm1696, %v2498, %v2967
  %v3419 = vsel %vm1696, %v2499, %v2969
  %v3420 = vsel %vm1696, %v2500, %v2971
  %v3421 = vsel %vm1696, %v2501, %v2973
  %v3422 = vsel %vm1696, %v2502, %v2975
  %v3423 = vsel %vm1696, %v2503, %v2977
  %v3424 = vsel %vm1696, %v2504, %v2979
  %v3425 = vsel %vm1696, %v2505, %v2981
  %v3426 = vsel %vm1696, %v2506, %v2983
  %v3427 = vsel %vm1696, %v2507, %v2985
  %v3428 = vsel %vm1696, %v2508, %v2987
  %v3429 = vsel %vm1696, %v2509, %v2989
  %v3430 = vsel %vm1696, %v2510, %v2991
  %v3431 = vsel %vm1696, %v2511, %v2993
  %v3432 = vsel %vm1696, %v2512, %v2995
  %v3433 = vsel %vm1696, %v2513, %v2997
  %v3434 = vsel %vm1696, %v2514, %v2999
  %v3435 = vsel %vm1696, %v2515, %v3001
  %v3436 = vsel %vm1696, %v2516, %v3003
  %v3437 = vsel %vm1696, %v2517, %v3005
  %v3438 = vsel %vm1696, %v2518, %v3007
  %v3439 = vsel %vm1696, %v2519, %v3009
  %v3440 = vsel %vm1696, %v2520, %v3011
  %v3441 = vsel %vm1696, %v2521, %v3013
  %v3442 = vsel %vm1696, %v2522, %v3015
  %v3443 = vsel %vm1696, %v2523, %v3017
  %v3444 = vsel %vm1696, %v2524, %v3019
  %v3445 = vsel %vm1696, %v2525, %v3021
  %v3446 = vsel %vm1696, %v2526, %v3023
  %v3447 = vsel %vm1696, %v2527, %v3025
  %v3448 = vsel %vm1696, %v2528, %v3027
  %v3449 = vsel %vm1696, %v2529, %v3029
  %v3450 = vsel %vm1696, %v2530, %v3031
  %v3451 = vsel %vm1696, %v2531, %v3033
  %v3452 = vsel %vm1696, %v2532, %v3035
  %v3453 = vsel %vm1696, %v2533, %v3037
  %v3454 = vsel %vm1696, %v2534, %v3039
  %v3455 = vsel %vm1696, %v2535, %v3041
  %v3456 = vsel %vm1696, %v2536, %v3043
  %v3457 = vsel %vm1696, %v2537, %v3045
  %v3458 = vsel %vm1696, %v2538, %v3047
  %v3459 = vsel %vm1696, %v2539, %v3049
  %v3460 = vsel %vm1696, %v2540, %v3051
  %v3461 = vsel %vm1696, %v2541, %v3053
  %v3462 = vsel %vm1696, %v2542, %v3055
  %v3463 = vsel %vm1696, %v2543, %v3057
  %v3464 = vsel %vm1696, %v2544, %v3059
  %v3465 = vsel %vm1696, %v2545, %v3061
  %v3466 = vsel %vm1696, %v2546, %v3063
  %v3467 = vsel %vm1696, %v2547, %v3065
  %v3468 = vsel %vm1696, %v2548, %v3067
  %v3469 = vsel %vm1696, %v2549, %v3069
  %v3470 = vsel %vm1696, %v2550, %v3071
  %v3471 = vsel %vm1696, %v2551, %v3073
  %v3472 = vsel %vm1696, %v2552, %v3075
  %v3473 = vsel %vm1696, %v2553, %v3077
  %v3474 = vsel %vm1696, %v2554, %v3079
  %v3475 = vsel %vm1696, %v2555, %v3081
  %v3476 = vsel %vm1696, %v2556, %v3083
  %v3477 = vsel %vm1696, %v2557, %v3085
  %v3478 = vsel %vm1696, %v2558, %v3087
  %v3479 = vsel %vm1696, %v2559, %v3089
  %v3480 = vsel %vm1696, %v2560, %v3091
  %v3481 = vsel %vm1696, %v2561, %v3093
  %v3482 = vsel %vm1696, %v2562, %v3095
  %v3483 = vsel %vm1696, %v2563, %v3097
  %v3484 = vsel %vm1696, %v2564, %v3099
  %v3485 = vsel %vm1696, %v2565, %v3101
  %v3486 = vsel %vm1696, %v2566, %v3103
  %v3487 = vsel %vm1696, %v2567, %v3105
  %v3488 = vsel %vm1696, %v2568, %v3107
  %vm3489 = vcmask 523264
  %v3490 = vsel %vm3489, %v3413, %v3186
  %v3491 = vsel %vm3489, %v3414, %v3188
  %v3492 = vsel %vm3489, %v3415, %v3190
  %v3493 = vsel %vm3489, %v3416, %v3192
  %v3494 = vsel %vm3489, %v3417, %v3194
  %v3495 = vsel %vm3489, %v3418, %v3196
  %v3496 = vsel %vm3489, %v3419, %v3198
  %v3497 = vsel %vm3489, %v3420, %v3200
  %v3498 = vsel %vm3489, %v3421, %v3202
  %v3499 = vsel %vm3489, %v3422, %v3204
  %v3500 = vsel %vm3489, %v3423, %v3206
  %v3501 = vsel %vm3489, %v3424, %v3208
  %v3502 = vsel %vm3489, %v3425, %v3210
  %v3503 = vsel %vm3489, %v3426, %v3212
  %v3504 = vsel %vm3489, %v3427, %v3214
  %v3505 = vsel %vm3489, %v3428, %v3216
  %v3506 = vsel %vm3489, %v3429, %v3218
  %v3507 = vsel %vm3489, %v3430, %v3220
  %v3508 = vsel %vm3489, %v3431, %v3222
  %v3509 = vsel %vm3489, %v3432, %v3224
  %v3510 = vsel %vm3489, %v3433, %v3226
  %v3511 = vsel %vm3489, %v3434, %v3228
  %v3512 = vsel %vm3489, %v3435, %v3230
  %v3513 = vsel %vm3489, %v3436, %v3232
  %v3514 = vsel %vm3489, %v3437, %v3234
  %v3515 = vsel %vm3489, %v3438, %v3236
  %v3516 = vsel %vm3489, %v3439, %v3238
  %v3517 = vsel %vm3489, %v3440, %v3240
  %v3518 = vsel %vm3489, %v3441, %v3242
  %v3519 = vsel %vm3489, %v3442, %v3244
  %v3520 = vsel %vm3489, %v3443, %v3246
  %v3521 = vsel %vm3489, %v3444, %v3248
  %v3522 = vsel %vm3489, %v3445, %v3250
  %v3523 = vsel %vm3489, %v3446, %v3252
  %v3524 = vsel %vm3489, %v3447, %v3254
  %v3525 = vsel %vm3489, %v3448, %v3256
  %v3526 = vsel %vm3489, %v3449, %v3258
  %v3527 = vsel %vm3489, %v3450, %v3260
  %v3528 = vsel %vm3489, %v3451, %v3262
  %v3529 = vsel %vm3489, %v3452, %v3264
  %v3530 = vsel %vm3489, %v3453, %v3266
  %v3531 = vsel %vm3489, %v3454, %v3268
  %v3532 = vsel %vm3489, %v3455, %v3270
  %v3533 = vsel %vm3489, %v3456, %v3272
  %v3534 = vsel %vm3489, %v3457, %v3274
  %v3535 = vsel %vm3489, %v3458, %v3276
  %v3536 = vsel %vm3489, %v3459, %v3278
  %v3537 = vsel %vm3489, %v3460, %v3280
  %v3538 = vsel %vm3489, %v3461, %v3282
  %v3539 = vsel %vm3489, %v3462, %v3284
  %v3540 = vsel %vm3489, %v3463, %v3286
  %v3541 = vsel %vm3489, %v3464, %v3288
  %v3542 = vsel %vm3489, %v3465, %v3290
  %v3543 = vsel %vm3489, %v3466, %v3292
  %v3544 = vsel %vm3489, %v3467, %v3294
  %v3545 = vsel %vm3489, %v3468, %v3296
  %v3546 = vsel %vm3489, %v3469, %v3298
  %v3547 = vsel %vm3489, %v3470, %v3300
  %v3548 = vsel %vm3489, %v3471, %v3302
  %v3549 = vsel %vm3489, %v3472, %v3304
  %v3550 = vsel %vm3489, %v3473, %v3306
  %v3551 = vsel %vm3489, %v3474, %v3308
  %v3552 = vsel %vm3489, %v3475, %v3310
  %v3553 = vsel %vm3489, %v3476, %v3312
  %v3554 = vsel %vm3489, %v3477, %v3314
  %v3555 = vsel %vm3489, %v3478, %v3316
  %v3556 = vsel %vm3489, %v3479, %v3318
  %v3557 = vsel %vm3489, %v3480, %v3320
  %v3558 = vsel %vm3489, %v3481, %v3322
  %v3559 = vsel %vm3489, %v3482, %v3324
  %v3560 = vsel %vm3489, %v3483, %v3326
  %v3561 = vsel %vm3489, %v3484, %v3328
  %v3562 = vsel %vm3489, %v3485, %v3330
  %v3563 = vsel %vm3489, %v3486, %v3332
  %v3564 = vsel %vm3489, %v3487, %v3334
  %v3565 = vsel %vm3489, %v3488, %v3336
  %v3566 = vpack.c.bf16 %v3491, %v3490
  %v3567 = vpack.c.bf16 %v3493, %v3492
  %v3568 = vpack.c.bf16 %v3495, %v3494
  %v3569 = vpack.c.bf16 %v3497, %v3496
  %v3570 = vpack.c.bf16 %v3499, %v3498
  %v3571 = vpack.c.bf16 %v3501, %v3500
  %v3572 = vpack.c.bf16 %v3503, %v3502
  %v3573 = vpack.c.bf16 %v3505, %v3504
  %v3574 = vpack.c.bf16 %v3507, %v3506
  %v3575 = vpack.c.bf16 %v3509, %v3508
  %v3576 = vpack.c.bf16 %v3511, %v3510
  %v3577 = vpack.c.bf16 %v3513, %v3512
  %v3578 = vpack.c.bf16 %v3515, %v3514
  %v3579 = vpack.c.bf16 %v3517, %v3516
  %v3580 = vpack.c.bf16 %v3519, %v3518
  %v3581 = vpack.c.bf16 %v3521, %v3520
  %v3582 = vpack.c.bf16 %v3523, %v3522
  %v3583 = vpack.c.bf16 %v3525, %v3524
  %v3584 = vpack.c.bf16 %v3527, %v3526
  %v3585 = vpack.c.bf16 %v3529, %v3528
  %v3586 = vpack.c.bf16 %v3531, %v3530
  %v3587 = vpack.c.bf16 %v3533, %v3532
  %v3588 = vpack.c.bf16 %v3535, %v3534
  %v3589 = vpack.c.bf16 %v3537, %v3536
  %v3590 = vpack.c.bf16 %v3539, %v3538
  %v3591 = vpack.c.bf16 %v3541, %v3540
  %v3592 = vpack.c.bf16 %v3543, %v3542
  %v3593 = vpack.c.bf16 %v3545, %v3544
  %v3594 = vpack.c.bf16 %v3547, %v3546
  %v3595 = vpack.c.bf16 %v3549, %v3548
  %v3596 = vpack.c.bf16 %v3551, %v3550
  %v3597 = vpack.c.bf16 %v3553, %v3552
  %v3598 = vpack.c.bf16 %v3555, %v3554
  %v3599 = vpack.c.bf16 %v3557, %v3556
  %v3600 = vpack.c.bf16 %v3559, %v3558
  %v3601 = vpack.c.bf16 %v3561, %v3560
  %v3602 = vpack.c.bf16 %v3563, %v3562
  %v3603 = vpack.c.bf16 %v3565, %v3564
  %v3604 = vld [vmem:[%s7] sm:$0xf]
  %v3605 = vld [vmem:[%s7 + $0x4] sm:$0xf]
  %v3606 = vld [vmem:[%s7 + $0x8] sm:$0xf]
  %v3607 = vld [vmem:[%s7 + $0xc] sm:$0xf]
  %v3608 = vld [vmem:[%s7 + $0x10] sm:$0xf]
  %v3609 = vld [vmem:[%s7 + $0x14] sm:$0xf]
  %v3610 = vld [vmem:[%s7 + $0x18] sm:$0xf]
  %v3611 = vld [vmem:[%s7 + $0x1c] sm:$0xf]
  %v3612 = vld [vmem:[%s7 + $0x20] sm:$0xf]
  %v3613 = vld [vmem:[%s7 + $0x24] sm:$0xf]
  %v3614 = vld [vmem:[%s7 + $0x28] sm:$0xf]
  %v3615 = vld [vmem:[%s7 + $0x2c] sm:$0xf]
  %v3628 = vunpack.c.l.b16 %v3604
  %v3629 = vunpack.c.l.b16 %v3605
  %v3630 = vunpack.c.l.b16 %v3606
  %v3631 = vunpack.c.l.b16 %v3607
  %v3632 = vunpack.c.l.b16 %v3608
  %v3633 = vunpack.c.l.b16 %v3609
  %v3634 = vunpack.c.l.b16 %v3610
  %v3635 = vunpack.c.l.b16 %v3611
  %v3636 = vunpack.c.l.b16 %v3612
  %v3637 = vunpack.c.l.b16 %v3613
  %v3638 = vunpack.c.l.b16 %v3614
  %v3639 = vunpack.c.l.b16 %v3615
  %v3640 = vpack.c.b16 %v3629, %v3628
  %v3641 = vpack.c.b16 %v3631, %v3630
  %v3642 = vpack.c.b16 %v3633, %v3632
  %v3643 = vpack.c.b16 %v3635, %v3634
  %v3644 = vpack.c.b16 %v3637, %v3636
  %v3645 = vpack.c.b16 %v3639, %v3638
  %vm3652 = vcmask 785408
  %v3654 = vsel %vm3652, %v3566, 0
  %v3657 = vsel %vm3652, %v3567, 0
  %v3660 = vsel %vm3652, %v3568, 0
  %v3663 = vsel %vm3652, %v3569, 0
  %v3666 = vsel %vm3652, %v3570, 0
  %v3669 = vsel %vm3652, %v3571, 0
  %v3672 = vsel %vm3652, %v3572, 0
  %v3675 = vsel %vm3652, %v3573, 0
  %v3678 = vsel %vm3652, %v3574, 0
  %v3681 = vsel %vm3652, %v3575, 0
  %v3684 = vsel %vm3652, %v3576, 0
  %v3687 = vsel %vm3652, %v3577, 0
  %v3690 = vsel %vm3652, %v3578, 0
  %v3693 = vsel %vm3652, %v3579, 0
  %v3696 = vsel %vm3652, %v3580, 0
  %v3699 = vsel %vm3652, %v3581, 0
  %v3702 = vsel %vm3652, %v3582, 0
  %v3705 = vsel %vm3652, %v3583, 0
  %v3708 = vsel %vm3652, %v3584, 0
  %v3711 = vsel %vm3652, %v3585, 0
  %v3714 = vsel %vm3652, %v3586, 0
  %v3717 = vsel %vm3652, %v3587, 0
  %v3720 = vsel %vm3652, %v3588, 0
  %v3723 = vsel %vm3652, %v3589, 0
  %v3726 = vsel %vm3652, %v3590, 0
  %v3729 = vsel %vm3652, %v3591, 0
  %v3732 = vsel %vm3652, %v3592, 0
  %v3735 = vsel %vm3652, %v3593, 0
  %v3738 = vsel %vm3652, %v3594, 0
  %v3741 = vsel %vm3652, %v3595, 0
  %v3744 = vsel %vm3652, %v3596, 0
  %v3747 = vsel %vm3652, %v3597, 0
  %v3750 = vsel %vm3652, %v3598, 0
  %v3753 = vsel %vm3652, %v3599, 0
  %v3756 = vsel %vm3652, %v3600, 0
  %v3759 = vsel %vm3652, %v3601, 0
  %v3762 = vsel %vm3652, %v3602, 0
  %v3765 = vsel %vm3652, %v3603, 0
  %3767 = vmatpush.bf16.msra.mxu0 0
  %3768 = vmatpush.bf16.msra.mxu0 0
  %3769 = vmatpush.bf16.msra.mxu0 %v3645
  %3770 = vmatpush.bf16.msra.mxu0 %v3644
  %3771 = vmatpush.bf16.msra.mxu0 %v3643
  %3772 = vmatpush.bf16.msra.mxu0 %v3642
  %3773 = vmatpush.bf16.msra.mxu0 %v3641
  %3774 = vmatpush.bf16.msra.mxu0 %v3640
  %3775 = vmatmul.bf16.gmra.mxu0 %v3654
  %v3776 = vpop.f32.mrf.mxu0
  %v3777 = vadd.f32 0.0, %v3776
  %v3778 = vpop.f32.mrf.mxu0
  %v3779 = vadd.f32 0.0, %v3778
  %3780 = vmatmul.bf16.gmra.mxu0 %v3657
  %v3781 = vpop.f32.mrf.mxu0
  %v3782 = vadd.f32 0.0, %v3781
  %v3783 = vpop.f32.mrf.mxu0
  %v3784 = vadd.f32 0.0, %v3783
  %3785 = vmatmul.bf16.gmra.mxu0 %v3660
  %v3786 = vpop.f32.mrf.mxu0
  %v3787 = vadd.f32 0.0, %v3786
  %v3788 = vpop.f32.mrf.mxu0
  %v3789 = vadd.f32 0.0, %v3788
  %3790 = vmatmul.bf16.gmra.mxu0 %v3663
  %v3791 = vpop.f32.mrf.mxu0
  %v3792 = vadd.f32 0.0, %v3791
  %v3793 = vpop.f32.mrf.mxu0
  %v3794 = vadd.f32 0.0, %v3793
  %3795 = vmatmul.bf16.gmra.mxu0 %v3666
  %v3796 = vpop.f32.mrf.mxu0
  %v3797 = vadd.f32 0.0, %v3796
  %v3798 = vpop.f32.mrf.mxu0
  %v3799 = vadd.f32 0.0, %v3798
  %3800 = vmatmul.bf16.gmra.mxu0 %v3669
  %v3801 = vpop.f32.mrf.mxu0
  %v3802 = vadd.f32 0.0, %v3801
  %v3803 = vpop.f32.mrf.mxu0
  %v3804 = vadd.f32 0.0, %v3803
  %3805 = vmatmul.bf16.gmra.mxu0 %v3672
  %v3806 = vpop.f32.mrf.mxu0
  %v3807 = vadd.f32 0.0, %v3806
  %v3808 = vpop.f32.mrf.mxu0
  %v3809 = vadd.f32 0.0, %v3808
  %3810 = vmatmul.bf16.gmra.mxu0 %v3675
  %v3811 = vpop.f32.mrf.mxu0
  %v3812 = vadd.f32 0.0, %v3811
  %v3813 = vpop.f32.mrf.mxu0
  %v3814 = vadd.f32 0.0, %v3813
  %3815 = vmatmul.bf16.gmra.mxu0 %v3678
  %v3816 = vpop.f32.mrf.mxu0
  %v3817 = vadd.f32 0.0, %v3816
  %v3818 = vpop.f32.mrf.mxu0
  %v3819 = vadd.f32 0.0, %v3818
  %3820 = vmatmul.bf16.gmra.mxu0 %v3681
  %v3821 = vpop.f32.mrf.mxu0
  %v3822 = vadd.f32 0.0, %v3821
  %v3823 = vpop.f32.mrf.mxu0
  %v3824 = vadd.f32 0.0, %v3823
  %3825 = vmatmul.bf16.gmra.mxu0 %v3684
  %v3826 = vpop.f32.mrf.mxu0
  %v3827 = vadd.f32 0.0, %v3826
  %v3828 = vpop.f32.mrf.mxu0
  %v3829 = vadd.f32 0.0, %v3828
  %3830 = vmatmul.bf16.gmra.mxu0 %v3687
  %v3831 = vpop.f32.mrf.mxu0
  %v3832 = vadd.f32 0.0, %v3831
  %v3833 = vpop.f32.mrf.mxu0
  %v3834 = vadd.f32 0.0, %v3833
  %3835 = vmatmul.bf16.gmra.mxu0 %v3690
  %v3836 = vpop.f32.mrf.mxu0
  %v3837 = vadd.f32 0.0, %v3836
  %v3838 = vpop.f32.mrf.mxu0
  %v3839 = vadd.f32 0.0, %v3838
  %3840 = vmatmul.bf16.gmra.mxu0 %v3693
  %v3841 = vpop.f32.mrf.mxu0
  %v3842 = vadd.f32 0.0, %v3841
  %v3843 = vpop.f32.mrf.mxu0
  %v3844 = vadd.f32 0.0, %v3843
  %3845 = vmatmul.bf16.gmra.mxu0 %v3696
  %v3846 = vpop.f32.mrf.mxu0
  %v3847 = vadd.f32 0.0, %v3846
  %v3848 = vpop.f32.mrf.mxu0
  %v3849 = vadd.f32 0.0, %v3848
  %3850 = vmatmul.bf16.gmra.mxu0 %v3699
  %v3851 = vpop.f32.mrf.mxu0
  %v3852 = vadd.f32 0.0, %v3851
  %v3853 = vpop.f32.mrf.mxu0
  %v3854 = vadd.f32 0.0, %v3853
  %3855 = vmatmul.bf16.gmra.mxu0 %v3702
  %v3856 = vpop.f32.mrf.mxu0
  %v3857 = vadd.f32 0.0, %v3856
  %v3858 = vpop.f32.mrf.mxu0
  %v3859 = vadd.f32 0.0, %v3858
  %3860 = vmatmul.bf16.gmra.mxu0 %v3705
  %v3861 = vpop.f32.mrf.mxu0
  %v3862 = vadd.f32 0.0, %v3861
  %v3863 = vpop.f32.mrf.mxu0
  %v3864 = vadd.f32 0.0, %v3863
  %3865 = vmatmul.bf16.gmra.mxu0 %v3708
  %v3866 = vpop.f32.mrf.mxu0
  %v3867 = vadd.f32 0.0, %v3866
  %v3868 = vpop.f32.mrf.mxu0
  %v3869 = vadd.f32 0.0, %v3868
  %3870 = vmatmul.bf16.gmra.mxu0 %v3711
  %v3871 = vpop.f32.mrf.mxu0
  %v3872 = vadd.f32 0.0, %v3871
  %v3873 = vpop.f32.mrf.mxu0
  %v3874 = vadd.f32 0.0, %v3873
  %3875 = vmatmul.bf16.gmra.mxu0 %v3714
  %v3876 = vpop.f32.mrf.mxu0
  %v3877 = vadd.f32 0.0, %v3876
  %v3878 = vpop.f32.mrf.mxu0
  %v3879 = vadd.f32 0.0, %v3878
  %3880 = vmatmul.bf16.gmra.mxu0 %v3717
  %v3881 = vpop.f32.mrf.mxu0
  %v3882 = vadd.f32 0.0, %v3881
  %v3883 = vpop.f32.mrf.mxu0
  %v3884 = vadd.f32 0.0, %v3883
  %3885 = vmatmul.bf16.gmra.mxu0 %v3720
  %v3886 = vpop.f32.mrf.mxu0
  %v3887 = vadd.f32 0.0, %v3886
  %v3888 = vpop.f32.mrf.mxu0
  %v3889 = vadd.f32 0.0, %v3888
  %3890 = vmatmul.bf16.gmra.mxu0 %v3723
  %v3891 = vpop.f32.mrf.mxu0
  %v3892 = vadd.f32 0.0, %v3891
  %v3893 = vpop.f32.mrf.mxu0
  %v3894 = vadd.f32 0.0, %v3893
  %3895 = vmatmul.bf16.gmra.mxu0 %v3726
  %v3896 = vpop.f32.mrf.mxu0
  %v3897 = vadd.f32 0.0, %v3896
  %v3898 = vpop.f32.mrf.mxu0
  %v3899 = vadd.f32 0.0, %v3898
  %3900 = vmatmul.bf16.gmra.mxu0 %v3729
  %v3901 = vpop.f32.mrf.mxu0
  %v3902 = vadd.f32 0.0, %v3901
  %v3903 = vpop.f32.mrf.mxu0
  %v3904 = vadd.f32 0.0, %v3903
  %3905 = vmatmul.bf16.gmra.mxu0 %v3732
  %v3906 = vpop.f32.mrf.mxu0
  %v3907 = vadd.f32 0.0, %v3906
  %v3908 = vpop.f32.mrf.mxu0
  %v3909 = vadd.f32 0.0, %v3908
  %3910 = vmatmul.bf16.gmra.mxu0 %v3735
  %v3911 = vpop.f32.mrf.mxu0
  %v3912 = vadd.f32 0.0, %v3911
  %v3913 = vpop.f32.mrf.mxu0
  %v3914 = vadd.f32 0.0, %v3913
  %3915 = vmatmul.bf16.gmra.mxu0 %v3738
  %v3916 = vpop.f32.mrf.mxu0
  %v3917 = vadd.f32 0.0, %v3916
  %v3918 = vpop.f32.mrf.mxu0
  %v3919 = vadd.f32 0.0, %v3918
  %3920 = vmatmul.bf16.gmra.mxu0 %v3741
  %v3921 = vpop.f32.mrf.mxu0
  %v3922 = vadd.f32 0.0, %v3921
  %v3923 = vpop.f32.mrf.mxu0
  %v3924 = vadd.f32 0.0, %v3923
  %3925 = vmatmul.bf16.gmra.mxu0 %v3744
  %v3926 = vpop.f32.mrf.mxu0
  %v3927 = vadd.f32 0.0, %v3926
  %v3928 = vpop.f32.mrf.mxu0
  %v3929 = vadd.f32 0.0, %v3928
  %3930 = vmatmul.bf16.gmra.mxu0 %v3747
  %v3931 = vpop.f32.mrf.mxu0
  %v3932 = vadd.f32 0.0, %v3931
  %v3933 = vpop.f32.mrf.mxu0
  %v3934 = vadd.f32 0.0, %v3933
  %3935 = vmatmul.bf16.gmra.mxu0 %v3750
  %v3936 = vpop.f32.mrf.mxu0
  %v3937 = vadd.f32 0.0, %v3936
  %v3938 = vpop.f32.mrf.mxu0
  %v3939 = vadd.f32 0.0, %v3938
  %3940 = vmatmul.bf16.gmra.mxu0 %v3753
  %v3941 = vpop.f32.mrf.mxu0
  %v3942 = vadd.f32 0.0, %v3941
  %v3943 = vpop.f32.mrf.mxu0
  %v3944 = vadd.f32 0.0, %v3943
  %3945 = vmatmul.bf16.gmra.mxu0 %v3756
  %v3946 = vpop.f32.mrf.mxu0
  %v3947 = vadd.f32 0.0, %v3946
  %v3948 = vpop.f32.mrf.mxu0
  %v3949 = vadd.f32 0.0, %v3948
  %3950 = vmatmul.bf16.gmra.mxu0 %v3759
  %v3951 = vpop.f32.mrf.mxu0
  %v3952 = vadd.f32 0.0, %v3951
  %v3953 = vpop.f32.mrf.mxu0
  %v3954 = vadd.f32 0.0, %v3953
  %3955 = vmatmul.bf16.gmra.mxu0 %v3762
  %v3956 = vpop.f32.mrf.mxu0
  %v3957 = vadd.f32 0.0, %v3956
  %v3958 = vpop.f32.mrf.mxu0
  %v3959 = vadd.f32 0.0, %v3958
  %3960 = vmatmul.bf16.gmra.mxu0 %v3765
  %v3961 = vpop.f32.mrf.mxu0
  %v3962 = vadd.f32 0.0, %v3961
  %v3963 = vpop.f32.mrf.mxu0
  %v3964 = vadd.f32 0.0, %v3963
  %3965 = vdwg.mxu0
  %v3966 = vsel %vm946, %v3777, 0.0
  %v3967 = vsel %vm947, %v3779, 0.0
  %v3968 = vsel %vm948, %v3782, 0.0
  %v3969 = vsel %vm949, %v3784, 0.0
  %v3970 = vsel %vm950, %v3787, 0.0
  %v3971 = vsel %vm951, %v3789, 0.0
  %v3972 = vsel %vm952, %v3792, 0.0
  %v3973 = vsel %vm953, %v3794, 0.0
  %v3974 = vsel %vm954, %v3797, 0.0
  %v3975 = vsel %vm955, %v3799, 0.0
  %v3976 = vsel %vm956, %v3802, 0.0
  %v3977 = vsel %vm957, %v3804, 0.0
  %v3978 = vsel %vm958, %v3807, 0.0
  %v3979 = vsel %vm959, %v3809, 0.0
  %v3980 = vsel %vm960, %v3812, 0.0
  %v3981 = vsel %vm961, %v3814, 0.0
  %v3982 = vsel %vm962, %v3817, 0.0
  %v3983 = vsel %vm963, %v3819, 0.0
  %v3984 = vsel %vm964, %v3822, 0.0
  %v3985 = vsel %vm965, %v3824, 0.0
  %v3986 = vsel %vm966, %v3827, 0.0
  %v3987 = vsel %vm967, %v3829, 0.0
  %v3988 = vsel %vm968, %v3832, 0.0
  %v3989 = vsel %vm969, %v3834, 0.0
  %v3990 = vsel %vm970, %v3837, 0.0
  %v3991 = vsel %vm971, %v3839, 0.0
  %v3992 = vsel %vm972, %v3842, 0.0
  %v3993 = vsel %vm973, %v3844, 0.0
  %v3994 = vsel %vm974, %v3847, 0.0
  %v3995 = vsel %vm975, %v3849, 0.0
  %v3996 = vsel %vm976, %v3852, 0.0
  %v3997 = vsel %vm977, %v3854, 0.0
  %v3998 = vsel %vm978, %v3857, 0.0
  %v3999 = vsel %vm979, %v3859, 0.0
  %v4000 = vsel %vm980, %v3862, 0.0
  %v4001 = vsel %vm981, %v3864, 0.0
  %v4002 = vsel %vm982, %v3867, 0.0
  %v4003 = vsel %vm983, %v3869, 0.0
  %v4004 = vsel %vm984, %v3872, 0.0
  %v4005 = vsel %vm985, %v3874, 0.0
  %v4006 = vsel %vm986, %v3877, 0.0
  %v4007 = vsel %vm987, %v3879, 0.0
  %v4008 = vsel %vm988, %v3882, 0.0
  %v4009 = vsel %vm989, %v3884, 0.0
  %v4010 = vsel %vm990, %v3887, 0.0
  %v4011 = vsel %vm991, %v3889, 0.0
  %v4012 = vsel %vm992, %v3892, 0.0
  %v4013 = vsel %vm993, %v3894, 0.0
  %v4014 = vsel %vm994, %v3897, 0.0
  %v4015 = vsel %vm995, %v3899, 0.0
  %v4016 = vsel %vm996, %v3902, 0.0
  %v4017 = vsel %vm997, %v3904, 0.0
  %v4018 = vsel %vm998, %v3907, 0.0
  %v4019 = vsel %vm999, %v3909, 0.0
  %v4020 = vsel %vm1000, %v3912, 0.0
  %v4021 = vsel %vm1001, %v3914, 0.0
  %v4022 = vsel %vm1002, %v3917, 0.0
  %v4023 = vsel %vm1003, %v3919, 0.0
  %v4024 = vsel %vm1004, %v3922, 0.0
  %v4025 = vsel %vm1005, %v3924, 0.0
  %v4026 = vsel %vm1006, %v3927, 0.0
  %v4027 = vsel %vm1007, %v3929, 0.0
  %v4028 = vsel %vm1008, %v3932, 0.0
  %v4029 = vsel %vm1009, %v3934, 0.0
  %v4030 = vsel %vm1010, %v3937, 0.0
  %v4031 = vsel %vm1011, %v3939, 0.0
  %v4032 = vsel %vm1012, %v3942, 0.0
  %v4033 = vsel %vm1013, %v3944, 0.0
  %v4034 = vsel %vm1014, %v3947, 0.0
  %v4035 = vsel %vm1015, %v3949, 0.0
  %v4036 = vsel %vm1016, %v3952, 0.0
  %v4037 = vsel %vm1017, %v3954, 0.0
  %v4038 = vsel %vm1018, %v3957, 0.0
  %v4039 = vsel %vm1019, %v3959, 0.0
  %v4040 = vsel %vm1020, %v3962, 0.0
  %v4041 = vsel %vm1021, %v3964, 0.0
  %v4042 = vsel %vm1696, %v3966, 0.0
  %v4043 = vsel %vm1696, %v3967, 0.0
  %v4044 = vadd.f32 %v4042, %v4043
  %v4045 = vsel %vm1696, %v3968, 0.0
  %v4046 = vadd.f32 %v4044, %v4045
  %v4047 = vsel %vm1696, %v3969, 0.0
  %v4048 = vadd.f32 %v4046, %v4047
  %v4049 = vsel %vm1696, %v3970, 0.0
  %v4050 = vadd.f32 %v4048, %v4049
  %v4051 = vsel %vm1696, %v3971, 0.0
  %v4052 = vadd.f32 %v4050, %v4051
  %v4053 = vsel %vm1696, %v3972, 0.0
  %v4054 = vadd.f32 %v4052, %v4053
  %v4055 = vsel %vm1696, %v3973, 0.0
  %v4056 = vadd.f32 %v4054, %v4055
  %v4057 = vsel %vm1696, %v3974, 0.0
  %v4058 = vadd.f32 %v4056, %v4057
  %v4059 = vsel %vm1696, %v3975, 0.0
  %v4060 = vadd.f32 %v4058, %v4059
  %v4061 = vsel %vm1696, %v3976, 0.0
  %v4062 = vadd.f32 %v4060, %v4061
  %v4063 = vsel %vm1696, %v3977, 0.0
  %v4064 = vadd.f32 %v4062, %v4063
  %v4065 = vsel %vm1696, %v3978, 0.0
  %v4066 = vadd.f32 %v4064, %v4065
  %v4067 = vsel %vm1696, %v3979, 0.0
  %v4068 = vadd.f32 %v4066, %v4067
  %v4069 = vsel %vm1696, %v3980, 0.0
  %v4070 = vadd.f32 %v4068, %v4069
  %v4071 = vsel %vm1696, %v3981, 0.0
  %v4072 = vadd.f32 %v4070, %v4071
  %v4073 = vsel %vm1696, %v3982, 0.0
  %v4074 = vadd.f32 %v4072, %v4073
  %v4075 = vsel %vm1696, %v3983, 0.0
  %v4076 = vadd.f32 %v4074, %v4075
  %v4077 = vsel %vm1696, %v3984, 0.0
  %v4078 = vadd.f32 %v4076, %v4077
  %v4079 = vsel %vm1696, %v3985, 0.0
  %v4080 = vadd.f32 %v4078, %v4079
  %v4081 = vsel %vm1696, %v3986, 0.0
  %v4082 = vadd.f32 %v4080, %v4081
  %v4083 = vsel %vm1696, %v3987, 0.0
  %v4084 = vadd.f32 %v4082, %v4083
  %v4085 = vsel %vm1696, %v3988, 0.0
  %v4086 = vadd.f32 %v4084, %v4085
  %v4087 = vsel %vm1696, %v3989, 0.0
  %v4088 = vadd.f32 %v4086, %v4087
  %v4089 = vsel %vm1696, %v3990, 0.0
  %v4090 = vadd.f32 %v4088, %v4089
  %v4091 = vsel %vm1696, %v3991, 0.0
  %v4092 = vadd.f32 %v4090, %v4091
  %v4093 = vsel %vm1696, %v3992, 0.0
  %v4094 = vadd.f32 %v4092, %v4093
  %v4095 = vsel %vm1696, %v3993, 0.0
  %v4096 = vadd.f32 %v4094, %v4095
  %v4097 = vsel %vm1696, %v3994, 0.0
  %v4098 = vadd.f32 %v4096, %v4097
  %v4099 = vsel %vm1696, %v3995, 0.0
  %v4100 = vadd.f32 %v4098, %v4099
  %v4101 = vsel %vm1696, %v3996, 0.0
  %v4102 = vadd.f32 %v4100, %v4101
  %v4103 = vsel %vm1696, %v3997, 0.0
  %v4104 = vadd.f32 %v4102, %v4103
  %v4105 = vsel %vm1696, %v3998, 0.0
  %v4106 = vadd.f32 %v4104, %v4105
  %v4107 = vsel %vm1696, %v3999, 0.0
  %v4108 = vadd.f32 %v4106, %v4107
  %v4109 = vsel %vm1696, %v4000, 0.0
  %v4110 = vadd.f32 %v4108, %v4109
  %v4111 = vsel %vm1696, %v4001, 0.0
  %v4112 = vadd.f32 %v4110, %v4111
  %v4113 = vsel %vm1696, %v4002, 0.0
  %v4114 = vadd.f32 %v4112, %v4113
  %v4115 = vsel %vm1696, %v4003, 0.0
  %v4116 = vadd.f32 %v4114, %v4115
  %v4117 = vsel %vm1696, %v4004, 0.0
  %v4118 = vadd.f32 %v4116, %v4117
  %v4119 = vsel %vm1696, %v4005, 0.0
  %v4120 = vadd.f32 %v4118, %v4119
  %v4121 = vsel %vm1696, %v4006, 0.0
  %v4122 = vadd.f32 %v4120, %v4121
  %v4123 = vsel %vm1696, %v4007, 0.0
  %v4124 = vadd.f32 %v4122, %v4123
  %v4125 = vsel %vm1696, %v4008, 0.0
  %v4126 = vadd.f32 %v4124, %v4125
  %v4127 = vsel %vm1696, %v4009, 0.0
  %v4128 = vadd.f32 %v4126, %v4127
  %v4129 = vsel %vm1696, %v4010, 0.0
  %v4130 = vadd.f32 %v4128, %v4129
  %v4131 = vsel %vm1696, %v4011, 0.0
  %v4132 = vadd.f32 %v4130, %v4131
  %v4133 = vsel %vm1696, %v4012, 0.0
  %v4134 = vadd.f32 %v4132, %v4133
  %v4135 = vsel %vm1696, %v4013, 0.0
  %v4136 = vadd.f32 %v4134, %v4135
  %v4137 = vsel %vm1696, %v4014, 0.0
  %v4138 = vadd.f32 %v4136, %v4137
  %v4139 = vsel %vm1696, %v4015, 0.0
  %v4140 = vadd.f32 %v4138, %v4139
  %v4141 = vsel %vm1696, %v4016, 0.0
  %v4142 = vadd.f32 %v4140, %v4141
  %v4143 = vsel %vm1696, %v4017, 0.0
  %v4144 = vadd.f32 %v4142, %v4143
  %v4145 = vsel %vm1696, %v4018, 0.0
  %v4146 = vadd.f32 %v4144, %v4145
  %v4147 = vsel %vm1696, %v4019, 0.0
  %v4148 = vadd.f32 %v4146, %v4147
  %v4149 = vsel %vm1696, %v4020, 0.0
  %v4150 = vadd.f32 %v4148, %v4149
  %v4151 = vsel %vm1696, %v4021, 0.0
  %v4152 = vadd.f32 %v4150, %v4151
  %v4153 = vsel %vm1696, %v4022, 0.0
  %v4154 = vadd.f32 %v4152, %v4153
  %v4155 = vsel %vm1696, %v4023, 0.0
  %v4156 = vadd.f32 %v4154, %v4155
  %v4157 = vsel %vm1696, %v4024, 0.0
  %v4158 = vadd.f32 %v4156, %v4157
  %v4159 = vsel %vm1696, %v4025, 0.0
  %v4160 = vadd.f32 %v4158, %v4159
  %v4161 = vsel %vm1696, %v4026, 0.0
  %v4162 = vadd.f32 %v4160, %v4161
  %v4163 = vsel %vm1696, %v4027, 0.0
  %v4164 = vadd.f32 %v4162, %v4163
  %v4165 = vsel %vm1696, %v4028, 0.0
  %v4166 = vadd.f32 %v4164, %v4165
  %v4167 = vsel %vm1696, %v4029, 0.0
  %v4168 = vadd.f32 %v4166, %v4167
  %v4169 = vsel %vm1696, %v4030, 0.0
  %v4170 = vadd.f32 %v4168, %v4169
  %v4171 = vsel %vm1696, %v4031, 0.0
  %v4172 = vadd.f32 %v4170, %v4171
  %v4173 = vsel %vm1696, %v4032, 0.0
  %v4174 = vadd.f32 %v4172, %v4173
  %v4175 = vsel %vm1696, %v4033, 0.0
  %v4176 = vadd.f32 %v4174, %v4175
  %v4177 = vsel %vm1696, %v4034, 0.0
  %v4178 = vadd.f32 %v4176, %v4177
  %v4179 = vsel %vm1696, %v4035, 0.0
  %v4180 = vadd.f32 %v4178, %v4179
  %v4181 = vsel %vm1696, %v4036, 0.0
  %v4182 = vadd.f32 %v4180, %v4181
  %v4183 = vsel %vm1696, %v4037, 0.0
  %v4184 = vadd.f32 %v4182, %v4183
  %v4185 = vsel %vm1696, %v4038, 0.0
  %v4186 = vadd.f32 %v4184, %v4185
  %v4187 = vsel %vm1696, %v4039, 0.0
  %v4188 = vadd.f32 %v4186, %v4187
  %v4189 = vsel %vm1696, %v4040, 0.0
  %v4190 = vadd.f32 %v4188, %v4189
  %v4191 = vsel %vm1846, %v4041, 0.0
  %v4192 = vadd.f32 %v4190, %v4191
  %v4193 = vrot.slane %v4192, 4
  %v4194 = vadd.f32 %v4192, %v4193
  %v4195 = vrot.slane %v4194, 2
  %v4196 = vadd.f32 %v4194, %v4195
  %v4197 = vrot.slane %v4196, 1
  %v4198 = vadd.f32 %v4196, %v4197
  %v4199 = vmul.f32 %v4198, %v1861
  %v4200 = vsub.f32 %v3777, %v4199
  %v4201 = vsub.f32 %v3779, %v4199
  %v4202 = vsub.f32 %v3782, %v4199
  %v4203 = vsub.f32 %v3784, %v4199
  %v4204 = vsub.f32 %v3787, %v4199
  %v4205 = vsub.f32 %v3789, %v4199
  %v4206 = vsub.f32 %v3792, %v4199
  %v4207 = vsub.f32 %v3794, %v4199
  %v4208 = vsub.f32 %v3797, %v4199
  %v4209 = vsub.f32 %v3799, %v4199
  %v4210 = vsub.f32 %v3802, %v4199
  %v4211 = vsub.f32 %v3804, %v4199
  %v4212 = vsub.f32 %v3807, %v4199
  %v4213 = vsub.f32 %v3809, %v4199
  %v4214 = vsub.f32 %v3812, %v4199
  %v4215 = vsub.f32 %v3814, %v4199
  %v4216 = vsub.f32 %v3817, %v4199
  %v4217 = vsub.f32 %v3819, %v4199
  %v4218 = vsub.f32 %v3822, %v4199
  %v4219 = vsub.f32 %v3824, %v4199
  %v4220 = vsub.f32 %v3827, %v4199
  %v4221 = vsub.f32 %v3829, %v4199
  %v4222 = vsub.f32 %v3832, %v4199
  %v4223 = vsub.f32 %v3834, %v4199
  %v4224 = vsub.f32 %v3837, %v4199
  %v4225 = vsub.f32 %v3839, %v4199
  %v4226 = vsub.f32 %v3842, %v4199
  %v4227 = vsub.f32 %v3844, %v4199
  %v4228 = vsub.f32 %v3847, %v4199
  %v4229 = vsub.f32 %v3849, %v4199
  %v4230 = vsub.f32 %v3852, %v4199
  %v4231 = vsub.f32 %v3854, %v4199
  %v4232 = vsub.f32 %v3857, %v4199
  %v4233 = vsub.f32 %v3859, %v4199
  %v4234 = vsub.f32 %v3862, %v4199
  %v4235 = vsub.f32 %v3864, %v4199
  %v4236 = vsub.f32 %v3867, %v4199
  %v4237 = vsub.f32 %v3869, %v4199
  %v4238 = vsub.f32 %v3872, %v4199
  %v4239 = vsub.f32 %v3874, %v4199
  %v4240 = vsub.f32 %v3877, %v4199
  %v4241 = vsub.f32 %v3879, %v4199
  %v4242 = vsub.f32 %v3882, %v4199
  %v4243 = vsub.f32 %v3884, %v4199
  %v4244 = vsub.f32 %v3887, %v4199
  %v4245 = vsub.f32 %v3889, %v4199
  %v4246 = vsub.f32 %v3892, %v4199
  %v4247 = vsub.f32 %v3894, %v4199
  %v4248 = vsub.f32 %v3897, %v4199
  %v4249 = vsub.f32 %v3899, %v4199
  %v4250 = vsub.f32 %v3902, %v4199
  %v4251 = vsub.f32 %v3904, %v4199
  %v4252 = vsub.f32 %v3907, %v4199
  %v4253 = vsub.f32 %v3909, %v4199
  %v4254 = vsub.f32 %v3912, %v4199
  %v4255 = vsub.f32 %v3914, %v4199
  %v4256 = vsub.f32 %v3917, %v4199
  %v4257 = vsub.f32 %v3919, %v4199
  %v4258 = vsub.f32 %v3922, %v4199
  %v4259 = vsub.f32 %v3924, %v4199
  %v4260 = vsub.f32 %v3927, %v4199
  %v4261 = vsub.f32 %v3929, %v4199
  %v4262 = vsub.f32 %v3932, %v4199
  %v4263 = vsub.f32 %v3934, %v4199
  %v4264 = vsub.f32 %v3937, %v4199
  %v4265 = vsub.f32 %v3939, %v4199
  %v4266 = vsub.f32 %v3942, %v4199
  %v4267 = vsub.f32 %v3944, %v4199
  %v4268 = vsub.f32 %v3947, %v4199
  %v4269 = vsub.f32 %v3949, %v4199
  %v4270 = vsub.f32 %v3952, %v4199
  %v4271 = vsub.f32 %v3954, %v4199
  %v4272 = vsub.f32 %v3957, %v4199
  %v4273 = vsub.f32 %v3959, %v4199
  %v4274 = vsub.f32 %v3962, %v4199
  %v4275 = vsub.f32 %v3964, %v4199
  %v4276 = vmul.f32 %v4200, %v4200
  %v4277 = vmul.f32 %v4201, %v4201
  %v4278 = vmul.f32 %v4202, %v4202
  %v4279 = vmul.f32 %v4203, %v4203
  %v4280 = vmul.f32 %v4204, %v4204
  %v4281 = vmul.f32 %v4205, %v4205
  %v4282 = vmul.f32 %v4206, %v4206
  %v4283 = vmul.f32 %v4207, %v4207
  %v4284 = vmul.f32 %v4208, %v4208
  %v4285 = vmul.f32 %v4209, %v4209
  %v4286 = vmul.f32 %v4210, %v4210
  %v4287 = vmul.f32 %v4211, %v4211
  %v4288 = vmul.f32 %v4212, %v4212
  %v4289 = vmul.f32 %v4213, %v4213
  %v4290 = vmul.f32 %v4214, %v4214
  %v4291 = vmul.f32 %v4215, %v4215
  %v4292 = vmul.f32 %v4216, %v4216
  %v4293 = vmul.f32 %v4217, %v4217
  %v4294 = vmul.f32 %v4218, %v4218
  %v4295 = vmul.f32 %v4219, %v4219
  %v4296 = vmul.f32 %v4220, %v4220
  %v4297 = vmul.f32 %v4221, %v4221
  %v4298 = vmul.f32 %v4222, %v4222
  %v4299 = vmul.f32 %v4223, %v4223
  %v4300 = vmul.f32 %v4224, %v4224
  %v4301 = vmul.f32 %v4225, %v4225
  %v4302 = vmul.f32 %v4226, %v4226
  %v4303 = vmul.f32 %v4227, %v4227
  %v4304 = vmul.f32 %v4228, %v4228
  %v4305 = vmul.f32 %v4229, %v4229
  %v4306 = vmul.f32 %v4230, %v4230
  %v4307 = vmul.f32 %v4231, %v4231
  %v4308 = vmul.f32 %v4232, %v4232
  %v4309 = vmul.f32 %v4233, %v4233
  %v4310 = vmul.f32 %v4234, %v4234
  %v4311 = vmul.f32 %v4235, %v4235
  %v4312 = vmul.f32 %v4236, %v4236
  %v4313 = vmul.f32 %v4237, %v4237
  %v4314 = vmul.f32 %v4238, %v4238
  %v4315 = vmul.f32 %v4239, %v4239
  %v4316 = vmul.f32 %v4240, %v4240
  %v4317 = vmul.f32 %v4241, %v4241
  %v4318 = vmul.f32 %v4242, %v4242
  %v4319 = vmul.f32 %v4243, %v4243
  %v4320 = vmul.f32 %v4244, %v4244
  %v4321 = vmul.f32 %v4245, %v4245
  %v4322 = vmul.f32 %v4246, %v4246
  %v4323 = vmul.f32 %v4247, %v4247
  %v4324 = vmul.f32 %v4248, %v4248
  %v4325 = vmul.f32 %v4249, %v4249
  %v4326 = vmul.f32 %v4250, %v4250
  %v4327 = vmul.f32 %v4251, %v4251
  %v4328 = vmul.f32 %v4252, %v4252
  %v4329 = vmul.f32 %v4253, %v4253
  %v4330 = vmul.f32 %v4254, %v4254
  %v4331 = vmul.f32 %v4255, %v4255
  %v4332 = vmul.f32 %v4256, %v4256
  %v4333 = vmul.f32 %v4257, %v4257
  %v4334 = vmul.f32 %v4258, %v4258
  %v4335 = vmul.f32 %v4259, %v4259
  %v4336 = vmul.f32 %v4260, %v4260
  %v4337 = vmul.f32 %v4261, %v4261
  %v4338 = vmul.f32 %v4262, %v4262
  %v4339 = vmul.f32 %v4263, %v4263
  %v4340 = vmul.f32 %v4264, %v4264
  %v4341 = vmul.f32 %v4265, %v4265
  %v4342 = vmul.f32 %v4266, %v4266
  %v4343 = vmul.f32 %v4267, %v4267
  %v4344 = vmul.f32 %v4268, %v4268
  %v4345 = vmul.f32 %v4269, %v4269
  %v4346 = vmul.f32 %v4270, %v4270
  %v4347 = vmul.f32 %v4271, %v4271
  %v4348 = vmul.f32 %v4272, %v4272
  %v4349 = vmul.f32 %v4273, %v4273
  %v4350 = vmul.f32 %v4274, %v4274
  %v4351 = vmul.f32 %v4275, %v4275
  %v4352 = vsel %vm946, %v4276, 0.0
  %v4353 = vsel %vm947, %v4277, 0.0
  %v4354 = vsel %vm948, %v4278, 0.0
  %v4355 = vsel %vm949, %v4279, 0.0
  %v4356 = vsel %vm950, %v4280, 0.0
  %v4357 = vsel %vm951, %v4281, 0.0
  %v4358 = vsel %vm952, %v4282, 0.0
  %v4359 = vsel %vm953, %v4283, 0.0
  %v4360 = vsel %vm954, %v4284, 0.0
  %v4361 = vsel %vm955, %v4285, 0.0
  %v4362 = vsel %vm956, %v4286, 0.0
  %v4363 = vsel %vm957, %v4287, 0.0
  %v4364 = vsel %vm958, %v4288, 0.0
  %v4365 = vsel %vm959, %v4289, 0.0
  %v4366 = vsel %vm960, %v4290, 0.0
  %v4367 = vsel %vm961, %v4291, 0.0
  %v4368 = vsel %vm962, %v4292, 0.0
  %v4369 = vsel %vm963, %v4293, 0.0
  %v4370 = vsel %vm964, %v4294, 0.0
  %v4371 = vsel %vm965, %v4295, 0.0
  %v4372 = vsel %vm966, %v4296, 0.0
  %v4373 = vsel %vm967, %v4297, 0.0
  %v4374 = vsel %vm968, %v4298, 0.0
  %v4375 = vsel %vm969, %v4299, 0.0
  %v4376 = vsel %vm970, %v4300, 0.0
  %v4377 = vsel %vm971, %v4301, 0.0
  %v4378 = vsel %vm972, %v4302, 0.0
  %v4379 = vsel %vm973, %v4303, 0.0
  %v4380 = vsel %vm974, %v4304, 0.0
  %v4381 = vsel %vm975, %v4305, 0.0
  %v4382 = vsel %vm976, %v4306, 0.0
  %v4383 = vsel %vm977, %v4307, 0.0
  %v4384 = vsel %vm978, %v4308, 0.0
  %v4385 = vsel %vm979, %v4309, 0.0
  %v4386 = vsel %vm980, %v4310, 0.0
  %v4387 = vsel %vm981, %v4311, 0.0
  %v4388 = vsel %vm982, %v4312, 0.0
  %v4389 = vsel %vm983, %v4313, 0.0
  %v4390 = vsel %vm984, %v4314, 0.0
  %v4391 = vsel %vm985, %v4315, 0.0
  %v4392 = vsel %vm986, %v4316, 0.0
  %v4393 = vsel %vm987, %v4317, 0.0
  %v4394 = vsel %vm988, %v4318, 0.0
  %v4395 = vsel %vm989, %v4319, 0.0
  %v4396 = vsel %vm990, %v4320, 0.0
  %v4397 = vsel %vm991, %v4321, 0.0
  %v4398 = vsel %vm992, %v4322, 0.0
  %v4399 = vsel %vm993, %v4323, 0.0
  %v4400 = vsel %vm994, %v4324, 0.0
  %v4401 = vsel %vm995, %v4325, 0.0
  %v4402 = vsel %vm996, %v4326, 0.0
  %v4403 = vsel %vm997, %v4327, 0.0
  %v4404 = vsel %vm998, %v4328, 0.0
  %v4405 = vsel %vm999, %v4329, 0.0
  %v4406 = vsel %vm1000, %v4330, 0.0
  %v4407 = vsel %vm1001, %v4331, 0.0
  %v4408 = vsel %vm1002, %v4332, 0.0
  %v4409 = vsel %vm1003, %v4333, 0.0
  %v4410 = vsel %vm1004, %v4334, 0.0
  %v4411 = vsel %vm1005, %v4335, 0.0
  %v4412 = vsel %vm1006, %v4336, 0.0
  %v4413 = vsel %vm1007, %v4337, 0.0
  %v4414 = vsel %vm1008, %v4338, 0.0
  %v4415 = vsel %vm1009, %v4339, 0.0
  %v4416 = vsel %vm1010, %v4340, 0.0
  %v4417 = vsel %vm1011, %v4341, 0.0
  %v4418 = vsel %vm1012, %v4342, 0.0
  %v4419 = vsel %vm1013, %v4343, 0.0
  %v4420 = vsel %vm1014, %v4344, 0.0
  %v4421 = vsel %vm1015, %v4345, 0.0
  %v4422 = vsel %vm1016, %v4346, 0.0
  %v4423 = vsel %vm1017, %v4347, 0.0
  %v4424 = vsel %vm1018, %v4348, 0.0
  %v4425 = vsel %vm1019, %v4349, 0.0
  %v4426 = vsel %vm1020, %v4350, 0.0
  %v4427 = vsel %vm1021, %v4351, 0.0
  %v4428 = vsel %vm1696, %v4352, 0.0
  %v4429 = vsel %vm1696, %v4353, 0.0
  %v4430 = vadd.f32 %v4428, %v4429
  %v4431 = vsel %vm1696, %v4354, 0.0
  %v4432 = vadd.f32 %v4430, %v4431
  %v4433 = vsel %vm1696, %v4355, 0.0
  %v4434 = vadd.f32 %v4432, %v4433
  %v4435 = vsel %vm1696, %v4356, 0.0
  %v4436 = vadd.f32 %v4434, %v4435
  %v4437 = vsel %vm1696, %v4357, 0.0
  %v4438 = vadd.f32 %v4436, %v4437
  %v4439 = vsel %vm1696, %v4358, 0.0
  %v4440 = vadd.f32 %v4438, %v4439
  %v4441 = vsel %vm1696, %v4359, 0.0
  %v4442 = vadd.f32 %v4440, %v4441
  %v4443 = vsel %vm1696, %v4360, 0.0
  %v4444 = vadd.f32 %v4442, %v4443
  %v4445 = vsel %vm1696, %v4361, 0.0
  %v4446 = vadd.f32 %v4444, %v4445
  %v4447 = vsel %vm1696, %v4362, 0.0
  %v4448 = vadd.f32 %v4446, %v4447
  %v4449 = vsel %vm1696, %v4363, 0.0
  %v4450 = vadd.f32 %v4448, %v4449
  %v4451 = vsel %vm1696, %v4364, 0.0
  %v4452 = vadd.f32 %v4450, %v4451
  %v4453 = vsel %vm1696, %v4365, 0.0
  %v4454 = vadd.f32 %v4452, %v4453
  %v4455 = vsel %vm1696, %v4366, 0.0
  %v4456 = vadd.f32 %v4454, %v4455
  %v4457 = vsel %vm1696, %v4367, 0.0
  %v4458 = vadd.f32 %v4456, %v4457
  %v4459 = vsel %vm1696, %v4368, 0.0
  %v4460 = vadd.f32 %v4458, %v4459
  %v4461 = vsel %vm1696, %v4369, 0.0
  %v4462 = vadd.f32 %v4460, %v4461
  %v4463 = vsel %vm1696, %v4370, 0.0
  %v4464 = vadd.f32 %v4462, %v4463
  %v4465 = vsel %vm1696, %v4371, 0.0
  %v4466 = vadd.f32 %v4464, %v4465
  %v4467 = vsel %vm1696, %v4372, 0.0
  %v4468 = vadd.f32 %v4466, %v4467
  %v4469 = vsel %vm1696, %v4373, 0.0
  %v4470 = vadd.f32 %v4468, %v4469
  %v4471 = vsel %vm1696, %v4374, 0.0
  %v4472 = vadd.f32 %v4470, %v4471
  %v4473 = vsel %vm1696, %v4375, 0.0
  %v4474 = vadd.f32 %v4472, %v4473
  %v4475 = vsel %vm1696, %v4376, 0.0
  %v4476 = vadd.f32 %v4474, %v4475
  %v4477 = vsel %vm1696, %v4377, 0.0
  %v4478 = vadd.f32 %v4476, %v4477
  %v4479 = vsel %vm1696, %v4378, 0.0
  %v4480 = vadd.f32 %v4478, %v4479
  %v4481 = vsel %vm1696, %v4379, 0.0
  %v4482 = vadd.f32 %v4480, %v4481
  %v4483 = vsel %vm1696, %v4380, 0.0
  %v4484 = vadd.f32 %v4482, %v4483
  %v4485 = vsel %vm1696, %v4381, 0.0
  %v4486 = vadd.f32 %v4484, %v4485
  %v4487 = vsel %vm1696, %v4382, 0.0
  %v4488 = vadd.f32 %v4486, %v4487
  %v4489 = vsel %vm1696, %v4383, 0.0
  %v4490 = vadd.f32 %v4488, %v4489
  %v4491 = vsel %vm1696, %v4384, 0.0
  %v4492 = vadd.f32 %v4490, %v4491
  %v4493 = vsel %vm1696, %v4385, 0.0
  %v4494 = vadd.f32 %v4492, %v4493
  %v4495 = vsel %vm1696, %v4386, 0.0
  %v4496 = vadd.f32 %v4494, %v4495
  %v4497 = vsel %vm1696, %v4387, 0.0
  %v4498 = vadd.f32 %v4496, %v4497
  %v4499 = vsel %vm1696, %v4388, 0.0
  %v4500 = vadd.f32 %v4498, %v4499
  %v4501 = vsel %vm1696, %v4389, 0.0
  %v4502 = vadd.f32 %v4500, %v4501
  %v4503 = vsel %vm1696, %v4390, 0.0
  %v4504 = vadd.f32 %v4502, %v4503
  %v4505 = vsel %vm1696, %v4391, 0.0
  %v4506 = vadd.f32 %v4504, %v4505
  %v4507 = vsel %vm1696, %v4392, 0.0
  %v4508 = vadd.f32 %v4506, %v4507
  %v4509 = vsel %vm1696, %v4393, 0.0
  %v4510 = vadd.f32 %v4508, %v4509
  %v4511 = vsel %vm1696, %v4394, 0.0
  %v4512 = vadd.f32 %v4510, %v4511
  %v4513 = vsel %vm1696, %v4395, 0.0
  %v4514 = vadd.f32 %v4512, %v4513
  %v4515 = vsel %vm1696, %v4396, 0.0
  %v4516 = vadd.f32 %v4514, %v4515
  %v4517 = vsel %vm1696, %v4397, 0.0
  %v4518 = vadd.f32 %v4516, %v4517
  %v4519 = vsel %vm1696, %v4398, 0.0
  %v4520 = vadd.f32 %v4518, %v4519
  %v4521 = vsel %vm1696, %v4399, 0.0
  %v4522 = vadd.f32 %v4520, %v4521
  %v4523 = vsel %vm1696, %v4400, 0.0
  %v4524 = vadd.f32 %v4522, %v4523
  %v4525 = vsel %vm1696, %v4401, 0.0
  %v4526 = vadd.f32 %v4524, %v4525
  %v4527 = vsel %vm1696, %v4402, 0.0
  %v4528 = vadd.f32 %v4526, %v4527
  %v4529 = vsel %vm1696, %v4403, 0.0
  %v4530 = vadd.f32 %v4528, %v4529
  %v4531 = vsel %vm1696, %v4404, 0.0
  %v4532 = vadd.f32 %v4530, %v4531
  %v4533 = vsel %vm1696, %v4405, 0.0
  %v4534 = vadd.f32 %v4532, %v4533
  %v4535 = vsel %vm1696, %v4406, 0.0
  %v4536 = vadd.f32 %v4534, %v4535
  %v4537 = vsel %vm1696, %v4407, 0.0
  %v4538 = vadd.f32 %v4536, %v4537
  %v4539 = vsel %vm1696, %v4408, 0.0
  %v4540 = vadd.f32 %v4538, %v4539
  %v4541 = vsel %vm1696, %v4409, 0.0
  %v4542 = vadd.f32 %v4540, %v4541
  %v4543 = vsel %vm1696, %v4410, 0.0
  %v4544 = vadd.f32 %v4542, %v4543
  %v4545 = vsel %vm1696, %v4411, 0.0
  %v4546 = vadd.f32 %v4544, %v4545
  %v4547 = vsel %vm1696, %v4412, 0.0
  %v4548 = vadd.f32 %v4546, %v4547
  %v4549 = vsel %vm1696, %v4413, 0.0
  %v4550 = vadd.f32 %v4548, %v4549
  %v4551 = vsel %vm1696, %v4414, 0.0
  %v4552 = vadd.f32 %v4550, %v4551
  %v4553 = vsel %vm1696, %v4415, 0.0
  %v4554 = vadd.f32 %v4552, %v4553
  %v4555 = vsel %vm1696, %v4416, 0.0
  %v4556 = vadd.f32 %v4554, %v4555
  %v4557 = vsel %vm1696, %v4417, 0.0
  %v4558 = vadd.f32 %v4556, %v4557
  %v4559 = vsel %vm1696, %v4418, 0.0
  %v4560 = vadd.f32 %v4558, %v4559
  %v4561 = vsel %vm1696, %v4419, 0.0
  %v4562 = vadd.f32 %v4560, %v4561
  %v4563 = vsel %vm1696, %v4420, 0.0
  %v4564 = vadd.f32 %v4562, %v4563
  %v4565 = vsel %vm1696, %v4421, 0.0
  %v4566 = vadd.f32 %v4564, %v4565
  %v4567 = vsel %vm1696, %v4422, 0.0
  %v4568 = vadd.f32 %v4566, %v4567
  %v4569 = vsel %vm1696, %v4423, 0.0
  %v4570 = vadd.f32 %v4568, %v4569
  %v4571 = vsel %vm1696, %v4424, 0.0
  %v4572 = vadd.f32 %v4570, %v4571
  %v4573 = vsel %vm1696, %v4425, 0.0
  %v4574 = vadd.f32 %v4572, %v4573
  %v4575 = vsel %vm1696, %v4426, 0.0
  %v4576 = vadd.f32 %v4574, %v4575
  %v4577 = vsel %vm1846, %v4427, 0.0
  %v4578 = vadd.f32 %v4576, %v4577
  %v4579 = vrot.slane %v4578, 4
  %v4580 = vadd.f32 %v4578, %v4579
  %v4581 = vrot.slane %v4580, 2
  %v4582 = vadd.f32 %v4580, %v4581
  %v4583 = vrot.slane %v4582, 1
  %v4584 = vadd.f32 %v4582, %v4583
  %v4585 = vmul.f32 %v4584, %v1861
  %v4586 = vadd.f32 %v4585, 1e-05
  %v4587 = vrsqrt.pop %v4586
  %v4588 = vmul.f32 %v4587, %v4586
  %v4589 = vmul.f32 %v4588, %v4587
  %v4590 = vmul.f32 0.5, %v4589
  %v4591 = vsub.f32 1.5, %v4590
  %v4592 = vmul.f32 %v4587, %v4591
  %vm4593 = vweird.f32 %v4586
  %vm4594 = vweird.f32 %v4587
  %vm4595 = vmor %vm4593, %vm4594
  %v4596 = vsel %vm4595, %v4587, %v4592
  %v4597 = vmul.f32 %v1618, %v4596
  %v4598 = vmul.f32 %v4199, %v4597
  %v4599 = vsub.f32 %v1619, %v4598
  %v4600 = vperm.slane %v4597, 0
  %v4601 = vmul.f32 %v3777, %v4600
  %v4602 = vmul.f32 %v3779, %v4600
  %v4603 = vmul.f32 %v3782, %v4600
  %v4604 = vmul.f32 %v3784, %v4600
  %v4605 = vmul.f32 %v3787, %v4600
  %v4606 = vmul.f32 %v3789, %v4600
  %v4607 = vmul.f32 %v3792, %v4600
  %v4608 = vmul.f32 %v3794, %v4600
  %v4609 = vmul.f32 %v3797, %v4600
  %v4610 = vmul.f32 %v3799, %v4600
  %v4611 = vmul.f32 %v3802, %v4600
  %v4612 = vmul.f32 %v3804, %v4600
  %v4613 = vmul.f32 %v3807, %v4600
  %v4614 = vmul.f32 %v3809, %v4600
  %v4615 = vmul.f32 %v3812, %v4600
  %v4616 = vmul.f32 %v3814, %v4600
  %v4617 = vmul.f32 %v3817, %v4600
  %v4618 = vmul.f32 %v3819, %v4600
  %v4619 = vmul.f32 %v3822, %v4600
  %v4620 = vmul.f32 %v3824, %v4600
  %v4621 = vmul.f32 %v3827, %v4600
  %v4622 = vmul.f32 %v3829, %v4600
  %v4623 = vmul.f32 %v3832, %v4600
  %v4624 = vmul.f32 %v3834, %v4600
  %v4625 = vmul.f32 %v3837, %v4600
  %v4626 = vmul.f32 %v3839, %v4600
  %v4627 = vmul.f32 %v3842, %v4600
  %v4628 = vmul.f32 %v3844, %v4600
  %v4629 = vmul.f32 %v3847, %v4600
  %v4630 = vmul.f32 %v3849, %v4600
  %v4631 = vmul.f32 %v3852, %v4600
  %v4632 = vmul.f32 %v3854, %v4600
  %v4633 = vmul.f32 %v3857, %v4600
  %v4634 = vmul.f32 %v3859, %v4600
  %v4635 = vmul.f32 %v3862, %v4600
  %v4636 = vmul.f32 %v3864, %v4600
  %v4637 = vmul.f32 %v3867, %v4600
  %v4638 = vmul.f32 %v3869, %v4600
  %v4639 = vmul.f32 %v3872, %v4600
  %v4640 = vmul.f32 %v3874, %v4600
  %v4641 = vmul.f32 %v3877, %v4600
  %v4642 = vmul.f32 %v3879, %v4600
  %v4643 = vmul.f32 %v3882, %v4600
  %v4644 = vmul.f32 %v3884, %v4600
  %v4645 = vmul.f32 %v3887, %v4600
  %v4646 = vmul.f32 %v3889, %v4600
  %v4647 = vmul.f32 %v3892, %v4600
  %v4648 = vmul.f32 %v3894, %v4600
  %v4649 = vmul.f32 %v3897, %v4600
  %v4650 = vmul.f32 %v3899, %v4600
  %v4651 = vmul.f32 %v3902, %v4600
  %v4652 = vmul.f32 %v3904, %v4600
  %v4653 = vmul.f32 %v3907, %v4600
  %v4654 = vmul.f32 %v3909, %v4600
  %v4655 = vmul.f32 %v3912, %v4600
  %v4656 = vmul.f32 %v3914, %v4600
  %v4657 = vmul.f32 %v3917, %v4600
  %v4658 = vmul.f32 %v3919, %v4600
  %v4659 = vmul.f32 %v3922, %v4600
  %v4660 = vmul.f32 %v3924, %v4600
  %v4661 = vmul.f32 %v3927, %v4600
  %v4662 = vmul.f32 %v3929, %v4600
  %v4663 = vmul.f32 %v3932, %v4600
  %v4664 = vmul.f32 %v3934, %v4600
  %v4665 = vmul.f32 %v3937, %v4600
  %v4666 = vmul.f32 %v3939, %v4600
  %v4667 = vmul.f32 %v3942, %v4600
  %v4668 = vmul.f32 %v3944, %v4600
  %v4669 = vmul.f32 %v3947, %v4600
  %v4670 = vmul.f32 %v3949, %v4600
  %v4671 = vmul.f32 %v3952, %v4600
  %v4672 = vmul.f32 %v3954, %v4600
  %v4673 = vmul.f32 %v3957, %v4600
  %v4674 = vmul.f32 %v3959, %v4600
  %v4675 = vmul.f32 %v3962, %v4600
  %v4676 = vmul.f32 %v3964, %v4600
  %v4677 = vperm.slane %v4599, 0
  %v4678 = vadd.f32 %v4601, %v4677
  %v4679 = vadd.f32 %v4602, %v4677
  %v4680 = vadd.f32 %v4603, %v4677
  %v4681 = vadd.f32 %v4604, %v4677
  %v4682 = vadd.f32 %v4605, %v4677
  %v4683 = vadd.f32 %v4606, %v4677
  %v4684 = vadd.f32 %v4607, %v4677
  %v4685 = vadd.f32 %v4608, %v4677
  %v4686 = vadd.f32 %v4609, %v4677
  %v4687 = vadd.f32 %v4610, %v4677
  %v4688 = vadd.f32 %v4611, %v4677
  %v4689 = vadd.f32 %v4612, %v4677
  %v4690 = vadd.f32 %v4613, %v4677
  %v4691 = vadd.f32 %v4614, %v4677
  %v4692 = vadd.f32 %v4615, %v4677
  %v4693 = vadd.f32 %v4616, %v4677
  %v4694 = vadd.f32 %v4617, %v4677
  %v4695 = vadd.f32 %v4618, %v4677
  %v4696 = vadd.f32 %v4619, %v4677
  %v4697 = vadd.f32 %v4620, %v4677
  %v4698 = vadd.f32 %v4621, %v4677
  %v4699 = vadd.f32 %v4622, %v4677
  %v4700 = vadd.f32 %v4623, %v4677
  %v4701 = vadd.f32 %v4624, %v4677
  %v4702 = vadd.f32 %v4625, %v4677
  %v4703 = vadd.f32 %v4626, %v4677
  %v4704 = vadd.f32 %v4627, %v4677
  %v4705 = vadd.f32 %v4628, %v4677
  %v4706 = vadd.f32 %v4629, %v4677
  %v4707 = vadd.f32 %v4630, %v4677
  %v4708 = vadd.f32 %v4631, %v4677
  %v4709 = vadd.f32 %v4632, %v4677
  %v4710 = vadd.f32 %v4633, %v4677
  %v4711 = vadd.f32 %v4634, %v4677
  %v4712 = vadd.f32 %v4635, %v4677
  %v4713 = vadd.f32 %v4636, %v4677
  %v4714 = vadd.f32 %v4637, %v4677
  %v4715 = vadd.f32 %v4638, %v4677
  %v4716 = vadd.f32 %v4639, %v4677
  %v4717 = vadd.f32 %v4640, %v4677
  %v4718 = vadd.f32 %v4641, %v4677
  %v4719 = vadd.f32 %v4642, %v4677
  %v4720 = vadd.f32 %v4643, %v4677
  %v4721 = vadd.f32 %v4644, %v4677
  %v4722 = vadd.f32 %v4645, %v4677
  %v4723 = vadd.f32 %v4646, %v4677
  %v4724 = vadd.f32 %v4647, %v4677
  %v4725 = vadd.f32 %v4648, %v4677
  %v4726 = vadd.f32 %v4649, %v4677
  %v4727 = vadd.f32 %v4650, %v4677
  %v4728 = vadd.f32 %v4651, %v4677
  %v4729 = vadd.f32 %v4652, %v4677
  %v4730 = vadd.f32 %v4653, %v4677
  %v4731 = vadd.f32 %v4654, %v4677
  %v4732 = vadd.f32 %v4655, %v4677
  %v4733 = vadd.f32 %v4656, %v4677
  %v4734 = vadd.f32 %v4657, %v4677
  %v4735 = vadd.f32 %v4658, %v4677
  %v4736 = vadd.f32 %v4659, %v4677
  %v4737 = vadd.f32 %v4660, %v4677
  %v4738 = vadd.f32 %v4661, %v4677
  %v4739 = vadd.f32 %v4662, %v4677
  %v4740 = vadd.f32 %v4663, %v4677
  %v4741 = vadd.f32 %v4664, %v4677
  %v4742 = vadd.f32 %v4665, %v4677
  %v4743 = vadd.f32 %v4666, %v4677
  %v4744 = vadd.f32 %v4667, %v4677
  %v4745 = vadd.f32 %v4668, %v4677
  %v4746 = vadd.f32 %v4669, %v4677
  %v4747 = vadd.f32 %v4670, %v4677
  %v4748 = vadd.f32 %v4671, %v4677
  %v4749 = vadd.f32 %v4672, %v4677
  %v4750 = vadd.f32 %v4673, %v4677
  %v4751 = vadd.f32 %v4674, %v4677
  %v4752 = vadd.f32 %v4675, %v4677
  %v4753 = vadd.f32 %v4676, %v4677
  %v4754 = vmax.f32 %v4678, 0.0
  %v4755 = vmax.f32 %v4679, 0.0
  %v4756 = vmax.f32 %v4680, 0.0
  %v4757 = vmax.f32 %v4681, 0.0
  %v4758 = vmax.f32 %v4682, 0.0
  %v4759 = vmax.f32 %v4683, 0.0
  %v4760 = vmax.f32 %v4684, 0.0
  %v4761 = vmax.f32 %v4685, 0.0
  %v4762 = vmax.f32 %v4686, 0.0
  %v4763 = vmax.f32 %v4687, 0.0
  %v4764 = vmax.f32 %v4688, 0.0
  %v4765 = vmax.f32 %v4689, 0.0
  %v4766 = vmax.f32 %v4690, 0.0
  %v4767 = vmax.f32 %v4691, 0.0
  %v4768 = vmax.f32 %v4692, 0.0
  %v4769 = vmax.f32 %v4693, 0.0
  %v4770 = vmax.f32 %v4694, 0.0
  %v4771 = vmax.f32 %v4695, 0.0
  %v4772 = vmax.f32 %v4696, 0.0
  %v4773 = vmax.f32 %v4697, 0.0
  %v4774 = vmax.f32 %v4698, 0.0
  %v4775 = vmax.f32 %v4699, 0.0
  %v4776 = vmax.f32 %v4700, 0.0
  %v4777 = vmax.f32 %v4701, 0.0
  %v4778 = vmax.f32 %v4702, 0.0
  %v4779 = vmax.f32 %v4703, 0.0
  %v4780 = vmax.f32 %v4704, 0.0
  %v4781 = vmax.f32 %v4705, 0.0
  %v4782 = vmax.f32 %v4706, 0.0
  %v4783 = vmax.f32 %v4707, 0.0
  %v4784 = vmax.f32 %v4708, 0.0
  %v4785 = vmax.f32 %v4709, 0.0
  %v4786 = vmax.f32 %v4710, 0.0
  %v4787 = vmax.f32 %v4711, 0.0
  %v4788 = vmax.f32 %v4712, 0.0
  %v4789 = vmax.f32 %v4713, 0.0
  %v4790 = vmax.f32 %v4714, 0.0
  %v4791 = vmax.f32 %v4715, 0.0
  %v4792 = vmax.f32 %v4716, 0.0
  %v4793 = vmax.f32 %v4717, 0.0
  %v4794 = vmax.f32 %v4718, 0.0
  %v4795 = vmax.f32 %v4719, 0.0
  %v4796 = vmax.f32 %v4720, 0.0
  %v4797 = vmax.f32 %v4721, 0.0
  %v4798 = vmax.f32 %v4722, 0.0
  %v4799 = vmax.f32 %v4723, 0.0
  %v4800 = vmax.f32 %v4724, 0.0
  %v4801 = vmax.f32 %v4725, 0.0
  %v4802 = vmax.f32 %v4726, 0.0
  %v4803 = vmax.f32 %v4727, 0.0
  %v4804 = vmax.f32 %v4728, 0.0
  %v4805 = vmax.f32 %v4729, 0.0
  %v4806 = vmax.f32 %v4730, 0.0
  %v4807 = vmax.f32 %v4731, 0.0
  %v4808 = vmax.f32 %v4732, 0.0
  %v4809 = vmax.f32 %v4733, 0.0
  %v4810 = vmax.f32 %v4734, 0.0
  %v4811 = vmax.f32 %v4735, 0.0
  %v4812 = vmax.f32 %v4736, 0.0
  %v4813 = vmax.f32 %v4737, 0.0
  %v4814 = vmax.f32 %v4738, 0.0
  %v4815 = vmax.f32 %v4739, 0.0
  %v4816 = vmax.f32 %v4740, 0.0
  %v4817 = vmax.f32 %v4741, 0.0
  %v4818 = vmax.f32 %v4742, 0.0
  %v4819 = vmax.f32 %v4743, 0.0
  %v4820 = vmax.f32 %v4744, 0.0
  %v4821 = vmax.f32 %v4745, 0.0
  %v4822 = vmax.f32 %v4746, 0.0
  %v4823 = vmax.f32 %v4747, 0.0
  %v4824 = vmax.f32 %v4748, 0.0
  %v4825 = vmax.f32 %v4749, 0.0
  %v4826 = vmax.f32 %v4750, 0.0
  %v4827 = vmax.f32 %v4751, 0.0
  %v4828 = vmax.f32 %v4752, 0.0
  %v4829 = vmax.f32 %v4753, 0.0
  %vm4830 = vcmp.ge.s32.totalorder %v34, 0
  %vm4831 = vcmp.ge.s32.totalorder %v35, 0
  %vm4832 = vcmp.ge.s32.totalorder %v36, 0
  %vm4833 = vcmp.ge.s32.totalorder %v37, 0
  %vm4834 = vcmp.ge.s32.totalorder %v38, 0
  %vm4835 = vcmp.ge.s32.totalorder %v39, 0
  %vm4836 = vcmp.ge.s32.totalorder %v40, 0
  %vm4837 = vcmp.ge.s32.totalorder %v41, 0
  %vm4838 = vcmp.ge.s32.totalorder %v42, 0
  %vm4839 = vcmp.ge.s32.totalorder %v43, 0
  %vm4840 = vcmp.ge.s32.totalorder %v44, 0
  %vm4841 = vcmp.ge.s32.totalorder %v45, 0
  %vm4842 = vcmp.ge.s32.totalorder %v46, 0
  %vm4843 = vcmp.ge.s32.totalorder %v47, 0
  %vm4844 = vcmp.ge.s32.totalorder %v48, 0
  %vm4845 = vcmp.ge.s32.totalorder %v49, 0
  %vm4846 = vcmp.ge.s32.totalorder %v50, 0
  %vm4847 = vcmp.ge.s32.totalorder %v51, 0
  %vm4848 = vcmp.ge.s32.totalorder %v52, 0
  %vm4849 = vcmp.ge.s32.totalorder %v53, 0
  %vm4850 = vcmp.ge.s32.totalorder %v54, 0
  %vm4851 = vcmp.ge.s32.totalorder %v55, 0
  %vm4852 = vcmp.ge.s32.totalorder %v56, 0
  %vm4853 = vcmp.ge.s32.totalorder %v57, 0
  %vm4854 = vcmp.ge.s32.totalorder %v58, 0
  %vm4855 = vcmp.ge.s32.totalorder %v59, 0
  %vm4856 = vcmp.ge.s32.totalorder %v60, 0
  %vm4857 = vcmp.ge.s32.totalorder %v61, 0
  %vm4858 = vcmp.ge.s32.totalorder %v62, 0
  %vm4859 = vcmp.ge.s32.totalorder %v63, 0
  %vm4860 = vcmp.ge.s32.totalorder %v64, 0
  %vm4861 = vcmp.ge.s32.totalorder %v65, 0
  %vm4862 = vcmp.ge.s32.totalorder %v66, 0
  %vm4863 = vcmp.ge.s32.totalorder %v67, 0
  %vm4864 = vcmp.ge.s32.totalorder %v68, 0
  %vm4865 = vcmp.ge.s32.totalorder %v69, 0
  %vm4866 = vcmp.ge.s32.totalorder %v70, 0
  %vm4867 = vcmp.ge.s32.totalorder %v71, 0
  %vm4868 = vcmp.ge.s32.totalorder %v72, 0
  %vm4869 = vcmp.ge.s32.totalorder %v73, 0
  %vm4870 = vcmp.ge.s32.totalorder %v74, 0
  %vm4871 = vcmp.ge.s32.totalorder %v75, 0
  %vm4872 = vcmp.ge.s32.totalorder %v76, 0
  %vm4873 = vcmp.ge.s32.totalorder %v77, 0
  %vm4874 = vcmp.ge.s32.totalorder %v78, 0
  %vm4875 = vcmp.ge.s32.totalorder %v79, 0
  %vm4876 = vcmp.ge.s32.totalorder %v80, 0
  %vm4877 = vcmp.ge.s32.totalorder %v81, 0
  %vm4878 = vcmp.ge.s32.totalorder %v82, 0
  %vm4879 = vcmp.ge.s32.totalorder %v83, 0
  %vm4880 = vcmp.ge.s32.totalorder %v84, 0
  %vm4881 = vcmp.ge.s32.totalorder %v85, 0
  %vm4882 = vcmp.ge.s32.totalorder %v86, 0
  %vm4883 = vcmp.ge.s32.totalorder %v87, 0
  %vm4884 = vcmp.ge.s32.totalorder %v88, 0
  %vm4885 = vcmp.ge.s32.totalorder %v89, 0
  %vm4886 = vcmp.ge.s32.totalorder %v90, 0
  %vm4887 = vcmp.ge.s32.totalorder %v91, 0
  %vm4888 = vcmp.ge.s32.totalorder %v92, 0
  %vm4889 = vcmp.ge.s32.totalorder %v93, 0
  %vm4890 = vcmp.ge.s32.totalorder %v94, 0
  %vm4891 = vcmp.ge.s32.totalorder %v95, 0
  %vm4892 = vcmp.ge.s32.totalorder %v96, 0
  %vm4893 = vcmp.ge.s32.totalorder %v97, 0
  %vm4894 = vcmp.ge.s32.totalorder %v98, 0
  %vm4895 = vcmp.ge.s32.totalorder %v99, 0
  %vm4896 = vcmp.ge.s32.totalorder %v100, 0
  %vm4897 = vcmp.ge.s32.totalorder %v101, 0
  %vm4898 = vcmp.ge.s32.totalorder %v102, 0
  %vm4899 = vcmp.ge.s32.totalorder %v103, 0
  %vm4900 = vcmp.ge.s32.totalorder %v104, 0
  %vm4901 = vcmp.ge.s32.totalorder %v105, 0
  %vm4902 = vcmp.ge.s32.totalorder %v106, 0
  %vm4903 = vcmp.ge.s32.totalorder %v107, 0
  %vm4904 = vcmp.ge.s32.totalorder %v108, 0
  %vm4905 = vcmp.ge.s32.totalorder %v109, 0
  %vm4906 = vcmp.lt.s32.totalorder %v34, 150
  %vm4907 = vcmp.lt.s32.totalorder %v35, 150
  %vm4908 = vcmp.lt.s32.totalorder %v36, 150
  %vm4909 = vcmp.lt.s32.totalorder %v37, 150
  %vm4910 = vcmp.lt.s32.totalorder %v38, 150
  %vm4911 = vcmp.lt.s32.totalorder %v39, 150
  %vm4912 = vcmp.lt.s32.totalorder %v40, 150
  %vm4913 = vcmp.lt.s32.totalorder %v41, 150
  %vm4914 = vcmp.lt.s32.totalorder %v42, 150
  %vm4915 = vcmp.lt.s32.totalorder %v43, 150
  %vm4916 = vcmp.lt.s32.totalorder %v44, 150
  %vm4917 = vcmp.lt.s32.totalorder %v45, 150
  %vm4918 = vcmp.lt.s32.totalorder %v46, 150
  %vm4919 = vcmp.lt.s32.totalorder %v47, 150
  %vm4920 = vcmp.lt.s32.totalorder %v48, 150
  %vm4921 = vcmp.lt.s32.totalorder %v49, 150
  %vm4922 = vcmp.lt.s32.totalorder %v50, 150
  %vm4923 = vcmp.lt.s32.totalorder %v51, 150
  %vm4924 = vcmp.lt.s32.totalorder %v52, 150
  %vm4925 = vcmp.lt.s32.totalorder %v53, 150
  %vm4926 = vcmp.lt.s32.totalorder %v54, 150
  %vm4927 = vcmp.lt.s32.totalorder %v55, 150
  %vm4928 = vcmp.lt.s32.totalorder %v56, 150
  %vm4929 = vcmp.lt.s32.totalorder %v57, 150
  %vm4930 = vcmp.lt.s32.totalorder %v58, 150
  %vm4931 = vcmp.lt.s32.totalorder %v59, 150
  %vm4932 = vcmp.lt.s32.totalorder %v60, 150
  %vm4933 = vcmp.lt.s32.totalorder %v61, 150
  %vm4934 = vcmp.lt.s32.totalorder %v62, 150
  %vm4935 = vcmp.lt.s32.totalorder %v63, 150
  %vm4936 = vcmp.lt.s32.totalorder %v64, 150
  %vm4937 = vcmp.lt.s32.totalorder %v65, 150
  %vm4938 = vcmp.lt.s32.totalorder %v66, 150
  %vm4939 = vcmp.lt.s32.totalorder %v67, 150
  %vm4940 = vcmp.lt.s32.totalorder %v68, 150
  %vm4941 = vcmp.lt.s32.totalorder %v69, 150
  %vm4942 = vcmp.lt.s32.totalorder %v70, 150
  %vm4943 = vcmp.lt.s32.totalorder %v71, 150
  %vm4944 = vcmp.lt.s32.totalorder %v72, 150
  %vm4945 = vcmp.lt.s32.totalorder %v73, 150
  %vm4946 = vcmp.lt.s32.totalorder %v74, 150
  %vm4947 = vcmp.lt.s32.totalorder %v75, 150
  %vm4948 = vcmp.lt.s32.totalorder %v76, 150
  %vm4949 = vcmp.lt.s32.totalorder %v77, 150
  %vm4950 = vcmp.lt.s32.totalorder %v78, 150
  %vm4951 = vcmp.lt.s32.totalorder %v79, 150
  %vm4952 = vcmp.lt.s32.totalorder %v80, 150
  %vm4953 = vcmp.lt.s32.totalorder %v81, 150
  %vm4954 = vcmp.lt.s32.totalorder %v82, 150
  %vm4955 = vcmp.lt.s32.totalorder %v83, 150
  %vm4956 = vcmp.lt.s32.totalorder %v84, 150
  %vm4957 = vcmp.lt.s32.totalorder %v85, 150
  %vm4958 = vcmp.lt.s32.totalorder %v86, 150
  %vm4959 = vcmp.lt.s32.totalorder %v87, 150
  %vm4960 = vcmp.lt.s32.totalorder %v88, 150
  %vm4961 = vcmp.lt.s32.totalorder %v89, 150
  %vm4962 = vcmp.lt.s32.totalorder %v90, 150
  %vm4963 = vcmp.lt.s32.totalorder %v91, 150
  %vm4964 = vcmp.lt.s32.totalorder %v92, 150
  %vm4965 = vcmp.lt.s32.totalorder %v93, 150
  %vm4966 = vcmp.lt.s32.totalorder %v94, 150
  %vm4967 = vcmp.lt.s32.totalorder %v95, 150
  %vm4968 = vcmp.lt.s32.totalorder %v96, 150
  %vm4969 = vcmp.lt.s32.totalorder %v97, 150
  %vm4970 = vcmp.lt.s32.totalorder %v98, 150
  %vm4971 = vcmp.lt.s32.totalorder %v99, 150
  %vm4972 = vcmp.lt.s32.totalorder %v100, 150
  %vm4973 = vcmp.lt.s32.totalorder %v101, 150
  %vm4974 = vcmp.lt.s32.totalorder %v102, 150
  %vm4975 = vcmp.lt.s32.totalorder %v103, 150
  %vm4976 = vcmp.lt.s32.totalorder %v104, 150
  %vm4977 = vcmp.lt.s32.totalorder %v105, 150
  %vm4978 = vcmp.lt.s32.totalorder %v106, 150
  %vm4979 = vcmp.lt.s32.totalorder %v107, 150
  %vm4980 = vcmp.lt.s32.totalorder %v108, 150
  %vm4981 = vcmp.lt.s32.totalorder %v109, 150
  %vm4982 = vmand %vm4830, %vm4906
  %vm4983 = vmand %vm4831, %vm4907
  %vm4984 = vmand %vm4832, %vm4908
  %vm4985 = vmand %vm4833, %vm4909
  %vm4986 = vmand %vm4834, %vm4910
  %vm4987 = vmand %vm4835, %vm4911
  %vm4988 = vmand %vm4836, %vm4912
  %vm4989 = vmand %vm4837, %vm4913
  %vm4990 = vmand %vm4838, %vm4914
  %vm4991 = vmand %vm4839, %vm4915
  %vm4992 = vmand %vm4840, %vm4916
  %vm4993 = vmand %vm4841, %vm4917
  %vm4994 = vmand %vm4842, %vm4918
  %vm4995 = vmand %vm4843, %vm4919
  %vm4996 = vmand %vm4844, %vm4920
  %vm4997 = vmand %vm4845, %vm4921
  %vm4998 = vmand %vm4846, %vm4922
  %vm4999 = vmand %vm4847, %vm4923
  %vm5000 = vmand %vm4848, %vm4924
  %vm5001 = vmand %vm4849, %vm4925
  %vm5002 = vmand %vm4850, %vm4926
  %vm5003 = vmand %vm4851, %vm4927
  %vm5004 = vmand %vm4852, %vm4928
  %vm5005 = vmand %vm4853, %vm4929
  %vm5006 = vmand %vm4854, %vm4930
  %vm5007 = vmand %vm4855, %vm4931
  %vm5008 = vmand %vm4856, %vm4932
  %vm5009 = vmand %vm4857, %vm4933
  %vm5010 = vmand %vm4858, %vm4934
  %vm5011 = vmand %vm4859, %vm4935
  %vm5012 = vmand %vm4860, %vm4936
  %vm5013 = vmand %vm4861, %vm4937
  %vm5014 = vmand %vm4862, %vm4938
  %vm5015 = vmand %vm4863, %vm4939
  %vm5016 = vmand %vm4864, %vm4940
  %vm5017 = vmand %vm4865, %vm4941
  %vm5018 = vmand %vm4866, %vm4942
  %vm5019 = vmand %vm4867, %vm4943
  %vm5020 = vmand %vm4868, %vm4944
  %vm5021 = vmand %vm4869, %vm4945
  %vm5022 = vmand %vm4870, %vm4946
  %vm5023 = vmand %vm4871, %vm4947
  %vm5024 = vmand %vm4872, %vm4948
  %vm5025 = vmand %vm4873, %vm4949
  %vm5026 = vmand %vm4874, %vm4950
  %vm5027 = vmand %vm4875, %vm4951
  %vm5028 = vmand %vm4876, %vm4952
  %vm5029 = vmand %vm4877, %vm4953
  %vm5030 = vmand %vm4878, %vm4954
  %vm5031 = vmand %vm4879, %vm4955
  %vm5032 = vmand %vm4880, %vm4956
  %vm5033 = vmand %vm4881, %vm4957
  %vm5034 = vmand %vm4882, %vm4958
  %vm5035 = vmand %vm4883, %vm4959
  %vm5036 = vmand %vm4884, %vm4960
  %vm5037 = vmand %vm4885, %vm4961
  %vm5038 = vmand %vm4886, %vm4962
  %vm5039 = vmand %vm4887, %vm4963
  %vm5040 = vmand %vm4888, %vm4964
  %vm5041 = vmand %vm4889, %vm4965
  %vm5042 = vmand %vm4890, %vm4966
  %vm5043 = vmand %vm4891, %vm4967
  %vm5044 = vmand %vm4892, %vm4968
  %vm5045 = vmand %vm4893, %vm4969
  %vm5046 = vmand %vm4894, %vm4970
  %vm5047 = vmand %vm4895, %vm4971
  %vm5048 = vmand %vm4896, %vm4972
  %vm5049 = vmand %vm4897, %vm4973
  %vm5050 = vmand %vm4898, %vm4974
  %vm5051 = vmand %vm4899, %vm4975
  %vm5052 = vmand %vm4900, %vm4976
  %vm5053 = vmand %vm4901, %vm4977
  %vm5054 = vmand %vm4902, %vm4978
  %vm5055 = vmand %vm4903, %vm4979
  %vm5056 = vmand %vm4904, %vm4980
  %vm5057 = vmand %vm4905, %vm4981
  %v5058 = vsel %vm4982, %v4754, 0.0
  %v5059 = vsel %vm4983, %v4755, 0.0
  %v5060 = vsel %vm4984, %v4756, 0.0
  %v5061 = vsel %vm4985, %v4757, 0.0
  %v5062 = vsel %vm4986, %v4758, 0.0
  %v5063 = vsel %vm4987, %v4759, 0.0
  %v5064 = vsel %vm4988, %v4760, 0.0
  %v5065 = vsel %vm4989, %v4761, 0.0
  %v5066 = vsel %vm4990, %v4762, 0.0
  %v5067 = vsel %vm4991, %v4763, 0.0
  %v5068 = vsel %vm4992, %v4764, 0.0
  %v5069 = vsel %vm4993, %v4765, 0.0
  %v5070 = vsel %vm4994, %v4766, 0.0
  %v5071 = vsel %vm4995, %v4767, 0.0
  %v5072 = vsel %vm4996, %v4768, 0.0
  %v5073 = vsel %vm4997, %v4769, 0.0
  %v5074 = vsel %vm4998, %v4770, 0.0
  %v5075 = vsel %vm4999, %v4771, 0.0
  %v5076 = vsel %vm5000, %v4772, 0.0
  %v5077 = vsel %vm5001, %v4773, 0.0
  %v5078 = vsel %vm5002, %v4774, 0.0
  %v5079 = vsel %vm5003, %v4775, 0.0
  %v5080 = vsel %vm5004, %v4776, 0.0
  %v5081 = vsel %vm5005, %v4777, 0.0
  %v5082 = vsel %vm5006, %v4778, 0.0
  %v5083 = vsel %vm5007, %v4779, 0.0
  %v5084 = vsel %vm5008, %v4780, 0.0
  %v5085 = vsel %vm5009, %v4781, 0.0
  %v5086 = vsel %vm5010, %v4782, 0.0
  %v5087 = vsel %vm5011, %v4783, 0.0
  %v5088 = vsel %vm5012, %v4784, 0.0
  %v5089 = vsel %vm5013, %v4785, 0.0
  %v5090 = vsel %vm5014, %v4786, 0.0
  %v5091 = vsel %vm5015, %v4787, 0.0
  %v5092 = vsel %vm5016, %v4788, 0.0
  %v5093 = vsel %vm5017, %v4789, 0.0
  %v5094 = vsel %vm5018, %v4790, 0.0
  %v5095 = vsel %vm5019, %v4791, 0.0
  %v5096 = vsel %vm5020, %v4792, 0.0
  %v5097 = vsel %vm5021, %v4793, 0.0
  %v5098 = vsel %vm5022, %v4794, 0.0
  %v5099 = vsel %vm5023, %v4795, 0.0
  %v5100 = vsel %vm5024, %v4796, 0.0
  %v5101 = vsel %vm5025, %v4797, 0.0
  %v5102 = vsel %vm5026, %v4798, 0.0
  %v5103 = vsel %vm5027, %v4799, 0.0
  %v5104 = vsel %vm5028, %v4800, 0.0
  %v5105 = vsel %vm5029, %v4801, 0.0
  %v5106 = vsel %vm5030, %v4802, 0.0
  %v5107 = vsel %vm5031, %v4803, 0.0
  %v5108 = vsel %vm5032, %v4804, 0.0
  %v5109 = vsel %vm5033, %v4805, 0.0
  %v5110 = vsel %vm5034, %v4806, 0.0
  %v5111 = vsel %vm5035, %v4807, 0.0
  %v5112 = vsel %vm5036, %v4808, 0.0
  %v5113 = vsel %vm5037, %v4809, 0.0
  %v5114 = vsel %vm5038, %v4810, 0.0
  %v5115 = vsel %vm5039, %v4811, 0.0
  %v5116 = vsel %vm5040, %v4812, 0.0
  %v5117 = vsel %vm5041, %v4813, 0.0
  %v5118 = vsel %vm5042, %v4814, 0.0
  %v5119 = vsel %vm5043, %v4815, 0.0
  %v5120 = vsel %vm5044, %v4816, 0.0
  %v5121 = vsel %vm5045, %v4817, 0.0
  %v5122 = vsel %vm5046, %v4818, 0.0
  %v5123 = vsel %vm5047, %v4819, 0.0
  %v5124 = vsel %vm5048, %v4820, 0.0
  %v5125 = vsel %vm5049, %v4821, 0.0
  %v5126 = vsel %vm5050, %v4822, 0.0
  %v5127 = vsel %vm5051, %v4823, 0.0
  %v5128 = vsel %vm5052, %v4824, 0.0
  %v5129 = vsel %vm5053, %v4825, 0.0
  %v5130 = vsel %vm5054, %v4826, 0.0
  %v5131 = vsel %vm5055, %v4827, 0.0
  %v5132 = vsel %vm5056, %v4828, 0.0
  %v5133 = vsel %vm5057, %v4829, 0.0
  %v5134 = vsel %vm1696, %v5058, -inf
  %v5135 = vsel %vm1696, %v5059, -inf
  %v5136 = vsel %vm1696, %v5060, -inf
  %v5137 = vsel %vm1696, %v5061, -inf
  %v5138 = vsel %vm1696, %v5062, -inf
  %v5139 = vmax.f32 %v5134, %v5138
  %v5140 = vsel %vm1696, %v5063, -inf
  %v5141 = vmax.f32 %v5135, %v5140
  %v5142 = vsel %vm1696, %v5064, -inf
  %v5143 = vmax.f32 %v5136, %v5142
  %v5144 = vsel %vm1696, %v5065, -inf
  %v5145 = vmax.f32 %v5137, %v5144
  %v5146 = vsel %vm1696, %v5066, -inf
  %v5147 = vmax.f32 %v5139, %v5146
  %v5148 = vsel %vm1696, %v5067, -inf
  %v5149 = vmax.f32 %v5141, %v5148
  %v5150 = vsel %vm1696, %v5068, -inf
  %v5151 = vmax.f32 %v5143, %v5150
  %v5152 = vsel %vm1696, %v5069, -inf
  %v5153 = vmax.f32 %v5145, %v5152
  %v5154 = vsel %vm1696, %v5070, -inf
  %v5155 = vmax.f32 %v5147, %v5154
  %v5156 = vsel %vm1696, %v5071, -inf
  %v5157 = vmax.f32 %v5149, %v5156
  %v5158 = vsel %vm1696, %v5072, -inf
  %v5159 = vmax.f32 %v5151, %v5158
  %v5160 = vsel %vm1696, %v5073, -inf
  %v5161 = vmax.f32 %v5153, %v5160
  %v5162 = vsel %vm1696, %v5074, -inf
  %v5163 = vmax.f32 %v5155, %v5162
  %v5164 = vsel %vm1696, %v5075, -inf
  %v5165 = vmax.f32 %v5157, %v5164
  %v5166 = vsel %vm1696, %v5076, -inf
  %v5167 = vmax.f32 %v5159, %v5166
  %v5168 = vsel %vm1696, %v5077, -inf
  %v5169 = vmax.f32 %v5161, %v5168
  %v5170 = vsel %vm1696, %v5078, -inf
  %v5171 = vmax.f32 %v5163, %v5170
  %v5172 = vsel %vm1696, %v5079, -inf
  %v5173 = vmax.f32 %v5165, %v5172
  %v5174 = vsel %vm1696, %v5080, -inf
  %v5175 = vmax.f32 %v5167, %v5174
  %v5176 = vsel %vm1696, %v5081, -inf
  %v5177 = vmax.f32 %v5169, %v5176
  %v5178 = vsel %vm1696, %v5082, -inf
  %v5179 = vmax.f32 %v5171, %v5178
  %v5180 = vsel %vm1696, %v5083, -inf
  %v5181 = vmax.f32 %v5173, %v5180
  %v5182 = vsel %vm1696, %v5084, -inf
  %v5183 = vmax.f32 %v5175, %v5182
  %v5184 = vsel %vm1696, %v5085, -inf
  %v5185 = vmax.f32 %v5177, %v5184
  %v5186 = vsel %vm1696, %v5086, -inf
  %v5187 = vmax.f32 %v5179, %v5186
  %v5188 = vsel %vm1696, %v5087, -inf
  %v5189 = vmax.f32 %v5181, %v5188
  %v5190 = vsel %vm1696, %v5088, -inf
  %v5191 = vmax.f32 %v5183, %v5190
  %v5192 = vsel %vm1696, %v5089, -inf
  %v5193 = vmax.f32 %v5185, %v5192
  %v5194 = vsel %vm1696, %v5090, -inf
  %v5195 = vmax.f32 %v5187, %v5194
  %v5196 = vsel %vm1696, %v5091, -inf
  %v5197 = vmax.f32 %v5189, %v5196
  %v5198 = vsel %vm1696, %v5092, -inf
  %v5199 = vmax.f32 %v5191, %v5198
  %v5200 = vsel %vm1696, %v5093, -inf
  %v5201 = vmax.f32 %v5193, %v5200
  %v5202 = vsel %vm1696, %v5094, -inf
  %v5203 = vmax.f32 %v5195, %v5202
  %v5204 = vsel %vm1696, %v5095, -inf
  %v5205 = vmax.f32 %v5197, %v5204
  %v5206 = vsel %vm1696, %v5096, -inf
  %v5207 = vmax.f32 %v5199, %v5206
  %v5208 = vsel %vm1696, %v5097, -inf
  %v5209 = vmax.f32 %v5201, %v5208
  %v5210 = vsel %vm1696, %v5098, -inf
  %v5211 = vmax.f32 %v5203, %v5210
  %v5212 = vsel %vm1696, %v5099, -inf
  %v5213 = vmax.f32 %v5205, %v5212
  %v5214 = vsel %vm1696, %v5100, -inf
  %v5215 = vmax.f32 %v5207, %v5214
  %v5216 = vsel %vm1696, %v5101, -inf
  %v5217 = vmax.f32 %v5209, %v5216
  %v5218 = vsel %vm1696, %v5102, -inf
  %v5219 = vmax.f32 %v5211, %v5218
  %v5220 = vsel %vm1696, %v5103, -inf
  %v5221 = vmax.f32 %v5213, %v5220
  %v5222 = vsel %vm1696, %v5104, -inf
  %v5223 = vmax.f32 %v5215, %v5222
  %v5224 = vsel %vm1696, %v5105, -inf
  %v5225 = vmax.f32 %v5217, %v5224
  %v5226 = vsel %vm1696, %v5106, -inf
  %v5227 = vmax.f32 %v5219, %v5226
  %v5228 = vsel %vm1696, %v5107, -inf
  %v5229 = vmax.f32 %v5221, %v5228
  %v5230 = vsel %vm1696, %v5108, -inf
  %v5231 = vmax.f32 %v5223, %v5230
  %v5232 = vsel %vm1696, %v5109, -inf
  %v5233 = vmax.f32 %v5225, %v5232
  %v5234 = vsel %vm1696, %v5110, -inf
  %v5235 = vmax.f32 %v5227, %v5234
  %v5236 = vsel %vm1696, %v5111, -inf
  %v5237 = vmax.f32 %v5229, %v5236
  %v5238 = vsel %vm1696, %v5112, -inf
  %v5239 = vmax.f32 %v5231, %v5238
  %v5240 = vsel %vm1696, %v5113, -inf
  %v5241 = vmax.f32 %v5233, %v5240
  %v5242 = vsel %vm1696, %v5114, -inf
  %v5243 = vmax.f32 %v5235, %v5242
  %v5244 = vsel %vm1696, %v5115, -inf
  %v5245 = vmax.f32 %v5237, %v5244
  %v5246 = vsel %vm1696, %v5116, -inf
  %v5247 = vmax.f32 %v5239, %v5246
  %v5248 = vsel %vm1696, %v5117, -inf
  %v5249 = vmax.f32 %v5241, %v5248
  %v5250 = vsel %vm1696, %v5118, -inf
  %v5251 = vmax.f32 %v5243, %v5250
  %v5252 = vsel %vm1696, %v5119, -inf
  %v5253 = vmax.f32 %v5245, %v5252
  %v5254 = vsel %vm1696, %v5120, -inf
  %v5255 = vmax.f32 %v5247, %v5254
  %v5256 = vsel %vm1696, %v5121, -inf
  %v5257 = vmax.f32 %v5249, %v5256
  %v5258 = vsel %vm1696, %v5122, -inf
  %v5259 = vmax.f32 %v5251, %v5258
  %v5260 = vsel %vm1696, %v5123, -inf
  %v5261 = vmax.f32 %v5253, %v5260
  %v5262 = vsel %vm1696, %v5124, -inf
  %v5263 = vmax.f32 %v5255, %v5262
  %v5264 = vsel %vm1696, %v5125, -inf
  %v5265 = vmax.f32 %v5257, %v5264
  %v5266 = vsel %vm1696, %v5126, -inf
  %v5267 = vmax.f32 %v5259, %v5266
  %v5268 = vsel %vm1696, %v5127, -inf
  %v5269 = vmax.f32 %v5261, %v5268
  %v5270 = vsel %vm1696, %v5128, -inf
  %v5271 = vmax.f32 %v5263, %v5270
  %v5272 = vsel %vm1696, %v5129, -inf
  %v5273 = vmax.f32 %v5265, %v5272
  %v5274 = vsel %vm1696, %v5130, -inf
  %v5275 = vmax.f32 %v5267, %v5274
  %v5276 = vsel %vm1696, %v5131, -inf
  %v5277 = vmax.f32 %v5269, %v5276
  %v5278 = vsel %vm1696, %v5132, -inf
  %v5279 = vmax.f32 %v5271, %v5278
  %v5280 = vsel %vm1846, %v5133, -inf
  %v5281 = vmax.f32 %v5273, %v5280
  %v5282 = vmax.f32 %v5275, %v5277
  %v5283 = vmax.f32 %v5279, %v5281
  %v5284 = vmax.f32 %v5282, %v5283
  %v5285 = vrot.slane %v5284, 4
  %v5286 = vmax.f32 %v5284, %v5285
  %v5287 = vrot.slane %v5286, 2
  %v5288 = vmax.f32 %v5286, %v5287
  %v5289 = vrot.slane %v5288, 1
  %v5290 = vmax.f32 %v5288, %v5289
  %vm5291 = vcmp.ge.s32.totalorder %v34, 150
  %vm5292 = vcmp.ge.s32.totalorder %v35, 150
  %vm5293 = vcmp.ge.s32.totalorder %v36, 150
  %vm5294 = vcmp.ge.s32.totalorder %v37, 150
  %vm5295 = vcmp.ge.s32.totalorder %v38, 150
  %vm5296 = vcmp.ge.s32.totalorder %v39, 150
  %vm5297 = vcmp.ge.s32.totalorder %v40, 150
  %vm5298 = vcmp.ge.s32.totalorder %v41, 150
  %vm5299 = vcmp.ge.s32.totalorder %v42, 150
  %vm5300 = vcmp.ge.s32.totalorder %v43, 150
  %vm5301 = vcmp.ge.s32.totalorder %v44, 150
  %vm5302 = vcmp.ge.s32.totalorder %v45, 150
  %vm5303 = vcmp.ge.s32.totalorder %v46, 150
  %vm5304 = vcmp.ge.s32.totalorder %v47, 150
  %vm5305 = vcmp.ge.s32.totalorder %v48, 150
  %vm5306 = vcmp.ge.s32.totalorder %v49, 150
  %vm5307 = vcmp.ge.s32.totalorder %v50, 150
  %vm5308 = vcmp.ge.s32.totalorder %v51, 150
  %vm5309 = vcmp.ge.s32.totalorder %v52, 150
  %vm5310 = vcmp.ge.s32.totalorder %v53, 150
  %vm5311 = vcmp.ge.s32.totalorder %v54, 150
  %vm5312 = vcmp.ge.s32.totalorder %v55, 150
  %vm5313 = vcmp.ge.s32.totalorder %v56, 150
  %vm5314 = vcmp.ge.s32.totalorder %v57, 150
  %vm5315 = vcmp.ge.s32.totalorder %v58, 150
  %vm5316 = vcmp.ge.s32.totalorder %v59, 150
  %vm5317 = vcmp.ge.s32.totalorder %v60, 150
  %vm5318 = vcmp.ge.s32.totalorder %v61, 150
  %vm5319 = vcmp.ge.s32.totalorder %v62, 150
  %vm5320 = vcmp.ge.s32.totalorder %v63, 150
  %vm5321 = vcmp.ge.s32.totalorder %v64, 150
  %vm5322 = vcmp.ge.s32.totalorder %v65, 150
  %vm5323 = vcmp.ge.s32.totalorder %v66, 150
  %vm5324 = vcmp.ge.s32.totalorder %v67, 150
  %vm5325 = vcmp.ge.s32.totalorder %v68, 150
  %vm5326 = vcmp.ge.s32.totalorder %v69, 150
  %vm5327 = vcmp.ge.s32.totalorder %v70, 150
  %vm5328 = vcmp.ge.s32.totalorder %v71, 150
  %vm5329 = vcmp.ge.s32.totalorder %v72, 150
  %vm5330 = vcmp.ge.s32.totalorder %v73, 150
  %vm5331 = vcmp.ge.s32.totalorder %v74, 150
  %vm5332 = vcmp.ge.s32.totalorder %v75, 150
  %vm5333 = vcmp.ge.s32.totalorder %v76, 150
  %vm5334 = vcmp.ge.s32.totalorder %v77, 150
  %vm5335 = vcmp.ge.s32.totalorder %v78, 150
  %vm5336 = vcmp.ge.s32.totalorder %v79, 150
  %vm5337 = vcmp.ge.s32.totalorder %v80, 150
  %vm5338 = vcmp.ge.s32.totalorder %v81, 150
  %vm5339 = vcmp.ge.s32.totalorder %v82, 150
  %vm5340 = vcmp.ge.s32.totalorder %v83, 150
  %vm5341 = vcmp.ge.s32.totalorder %v84, 150
  %vm5342 = vcmp.ge.s32.totalorder %v85, 150
  %vm5343 = vcmp.ge.s32.totalorder %v86, 150
  %vm5344 = vcmp.ge.s32.totalorder %v87, 150
  %vm5345 = vcmp.ge.s32.totalorder %v88, 150
  %vm5346 = vcmp.ge.s32.totalorder %v89, 150
  %vm5347 = vcmp.ge.s32.totalorder %v90, 150
  %vm5348 = vcmp.ge.s32.totalorder %v91, 150
  %vm5349 = vcmp.ge.s32.totalorder %v92, 150
  %vm5350 = vcmp.ge.s32.totalorder %v93, 150
  %vm5351 = vcmp.ge.s32.totalorder %v94, 150
  %vm5352 = vcmp.ge.s32.totalorder %v95, 150
  %vm5353 = vcmp.ge.s32.totalorder %v96, 150
  %vm5354 = vcmp.ge.s32.totalorder %v97, 150
  %vm5355 = vcmp.ge.s32.totalorder %v98, 150
  %vm5356 = vcmp.ge.s32.totalorder %v99, 150
  %vm5357 = vcmp.ge.s32.totalorder %v100, 150
  %vm5358 = vcmp.ge.s32.totalorder %v101, 150
  %vm5359 = vcmp.ge.s32.totalorder %v102, 150
  %vm5360 = vcmp.ge.s32.totalorder %v103, 150
  %vm5361 = vcmp.ge.s32.totalorder %v104, 150
  %vm5362 = vcmp.ge.s32.totalorder %v105, 150
  %vm5363 = vcmp.ge.s32.totalorder %v106, 150
  %vm5364 = vcmp.ge.s32.totalorder %v107, 150
  %vm5365 = vcmp.ge.s32.totalorder %v108, 150
  %vm5366 = vcmp.ge.s32.totalorder %v109, 150
  %vm5367 = vcmp.lt.s32.totalorder %v34, 300
  %vm5368 = vcmp.lt.s32.totalorder %v35, 300
  %vm5369 = vcmp.lt.s32.totalorder %v36, 300
  %vm5370 = vcmp.lt.s32.totalorder %v37, 300
  %vm5371 = vcmp.lt.s32.totalorder %v38, 300
  %vm5372 = vcmp.lt.s32.totalorder %v39, 300
  %vm5373 = vcmp.lt.s32.totalorder %v40, 300
  %vm5374 = vcmp.lt.s32.totalorder %v41, 300
  %vm5375 = vcmp.lt.s32.totalorder %v42, 300
  %vm5376 = vcmp.lt.s32.totalorder %v43, 300
  %vm5377 = vcmp.lt.s32.totalorder %v44, 300
  %vm5378 = vcmp.lt.s32.totalorder %v45, 300
  %vm5379 = vcmp.lt.s32.totalorder %v46, 300
  %vm5380 = vcmp.lt.s32.totalorder %v47, 300
  %vm5381 = vcmp.lt.s32.totalorder %v48, 300
  %vm5382 = vcmp.lt.s32.totalorder %v49, 300
  %vm5383 = vcmp.lt.s32.totalorder %v50, 300
  %vm5384 = vcmp.lt.s32.totalorder %v51, 300
  %vm5385 = vcmp.lt.s32.totalorder %v52, 300
  %vm5386 = vcmp.lt.s32.totalorder %v53, 300
  %vm5387 = vcmp.lt.s32.totalorder %v54, 300
  %vm5388 = vcmp.lt.s32.totalorder %v55, 300
  %vm5389 = vcmp.lt.s32.totalorder %v56, 300
  %vm5390 = vcmp.lt.s32.totalorder %v57, 300
  %vm5391 = vcmp.lt.s32.totalorder %v58, 300
  %vm5392 = vcmp.lt.s32.totalorder %v59, 300
  %vm5393 = vcmp.lt.s32.totalorder %v60, 300
  %vm5394 = vcmp.lt.s32.totalorder %v61, 300
  %vm5395 = vcmp.lt.s32.totalorder %v62, 300
  %vm5396 = vcmp.lt.s32.totalorder %v63, 300
  %vm5397 = vcmp.lt.s32.totalorder %v64, 300
  %vm5398 = vcmp.lt.s32.totalorder %v65, 300
  %vm5399 = vcmp.lt.s32.totalorder %v66, 300
  %vm5400 = vcmp.lt.s32.totalorder %v67, 300
  %vm5401 = vcmp.lt.s32.totalorder %v68, 300
  %vm5402 = vcmp.lt.s32.totalorder %v69, 300
  %vm5403 = vcmp.lt.s32.totalorder %v70, 300
  %vm5404 = vcmp.lt.s32.totalorder %v71, 300
  %vm5405 = vcmp.lt.s32.totalorder %v72, 300
  %vm5406 = vcmp.lt.s32.totalorder %v73, 300
  %vm5407 = vcmp.lt.s32.totalorder %v74, 300
  %vm5408 = vcmp.lt.s32.totalorder %v75, 300
  %vm5409 = vcmp.lt.s32.totalorder %v76, 300
  %vm5410 = vcmp.lt.s32.totalorder %v77, 300
  %vm5411 = vcmp.lt.s32.totalorder %v78, 300
  %vm5412 = vcmp.lt.s32.totalorder %v79, 300
  %vm5413 = vcmp.lt.s32.totalorder %v80, 300
  %vm5414 = vcmp.lt.s32.totalorder %v81, 300
  %vm5415 = vcmp.lt.s32.totalorder %v82, 300
  %vm5416 = vcmp.lt.s32.totalorder %v83, 300
  %vm5417 = vcmp.lt.s32.totalorder %v84, 300
  %vm5418 = vcmp.lt.s32.totalorder %v85, 300
  %vm5419 = vcmp.lt.s32.totalorder %v86, 300
  %vm5420 = vcmp.lt.s32.totalorder %v87, 300
  %vm5421 = vcmp.lt.s32.totalorder %v88, 300
  %vm5422 = vcmp.lt.s32.totalorder %v89, 300
  %vm5423 = vcmp.lt.s32.totalorder %v90, 300
  %vm5424 = vcmp.lt.s32.totalorder %v91, 300
  %vm5425 = vcmp.lt.s32.totalorder %v92, 300
  %vm5426 = vcmp.lt.s32.totalorder %v93, 300
  %vm5427 = vcmp.lt.s32.totalorder %v94, 300
  %vm5428 = vcmp.lt.s32.totalorder %v95, 300
  %vm5429 = vcmp.lt.s32.totalorder %v96, 300
  %vm5430 = vcmp.lt.s32.totalorder %v97, 300
  %vm5431 = vcmp.lt.s32.totalorder %v98, 300
  %vm5432 = vcmp.lt.s32.totalorder %v99, 300
  %vm5433 = vcmp.lt.s32.totalorder %v100, 300
  %vm5434 = vcmp.lt.s32.totalorder %v101, 300
  %vm5435 = vcmp.lt.s32.totalorder %v102, 300
  %vm5436 = vcmp.lt.s32.totalorder %v103, 300
  %vm5437 = vcmp.lt.s32.totalorder %v104, 300
  %vm5438 = vcmp.lt.s32.totalorder %v105, 300
  %vm5439 = vcmp.lt.s32.totalorder %v106, 300
  %vm5440 = vcmp.lt.s32.totalorder %v107, 300
  %vm5441 = vcmp.lt.s32.totalorder %v108, 300
  %vm5442 = vcmp.lt.s32.totalorder %v109, 300
  %vm5443 = vmand %vm5291, %vm5367
  %vm5444 = vmand %vm5292, %vm5368
  %vm5445 = vmand %vm5293, %vm5369
  %vm5446 = vmand %vm5294, %vm5370
  %vm5447 = vmand %vm5295, %vm5371
  %vm5448 = vmand %vm5296, %vm5372
  %vm5449 = vmand %vm5297, %vm5373
  %vm5450 = vmand %vm5298, %vm5374
  %vm5451 = vmand %vm5299, %vm5375
  %vm5452 = vmand %vm5300, %vm5376
  %vm5453 = vmand %vm5301, %vm5377
  %vm5454 = vmand %vm5302, %vm5378
  %vm5455 = vmand %vm5303, %vm5379
  %vm5456 = vmand %vm5304, %vm5380
  %vm5457 = vmand %vm5305, %vm5381
  %vm5458 = vmand %vm5306, %vm5382
  %vm5459 = vmand %vm5307, %vm5383
  %vm5460 = vmand %vm5308, %vm5384
  %vm5461 = vmand %vm5309, %vm5385
  %vm5462 = vmand %vm5310, %vm5386
  %vm5463 = vmand %vm5311, %vm5387
  %vm5464 = vmand %vm5312, %vm5388
  %vm5465 = vmand %vm5313, %vm5389
  %vm5466 = vmand %vm5314, %vm5390
  %vm5467 = vmand %vm5315, %vm5391
  %vm5468 = vmand %vm5316, %vm5392
  %vm5469 = vmand %vm5317, %vm5393
  %vm5470 = vmand %vm5318, %vm5394
  %vm5471 = vmand %vm5319, %vm5395
  %vm5472 = vmand %vm5320, %vm5396
  %vm5473 = vmand %vm5321, %vm5397
  %vm5474 = vmand %vm5322, %vm5398
  %vm5475 = vmand %vm5323, %vm5399
  %vm5476 = vmand %vm5324, %vm5400
  %vm5477 = vmand %vm5325, %vm5401
  %vm5478 = vmand %vm5326, %vm5402
  %vm5479 = vmand %vm5327, %vm5403
  %vm5480 = vmand %vm5328, %vm5404
  %vm5481 = vmand %vm5329, %vm5405
  %vm5482 = vmand %vm5330, %vm5406
  %vm5483 = vmand %vm5331, %vm5407
  %vm5484 = vmand %vm5332, %vm5408
  %vm5485 = vmand %vm5333, %vm5409
  %vm5486 = vmand %vm5334, %vm5410
  %vm5487 = vmand %vm5335, %vm5411
  %vm5488 = vmand %vm5336, %vm5412
  %vm5489 = vmand %vm5337, %vm5413
  %vm5490 = vmand %vm5338, %vm5414
  %vm5491 = vmand %vm5339, %vm5415
  %vm5492 = vmand %vm5340, %vm5416
  %vm5493 = vmand %vm5341, %vm5417
  %vm5494 = vmand %vm5342, %vm5418
  %vm5495 = vmand %vm5343, %vm5419
  %vm5496 = vmand %vm5344, %vm5420
  %vm5497 = vmand %vm5345, %vm5421
  %vm5498 = vmand %vm5346, %vm5422
  %vm5499 = vmand %vm5347, %vm5423
  %vm5500 = vmand %vm5348, %vm5424
  %vm5501 = vmand %vm5349, %vm5425
  %vm5502 = vmand %vm5350, %vm5426
  %vm5503 = vmand %vm5351, %vm5427
  %vm5504 = vmand %vm5352, %vm5428
  %vm5505 = vmand %vm5353, %vm5429
  %vm5506 = vmand %vm5354, %vm5430
  %vm5507 = vmand %vm5355, %vm5431
  %vm5508 = vmand %vm5356, %vm5432
  %vm5509 = vmand %vm5357, %vm5433
  %vm5510 = vmand %vm5358, %vm5434
  %vm5511 = vmand %vm5359, %vm5435
  %vm5512 = vmand %vm5360, %vm5436
  %vm5513 = vmand %vm5361, %vm5437
  %vm5514 = vmand %vm5362, %vm5438
  %vm5515 = vmand %vm5363, %vm5439
  %vm5516 = vmand %vm5364, %vm5440
  %vm5517 = vmand %vm5365, %vm5441
  %vm5518 = vmand %vm5366, %vm5442
  %v5519 = vsel %vm5443, %v4754, 0.0
  %v5520 = vsel %vm5444, %v4755, 0.0
  %v5521 = vsel %vm5445, %v4756, 0.0
  %v5522 = vsel %vm5446, %v4757, 0.0
  %v5523 = vsel %vm5447, %v4758, 0.0
  %v5524 = vsel %vm5448, %v4759, 0.0
  %v5525 = vsel %vm5449, %v4760, 0.0
  %v5526 = vsel %vm5450, %v4761, 0.0
  %v5527 = vsel %vm5451, %v4762, 0.0
  %v5528 = vsel %vm5452, %v4763, 0.0
  %v5529 = vsel %vm5453, %v4764, 0.0
  %v5530 = vsel %vm5454, %v4765, 0.0
  %v5531 = vsel %vm5455, %v4766, 0.0
  %v5532 = vsel %vm5456, %v4767, 0.0
  %v5533 = vsel %vm5457, %v4768, 0.0
  %v5534 = vsel %vm5458, %v4769, 0.0
  %v5535 = vsel %vm5459, %v4770, 0.0
  %v5536 = vsel %vm5460, %v4771, 0.0
  %v5537 = vsel %vm5461, %v4772, 0.0
  %v5538 = vsel %vm5462, %v4773, 0.0
  %v5539 = vsel %vm5463, %v4774, 0.0
  %v5540 = vsel %vm5464, %v4775, 0.0
  %v5541 = vsel %vm5465, %v4776, 0.0
  %v5542 = vsel %vm5466, %v4777, 0.0
  %v5543 = vsel %vm5467, %v4778, 0.0
  %v5544 = vsel %vm5468, %v4779, 0.0
  %v5545 = vsel %vm5469, %v4780, 0.0
  %v5546 = vsel %vm5470, %v4781, 0.0
  %v5547 = vsel %vm5471, %v4782, 0.0
  %v5548 = vsel %vm5472, %v4783, 0.0
  %v5549 = vsel %vm5473, %v4784, 0.0
  %v5550 = vsel %vm5474, %v4785, 0.0
  %v5551 = vsel %vm5475, %v4786, 0.0
  %v5552 = vsel %vm5476, %v4787, 0.0
  %v5553 = vsel %vm5477, %v4788, 0.0
  %v5554 = vsel %vm5478, %v4789, 0.0
  %v5555 = vsel %vm5479, %v4790, 0.0
  %v5556 = vsel %vm5480, %v4791, 0.0
  %v5557 = vsel %vm5481, %v4792, 0.0
  %v5558 = vsel %vm5482, %v4793, 0.0
  %v5559 = vsel %vm5483, %v4794, 0.0
  %v5560 = vsel %vm5484, %v4795, 0.0
  %v5561 = vsel %vm5485, %v4796, 0.0
  %v5562 = vsel %vm5486, %v4797, 0.0
  %v5563 = vsel %vm5487, %v4798, 0.0
  %v5564 = vsel %vm5488, %v4799, 0.0
  %v5565 = vsel %vm5489, %v4800, 0.0
  %v5566 = vsel %vm5490, %v4801, 0.0
  %v5567 = vsel %vm5491, %v4802, 0.0
  %v5568 = vsel %vm5492, %v4803, 0.0
  %v5569 = vsel %vm5493, %v4804, 0.0
  %v5570 = vsel %vm5494, %v4805, 0.0
  %v5571 = vsel %vm5495, %v4806, 0.0
  %v5572 = vsel %vm5496, %v4807, 0.0
  %v5573 = vsel %vm5497, %v4808, 0.0
  %v5574 = vsel %vm5498, %v4809, 0.0
  %v5575 = vsel %vm5499, %v4810, 0.0
  %v5576 = vsel %vm5500, %v4811, 0.0
  %v5577 = vsel %vm5501, %v4812, 0.0
  %v5578 = vsel %vm5502, %v4813, 0.0
  %v5579 = vsel %vm5503, %v4814, 0.0
  %v5580 = vsel %vm5504, %v4815, 0.0
  %v5581 = vsel %vm5505, %v4816, 0.0
  %v5582 = vsel %vm5506, %v4817, 0.0
  %v5583 = vsel %vm5507, %v4818, 0.0
  %v5584 = vsel %vm5508, %v4819, 0.0
  %v5585 = vsel %vm5509, %v4820, 0.0
  %v5586 = vsel %vm5510, %v4821, 0.0
  %v5587 = vsel %vm5511, %v4822, 0.0
  %v5588 = vsel %vm5512, %v4823, 0.0
  %v5589 = vsel %vm5513, %v4824, 0.0
  %v5590 = vsel %vm5514, %v4825, 0.0
  %v5591 = vsel %vm5515, %v4826, 0.0
  %v5592 = vsel %vm5516, %v4827, 0.0
  %v5593 = vsel %vm5517, %v4828, 0.0
  %v5594 = vsel %vm5518, %v4829, 0.0
  %v5595 = vsel %vm1696, %v5519, -inf
  %v5596 = vsel %vm1696, %v5520, -inf
  %v5597 = vsel %vm1696, %v5521, -inf
  %v5598 = vsel %vm1696, %v5522, -inf
  %v5599 = vsel %vm1696, %v5523, -inf
  %v5600 = vmax.f32 %v5595, %v5599
  %v5601 = vsel %vm1696, %v5524, -inf
  %v5602 = vmax.f32 %v5596, %v5601
  %v5603 = vsel %vm1696, %v5525, -inf
  %v5604 = vmax.f32 %v5597, %v5603
  %v5605 = vsel %vm1696, %v5526, -inf
  %v5606 = vmax.f32 %v5598, %v5605
  %v5607 = vsel %vm1696, %v5527, -inf
  %v5608 = vmax.f32 %v5600, %v5607
  %v5609 = vsel %vm1696, %v5528, -inf
  %v5610 = vmax.f32 %v5602, %v5609
  %v5611 = vsel %vm1696, %v5529, -inf
  %v5612 = vmax.f32 %v5604, %v5611
  %v5613 = vsel %vm1696, %v5530, -inf
  %v5614 = vmax.f32 %v5606, %v5613
  %v5615 = vsel %vm1696, %v5531, -inf
  %v5616 = vmax.f32 %v5608, %v5615
  %v5617 = vsel %vm1696, %v5532, -inf
  %v5618 = vmax.f32 %v5610, %v5617
  %v5619 = vsel %vm1696, %v5533, -inf
  %v5620 = vmax.f32 %v5612, %v5619
  %v5621 = vsel %vm1696, %v5534, -inf
  %v5622 = vmax.f32 %v5614, %v5621
  %v5623 = vsel %vm1696, %v5535, -inf
  %v5624 = vmax.f32 %v5616, %v5623
  %v5625 = vsel %vm1696, %v5536, -inf
  %v5626 = vmax.f32 %v5618, %v5625
  %v5627 = vsel %vm1696, %v5537, -inf
  %v5628 = vmax.f32 %v5620, %v5627
  %v5629 = vsel %vm1696, %v5538, -inf
  %v5630 = vmax.f32 %v5622, %v5629
  %v5631 = vsel %vm1696, %v5539, -inf
  %v5632 = vmax.f32 %v5624, %v5631
  %v5633 = vsel %vm1696, %v5540, -inf
  %v5634 = vmax.f32 %v5626, %v5633
  %v5635 = vsel %vm1696, %v5541, -inf
  %v5636 = vmax.f32 %v5628, %v5635
  %v5637 = vsel %vm1696, %v5542, -inf
  %v5638 = vmax.f32 %v5630, %v5637
  %v5639 = vsel %vm1696, %v5543, -inf
  %v5640 = vmax.f32 %v5632, %v5639
  %v5641 = vsel %vm1696, %v5544, -inf
  %v5642 = vmax.f32 %v5634, %v5641
  %v5643 = vsel %vm1696, %v5545, -inf
  %v5644 = vmax.f32 %v5636, %v5643
  %v5645 = vsel %vm1696, %v5546, -inf
  %v5646 = vmax.f32 %v5638, %v5645
  %v5647 = vsel %vm1696, %v5547, -inf
  %v5648 = vmax.f32 %v5640, %v5647
  %v5649 = vsel %vm1696, %v5548, -inf
  %v5650 = vmax.f32 %v5642, %v5649
  %v5651 = vsel %vm1696, %v5549, -inf
  %v5652 = vmax.f32 %v5644, %v5651
  %v5653 = vsel %vm1696, %v5550, -inf
  %v5654 = vmax.f32 %v5646, %v5653
  %v5655 = vsel %vm1696, %v5551, -inf
  %v5656 = vmax.f32 %v5648, %v5655
  %v5657 = vsel %vm1696, %v5552, -inf
  %v5658 = vmax.f32 %v5650, %v5657
  %v5659 = vsel %vm1696, %v5553, -inf
  %v5660 = vmax.f32 %v5652, %v5659
  %v5661 = vsel %vm1696, %v5554, -inf
  %v5662 = vmax.f32 %v5654, %v5661
  %v5663 = vsel %vm1696, %v5555, -inf
  %v5664 = vmax.f32 %v5656, %v5663
  %v5665 = vsel %vm1696, %v5556, -inf
  %v5666 = vmax.f32 %v5658, %v5665
  %v5667 = vsel %vm1696, %v5557, -inf
  %v5668 = vmax.f32 %v5660, %v5667
  %v5669 = vsel %vm1696, %v5558, -inf
  %v5670 = vmax.f32 %v5662, %v5669
  %v5671 = vsel %vm1696, %v5559, -inf
  %v5672 = vmax.f32 %v5664, %v5671
  %v5673 = vsel %vm1696, %v5560, -inf
  %v5674 = vmax.f32 %v5666, %v5673
  %v5675 = vsel %vm1696, %v5561, -inf
  %v5676 = vmax.f32 %v5668, %v5675
  %v5677 = vsel %vm1696, %v5562, -inf
  %v5678 = vmax.f32 %v5670, %v5677
  %v5679 = vsel %vm1696, %v5563, -inf
  %v5680 = vmax.f32 %v5672, %v5679
  %v5681 = vsel %vm1696, %v5564, -inf
  %v5682 = vmax.f32 %v5674, %v5681
  %v5683 = vsel %vm1696, %v5565, -inf
  %v5684 = vmax.f32 %v5676, %v5683
  %v5685 = vsel %vm1696, %v5566, -inf
  %v5686 = vmax.f32 %v5678, %v5685
  %v5687 = vsel %vm1696, %v5567, -inf
  %v5688 = vmax.f32 %v5680, %v5687
  %v5689 = vsel %vm1696, %v5568, -inf
  %v5690 = vmax.f32 %v5682, %v5689
  %v5691 = vsel %vm1696, %v5569, -inf
  %v5692 = vmax.f32 %v5684, %v5691
  %v5693 = vsel %vm1696, %v5570, -inf
  %v5694 = vmax.f32 %v5686, %v5693
  %v5695 = vsel %vm1696, %v5571, -inf
  %v5696 = vmax.f32 %v5688, %v5695
  %v5697 = vsel %vm1696, %v5572, -inf
  %v5698 = vmax.f32 %v5690, %v5697
  %v5699 = vsel %vm1696, %v5573, -inf
  %v5700 = vmax.f32 %v5692, %v5699
  %v5701 = vsel %vm1696, %v5574, -inf
  %v5702 = vmax.f32 %v5694, %v5701
  %v5703 = vsel %vm1696, %v5575, -inf
  %v5704 = vmax.f32 %v5696, %v5703
  %v5705 = vsel %vm1696, %v5576, -inf
  %v5706 = vmax.f32 %v5698, %v5705
  %v5707 = vsel %vm1696, %v5577, -inf
  %v5708 = vmax.f32 %v5700, %v5707
  %v5709 = vsel %vm1696, %v5578, -inf
  %v5710 = vmax.f32 %v5702, %v5709
  %v5711 = vsel %vm1696, %v5579, -inf
  %v5712 = vmax.f32 %v5704, %v5711
  %v5713 = vsel %vm1696, %v5580, -inf
  %v5714 = vmax.f32 %v5706, %v5713
  %v5715 = vsel %vm1696, %v5581, -inf
  %v5716 = vmax.f32 %v5708, %v5715
  %v5717 = vsel %vm1696, %v5582, -inf
  %v5718 = vmax.f32 %v5710, %v5717
  %v5719 = vsel %vm1696, %v5583, -inf
  %v5720 = vmax.f32 %v5712, %v5719
  %v5721 = vsel %vm1696, %v5584, -inf
  %v5722 = vmax.f32 %v5714, %v5721
  %v5723 = vsel %vm1696, %v5585, -inf
  %v5724 = vmax.f32 %v5716, %v5723
  %v5725 = vsel %vm1696, %v5586, -inf
  %v5726 = vmax.f32 %v5718, %v5725
  %v5727 = vsel %vm1696, %v5587, -inf
  %v5728 = vmax.f32 %v5720, %v5727
  %v5729 = vsel %vm1696, %v5588, -inf
  %v5730 = vmax.f32 %v5722, %v5729
  %v5731 = vsel %vm1696, %v5589, -inf
  %v5732 = vmax.f32 %v5724, %v5731
  %v5733 = vsel %vm1696, %v5590, -inf
  %v5734 = vmax.f32 %v5726, %v5733
  %v5735 = vsel %vm1696, %v5591, -inf
  %v5736 = vmax.f32 %v5728, %v5735
  %v5737 = vsel %vm1696, %v5592, -inf
  %v5738 = vmax.f32 %v5730, %v5737
  %v5739 = vsel %vm1696, %v5593, -inf
  %v5740 = vmax.f32 %v5732, %v5739
  %v5741 = vsel %vm1846, %v5594, -inf
  %v5742 = vmax.f32 %v5734, %v5741
  %v5743 = vmax.f32 %v5736, %v5738
  %v5744 = vmax.f32 %v5740, %v5742
  %v5745 = vmax.f32 %v5743, %v5744
  %v5746 = vrot.slane %v5745, 4
  %v5747 = vmax.f32 %v5745, %v5746
  %v5748 = vrot.slane %v5747, 2
  %v5749 = vmax.f32 %v5747, %v5748
  %v5750 = vrot.slane %v5749, 1
  %v5751 = vmax.f32 %v5749, %v5750
  %vm5752 = vcmp.ge.s32.totalorder %v34, 302
  %vm5753 = vcmp.ge.s32.totalorder %v35, 302
  %vm5754 = vcmp.ge.s32.totalorder %v36, 302
  %vm5755 = vcmp.ge.s32.totalorder %v37, 302
  %vm5756 = vcmp.ge.s32.totalorder %v38, 302
  %vm5757 = vcmp.ge.s32.totalorder %v39, 302
  %vm5758 = vcmp.ge.s32.totalorder %v40, 302
  %vm5759 = vcmp.ge.s32.totalorder %v41, 302
  %vm5760 = vcmp.ge.s32.totalorder %v42, 302
  %vm5761 = vcmp.ge.s32.totalorder %v43, 302
  %vm5762 = vcmp.ge.s32.totalorder %v44, 302
  %vm5763 = vcmp.ge.s32.totalorder %v45, 302
  %vm5764 = vcmp.ge.s32.totalorder %v46, 302
  %vm5765 = vcmp.ge.s32.totalorder %v47, 302
  %vm5766 = vcmp.ge.s32.totalorder %v48, 302
  %vm5767 = vcmp.ge.s32.totalorder %v49, 302
  %vm5768 = vcmp.ge.s32.totalorder %v50, 302
  %vm5769 = vcmp.ge.s32.totalorder %v51, 302
  %vm5770 = vcmp.ge.s32.totalorder %v52, 302
  %vm5771 = vcmp.ge.s32.totalorder %v53, 302
  %vm5772 = vcmp.ge.s32.totalorder %v54, 302
  %vm5773 = vcmp.ge.s32.totalorder %v55, 302
  %vm5774 = vcmp.ge.s32.totalorder %v56, 302
  %vm5775 = vcmp.ge.s32.totalorder %v57, 302
  %vm5776 = vcmp.ge.s32.totalorder %v58, 302
  %vm5777 = vcmp.ge.s32.totalorder %v59, 302
  %vm5778 = vcmp.ge.s32.totalorder %v60, 302
  %vm5779 = vcmp.ge.s32.totalorder %v61, 302
  %vm5780 = vcmp.ge.s32.totalorder %v62, 302
  %vm5781 = vcmp.ge.s32.totalorder %v63, 302
  %vm5782 = vcmp.ge.s32.totalorder %v64, 302
  %vm5783 = vcmp.ge.s32.totalorder %v65, 302
  %vm5784 = vcmp.ge.s32.totalorder %v66, 302
  %vm5785 = vcmp.ge.s32.totalorder %v67, 302
  %vm5786 = vcmp.ge.s32.totalorder %v68, 302
  %vm5787 = vcmp.ge.s32.totalorder %v69, 302
  %vm5788 = vcmp.ge.s32.totalorder %v70, 302
  %vm5789 = vcmp.ge.s32.totalorder %v71, 302
  %vm5790 = vcmp.ge.s32.totalorder %v72, 302
  %vm5791 = vcmp.ge.s32.totalorder %v73, 302
  %vm5792 = vcmp.ge.s32.totalorder %v74, 302
  %vm5793 = vcmp.ge.s32.totalorder %v75, 302
  %vm5794 = vcmp.ge.s32.totalorder %v76, 302
  %vm5795 = vcmp.ge.s32.totalorder %v77, 302
  %vm5796 = vcmp.ge.s32.totalorder %v78, 302
  %vm5797 = vcmp.ge.s32.totalorder %v79, 302
  %vm5798 = vcmp.ge.s32.totalorder %v80, 302
  %vm5799 = vcmp.ge.s32.totalorder %v81, 302
  %vm5800 = vcmp.ge.s32.totalorder %v82, 302
  %vm5801 = vcmp.ge.s32.totalorder %v83, 302
  %vm5802 = vcmp.ge.s32.totalorder %v84, 302
  %vm5803 = vcmp.ge.s32.totalorder %v85, 302
  %vm5804 = vcmp.ge.s32.totalorder %v86, 302
  %vm5805 = vcmp.ge.s32.totalorder %v87, 302
  %vm5806 = vcmp.ge.s32.totalorder %v88, 302
  %vm5807 = vcmp.ge.s32.totalorder %v89, 302
  %vm5808 = vcmp.ge.s32.totalorder %v90, 302
  %vm5809 = vcmp.ge.s32.totalorder %v91, 302
  %vm5810 = vcmp.ge.s32.totalorder %v92, 302
  %vm5811 = vcmp.ge.s32.totalorder %v93, 302
  %vm5812 = vcmp.ge.s32.totalorder %v94, 302
  %vm5813 = vcmp.ge.s32.totalorder %v95, 302
  %vm5814 = vcmp.ge.s32.totalorder %v96, 302
  %vm5815 = vcmp.ge.s32.totalorder %v97, 302
  %vm5816 = vcmp.ge.s32.totalorder %v98, 302
  %vm5817 = vcmp.ge.s32.totalorder %v99, 302
  %vm5818 = vcmp.ge.s32.totalorder %v100, 302
  %vm5819 = vcmp.ge.s32.totalorder %v101, 302
  %vm5820 = vcmp.ge.s32.totalorder %v102, 302
  %vm5821 = vcmp.ge.s32.totalorder %v103, 302
  %vm5822 = vcmp.ge.s32.totalorder %v104, 302
  %vm5823 = vcmp.ge.s32.totalorder %v105, 302
  %vm5824 = vcmp.ge.s32.totalorder %v106, 302
  %vm5825 = vcmp.ge.s32.totalorder %v107, 302
  %vm5826 = vcmp.ge.s32.totalorder %v108, 302
  %vm5827 = vcmp.ge.s32.totalorder %v109, 302
  %vm5828 = vcmp.lt.s32.totalorder %v34, 452
  %vm5829 = vcmp.lt.s32.totalorder %v35, 452
  %vm5830 = vcmp.lt.s32.totalorder %v36, 452
  %vm5831 = vcmp.lt.s32.totalorder %v37, 452
  %vm5832 = vcmp.lt.s32.totalorder %v38, 452
  %vm5833 = vcmp.lt.s32.totalorder %v39, 452
  %vm5834 = vcmp.lt.s32.totalorder %v40, 452
  %vm5835 = vcmp.lt.s32.totalorder %v41, 452
  %vm5836 = vcmp.lt.s32.totalorder %v42, 452
  %vm5837 = vcmp.lt.s32.totalorder %v43, 452
  %vm5838 = vcmp.lt.s32.totalorder %v44, 452
  %vm5839 = vcmp.lt.s32.totalorder %v45, 452
  %vm5840 = vcmp.lt.s32.totalorder %v46, 452
  %vm5841 = vcmp.lt.s32.totalorder %v47, 452
  %vm5842 = vcmp.lt.s32.totalorder %v48, 452
  %vm5843 = vcmp.lt.s32.totalorder %v49, 452
  %vm5844 = vcmp.lt.s32.totalorder %v50, 452
  %vm5845 = vcmp.lt.s32.totalorder %v51, 452
  %vm5846 = vcmp.lt.s32.totalorder %v52, 452
  %vm5847 = vcmp.lt.s32.totalorder %v53, 452
  %vm5848 = vcmp.lt.s32.totalorder %v54, 452
  %vm5849 = vcmp.lt.s32.totalorder %v55, 452
  %vm5850 = vcmp.lt.s32.totalorder %v56, 452
  %vm5851 = vcmp.lt.s32.totalorder %v57, 452
  %vm5852 = vcmp.lt.s32.totalorder %v58, 452
  %vm5853 = vcmp.lt.s32.totalorder %v59, 452
  %vm5854 = vcmp.lt.s32.totalorder %v60, 452
  %vm5855 = vcmp.lt.s32.totalorder %v61, 452
  %vm5856 = vcmp.lt.s32.totalorder %v62, 452
  %vm5857 = vcmp.lt.s32.totalorder %v63, 452
  %vm5858 = vcmp.lt.s32.totalorder %v64, 452
  %vm5859 = vcmp.lt.s32.totalorder %v65, 452
  %vm5860 = vcmp.lt.s32.totalorder %v66, 452
  %vm5861 = vcmp.lt.s32.totalorder %v67, 452
  %vm5862 = vcmp.lt.s32.totalorder %v68, 452
  %vm5863 = vcmp.lt.s32.totalorder %v69, 452
  %vm5864 = vcmp.lt.s32.totalorder %v70, 452
  %vm5865 = vcmp.lt.s32.totalorder %v71, 452
  %vm5866 = vcmp.lt.s32.totalorder %v72, 452
  %vm5867 = vcmp.lt.s32.totalorder %v73, 452
  %vm5868 = vcmp.lt.s32.totalorder %v74, 452
  %vm5869 = vcmp.lt.s32.totalorder %v75, 452
  %vm5870 = vcmp.lt.s32.totalorder %v76, 452
  %vm5871 = vcmp.lt.s32.totalorder %v77, 452
  %vm5872 = vcmp.lt.s32.totalorder %v78, 452
  %vm5873 = vcmp.lt.s32.totalorder %v79, 452
  %vm5874 = vcmp.lt.s32.totalorder %v80, 452
  %vm5875 = vcmp.lt.s32.totalorder %v81, 452
  %vm5876 = vcmp.lt.s32.totalorder %v82, 452
  %vm5877 = vcmp.lt.s32.totalorder %v83, 452
  %vm5878 = vcmp.lt.s32.totalorder %v84, 452
  %vm5879 = vcmp.lt.s32.totalorder %v85, 452
  %vm5880 = vcmp.lt.s32.totalorder %v86, 452
  %vm5881 = vcmp.lt.s32.totalorder %v87, 452
  %vm5882 = vcmp.lt.s32.totalorder %v88, 452
  %vm5883 = vcmp.lt.s32.totalorder %v89, 452
  %vm5884 = vcmp.lt.s32.totalorder %v90, 452
  %vm5885 = vcmp.lt.s32.totalorder %v91, 452
  %vm5886 = vcmp.lt.s32.totalorder %v92, 452
  %vm5887 = vcmp.lt.s32.totalorder %v93, 452
  %vm5888 = vcmp.lt.s32.totalorder %v94, 452
  %vm5889 = vcmp.lt.s32.totalorder %v95, 452
  %vm5890 = vcmp.lt.s32.totalorder %v96, 452
  %vm5891 = vcmp.lt.s32.totalorder %v97, 452
  %vm5892 = vcmp.lt.s32.totalorder %v98, 452
  %vm5893 = vcmp.lt.s32.totalorder %v99, 452
  %vm5894 = vcmp.lt.s32.totalorder %v100, 452
  %vm5895 = vcmp.lt.s32.totalorder %v101, 452
  %vm5896 = vcmp.lt.s32.totalorder %v102, 452
  %vm5897 = vcmp.lt.s32.totalorder %v103, 452
  %vm5898 = vcmp.lt.s32.totalorder %v104, 452
  %vm5899 = vcmp.lt.s32.totalorder %v105, 452
  %vm5900 = vcmp.lt.s32.totalorder %v106, 452
  %vm5901 = vcmp.lt.s32.totalorder %v107, 452
  %vm5902 = vcmp.lt.s32.totalorder %v108, 452
  %vm5903 = vcmp.lt.s32.totalorder %v109, 452
  %vm5904 = vmand %vm5752, %vm5828
  %vm5905 = vmand %vm5753, %vm5829
  %vm5906 = vmand %vm5754, %vm5830
  %vm5907 = vmand %vm5755, %vm5831
  %vm5908 = vmand %vm5756, %vm5832
  %vm5909 = vmand %vm5757, %vm5833
  %vm5910 = vmand %vm5758, %vm5834
  %vm5911 = vmand %vm5759, %vm5835
  %vm5912 = vmand %vm5760, %vm5836
  %vm5913 = vmand %vm5761, %vm5837
  %vm5914 = vmand %vm5762, %vm5838
  %vm5915 = vmand %vm5763, %vm5839
  %vm5916 = vmand %vm5764, %vm5840
  %vm5917 = vmand %vm5765, %vm5841
  %vm5918 = vmand %vm5766, %vm5842
  %vm5919 = vmand %vm5767, %vm5843
  %vm5920 = vmand %vm5768, %vm5844
  %vm5921 = vmand %vm5769, %vm5845
  %vm5922 = vmand %vm5770, %vm5846
  %vm5923 = vmand %vm5771, %vm5847
  %vm5924 = vmand %vm5772, %vm5848
  %vm5925 = vmand %vm5773, %vm5849
  %vm5926 = vmand %vm5774, %vm5850
  %vm5927 = vmand %vm5775, %vm5851
  %vm5928 = vmand %vm5776, %vm5852
  %vm5929 = vmand %vm5777, %vm5853
  %vm5930 = vmand %vm5778, %vm5854
  %vm5931 = vmand %vm5779, %vm5855
  %vm5932 = vmand %vm5780, %vm5856
  %vm5933 = vmand %vm5781, %vm5857
  %vm5934 = vmand %vm5782, %vm5858
  %vm5935 = vmand %vm5783, %vm5859
  %vm5936 = vmand %vm5784, %vm5860
  %vm5937 = vmand %vm5785, %vm5861
  %vm5938 = vmand %vm5786, %vm5862
  %vm5939 = vmand %vm5787, %vm5863
  %vm5940 = vmand %vm5788, %vm5864
  %vm5941 = vmand %vm5789, %vm5865
  %vm5942 = vmand %vm5790, %vm5866
  %vm5943 = vmand %vm5791, %vm5867
  %vm5944 = vmand %vm5792, %vm5868
  %vm5945 = vmand %vm5793, %vm5869
  %vm5946 = vmand %vm5794, %vm5870
  %vm5947 = vmand %vm5795, %vm5871
  %vm5948 = vmand %vm5796, %vm5872
  %vm5949 = vmand %vm5797, %vm5873
  %vm5950 = vmand %vm5798, %vm5874
  %vm5951 = vmand %vm5799, %vm5875
  %vm5952 = vmand %vm5800, %vm5876
  %vm5953 = vmand %vm5801, %vm5877
  %vm5954 = vmand %vm5802, %vm5878
  %vm5955 = vmand %vm5803, %vm5879
  %vm5956 = vmand %vm5804, %vm5880
  %vm5957 = vmand %vm5805, %vm5881
  %vm5958 = vmand %vm5806, %vm5882
  %vm5959 = vmand %vm5807, %vm5883
  %vm5960 = vmand %vm5808, %vm5884
  %vm5961 = vmand %vm5809, %vm5885
  %vm5962 = vmand %vm5810, %vm5886
  %vm5963 = vmand %vm5811, %vm5887
  %vm5964 = vmand %vm5812, %vm5888
  %vm5965 = vmand %vm5813, %vm5889
  %vm5966 = vmand %vm5814, %vm5890
  %vm5967 = vmand %vm5815, %vm5891
  %vm5968 = vmand %vm5816, %vm5892
  %vm5969 = vmand %vm5817, %vm5893
  %vm5970 = vmand %vm5818, %vm5894
  %vm5971 = vmand %vm5819, %vm5895
  %vm5972 = vmand %vm5820, %vm5896
  %vm5973 = vmand %vm5821, %vm5897
  %vm5974 = vmand %vm5822, %vm5898
  %vm5975 = vmand %vm5823, %vm5899
  %vm5976 = vmand %vm5824, %vm5900
  %vm5977 = vmand %vm5825, %vm5901
  %vm5978 = vmand %vm5826, %vm5902
  %vm5979 = vmand %vm5827, %vm5903
  %v5980 = vsel %vm5904, %v4754, 0.0
  %v5981 = vsel %vm5905, %v4755, 0.0
  %v5982 = vsel %vm5906, %v4756, 0.0
  %v5983 = vsel %vm5907, %v4757, 0.0
  %v5984 = vsel %vm5908, %v4758, 0.0
  %v5985 = vsel %vm5909, %v4759, 0.0
  %v5986 = vsel %vm5910, %v4760, 0.0
  %v5987 = vsel %vm5911, %v4761, 0.0
  %v5988 = vsel %vm5912, %v4762, 0.0
  %v5989 = vsel %vm5913, %v4763, 0.0
  %v5990 = vsel %vm5914, %v4764, 0.0
  %v5991 = vsel %vm5915, %v4765, 0.0
  %v5992 = vsel %vm5916, %v4766, 0.0
  %v5993 = vsel %vm5917, %v4767, 0.0
  %v5994 = vsel %vm5918, %v4768, 0.0
  %v5995 = vsel %vm5919, %v4769, 0.0
  %v5996 = vsel %vm5920, %v4770, 0.0
  %v5997 = vsel %vm5921, %v4771, 0.0
  %v5998 = vsel %vm5922, %v4772, 0.0
  %v5999 = vsel %vm5923, %v4773, 0.0
  %v6000 = vsel %vm5924, %v4774, 0.0
  %v6001 = vsel %vm5925, %v4775, 0.0
  %v6002 = vsel %vm5926, %v4776, 0.0
  %v6003 = vsel %vm5927, %v4777, 0.0
  %v6004 = vsel %vm5928, %v4778, 0.0
  %v6005 = vsel %vm5929, %v4779, 0.0
  %v6006 = vsel %vm5930, %v4780, 0.0
  %v6007 = vsel %vm5931, %v4781, 0.0
  %v6008 = vsel %vm5932, %v4782, 0.0
  %v6009 = vsel %vm5933, %v4783, 0.0
  %v6010 = vsel %vm5934, %v4784, 0.0
  %v6011 = vsel %vm5935, %v4785, 0.0
  %v6012 = vsel %vm5936, %v4786, 0.0
  %v6013 = vsel %vm5937, %v4787, 0.0
  %v6014 = vsel %vm5938, %v4788, 0.0
  %v6015 = vsel %vm5939, %v4789, 0.0
  %v6016 = vsel %vm5940, %v4790, 0.0
  %v6017 = vsel %vm5941, %v4791, 0.0
  %v6018 = vsel %vm5942, %v4792, 0.0
  %v6019 = vsel %vm5943, %v4793, 0.0
  %v6020 = vsel %vm5944, %v4794, 0.0
  %v6021 = vsel %vm5945, %v4795, 0.0
  %v6022 = vsel %vm5946, %v4796, 0.0
  %v6023 = vsel %vm5947, %v4797, 0.0
  %v6024 = vsel %vm5948, %v4798, 0.0
  %v6025 = vsel %vm5949, %v4799, 0.0
  %v6026 = vsel %vm5950, %v4800, 0.0
  %v6027 = vsel %vm5951, %v4801, 0.0
  %v6028 = vsel %vm5952, %v4802, 0.0
  %v6029 = vsel %vm5953, %v4803, 0.0
  %v6030 = vsel %vm5954, %v4804, 0.0
  %v6031 = vsel %vm5955, %v4805, 0.0
  %v6032 = vsel %vm5956, %v4806, 0.0
  %v6033 = vsel %vm5957, %v4807, 0.0
  %v6034 = vsel %vm5958, %v4808, 0.0
  %v6035 = vsel %vm5959, %v4809, 0.0
  %v6036 = vsel %vm5960, %v4810, 0.0
  %v6037 = vsel %vm5961, %v4811, 0.0
  %v6038 = vsel %vm5962, %v4812, 0.0
  %v6039 = vsel %vm5963, %v4813, 0.0
  %v6040 = vsel %vm5964, %v4814, 0.0
  %v6041 = vsel %vm5965, %v4815, 0.0
  %v6042 = vsel %vm5966, %v4816, 0.0
  %v6043 = vsel %vm5967, %v4817, 0.0
  %v6044 = vsel %vm5968, %v4818, 0.0
  %v6045 = vsel %vm5969, %v4819, 0.0
  %v6046 = vsel %vm5970, %v4820, 0.0
  %v6047 = vsel %vm5971, %v4821, 0.0
  %v6048 = vsel %vm5972, %v4822, 0.0
  %v6049 = vsel %vm5973, %v4823, 0.0
  %v6050 = vsel %vm5974, %v4824, 0.0
  %v6051 = vsel %vm5975, %v4825, 0.0
  %v6052 = vsel %vm5976, %v4826, 0.0
  %v6053 = vsel %vm5977, %v4827, 0.0
  %v6054 = vsel %vm5978, %v4828, 0.0
  %v6055 = vsel %vm5979, %v4829, 0.0
  %v6056 = vsel %vm1696, %v5980, -inf
  %v6057 = vsel %vm1696, %v5981, -inf
  %v6058 = vsel %vm1696, %v5982, -inf
  %v6059 = vsel %vm1696, %v5983, -inf
  %v6060 = vsel %vm1696, %v5984, -inf
  %v6061 = vmax.f32 %v6056, %v6060
  %v6062 = vsel %vm1696, %v5985, -inf
  %v6063 = vmax.f32 %v6057, %v6062
  %v6064 = vsel %vm1696, %v5986, -inf
  %v6065 = vmax.f32 %v6058, %v6064
  %v6066 = vsel %vm1696, %v5987, -inf
  %v6067 = vmax.f32 %v6059, %v6066
  %v6068 = vsel %vm1696, %v5988, -inf
  %v6069 = vmax.f32 %v6061, %v6068
  %v6070 = vsel %vm1696, %v5989, -inf
  %v6071 = vmax.f32 %v6063, %v6070
  %v6072 = vsel %vm1696, %v5990, -inf
  %v6073 = vmax.f32 %v6065, %v6072
  %v6074 = vsel %vm1696, %v5991, -inf
  %v6075 = vmax.f32 %v6067, %v6074
  %v6076 = vsel %vm1696, %v5992, -inf
  %v6077 = vmax.f32 %v6069, %v6076
  %v6078 = vsel %vm1696, %v5993, -inf
  %v6079 = vmax.f32 %v6071, %v6078
  %v6080 = vsel %vm1696, %v5994, -inf
  %v6081 = vmax.f32 %v6073, %v6080
  %v6082 = vsel %vm1696, %v5995, -inf
  %v6083 = vmax.f32 %v6075, %v6082
  %v6084 = vsel %vm1696, %v5996, -inf
  %v6085 = vmax.f32 %v6077, %v6084
  %v6086 = vsel %vm1696, %v5997, -inf
  %v6087 = vmax.f32 %v6079, %v6086
  %v6088 = vsel %vm1696, %v5998, -inf
  %v6089 = vmax.f32 %v6081, %v6088
  %v6090 = vsel %vm1696, %v5999, -inf
  %v6091 = vmax.f32 %v6083, %v6090
  %v6092 = vsel %vm1696, %v6000, -inf
  %v6093 = vmax.f32 %v6085, %v6092
  %v6094 = vsel %vm1696, %v6001, -inf
  %v6095 = vmax.f32 %v6087, %v6094
  %v6096 = vsel %vm1696, %v6002, -inf
  %v6097 = vmax.f32 %v6089, %v6096
  %v6098 = vsel %vm1696, %v6003, -inf
  %v6099 = vmax.f32 %v6091, %v6098
  %v6100 = vsel %vm1696, %v6004, -inf
  %v6101 = vmax.f32 %v6093, %v6100
  %v6102 = vsel %vm1696, %v6005, -inf
  %v6103 = vmax.f32 %v6095, %v6102
  %v6104 = vsel %vm1696, %v6006, -inf
  %v6105 = vmax.f32 %v6097, %v6104
  %v6106 = vsel %vm1696, %v6007, -inf
  %v6107 = vmax.f32 %v6099, %v6106
  %v6108 = vsel %vm1696, %v6008, -inf
  %v6109 = vmax.f32 %v6101, %v6108
  %v6110 = vsel %vm1696, %v6009, -inf
  %v6111 = vmax.f32 %v6103, %v6110
  %v6112 = vsel %vm1696, %v6010, -inf
  %v6113 = vmax.f32 %v6105, %v6112
  %v6114 = vsel %vm1696, %v6011, -inf
  %v6115 = vmax.f32 %v6107, %v6114
  %v6116 = vsel %vm1696, %v6012, -inf
  %v6117 = vmax.f32 %v6109, %v6116
  %v6118 = vsel %vm1696, %v6013, -inf
  %v6119 = vmax.f32 %v6111, %v6118
  %v6120 = vsel %vm1696, %v6014, -inf
  %v6121 = vmax.f32 %v6113, %v6120
  %v6122 = vsel %vm1696, %v6015, -inf
  %v6123 = vmax.f32 %v6115, %v6122
  %v6124 = vsel %vm1696, %v6016, -inf
  %v6125 = vmax.f32 %v6117, %v6124
  %v6126 = vsel %vm1696, %v6017, -inf
  %v6127 = vmax.f32 %v6119, %v6126
  %v6128 = vsel %vm1696, %v6018, -inf
  %v6129 = vmax.f32 %v6121, %v6128
  %v6130 = vsel %vm1696, %v6019, -inf
  %v6131 = vmax.f32 %v6123, %v6130
  %v6132 = vsel %vm1696, %v6020, -inf
  %v6133 = vmax.f32 %v6125, %v6132
  %v6134 = vsel %vm1696, %v6021, -inf
  %v6135 = vmax.f32 %v6127, %v6134
  %v6136 = vsel %vm1696, %v6022, -inf
  %v6137 = vmax.f32 %v6129, %v6136
  %v6138 = vsel %vm1696, %v6023, -inf
  %v6139 = vmax.f32 %v6131, %v6138
  %v6140 = vsel %vm1696, %v6024, -inf
  %v6141 = vmax.f32 %v6133, %v6140
  %v6142 = vsel %vm1696, %v6025, -inf
  %v6143 = vmax.f32 %v6135, %v6142
  %v6144 = vsel %vm1696, %v6026, -inf
  %v6145 = vmax.f32 %v6137, %v6144
  %v6146 = vsel %vm1696, %v6027, -inf
  %v6147 = vmax.f32 %v6139, %v6146
  %v6148 = vsel %vm1696, %v6028, -inf
  %v6149 = vmax.f32 %v6141, %v6148
  %v6150 = vsel %vm1696, %v6029, -inf
  %v6151 = vmax.f32 %v6143, %v6150
  %v6152 = vsel %vm1696, %v6030, -inf
  %v6153 = vmax.f32 %v6145, %v6152
  %v6154 = vsel %vm1696, %v6031, -inf
  %v6155 = vmax.f32 %v6147, %v6154
  %v6156 = vsel %vm1696, %v6032, -inf
  %v6157 = vmax.f32 %v6149, %v6156
  %v6158 = vsel %vm1696, %v6033, -inf
  %v6159 = vmax.f32 %v6151, %v6158
  %v6160 = vsel %vm1696, %v6034, -inf
  %v6161 = vmax.f32 %v6153, %v6160
  %v6162 = vsel %vm1696, %v6035, -inf
  %v6163 = vmax.f32 %v6155, %v6162
  %v6164 = vsel %vm1696, %v6036, -inf
  %v6165 = vmax.f32 %v6157, %v6164
  %v6166 = vsel %vm1696, %v6037, -inf
  %v6167 = vmax.f32 %v6159, %v6166
  %v6168 = vsel %vm1696, %v6038, -inf
  %v6169 = vmax.f32 %v6161, %v6168
  %v6170 = vsel %vm1696, %v6039, -inf
  %v6171 = vmax.f32 %v6163, %v6170
  %v6172 = vsel %vm1696, %v6040, -inf
  %v6173 = vmax.f32 %v6165, %v6172
  %v6174 = vsel %vm1696, %v6041, -inf
  %v6175 = vmax.f32 %v6167, %v6174
  %v6176 = vsel %vm1696, %v6042, -inf
  %v6177 = vmax.f32 %v6169, %v6176
  %v6178 = vsel %vm1696, %v6043, -inf
  %v6179 = vmax.f32 %v6171, %v6178
  %v6180 = vsel %vm1696, %v6044, -inf
  %v6181 = vmax.f32 %v6173, %v6180
  %v6182 = vsel %vm1696, %v6045, -inf
  %v6183 = vmax.f32 %v6175, %v6182
  %v6184 = vsel %vm1696, %v6046, -inf
  %v6185 = vmax.f32 %v6177, %v6184
  %v6186 = vsel %vm1696, %v6047, -inf
  %v6187 = vmax.f32 %v6179, %v6186
  %v6188 = vsel %vm1696, %v6048, -inf
  %v6189 = vmax.f32 %v6181, %v6188
  %v6190 = vsel %vm1696, %v6049, -inf
  %v6191 = vmax.f32 %v6183, %v6190
  %v6192 = vsel %vm1696, %v6050, -inf
  %v6193 = vmax.f32 %v6185, %v6192
  %v6194 = vsel %vm1696, %v6051, -inf
  %v6195 = vmax.f32 %v6187, %v6194
  %v6196 = vsel %vm1696, %v6052, -inf
  %v6197 = vmax.f32 %v6189, %v6196
  %v6198 = vsel %vm1696, %v6053, -inf
  %v6199 = vmax.f32 %v6191, %v6198
  %v6200 = vsel %vm1696, %v6054, -inf
  %v6201 = vmax.f32 %v6193, %v6200
  %v6202 = vsel %vm1846, %v6055, -inf
  %v6203 = vmax.f32 %v6195, %v6202
  %v6204 = vmax.f32 %v6197, %v6199
  %v6205 = vmax.f32 %v6201, %v6203
  %v6206 = vmax.f32 %v6204, %v6205
  %v6207 = vrot.slane %v6206, 4
  %v6208 = vmax.f32 %v6206, %v6207
  %v6209 = vrot.slane %v6208, 2
  %v6210 = vmax.f32 %v6208, %v6209
  %v6211 = vrot.slane %v6210, 1
  %v6212 = vmax.f32 %v6210, %v6211
  %vm6213 = vcmp.ge.s32.totalorder %v34, 452
  %vm6214 = vcmp.ge.s32.totalorder %v35, 452
  %vm6215 = vcmp.ge.s32.totalorder %v36, 452
  %vm6216 = vcmp.ge.s32.totalorder %v37, 452
  %vm6217 = vcmp.ge.s32.totalorder %v38, 452
  %vm6218 = vcmp.ge.s32.totalorder %v39, 452
  %vm6219 = vcmp.ge.s32.totalorder %v40, 452
  %vm6220 = vcmp.ge.s32.totalorder %v41, 452
  %vm6221 = vcmp.ge.s32.totalorder %v42, 452
  %vm6222 = vcmp.ge.s32.totalorder %v43, 452
  %vm6223 = vcmp.ge.s32.totalorder %v44, 452
  %vm6224 = vcmp.ge.s32.totalorder %v45, 452
  %vm6225 = vcmp.ge.s32.totalorder %v46, 452
  %vm6226 = vcmp.ge.s32.totalorder %v47, 452
  %vm6227 = vcmp.ge.s32.totalorder %v48, 452
  %vm6228 = vcmp.ge.s32.totalorder %v49, 452
  %vm6229 = vcmp.ge.s32.totalorder %v50, 452
  %vm6230 = vcmp.ge.s32.totalorder %v51, 452
  %vm6231 = vcmp.ge.s32.totalorder %v52, 452
  %vm6232 = vcmp.ge.s32.totalorder %v53, 452
  %vm6233 = vcmp.ge.s32.totalorder %v54, 452
  %vm6234 = vcmp.ge.s32.totalorder %v55, 452
  %vm6235 = vcmp.ge.s32.totalorder %v56, 452
  %vm6236 = vcmp.ge.s32.totalorder %v57, 452
  %vm6237 = vcmp.ge.s32.totalorder %v58, 452
  %vm6238 = vcmp.ge.s32.totalorder %v59, 452
  %vm6239 = vcmp.ge.s32.totalorder %v60, 452
  %vm6240 = vcmp.ge.s32.totalorder %v61, 452
  %vm6241 = vcmp.ge.s32.totalorder %v62, 452
  %vm6242 = vcmp.ge.s32.totalorder %v63, 452
  %vm6243 = vcmp.ge.s32.totalorder %v64, 452
  %vm6244 = vcmp.ge.s32.totalorder %v65, 452
  %vm6245 = vcmp.ge.s32.totalorder %v66, 452
  %vm6246 = vcmp.ge.s32.totalorder %v67, 452
  %vm6247 = vcmp.ge.s32.totalorder %v68, 452
  %vm6248 = vcmp.ge.s32.totalorder %v69, 452
  %vm6249 = vcmp.ge.s32.totalorder %v70, 452
  %vm6250 = vcmp.ge.s32.totalorder %v71, 452
  %vm6251 = vcmp.ge.s32.totalorder %v72, 452
  %vm6252 = vcmp.ge.s32.totalorder %v73, 452
  %vm6253 = vcmp.ge.s32.totalorder %v74, 452
  %vm6254 = vcmp.ge.s32.totalorder %v75, 452
  %vm6255 = vcmp.ge.s32.totalorder %v76, 452
  %vm6256 = vcmp.ge.s32.totalorder %v77, 452
  %vm6257 = vcmp.ge.s32.totalorder %v78, 452
  %vm6258 = vcmp.ge.s32.totalorder %v79, 452
  %vm6259 = vcmp.ge.s32.totalorder %v80, 452
  %vm6260 = vcmp.ge.s32.totalorder %v81, 452
  %vm6261 = vcmp.ge.s32.totalorder %v82, 452
  %vm6262 = vcmp.ge.s32.totalorder %v83, 452
  %vm6263 = vcmp.ge.s32.totalorder %v84, 452
  %vm6264 = vcmp.ge.s32.totalorder %v85, 452
  %vm6265 = vcmp.ge.s32.totalorder %v86, 452
  %vm6266 = vcmp.ge.s32.totalorder %v87, 452
  %vm6267 = vcmp.ge.s32.totalorder %v88, 452
  %vm6268 = vcmp.ge.s32.totalorder %v89, 452
  %vm6269 = vcmp.ge.s32.totalorder %v90, 452
  %vm6270 = vcmp.ge.s32.totalorder %v91, 452
  %vm6271 = vcmp.ge.s32.totalorder %v92, 452
  %vm6272 = vcmp.ge.s32.totalorder %v93, 452
  %vm6273 = vcmp.ge.s32.totalorder %v94, 452
  %vm6274 = vcmp.ge.s32.totalorder %v95, 452
  %vm6275 = vcmp.ge.s32.totalorder %v96, 452
  %vm6276 = vcmp.ge.s32.totalorder %v97, 452
  %vm6277 = vcmp.ge.s32.totalorder %v98, 452
  %vm6278 = vcmp.ge.s32.totalorder %v99, 452
  %vm6279 = vcmp.ge.s32.totalorder %v100, 452
  %vm6280 = vcmp.ge.s32.totalorder %v101, 452
  %vm6281 = vcmp.ge.s32.totalorder %v102, 452
  %vm6282 = vcmp.ge.s32.totalorder %v103, 452
  %vm6283 = vcmp.ge.s32.totalorder %v104, 452
  %vm6284 = vcmp.ge.s32.totalorder %v105, 452
  %vm6285 = vcmp.ge.s32.totalorder %v106, 452
  %vm6286 = vcmp.ge.s32.totalorder %v107, 452
  %vm6287 = vcmp.ge.s32.totalorder %v108, 452
  %vm6288 = vcmp.ge.s32.totalorder %v109, 452
  %vm6289 = vcmp.lt.s32.totalorder %v34, 602
  %vm6290 = vcmp.lt.s32.totalorder %v35, 602
  %vm6291 = vcmp.lt.s32.totalorder %v36, 602
  %vm6292 = vcmp.lt.s32.totalorder %v37, 602
  %vm6293 = vcmp.lt.s32.totalorder %v38, 602
  %vm6294 = vcmp.lt.s32.totalorder %v39, 602
  %vm6295 = vcmp.lt.s32.totalorder %v40, 602
  %vm6296 = vcmp.lt.s32.totalorder %v41, 602
  %vm6297 = vcmp.lt.s32.totalorder %v42, 602
  %vm6298 = vcmp.lt.s32.totalorder %v43, 602
  %vm6299 = vcmp.lt.s32.totalorder %v44, 602
  %vm6300 = vcmp.lt.s32.totalorder %v45, 602
  %vm6301 = vcmp.lt.s32.totalorder %v46, 602
  %vm6302 = vcmp.lt.s32.totalorder %v47, 602
  %vm6303 = vcmp.lt.s32.totalorder %v48, 602
  %vm6304 = vcmp.lt.s32.totalorder %v49, 602
  %vm6305 = vcmp.lt.s32.totalorder %v50, 602
  %vm6306 = vcmp.lt.s32.totalorder %v51, 602
  %vm6307 = vcmp.lt.s32.totalorder %v52, 602
  %vm6308 = vcmp.lt.s32.totalorder %v53, 602
  %vm6309 = vcmp.lt.s32.totalorder %v54, 602
  %vm6310 = vcmp.lt.s32.totalorder %v55, 602
  %vm6311 = vcmp.lt.s32.totalorder %v56, 602
  %vm6312 = vcmp.lt.s32.totalorder %v57, 602
  %vm6313 = vcmp.lt.s32.totalorder %v58, 602
  %vm6314 = vcmp.lt.s32.totalorder %v59, 602
  %vm6315 = vcmp.lt.s32.totalorder %v60, 602
  %vm6316 = vcmp.lt.s32.totalorder %v61, 602
  %vm6317 = vcmp.lt.s32.totalorder %v62, 602
  %vm6318 = vcmp.lt.s32.totalorder %v63, 602
  %vm6319 = vcmp.lt.s32.totalorder %v64, 602
  %vm6320 = vcmp.lt.s32.totalorder %v65, 602
  %vm6321 = vcmp.lt.s32.totalorder %v66, 602
  %vm6322 = vcmp.lt.s32.totalorder %v67, 602
  %vm6323 = vcmp.lt.s32.totalorder %v68, 602
  %vm6324 = vcmp.lt.s32.totalorder %v69, 602
  %vm6325 = vcmp.lt.s32.totalorder %v70, 602
  %vm6326 = vcmp.lt.s32.totalorder %v71, 602
  %vm6327 = vcmp.lt.s32.totalorder %v72, 602
  %vm6328 = vcmp.lt.s32.totalorder %v73, 602
  %vm6329 = vcmp.lt.s32.totalorder %v74, 602
  %vm6330 = vcmp.lt.s32.totalorder %v75, 602
  %vm6331 = vcmp.lt.s32.totalorder %v76, 602
  %vm6332 = vcmp.lt.s32.totalorder %v77, 602
  %vm6333 = vcmp.lt.s32.totalorder %v78, 602
  %vm6334 = vcmp.lt.s32.totalorder %v79, 602
  %vm6335 = vcmp.lt.s32.totalorder %v80, 602
  %vm6336 = vcmp.lt.s32.totalorder %v81, 602
  %vm6337 = vcmp.lt.s32.totalorder %v82, 602
  %vm6338 = vcmp.lt.s32.totalorder %v83, 602
  %vm6339 = vcmp.lt.s32.totalorder %v84, 602
  %vm6340 = vcmp.lt.s32.totalorder %v85, 602
  %vm6341 = vcmp.lt.s32.totalorder %v86, 602
  %vm6342 = vcmp.lt.s32.totalorder %v87, 602
  %vm6343 = vcmp.lt.s32.totalorder %v88, 602
  %vm6344 = vcmp.lt.s32.totalorder %v89, 602
  %vm6345 = vcmp.lt.s32.totalorder %v90, 602
  %vm6346 = vcmp.lt.s32.totalorder %v91, 602
  %vm6347 = vcmp.lt.s32.totalorder %v92, 602
  %vm6348 = vcmp.lt.s32.totalorder %v93, 602
  %vm6349 = vcmp.lt.s32.totalorder %v94, 602
  %vm6350 = vcmp.lt.s32.totalorder %v95, 602
  %vm6351 = vcmp.lt.s32.totalorder %v96, 602
  %vm6352 = vcmp.lt.s32.totalorder %v97, 602
  %vm6353 = vcmp.lt.s32.totalorder %v98, 602
  %vm6354 = vcmp.lt.s32.totalorder %v99, 602
  %vm6355 = vcmp.lt.s32.totalorder %v100, 602
  %vm6356 = vcmp.lt.s32.totalorder %v101, 602
  %vm6357 = vcmp.lt.s32.totalorder %v102, 602
  %vm6358 = vcmp.lt.s32.totalorder %v103, 602
  %vm6359 = vcmp.lt.s32.totalorder %v104, 602
  %vm6360 = vcmp.lt.s32.totalorder %v105, 602
  %vm6361 = vcmp.lt.s32.totalorder %v106, 602
  %vm6362 = vcmp.lt.s32.totalorder %v107, 602
  %vm6363 = vcmp.lt.s32.totalorder %v108, 602
  %vm6364 = vcmp.lt.s32.totalorder %v109, 602
  %vm6365 = vmand %vm6213, %vm6289
  %vm6366 = vmand %vm6214, %vm6290
  %vm6367 = vmand %vm6215, %vm6291
  %vm6368 = vmand %vm6216, %vm6292
  %vm6369 = vmand %vm6217, %vm6293
  %vm6370 = vmand %vm6218, %vm6294
  %vm6371 = vmand %vm6219, %vm6295
  %vm6372 = vmand %vm6220, %vm6296
  %vm6373 = vmand %vm6221, %vm6297
  %vm6374 = vmand %vm6222, %vm6298
  %vm6375 = vmand %vm6223, %vm6299
  %vm6376 = vmand %vm6224, %vm6300
  %vm6377 = vmand %vm6225, %vm6301
  %vm6378 = vmand %vm6226, %vm6302
  %vm6379 = vmand %vm6227, %vm6303
  %vm6380 = vmand %vm6228, %vm6304
  %vm6381 = vmand %vm6229, %vm6305
  %vm6382 = vmand %vm6230, %vm6306
  %vm6383 = vmand %vm6231, %vm6307
  %vm6384 = vmand %vm6232, %vm6308
  %vm6385 = vmand %vm6233, %vm6309
  %vm6386 = vmand %vm6234, %vm6310
  %vm6387 = vmand %vm6235, %vm6311
  %vm6388 = vmand %vm6236, %vm6312
  %vm6389 = vmand %vm6237, %vm6313
  %vm6390 = vmand %vm6238, %vm6314
  %vm6391 = vmand %vm6239, %vm6315
  %vm6392 = vmand %vm6240, %vm6316
  %vm6393 = vmand %vm6241, %vm6317
  %vm6394 = vmand %vm6242, %vm6318
  %vm6395 = vmand %vm6243, %vm6319
  %vm6396 = vmand %vm6244, %vm6320
  %vm6397 = vmand %vm6245, %vm6321
  %vm6398 = vmand %vm6246, %vm6322
  %vm6399 = vmand %vm6247, %vm6323
  %vm6400 = vmand %vm6248, %vm6324
  %vm6401 = vmand %vm6249, %vm6325
  %vm6402 = vmand %vm6250, %vm6326
  %vm6403 = vmand %vm6251, %vm6327
  %vm6404 = vmand %vm6252, %vm6328
  %vm6405 = vmand %vm6253, %vm6329
  %vm6406 = vmand %vm6254, %vm6330
  %vm6407 = vmand %vm6255, %vm6331
  %vm6408 = vmand %vm6256, %vm6332
  %vm6409 = vmand %vm6257, %vm6333
  %vm6410 = vmand %vm6258, %vm6334
  %vm6411 = vmand %vm6259, %vm6335
  %vm6412 = vmand %vm6260, %vm6336
  %vm6413 = vmand %vm6261, %vm6337
  %vm6414 = vmand %vm6262, %vm6338
  %vm6415 = vmand %vm6263, %vm6339
  %vm6416 = vmand %vm6264, %vm6340
  %vm6417 = vmand %vm6265, %vm6341
  %vm6418 = vmand %vm6266, %vm6342
  %vm6419 = vmand %vm6267, %vm6343
  %vm6420 = vmand %vm6268, %vm6344
  %vm6421 = vmand %vm6269, %vm6345
  %vm6422 = vmand %vm6270, %vm6346
  %vm6423 = vmand %vm6271, %vm6347
  %vm6424 = vmand %vm6272, %vm6348
  %vm6425 = vmand %vm6273, %vm6349
  %vm6426 = vmand %vm6274, %vm6350
  %vm6427 = vmand %vm6275, %vm6351
  %vm6428 = vmand %vm6276, %vm6352
  %vm6429 = vmand %vm6277, %vm6353
  %vm6430 = vmand %vm6278, %vm6354
  %vm6431 = vmand %vm6279, %vm6355
  %vm6432 = vmand %vm6280, %vm6356
  %vm6433 = vmand %vm6281, %vm6357
  %vm6434 = vmand %vm6282, %vm6358
  %vm6435 = vmand %vm6283, %vm6359
  %vm6436 = vmand %vm6284, %vm6360
  %vm6437 = vmand %vm6285, %vm6361
  %vm6438 = vmand %vm6286, %vm6362
  %vm6439 = vmand %vm6287, %vm6363
  %vm6440 = vmand %vm6288, %vm6364
  %v6441 = vsel %vm6365, %v4754, 0.0
  %v6442 = vsel %vm6366, %v4755, 0.0
  %v6443 = vsel %vm6367, %v4756, 0.0
  %v6444 = vsel %vm6368, %v4757, 0.0
  %v6445 = vsel %vm6369, %v4758, 0.0
  %v6446 = vsel %vm6370, %v4759, 0.0
  %v6447 = vsel %vm6371, %v4760, 0.0
  %v6448 = vsel %vm6372, %v4761, 0.0
  %v6449 = vsel %vm6373, %v4762, 0.0
  %v6450 = vsel %vm6374, %v4763, 0.0
  %v6451 = vsel %vm6375, %v4764, 0.0
  %v6452 = vsel %vm6376, %v4765, 0.0
  %v6453 = vsel %vm6377, %v4766, 0.0
  %v6454 = vsel %vm6378, %v4767, 0.0
  %v6455 = vsel %vm6379, %v4768, 0.0
  %v6456 = vsel %vm6380, %v4769, 0.0
  %v6457 = vsel %vm6381, %v4770, 0.0
  %v6458 = vsel %vm6382, %v4771, 0.0
  %v6459 = vsel %vm6383, %v4772, 0.0
  %v6460 = vsel %vm6384, %v4773, 0.0
  %v6461 = vsel %vm6385, %v4774, 0.0
  %v6462 = vsel %vm6386, %v4775, 0.0
  %v6463 = vsel %vm6387, %v4776, 0.0
  %v6464 = vsel %vm6388, %v4777, 0.0
  %v6465 = vsel %vm6389, %v4778, 0.0
  %v6466 = vsel %vm6390, %v4779, 0.0
  %v6467 = vsel %vm6391, %v4780, 0.0
  %v6468 = vsel %vm6392, %v4781, 0.0
  %v6469 = vsel %vm6393, %v4782, 0.0
  %v6470 = vsel %vm6394, %v4783, 0.0
  %v6471 = vsel %vm6395, %v4784, 0.0
  %v6472 = vsel %vm6396, %v4785, 0.0
  %v6473 = vsel %vm6397, %v4786, 0.0
  %v6474 = vsel %vm6398, %v4787, 0.0
  %v6475 = vsel %vm6399, %v4788, 0.0
  %v6476 = vsel %vm6400, %v4789, 0.0
  %v6477 = vsel %vm6401, %v4790, 0.0
  %v6478 = vsel %vm6402, %v4791, 0.0
  %v6479 = vsel %vm6403, %v4792, 0.0
  %v6480 = vsel %vm6404, %v4793, 0.0
  %v6481 = vsel %vm6405, %v4794, 0.0
  %v6482 = vsel %vm6406, %v4795, 0.0
  %v6483 = vsel %vm6407, %v4796, 0.0
  %v6484 = vsel %vm6408, %v4797, 0.0
  %v6485 = vsel %vm6409, %v4798, 0.0
  %v6486 = vsel %vm6410, %v4799, 0.0
  %v6487 = vsel %vm6411, %v4800, 0.0
  %v6488 = vsel %vm6412, %v4801, 0.0
  %v6489 = vsel %vm6413, %v4802, 0.0
  %v6490 = vsel %vm6414, %v4803, 0.0
  %v6491 = vsel %vm6415, %v4804, 0.0
  %v6492 = vsel %vm6416, %v4805, 0.0
  %v6493 = vsel %vm6417, %v4806, 0.0
  %v6494 = vsel %vm6418, %v4807, 0.0
  %v6495 = vsel %vm6419, %v4808, 0.0
  %v6496 = vsel %vm6420, %v4809, 0.0
  %v6497 = vsel %vm6421, %v4810, 0.0
  %v6498 = vsel %vm6422, %v4811, 0.0
  %v6499 = vsel %vm6423, %v4812, 0.0
  %v6500 = vsel %vm6424, %v4813, 0.0
  %v6501 = vsel %vm6425, %v4814, 0.0
  %v6502 = vsel %vm6426, %v4815, 0.0
  %v6503 = vsel %vm6427, %v4816, 0.0
  %v6504 = vsel %vm6428, %v4817, 0.0
  %v6505 = vsel %vm6429, %v4818, 0.0
  %v6506 = vsel %vm6430, %v4819, 0.0
  %v6507 = vsel %vm6431, %v4820, 0.0
  %v6508 = vsel %vm6432, %v4821, 0.0
  %v6509 = vsel %vm6433, %v4822, 0.0
  %v6510 = vsel %vm6434, %v4823, 0.0
  %v6511 = vsel %vm6435, %v4824, 0.0
  %v6512 = vsel %vm6436, %v4825, 0.0
  %v6513 = vsel %vm6437, %v4826, 0.0
  %v6514 = vsel %vm6438, %v4827, 0.0
  %v6515 = vsel %vm6439, %v4828, 0.0
  %v6516 = vsel %vm6440, %v4829, 0.0
  %v6517 = vsel %vm1696, %v6441, -inf
  %v6518 = vsel %vm1696, %v6442, -inf
  %v6519 = vsel %vm1696, %v6443, -inf
  %v6520 = vsel %vm1696, %v6444, -inf
  %v6521 = vsel %vm1696, %v6445, -inf
  %v6522 = vmax.f32 %v6517, %v6521
  %v6523 = vsel %vm1696, %v6446, -inf
  %v6524 = vmax.f32 %v6518, %v6523
  %v6525 = vsel %vm1696, %v6447, -inf
  %v6526 = vmax.f32 %v6519, %v6525
  %v6527 = vsel %vm1696, %v6448, -inf
  %v6528 = vmax.f32 %v6520, %v6527
  %v6529 = vsel %vm1696, %v6449, -inf
  %v6530 = vmax.f32 %v6522, %v6529
  %v6531 = vsel %vm1696, %v6450, -inf
  %v6532 = vmax.f32 %v6524, %v6531
  %v6533 = vsel %vm1696, %v6451, -inf
  %v6534 = vmax.f32 %v6526, %v6533
  %v6535 = vsel %vm1696, %v6452, -inf
  %v6536 = vmax.f32 %v6528, %v6535
  %v6537 = vsel %vm1696, %v6453, -inf
  %v6538 = vmax.f32 %v6530, %v6537
  %v6539 = vsel %vm1696, %v6454, -inf
  %v6540 = vmax.f32 %v6532, %v6539
  %v6541 = vsel %vm1696, %v6455, -inf
  %v6542 = vmax.f32 %v6534, %v6541
  %v6543 = vsel %vm1696, %v6456, -inf
  %v6544 = vmax.f32 %v6536, %v6543
  %v6545 = vsel %vm1696, %v6457, -inf
  %v6546 = vmax.f32 %v6538, %v6545
  %v6547 = vsel %vm1696, %v6458, -inf
  %v6548 = vmax.f32 %v6540, %v6547
  %v6549 = vsel %vm1696, %v6459, -inf
  %v6550 = vmax.f32 %v6542, %v6549
  %v6551 = vsel %vm1696, %v6460, -inf
  %v6552 = vmax.f32 %v6544, %v6551
  %v6553 = vsel %vm1696, %v6461, -inf
  %v6554 = vmax.f32 %v6546, %v6553
  %v6555 = vsel %vm1696, %v6462, -inf
  %v6556 = vmax.f32 %v6548, %v6555
  %v6557 = vsel %vm1696, %v6463, -inf
  %v6558 = vmax.f32 %v6550, %v6557
  %v6559 = vsel %vm1696, %v6464, -inf
  %v6560 = vmax.f32 %v6552, %v6559
  %v6561 = vsel %vm1696, %v6465, -inf
  %v6562 = vmax.f32 %v6554, %v6561
  %v6563 = vsel %vm1696, %v6466, -inf
  %v6564 = vmax.f32 %v6556, %v6563
  %v6565 = vsel %vm1696, %v6467, -inf
  %v6566 = vmax.f32 %v6558, %v6565
  %v6567 = vsel %vm1696, %v6468, -inf
  %v6568 = vmax.f32 %v6560, %v6567
  %v6569 = vsel %vm1696, %v6469, -inf
  %v6570 = vmax.f32 %v6562, %v6569
  %v6571 = vsel %vm1696, %v6470, -inf
  %v6572 = vmax.f32 %v6564, %v6571
  %v6573 = vsel %vm1696, %v6471, -inf
  %v6574 = vmax.f32 %v6566, %v6573
  %v6575 = vsel %vm1696, %v6472, -inf
  %v6576 = vmax.f32 %v6568, %v6575
  %v6577 = vsel %vm1696, %v6473, -inf
  %v6578 = vmax.f32 %v6570, %v6577
  %v6579 = vsel %vm1696, %v6474, -inf
  %v6580 = vmax.f32 %v6572, %v6579
  %v6581 = vsel %vm1696, %v6475, -inf
  %v6582 = vmax.f32 %v6574, %v6581
  %v6583 = vsel %vm1696, %v6476, -inf
  %v6584 = vmax.f32 %v6576, %v6583
  %v6585 = vsel %vm1696, %v6477, -inf
  %v6586 = vmax.f32 %v6578, %v6585
  %v6587 = vsel %vm1696, %v6478, -inf
  %v6588 = vmax.f32 %v6580, %v6587
  %v6589 = vsel %vm1696, %v6479, -inf
  %v6590 = vmax.f32 %v6582, %v6589
  %v6591 = vsel %vm1696, %v6480, -inf
  %v6592 = vmax.f32 %v6584, %v6591
  %v6593 = vsel %vm1696, %v6481, -inf
  %v6594 = vmax.f32 %v6586, %v6593
  %v6595 = vsel %vm1696, %v6482, -inf
  %v6596 = vmax.f32 %v6588, %v6595
  %v6597 = vsel %vm1696, %v6483, -inf
  %v6598 = vmax.f32 %v6590, %v6597
  %v6599 = vsel %vm1696, %v6484, -inf
  %v6600 = vmax.f32 %v6592, %v6599
  %v6601 = vsel %vm1696, %v6485, -inf
  %v6602 = vmax.f32 %v6594, %v6601
  %v6603 = vsel %vm1696, %v6486, -inf
  %v6604 = vmax.f32 %v6596, %v6603
  %v6605 = vsel %vm1696, %v6487, -inf
  %v6606 = vmax.f32 %v6598, %v6605
  %v6607 = vsel %vm1696, %v6488, -inf
  %v6608 = vmax.f32 %v6600, %v6607
  %v6609 = vsel %vm1696, %v6489, -inf
  %v6610 = vmax.f32 %v6602, %v6609
  %v6611 = vsel %vm1696, %v6490, -inf
  %v6612 = vmax.f32 %v6604, %v6611
  %v6613 = vsel %vm1696, %v6491, -inf
  %v6614 = vmax.f32 %v6606, %v6613
  %v6615 = vsel %vm1696, %v6492, -inf
  %v6616 = vmax.f32 %v6608, %v6615
  %v6617 = vsel %vm1696, %v6493, -inf
  %v6618 = vmax.f32 %v6610, %v6617
  %v6619 = vsel %vm1696, %v6494, -inf
  %v6620 = vmax.f32 %v6612, %v6619
  %v6621 = vsel %vm1696, %v6495, -inf
  %v6622 = vmax.f32 %v6614, %v6621
  %v6623 = vsel %vm1696, %v6496, -inf
  %v6624 = vmax.f32 %v6616, %v6623
  %v6625 = vsel %vm1696, %v6497, -inf
  %v6626 = vmax.f32 %v6618, %v6625
  %v6627 = vsel %vm1696, %v6498, -inf
  %v6628 = vmax.f32 %v6620, %v6627
  %v6629 = vsel %vm1696, %v6499, -inf
  %v6630 = vmax.f32 %v6622, %v6629
  %v6631 = vsel %vm1696, %v6500, -inf
  %v6632 = vmax.f32 %v6624, %v6631
  %v6633 = vsel %vm1696, %v6501, -inf
  %v6634 = vmax.f32 %v6626, %v6633
  %v6635 = vsel %vm1696, %v6502, -inf
  %v6636 = vmax.f32 %v6628, %v6635
  %v6637 = vsel %vm1696, %v6503, -inf
  %v6638 = vmax.f32 %v6630, %v6637
  %v6639 = vsel %vm1696, %v6504, -inf
  %v6640 = vmax.f32 %v6632, %v6639
  %v6641 = vsel %vm1696, %v6505, -inf
  %v6642 = vmax.f32 %v6634, %v6641
  %v6643 = vsel %vm1696, %v6506, -inf
  %v6644 = vmax.f32 %v6636, %v6643
  %v6645 = vsel %vm1696, %v6507, -inf
  %v6646 = vmax.f32 %v6638, %v6645
  %v6647 = vsel %vm1696, %v6508, -inf
  %v6648 = vmax.f32 %v6640, %v6647
  %v6649 = vsel %vm1696, %v6509, -inf
  %v6650 = vmax.f32 %v6642, %v6649
  %v6651 = vsel %vm1696, %v6510, -inf
  %v6652 = vmax.f32 %v6644, %v6651
  %v6653 = vsel %vm1696, %v6511, -inf
  %v6654 = vmax.f32 %v6646, %v6653
  %v6655 = vsel %vm1696, %v6512, -inf
  %v6656 = vmax.f32 %v6648, %v6655
  %v6657 = vsel %vm1696, %v6513, -inf
  %v6658 = vmax.f32 %v6650, %v6657
  %v6659 = vsel %vm1696, %v6514, -inf
  %v6660 = vmax.f32 %v6652, %v6659
  %v6661 = vsel %vm1696, %v6515, -inf
  %v6662 = vmax.f32 %v6654, %v6661
  %v6663 = vsel %vm1846, %v6516, -inf
  %v6664 = vmax.f32 %v6656, %v6663
  %v6665 = vmax.f32 %v6658, %v6660
  %v6666 = vmax.f32 %v6662, %v6664
  %v6667 = vmax.f32 %v6665, %v6666
  %v6668 = vrot.slane %v6667, 4
  %v6669 = vmax.f32 %v6667, %v6668
  %v6670 = vrot.slane %v6669, 2
  %v6671 = vmax.f32 %v6669, %v6670
  %v6672 = vrot.slane %v6671, 1
  %v6673 = vmax.f32 %v6671, %v6672
  %vm6674 = vcmp.ne.s32.totalorder %v34, 61
  %vm6675 = vcmp.ne.s32.totalorder %v35, 61
  %vm6676 = vcmp.ne.s32.totalorder %v36, 61
  %vm6677 = vcmp.ne.s32.totalorder %v37, 61
  %vm6678 = vcmp.ne.s32.totalorder %v38, 61
  %vm6679 = vcmp.ne.s32.totalorder %v39, 61
  %vm6680 = vcmp.ne.s32.totalorder %v40, 61
  %vm6681 = vcmp.ne.s32.totalorder %v41, 61
  %vm6682 = vcmp.ne.s32.totalorder %v42, 61
  %vm6683 = vcmp.ne.s32.totalorder %v43, 61
  %vm6684 = vcmp.ne.s32.totalorder %v44, 61
  %vm6685 = vcmp.ne.s32.totalorder %v45, 61
  %vm6686 = vcmp.ne.s32.totalorder %v46, 61
  %vm6687 = vcmp.ne.s32.totalorder %v47, 61
  %vm6688 = vcmp.ne.s32.totalorder %v48, 61
  %vm6689 = vcmp.ne.s32.totalorder %v49, 61
  %vm6690 = vcmp.ne.s32.totalorder %v34, 60
  %vm6691 = vcmp.ne.s32.totalorder %v35, 60
  %vm6692 = vcmp.ne.s32.totalorder %v36, 60
  %vm6693 = vcmp.ne.s32.totalorder %v37, 60
  %vm6694 = vcmp.ne.s32.totalorder %v38, 60
  %vm6695 = vcmp.ne.s32.totalorder %v39, 60
  %vm6696 = vcmp.ne.s32.totalorder %v40, 60
  %vm6697 = vcmp.ne.s32.totalorder %v41, 60
  %vm6698 = vcmp.ne.s32.totalorder %v42, 60
  %vm6699 = vcmp.ne.s32.totalorder %v43, 60
  %vm6700 = vcmp.ne.s32.totalorder %v44, 60
  %vm6701 = vcmp.ne.s32.totalorder %v45, 60
  %vm6702 = vcmp.ne.s32.totalorder %v46, 60
  %vm6703 = vcmp.ne.s32.totalorder %v47, 60
  %vm6704 = vcmp.ne.s32.totalorder %v48, 60
  %vm6705 = vcmp.ne.s32.totalorder %v49, 60
  %vm6706 = vcmp.ne.s32.totalorder %v34, 62
  %vm6707 = vcmp.ne.s32.totalorder %v35, 62
  %vm6708 = vcmp.ne.s32.totalorder %v36, 62
  %vm6709 = vcmp.ne.s32.totalorder %v37, 62
  %vm6710 = vcmp.ne.s32.totalorder %v38, 62
  %vm6711 = vcmp.ne.s32.totalorder %v39, 62
  %vm6712 = vcmp.ne.s32.totalorder %v40, 62
  %vm6713 = vcmp.ne.s32.totalorder %v41, 62
  %vm6714 = vcmp.ne.s32.totalorder %v42, 62
  %vm6715 = vcmp.ne.s32.totalorder %v43, 62
  %vm6716 = vcmp.ne.s32.totalorder %v44, 62
  %vm6717 = vcmp.ne.s32.totalorder %v45, 62
  %vm6718 = vcmp.ne.s32.totalorder %v46, 62
  %vm6719 = vcmp.ne.s32.totalorder %v47, 62
  %vm6720 = vcmp.ne.s32.totalorder %v48, 62
  %vm6721 = vcmp.ne.s32.totalorder %v49, 62
  %vm6722 = vcmp.ne.s32.totalorder %v34, 123
  %vm6723 = vcmp.ne.s32.totalorder %v35, 123
  %vm6724 = vcmp.ne.s32.totalorder %v36, 123
  %vm6725 = vcmp.ne.s32.totalorder %v37, 123
  %vm6726 = vcmp.ne.s32.totalorder %v38, 123
  %vm6727 = vcmp.ne.s32.totalorder %v39, 123
  %vm6728 = vcmp.ne.s32.totalorder %v40, 123
  %vm6729 = vcmp.ne.s32.totalorder %v41, 123
  %vm6730 = vcmp.ne.s32.totalorder %v42, 123
  %vm6731 = vcmp.ne.s32.totalorder %v43, 123
  %vm6732 = vcmp.ne.s32.totalorder %v44, 123
  %vm6733 = vcmp.ne.s32.totalorder %v45, 123
  %vm6734 = vcmp.ne.s32.totalorder %v46, 123
  %vm6735 = vcmp.ne.s32.totalorder %v47, 123
  %vm6736 = vcmp.ne.s32.totalorder %v48, 123
  %vm6737 = vcmp.ne.s32.totalorder %v49, 123
  %vm6738 = vcmp.ne.s32.totalorder %v34, 122
  %vm6739 = vcmp.ne.s32.totalorder %v35, 122
  %vm6740 = vcmp.ne.s32.totalorder %v36, 122
  %vm6741 = vcmp.ne.s32.totalorder %v37, 122
  %vm6742 = vcmp.ne.s32.totalorder %v38, 122
  %vm6743 = vcmp.ne.s32.totalorder %v39, 122
  %vm6744 = vcmp.ne.s32.totalorder %v40, 122
  %vm6745 = vcmp.ne.s32.totalorder %v41, 122
  %vm6746 = vcmp.ne.s32.totalorder %v42, 122
  %vm6747 = vcmp.ne.s32.totalorder %v43, 122
  %vm6748 = vcmp.ne.s32.totalorder %v44, 122
  %vm6749 = vcmp.ne.s32.totalorder %v45, 122
  %vm6750 = vcmp.ne.s32.totalorder %v46, 122
  %vm6751 = vcmp.ne.s32.totalorder %v47, 122
  %vm6752 = vcmp.ne.s32.totalorder %v48, 122
  %vm6753 = vcmp.ne.s32.totalorder %v49, 122
  %vm6754 = vmand %vm110, %vm6674
  %vm6755 = vmand %vm111, %vm6675
  %vm6756 = vmand %vm112, %vm6676
  %vm6757 = vmand %vm113, %vm6677
  %vm6758 = vmand %vm114, %vm6678
  %vm6759 = vmand %vm115, %vm6679
  %vm6760 = vmand %vm116, %vm6680
  %vm6761 = vmand %vm117, %vm6681
  %vm6762 = vmand %vm118, %vm6682
  %vm6763 = vmand %vm119, %vm6683
  %vm6764 = vmand %vm120, %vm6684
  %vm6765 = vmand %vm121, %vm6685
  %vm6766 = vmand %vm122, %vm6686
  %vm6767 = vmand %vm123, %vm6687
  %vm6768 = vmand %vm124, %vm6688
  %vm6769 = vmand %vm125, %vm6689
  %vm6770 = vmand %vm6754, %vm6706
  %vm6771 = vmand %vm6755, %vm6707
  %vm6772 = vmand %vm6756, %vm6708
  %vm6773 = vmand %vm6757, %vm6709
  %vm6774 = vmand %vm6758, %vm6710
  %vm6775 = vmand %vm6759, %vm6711
  %vm6776 = vmand %vm6760, %vm6712
  %vm6777 = vmand %vm6761, %vm6713
  %vm6778 = vmand %vm6762, %vm6714
  %vm6779 = vmand %vm6763, %vm6715
  %vm6780 = vmand %vm6764, %vm6716
  %vm6781 = vmand %vm6765, %vm6717
  %vm6782 = vmand %vm6766, %vm6718
  %vm6783 = vmand %vm6767, %vm6719
  %vm6784 = vmand %vm6768, %vm6720
  %vm6785 = vmand %vm6769, %vm6721
  %vm6786 = vmand %vm6770, %vm6722
  %vm6787 = vmand %vm6771, %vm6723
  %vm6788 = vmand %vm6772, %vm6724
  %vm6789 = vmand %vm6773, %vm6725
  %vm6790 = vmand %vm6774, %vm6726
  %vm6791 = vmand %vm6775, %vm6727
  %vm6792 = vmand %vm6776, %vm6728
  %vm6793 = vmand %vm6777, %vm6729
  %vm6794 = vmand %vm6778, %vm6730
  %vm6795 = vmand %vm6779, %vm6731
  %vm6796 = vmand %vm6780, %vm6732
  %vm6797 = vmand %vm6781, %vm6733
  %vm6798 = vmand %vm6782, %vm6734
  %vm6799 = vmand %vm6783, %vm6735
  %vm6800 = vmand %vm6784, %vm6736
  %vm6801 = vmand %vm6785, %vm6737
  %vm6802 = vmand %vm6690, %vm6674
  %vm6803 = vmand %vm6691, %vm6675
  %vm6804 = vmand %vm6692, %vm6676
  %vm6805 = vmand %vm6693, %vm6677
  %vm6806 = vmand %vm6694, %vm6678
  %vm6807 = vmand %vm6695, %vm6679
  %vm6808 = vmand %vm6696, %vm6680
  %vm6809 = vmand %vm6697, %vm6681
  %vm6810 = vmand %vm6698, %vm6682
  %vm6811 = vmand %vm6699, %vm6683
  %vm6812 = vmand %vm6700, %vm6684
  %vm6813 = vmand %vm6701, %vm6685
  %vm6814 = vmand %vm6702, %vm6686
  %vm6815 = vmand %vm6703, %vm6687
  %vm6816 = vmand %vm6704, %vm6688
  %vm6817 = vmand %vm6705, %vm6689
  %vm6818 = vmand %vm6802, %vm6738
  %vm6819 = vmand %vm6803, %vm6739
  %vm6820 = vmand %vm6804, %vm6740
  %vm6821 = vmand %vm6805, %vm6741
  %vm6822 = vmand %vm6806, %vm6742
  %vm6823 = vmand %vm6807, %vm6743
  %vm6824 = vmand %vm6808, %vm6744
  %vm6825 = vmand %vm6809, %vm6745
  %vm6826 = vmand %vm6810, %vm6746
  %vm6827 = vmand %vm6811, %vm6747
  %vm6828 = vmand %vm6812, %vm6748
  %vm6829 = vmand %vm6813, %vm6749
  %vm6830 = vmand %vm6814, %vm6750
  %vm6831 = vmand %vm6815, %vm6751
  %vm6832 = vmand %vm6816, %vm6752
  %vm6833 = vmand %vm6817, %vm6753
  %vm6834 = vmand %vm6818, %vm6722
  %vm6835 = vmand %vm6819, %vm6723
  %vm6836 = vmand %vm6820, %vm6724
  %vm6837 = vmand %vm6821, %vm6725
  %vm6838 = vmand %vm6822, %vm6726
  %vm6839 = vmand %vm6823, %vm6727
  %vm6840 = vmand %vm6824, %vm6728
  %vm6841 = vmand %vm6825, %vm6729
  %vm6842 = vmand %vm6826, %vm6730
  %vm6843 = vmand %vm6827, %vm6731
  %vm6844 = vmand %vm6828, %vm6732
  %vm6845 = vmand %vm6829, %vm6733
  %vm6846 = vmand %vm6830, %vm6734
  %vm6847 = vmand %vm6831, %vm6735
  %vm6848 = vmand %vm6832, %vm6736
  %vm6849 = vmand %vm6833, %vm6737
  %v6850 = vld [vmem:[%s2] sm:$0xf]
  %v6851 = vld [vmem:[%s2 + $0x4] sm:$0xf]
  %v6852 = vld [vmem:[%s2 + $0x8] sm:$0xf]
  %v6853 = vld [vmem:[%s2 + $0xc] sm:$0xf]
  %v6854 = vld [vmem:[%s2 + $0x10] sm:$0xf]
  %v6855 = vld [vmem:[%s2 + $0x14] sm:$0xf]
  %v6856 = vld [vmem:[%s2 + $0x18] sm:$0xf]
  %v6857 = vld [vmem:[%s2 + $0x1c] sm:$0xf]
  %v6858 = vld [vmem:[%s2 + $0x20] sm:$0xf]
  %v6859 = vld [vmem:[%s2 + $0x24] sm:$0xf]
  %v6860 = vld [vmem:[%s2 + $0x28] sm:$0xf]
  %v6861 = vld [vmem:[%s2 + $0x2c] sm:$0xf]
  %v6862 = vld [vmem:[%s2 + $0x30] sm:$0xf]
  %v6863 = vld [vmem:[%s2 + $0x34] sm:$0xf]
  %v6864 = vld [vmem:[%s2 + $0x38] sm:$0xf]
  %v6865 = vld [vmem:[%s2 + $0x3c] sm:$0x3]
  %v6866 = vld [vmem:[%s3] sm:$0xf]
  %v6867 = vld [vmem:[%s3 + $0x4] sm:$0xf]
  %v6868 = vld [vmem:[%s3 + $0x8] sm:$0xf]
  %v6869 = vld [vmem:[%s3 + $0xc] sm:$0xf]
  %v6870 = vld [vmem:[%s3 + $0x10] sm:$0xf]
  %v6871 = vld [vmem:[%s3 + $0x14] sm:$0xf]
  %v6872 = vld [vmem:[%s3 + $0x18] sm:$0x3]
  %v6889 = vunpack.c.l.b16 %v6850
  %v6890 = vunpack.c.l.b16 %v6851
  %v6891 = vunpack.c.l.b16 %v6852
  %v6892 = vunpack.c.l.b16 %v6853
  %v6893 = vunpack.c.l.b16 %v6854
  %v6894 = vunpack.c.l.b16 %v6855
  %v6895 = vunpack.c.l.b16 %v6856
  %v6896 = vunpack.c.l.b16 %v6857
  %v6897 = vunpack.c.l.b16 %v6858
  %v6898 = vunpack.c.l.b16 %v6859
  %v6899 = vunpack.c.l.b16 %v6860
  %v6900 = vunpack.c.l.b16 %v6861
  %v6901 = vunpack.c.l.b16 %v6862
  %v6902 = vunpack.c.l.b16 %v6863
  %v6903 = vunpack.c.l.b16 %v6864
  %v6904 = vunpack.c.l.b16 %v6865
  %v6905 = vpack.c.b16 %v6890, %v6889
  %v6906 = vpack.c.b16 %v6892, %v6891
  %v6907 = vpack.c.b16 %v6894, %v6893
  %v6908 = vpack.c.b16 %v6896, %v6895
  %v6909 = vpack.c.b16 %v6898, %v6897
  %v6910 = vpack.c.b16 %v6900, %v6899
  %v6911 = vpack.c.b16 %v6902, %v6901
  %v6912 = vpack.c.b16 %v6904, %v6903
  %v6920 = vunpack.c.l.b16 %v6866
  %v6921 = vunpack.c.l.b16 %v6867
  %v6922 = vunpack.c.l.b16 %v6868
  %v6923 = vunpack.c.l.b16 %v6869
  %v6924 = vunpack.c.l.b16 %v6870
  %v6925 = vunpack.c.l.b16 %v6871
  %v6926 = vunpack.c.l.b16 %v6872
  %v6927 = vpack.c.b16 %v6921, %v6920
  %v6928 = vpack.c.b16 %v6923, %v6922
  %v6929 = vpack.c.b16 %v6925, %v6924
  %v6930 = vpack.c.b16 %v6926, %v6926
  %vm6934 = vcmask 416768
  %v6936 = vsel %vm6934, %v6905, 0
  %v6939 = vsel %vm6934, %v6906, 0
  %v6942 = vsel %vm6934, %v6907, 0
  %v6945 = vsel %vm6934, %v6908, 0
  %v6948 = vsel %vm6934, %v6909, 0
  %v6951 = vsel %vm6934, %v6910, 0
  %v6954 = vsel %vm6934, %v6911, 0
  %v6957 = vsel %vm6934, %v6912, 0
  %vm6959 = vcmask 1040384
  %v6960 = vsel %vm6959, 4294967295, 65535
  %v6961 = vsel %vm2952, %v6960, 0
  %v6963 = vand.u32 %v6930, %v6961
  %6965 = vmatpush.bf16.msra.mxu0 0
  %6966 = vmatpush.bf16.msra.mxu0 0
  %6967 = vmatpush.bf16.msra.mxu0 0
  %6968 = vmatpush.bf16.msra.mxu0 0
  %6969 = vmatpush.bf16.msra.mxu0 %v6963
  %6970 = vmatpush.bf16.msra.mxu0 %v6929
  %6971 = vmatpush.bf16.msra.mxu0 %v6928
  %6972 = vmatpush.bf16.msra.mxu0 %v6927
  %6973 = vmatmul.bf16.gmra.mxu0 %v6936
  %v6974 = vpop.f32.mrf.mxu0
  %v6975 = vadd.f32 0.0, %v6974
  %v6976 = vpop.f32.mrf.mxu0
  %v6977 = vadd.f32 0.0, %v6976
  %6978 = vmatmul.bf16.gmra.mxu0 %v6939
  %v6979 = vpop.f32.mrf.mxu0
  %v6980 = vadd.f32 0.0, %v6979
  %v6981 = vpop.f32.mrf.mxu0
  %v6982 = vadd.f32 0.0, %v6981
  %6983 = vmatmul.bf16.gmra.mxu0 %v6942
  %v6984 = vpop.f32.mrf.mxu0
  %v6985 = vadd.f32 0.0, %v6984
  %v6986 = vpop.f32.mrf.mxu0
  %v6987 = vadd.f32 0.0, %v6986
  %6988 = vmatmul.bf16.gmra.mxu0 %v6945
  %v6989 = vpop.f32.mrf.mxu0
  %v6990 = vadd.f32 0.0, %v6989
  %v6991 = vpop.f32.mrf.mxu0
  %v6992 = vadd.f32 0.0, %v6991
  %6993 = vmatmul.bf16.gmra.mxu0 %v6948
  %v6994 = vpop.f32.mrf.mxu0
  %v6995 = vadd.f32 0.0, %v6994
  %v6996 = vpop.f32.mrf.mxu0
  %v6997 = vadd.f32 0.0, %v6996
  %6998 = vmatmul.bf16.gmra.mxu0 %v6951
  %v6999 = vpop.f32.mrf.mxu0
  %v7000 = vadd.f32 0.0, %v6999
  %v7001 = vpop.f32.mrf.mxu0
  %v7002 = vadd.f32 0.0, %v7001
  %7003 = vmatmul.bf16.gmra.mxu0 %v6954
  %v7004 = vpop.f32.mrf.mxu0
  %v7005 = vadd.f32 0.0, %v7004
  %v7006 = vpop.f32.mrf.mxu0
  %v7007 = vadd.f32 0.0, %v7006
  %7008 = vmatmul.bf16.gmra.mxu0 %v6957
  %v7009 = vpop.f32.mrf.mxu0
  %v7010 = vadd.f32 0.0, %v7009
  %v7011 = vpop.f32.mrf.mxu0
  %v7012 = vadd.f32 0.0, %v7011
  %7013 = vdwg.mxu0
  %v7014 = vld [vmem:[%s6 + $0x4] sm:$0x1]
  %v7015 = vld [vmem:[%s6 + $0x5] sm:$0x1]
  %v7016 = vld [vmem:[%s6 + $0x6] sm:$0x1]
  %v7017 = vld [vmem:[%s6 + $0x7] sm:$0x1]
  %v7018 = vsel %vm6786, %v6975, 0.0
  %v7019 = vsel %vm6787, %v6977, 0.0
  %v7020 = vsel %vm6788, %v6980, 0.0
  %v7021 = vsel %vm6789, %v6982, 0.0
  %v7022 = vsel %vm6790, %v6985, 0.0
  %v7023 = vsel %vm6791, %v6987, 0.0
  %v7024 = vsel %vm6792, %v6990, 0.0
  %v7025 = vsel %vm6793, %v6992, 0.0
  %v7026 = vsel %vm6794, %v6995, 0.0
  %v7027 = vsel %vm6795, %v6997, 0.0
  %v7028 = vsel %vm6796, %v7000, 0.0
  %v7029 = vsel %vm6797, %v7002, 0.0
  %v7030 = vsel %vm6798, %v7005, 0.0
  %v7031 = vsel %vm6799, %v7007, 0.0
  %v7032 = vsel %vm6800, %v7010, 0.0
  %v7033 = vsel %vm6801, %v7012, 0.0
  %v7034 = vsel %vm1696, %v7018, 0.0
  %v7035 = vsel %vm1696, %v7019, 0.0
  %v7036 = vadd.f32 %v7034, %v7035
  %v7037 = vsel %vm1696, %v7020, 0.0
  %v7038 = vadd.f32 %v7036, %v7037
  %v7039 = vsel %vm1696, %v7021, 0.0
  %v7040 = vadd.f32 %v7038, %v7039
  %v7041 = vsel %vm1696, %v7022, 0.0
  %v7042 = vadd.f32 %v7040, %v7041
  %v7043 = vsel %vm1696, %v7023, 0.0
  %v7044 = vadd.f32 %v7042, %v7043
  %v7045 = vsel %vm1696, %v7024, 0.0
  %v7046 = vadd.f32 %v7044, %v7045
  %v7047 = vsel %vm1696, %v7025, 0.0
  %v7048 = vadd.f32 %v7046, %v7047
  %v7049 = vsel %vm1696, %v7026, 0.0
  %v7050 = vadd.f32 %v7048, %v7049
  %v7051 = vsel %vm1696, %v7027, 0.0
  %v7052 = vadd.f32 %v7050, %v7051
  %v7053 = vsel %vm1696, %v7028, 0.0
  %v7054 = vadd.f32 %v7052, %v7053
  %v7055 = vsel %vm1696, %v7029, 0.0
  %v7056 = vadd.f32 %v7054, %v7055
  %v7057 = vsel %vm1696, %v7030, 0.0
  %v7058 = vadd.f32 %v7056, %v7057
  %v7059 = vsel %vm1696, %v7031, 0.0
  %v7060 = vadd.f32 %v7058, %v7059
  %v7061 = vsel %vm1696, %v7032, 0.0
  %v7062 = vadd.f32 %v7060, %v7061
  %v7063 = vsel %vm1846, %v7033, 0.0
  %v7064 = vadd.f32 %v7062, %v7063
  %v7065 = vrot.slane %v7064, 4
  %v7066 = vadd.f32 %v7064, %v7065
  %v7067 = vrot.slane %v7066, 2
  %v7068 = vadd.f32 %v7066, %v7067
  %v7069 = vrot.slane %v7068, 1
  %v7070 = vadd.f32 %v7068, %v7069
  %v7071 = vrcp.pop 120.0
  %v7072 = vmul.f32 120.0, %v7071
  %v7073 = vsub.f32 1.0, %v7072
  %v7074 = vmul.f32 %v7071, %v7073
  %v7075 = vadd.f32 %v7071, %v7074
  %vm7076 = vweird.f32 %v7071
  %v7077 = vsel %vm7076, %v7071, %v7075
  %v7078 = vmul.f32 %v7070, %v7077
  %v7079 = vsub.f32 %v6975, %v7078
  %v7080 = vsub.f32 %v6977, %v7078
  %v7081 = vsub.f32 %v6980, %v7078
  %v7082 = vsub.f32 %v6982, %v7078
  %v7083 = vsub.f32 %v6985, %v7078
  %v7084 = vsub.f32 %v6987, %v7078
  %v7085 = vsub.f32 %v6990, %v7078
  %v7086 = vsub.f32 %v6992, %v7078
  %v7087 = vsub.f32 %v6995, %v7078
  %v7088 = vsub.f32 %v6997, %v7078
  %v7089 = vsub.f32 %v7000, %v7078
  %v7090 = vsub.f32 %v7002, %v7078
  %v7091 = vsub.f32 %v7005, %v7078
  %v7092 = vsub.f32 %v7007, %v7078
  %v7093 = vsub.f32 %v7010, %v7078
  %v7094 = vsub.f32 %v7012, %v7078
  %v7095 = vmul.f32 %v7079, %v7079
  %v7096 = vmul.f32 %v7080, %v7080
  %v7097 = vmul.f32 %v7081, %v7081
  %v7098 = vmul.f32 %v7082, %v7082
  %v7099 = vmul.f32 %v7083, %v7083
  %v7100 = vmul.f32 %v7084, %v7084
  %v7101 = vmul.f32 %v7085, %v7085
  %v7102 = vmul.f32 %v7086, %v7086
  %v7103 = vmul.f32 %v7087, %v7087
  %v7104 = vmul.f32 %v7088, %v7088
  %v7105 = vmul.f32 %v7089, %v7089
  %v7106 = vmul.f32 %v7090, %v7090
  %v7107 = vmul.f32 %v7091, %v7091
  %v7108 = vmul.f32 %v7092, %v7092
  %v7109 = vmul.f32 %v7093, %v7093
  %v7110 = vmul.f32 %v7094, %v7094
  %v7111 = vsel %vm6786, %v7095, 0.0
  %v7112 = vsel %vm6787, %v7096, 0.0
  %v7113 = vsel %vm6788, %v7097, 0.0
  %v7114 = vsel %vm6789, %v7098, 0.0
  %v7115 = vsel %vm6790, %v7099, 0.0
  %v7116 = vsel %vm6791, %v7100, 0.0
  %v7117 = vsel %vm6792, %v7101, 0.0
  %v7118 = vsel %vm6793, %v7102, 0.0
  %v7119 = vsel %vm6794, %v7103, 0.0
  %v7120 = vsel %vm6795, %v7104, 0.0
  %v7121 = vsel %vm6796, %v7105, 0.0
  %v7122 = vsel %vm6797, %v7106, 0.0
  %v7123 = vsel %vm6798, %v7107, 0.0
  %v7124 = vsel %vm6799, %v7108, 0.0
  %v7125 = vsel %vm6800, %v7109, 0.0
  %v7126 = vsel %vm6801, %v7110, 0.0
  %v7127 = vsel %vm1696, %v7111, 0.0
  %v7128 = vsel %vm1696, %v7112, 0.0
  %v7129 = vadd.f32 %v7127, %v7128
  %v7130 = vsel %vm1696, %v7113, 0.0
  %v7131 = vadd.f32 %v7129, %v7130
  %v7132 = vsel %vm1696, %v7114, 0.0
  %v7133 = vadd.f32 %v7131, %v7132
  %v7134 = vsel %vm1696, %v7115, 0.0
  %v7135 = vadd.f32 %v7133, %v7134
  %v7136 = vsel %vm1696, %v7116, 0.0
  %v7137 = vadd.f32 %v7135, %v7136
  %v7138 = vsel %vm1696, %v7117, 0.0
  %v7139 = vadd.f32 %v7137, %v7138
  %v7140 = vsel %vm1696, %v7118, 0.0
  %v7141 = vadd.f32 %v7139, %v7140
  %v7142 = vsel %vm1696, %v7119, 0.0
  %v7143 = vadd.f32 %v7141, %v7142
  %v7144 = vsel %vm1696, %v7120, 0.0
  %v7145 = vadd.f32 %v7143, %v7144
  %v7146 = vsel %vm1696, %v7121, 0.0
  %v7147 = vadd.f32 %v7145, %v7146
  %v7148 = vsel %vm1696, %v7122, 0.0
  %v7149 = vadd.f32 %v7147, %v7148
  %v7150 = vsel %vm1696, %v7123, 0.0
  %v7151 = vadd.f32 %v7149, %v7150
  %v7152 = vsel %vm1696, %v7124, 0.0
  %v7153 = vadd.f32 %v7151, %v7152
  %v7154 = vsel %vm1696, %v7125, 0.0
  %v7155 = vadd.f32 %v7153, %v7154
  %v7156 = vsel %vm1846, %v7126, 0.0
  %v7157 = vadd.f32 %v7155, %v7156
  %v7158 = vrot.slane %v7157, 4
  %v7159 = vadd.f32 %v7157, %v7158
  %v7160 = vrot.slane %v7159, 2
  %v7161 = vadd.f32 %v7159, %v7160
  %v7162 = vrot.slane %v7161, 1
  %v7163 = vadd.f32 %v7161, %v7162
  %v7164 = vmul.f32 %v7163, %v7077
  %v7165 = vadd.f32 %v7164, 1e-05
  %v7166 = vrsqrt.pop %v7165
  %v7167 = vmul.f32 %v7166, %v7165
  %v7168 = vmul.f32 %v7167, %v7166
  %v7169 = vmul.f32 0.5, %v7168
  %v7170 = vsub.f32 1.5, %v7169
  %v7171 = vmul.f32 %v7166, %v7170
  %vm7172 = vweird.f32 %v7165
  %vm7173 = vweird.f32 %v7166
  %vm7174 = vmor %vm7172, %vm7173
  %v7175 = vsel %vm7174, %v7166, %v7171
  %v7176 = vmul.f32 %v7014, %v7175
  %v7177 = vmul.f32 %v7078, %v7176
  %v7178 = vsub.f32 %v7015, %v7177
  %v7179 = vperm.slane %v7176, 0
  %v7180 = vmul.f32 %v6975, %v7179
  %v7181 = vmul.f32 %v6977, %v7179
  %v7182 = vmul.f32 %v6980, %v7179
  %v7183 = vmul.f32 %v6982, %v7179
  %v7184 = vmul.f32 %v6985, %v7179
  %v7185 = vmul.f32 %v6987, %v7179
  %v7186 = vmul.f32 %v6990, %v7179
  %v7187 = vmul.f32 %v6992, %v7179
  %v7188 = vmul.f32 %v6995, %v7179
  %v7189 = vmul.f32 %v6997, %v7179
  %v7190 = vmul.f32 %v7000, %v7179
  %v7191 = vmul.f32 %v7002, %v7179
  %v7192 = vmul.f32 %v7005, %v7179
  %v7193 = vmul.f32 %v7007, %v7179
  %v7194 = vmul.f32 %v7010, %v7179
  %v7195 = vmul.f32 %v7012, %v7179
  %v7196 = vperm.slane %v7178, 0
  %v7197 = vadd.f32 %v7180, %v7196
  %v7198 = vadd.f32 %v7181, %v7196
  %v7199 = vadd.f32 %v7182, %v7196
  %v7200 = vadd.f32 %v7183, %v7196
  %v7201 = vadd.f32 %v7184, %v7196
  %v7202 = vadd.f32 %v7185, %v7196
  %v7203 = vadd.f32 %v7186, %v7196
  %v7204 = vadd.f32 %v7187, %v7196
  %v7205 = vadd.f32 %v7188, %v7196
  %v7206 = vadd.f32 %v7189, %v7196
  %v7207 = vadd.f32 %v7190, %v7196
  %v7208 = vadd.f32 %v7191, %v7196
  %v7209 = vadd.f32 %v7192, %v7196
  %v7210 = vadd.f32 %v7193, %v7196
  %v7211 = vadd.f32 %v7194, %v7196
  %v7212 = vadd.f32 %v7195, %v7196
  %v7213 = vmax.f32 %v7197, 0.0
  %v7214 = vmax.f32 %v7198, 0.0
  %v7215 = vmax.f32 %v7199, 0.0
  %v7216 = vmax.f32 %v7200, 0.0
  %v7217 = vmax.f32 %v7201, 0.0
  %v7218 = vmax.f32 %v7202, 0.0
  %v7219 = vmax.f32 %v7203, 0.0
  %v7220 = vmax.f32 %v7204, 0.0
  %v7221 = vmax.f32 %v7205, 0.0
  %v7222 = vmax.f32 %v7206, 0.0
  %v7223 = vmax.f32 %v7207, 0.0
  %v7224 = vmax.f32 %v7208, 0.0
  %v7225 = vmax.f32 %v7209, 0.0
  %v7226 = vmax.f32 %v7210, 0.0
  %v7227 = vmax.f32 %v7211, 0.0
  %v7228 = vmax.f32 %v7212, 0.0
  %v7229 = vsel %vm6786, %v7213, 0.0
  %v7230 = vsel %vm6787, %v7214, 0.0
  %v7231 = vsel %vm6788, %v7215, 0.0
  %v7232 = vsel %vm6789, %v7216, 0.0
  %v7233 = vsel %vm6790, %v7217, 0.0
  %v7234 = vsel %vm6791, %v7218, 0.0
  %v7235 = vsel %vm6792, %v7219, 0.0
  %v7236 = vsel %vm6793, %v7220, 0.0
  %v7237 = vsel %vm6794, %v7221, 0.0
  %v7238 = vsel %vm6795, %v7222, 0.0
  %v7239 = vsel %vm6796, %v7223, 0.0
  %v7240 = vsel %vm6797, %v7224, 0.0
  %v7241 = vsel %vm6798, %v7225, 0.0
  %v7242 = vsel %vm6799, %v7226, 0.0
  %v7243 = vsel %vm6800, %v7227, 0.0
  %v7244 = vsel %vm6801, %v7228, 0.0
  %v7261 = vrot.slane %v7229, 1
  %v7262 = vrot.slane %v7230, 1
  %v7263 = vsel %vm2645, %v7261, %v7262
  %v7264 = vrot.slane %v7231, 1
  %v7265 = vsel %vm2645, %v7262, %v7264
  %v7266 = vrot.slane %v7232, 1
  %v7267 = vsel %vm2645, %v7264, %v7266
  %v7268 = vrot.slane %v7233, 1
  %v7269 = vsel %vm2645, %v7266, %v7268
  %v7270 = vrot.slane %v7234, 1
  %v7271 = vsel %vm2645, %v7268, %v7270
  %v7272 = vrot.slane %v7235, 1
  %v7273 = vsel %vm2645, %v7270, %v7272
  %v7274 = vrot.slane %v7236, 1
  %v7275 = vsel %vm2645, %v7272, %v7274
  %v7276 = vrot.slane %v7237, 1
  %v7277 = vsel %vm2645, %v7274, %v7276
  %v7278 = vrot.slane %v7238, 1
  %v7279 = vsel %vm2645, %v7276, %v7278
  %v7280 = vrot.slane %v7239, 1
  %v7281 = vsel %vm2645, %v7278, %v7280
  %v7282 = vrot.slane %v7240, 1
  %v7283 = vsel %vm2645, %v7280, %v7282
  %v7284 = vrot.slane %v7241, 1
  %v7285 = vsel %vm2645, %v7282, %v7284
  %v7286 = vrot.slane %v7242, 1
  %v7287 = vsel %vm2645, %v7284, %v7286
  %v7288 = vrot.slane %v7243, 1
  %v7289 = vsel %vm2645, %v7286, %v7288
  %v7290 = vrot.slane %v7244, 1
  %v7291 = vsel %vm2645, %v7288, %v7290
  %v7293 = vsel %vm2798, %v7290, 0.0
  %v7294 = vrot.slane %v7229, 2
  %v7295 = vrot.slane %v7230, 2
  %v7296 = vsel %vm1411, %v7294, %v7295
  %v7297 = vrot.slane %v7231, 2
  %v7298 = vsel %vm1411, %v7295, %v7297
  %v7299 = vrot.slane %v7232, 2
  %v7300 = vsel %vm1411, %v7297, %v7299
  %v7301 = vrot.slane %v7233, 2
  %v7302 = vsel %vm1411, %v7299, %v7301
  %v7303 = vrot.slane %v7234, 2
  %v7304 = vsel %vm1411, %v7301, %v7303
  %v7305 = vrot.slane %v7235, 2
  %v7306 = vsel %vm1411, %v7303, %v7305
  %v7307 = vrot.slane %v7236, 2
  %v7308 = vsel %vm1411, %v7305, %v7307
  %v7309 = vrot.slane %v7237, 2
  %v7310 = vsel %vm1411, %v7307, %v7309
  %v7311 = vrot.slane %v7238, 2
  %v7312 = vsel %vm1411, %v7309, %v7311
  %v7313 = vrot.slane %v7239, 2
  %v7314 = vsel %vm1411, %v7311, %v7313
  %v7315 = vrot.slane %v7240, 2
  %v7316 = vsel %vm1411, %v7313, %v7315
  %v7317 = vrot.slane %v7241, 2
  %v7318 = vsel %vm1411, %v7315, %v7317
  %v7319 = vrot.slane %v7242, 2
  %v7320 = vsel %vm1411, %v7317, %v7319
  %v7321 = vrot.slane %v7243, 2
  %v7322 = vsel %vm1411, %v7319, %v7321
  %v7323 = vrot.slane %v7244, 2
  %v7324 = vsel %vm1411, %v7321, %v7323
  %v7326 = vsel %vm2952, %v7323, 0.0
  %v7327 = vsel %vm2798, %v7326, 0.0
  %7329 = vrot.lane.b32.xlu0 %v7263, 32
  %v7330 = vpop.permute.xlu0 %7329
  %7331 = vrot.lane.b32.xlu0 %v7265, 32
  %v7332 = vpop.permute.xlu0 %7331
  %7333 = vrot.lane.b32.xlu0 %v7267, 32
  %v7334 = vpop.permute.xlu0 %7333
  %7335 = vrot.lane.b32.xlu0 %v7269, 32
  %v7336 = vpop.permute.xlu0 %7335
  %7337 = vrot.lane.b32.xlu0 %v7271, 32
  %v7338 = vpop.permute.xlu0 %7337
  %7339 = vrot.lane.b32.xlu0 %v7273, 32
  %v7340 = vpop.permute.xlu0 %7339
  %7341 = vrot.lane.b32.xlu0 %v7275, 32
  %v7342 = vpop.permute.xlu0 %7341
  %7343 = vrot.lane.b32.xlu0 %v7277, 32
  %v7344 = vpop.permute.xlu0 %7343
  %7345 = vrot.lane.b32.xlu0 %v7279, 32
  %v7346 = vpop.permute.xlu0 %7345
  %7347 = vrot.lane.b32.xlu0 %v7281, 32
  %v7348 = vpop.permute.xlu0 %7347
  %7349 = vrot.lane.b32.xlu0 %v7283, 32
  %v7350 = vpop.permute.xlu0 %7349
  %7351 = vrot.lane.b32.xlu0 %v7285, 32
  %v7352 = vpop.permute.xlu0 %7351
  %7353 = vrot.lane.b32.xlu0 %v7287, 32
  %v7354 = vpop.permute.xlu0 %7353
  %7355 = vrot.lane.b32.xlu0 %v7289, 32
  %v7356 = vpop.permute.xlu0 %7355
  %7357 = vrot.lane.b32.xlu0 %v7291, 32
  %v7358 = vpop.permute.xlu0 %7357
  %7359 = vrot.lane.b32.xlu0 %v7293, 32
  %v7360 = vpop.permute.xlu0 %7359
  %7378 = vrot.lane.b32.xlu0 %v7296, 64
  %v7379 = vpop.permute.xlu0 %7378
  %7380 = vrot.lane.b32.xlu0 %v7298, 64
  %v7381 = vpop.permute.xlu0 %7380
  %7382 = vrot.lane.b32.xlu0 %v7300, 64
  %v7383 = vpop.permute.xlu0 %7382
  %7384 = vrot.lane.b32.xlu0 %v7302, 64
  %v7385 = vpop.permute.xlu0 %7384
  %7386 = vrot.lane.b32.xlu0 %v7304, 64
  %v7387 = vpop.permute.xlu0 %7386
  %7388 = vrot.lane.b32.xlu0 %v7306, 64
  %v7389 = vpop.permute.xlu0 %7388
  %7390 = vrot.lane.b32.xlu0 %v7308, 64
  %v7391 = vpop.permute.xlu0 %7390
  %7392 = vrot.lane.b32.xlu0 %v7310, 64
  %v7393 = vpop.permute.xlu0 %7392
  %7394 = vrot.lane.b32.xlu0 %v7312, 64
  %v7395 = vpop.permute.xlu0 %7394
  %7396 = vrot.lane.b32.xlu0 %v7314, 64
  %v7397 = vpop.permute.xlu0 %7396
  %7398 = vrot.lane.b32.xlu0 %v7316, 64
  %v7399 = vpop.permute.xlu0 %7398
  %7400 = vrot.lane.b32.xlu0 %v7318, 64
  %v7401 = vpop.permute.xlu0 %7400
  %7402 = vrot.lane.b32.xlu0 %v7320, 64
  %v7403 = vpop.permute.xlu0 %7402
  %7404 = vrot.lane.b32.xlu0 %v7322, 64
  %v7405 = vpop.permute.xlu0 %7404
  %7406 = vrot.lane.b32.xlu0 %v7324, 64
  %v7407 = vpop.permute.xlu0 %7406
  %7408 = vrot.lane.b32.xlu0 %v7327, 64
  %v7409 = vpop.permute.xlu0 %7408
  %v7426 = vsel %vm1696, %v7229, %v7330
  %v7427 = vsel %vm1696, %v7230, %v7332
  %v7428 = vsel %vm1696, %v7231, %v7334
  %v7429 = vsel %vm1696, %v7232, %v7336
  %v7430 = vsel %vm1696, %v7233, %v7338
  %v7431 = vsel %vm1696, %v7234, %v7340
  %v7432 = vsel %vm1696, %v7235, %v7342
  %v7433 = vsel %vm1696, %v7236, %v7344
  %v7434 = vsel %vm1696, %v7237, %v7346
  %v7435 = vsel %vm1696, %v7238, %v7348
  %v7436 = vsel %vm1696, %v7239, %v7350
  %v7437 = vsel %vm1696, %v7240, %v7352
  %v7438 = vsel %vm1696, %v7241, %v7354
  %v7439 = vsel %vm1696, %v7242, %v7356
  %v7440 = vsel %vm1696, %v7243, %v7358
  %v7441 = vsel %vm1696, %v7244, %v7360
  %v7442 = vsel %vm3489, %v7426, %v7379
  %v7443 = vsel %vm3489, %v7427, %v7381
  %v7444 = vsel %vm3489, %v7428, %v7383
  %v7445 = vsel %vm3489, %v7429, %v7385
  %v7446 = vsel %vm3489, %v7430, %v7387
  %v7447 = vsel %vm3489, %v7431, %v7389
  %v7448 = vsel %vm3489, %v7432, %v7391
  %v7449 = vsel %vm3489, %v7433, %v7393
  %v7450 = vsel %vm3489, %v7434, %v7395
  %v7451 = vsel %vm3489, %v7435, %v7397
  %v7452 = vsel %vm3489, %v7436, %v7399
  %v7453 = vsel %vm3489, %v7437, %v7401
  %v7454 = vsel %vm3489, %v7438, %v7403
  %v7455 = vsel %vm3489, %v7439, %v7405
  %v7456 = vsel %vm3489, %v7440, %v7407
  %v7457 = vsel %vm3489, %v7441, %v7409
  %v7458 = vpack.c.bf16 %v7443, %v7442
  %v7459 = vpack.c.bf16 %v7445, %v7444
  %v7460 = vpack.c.bf16 %v7447, %v7446
  %v7461 = vpack.c.bf16 %v7449, %v7448
  %v7462 = vpack.c.bf16 %v7451, %v7450
  %v7463 = vpack.c.bf16 %v7453, %v7452
  %v7464 = vpack.c.bf16 %v7455, %v7454
  %v7465 = vpack.c.bf16 %v7457, %v7456
  %v7466 = vld [vmem:[%s7 + $0x30] sm:$0xf]
  %v7467 = vld [vmem:[%s7 + $0x34] sm:$0xf]
  %v7468 = vld [vmem:[%s7 + $0x38] sm:$0xf]
  %v7469 = vld [vmem:[%s7 + $0x3c] sm:$0xf]
  %v7470 = vld [vmem:[%s7 + $0x40] sm:$0xf]
  %v7471 = vld [vmem:[%s7 + $0x44] sm:$0xf]
  %v7472 = vld [vmem:[%s7 + $0x48] sm:$0xf]
  %v7473 = vld [vmem:[%s7 + $0x4c] sm:$0xf]
  %v7474 = vld [vmem:[%s7 + $0x50] sm:$0xf]
  %v7475 = vld [vmem:[%s7 + $0x54] sm:$0xf]
  %v7476 = vld [vmem:[%s7 + $0x58] sm:$0xf]
  %v7477 = vld [vmem:[%s7 + $0x5c] sm:$0xf]
  %v7490 = vunpack.c.l.b16 %v7466
  %v7491 = vunpack.c.l.b16 %v7467
  %v7492 = vunpack.c.l.b16 %v7468
  %v7493 = vunpack.c.l.b16 %v7469
  %v7494 = vunpack.c.l.b16 %v7470
  %v7495 = vunpack.c.l.b16 %v7471
  %v7496 = vunpack.c.l.b16 %v7472
  %v7497 = vunpack.c.l.b16 %v7473
  %v7498 = vunpack.c.l.b16 %v7474
  %v7499 = vunpack.c.l.b16 %v7475
  %v7500 = vunpack.c.l.b16 %v7476
  %v7501 = vunpack.c.l.b16 %v7477
  %v7502 = vpack.c.b16 %v7491, %v7490
  %v7503 = vpack.c.b16 %v7493, %v7492
  %v7504 = vpack.c.b16 %v7495, %v7494
  %v7505 = vpack.c.b16 %v7497, %v7496
  %v7506 = vpack.c.b16 %v7499, %v7498
  %v7507 = vpack.c.b16 %v7501, %v7500
  %v7515 = vsel %vm3652, %v7458, 0
  %v7518 = vsel %vm3652, %v7459, 0
  %v7521 = vsel %vm3652, %v7460, 0
  %v7524 = vsel %vm3652, %v7461, 0
  %v7527 = vsel %vm3652, %v7462, 0
  %v7530 = vsel %vm3652, %v7463, 0
  %v7533 = vsel %vm3652, %v7464, 0
  %v7536 = vsel %vm3652, %v7465, 0
  %7538 = vmatpush.bf16.msra.mxu0 0
  %7539 = vmatpush.bf16.msra.mxu0 0
  %7540 = vmatpush.bf16.msra.mxu0 %v7507
  %7541 = vmatpush.bf16.msra.mxu0 %v7506
  %7542 = vmatpush.bf16.msra.mxu0 %v7505
  %7543 = vmatpush.bf16.msra.mxu0 %v7504
  %7544 = vmatpush.bf16.msra.mxu0 %v7503
  %7545 = vmatpush.bf16.msra.mxu0 %v7502
  %7546 = vmatmul.bf16.gmra.mxu0 %v7515
  %v7547 = vpop.f32.mrf.mxu0
  %v7548 = vadd.f32 0.0, %v7547
  %v7549 = vpop.f32.mrf.mxu0
  %v7550 = vadd.f32 0.0, %v7549
  %7551 = vmatmul.bf16.gmra.mxu0 %v7518
  %v7552 = vpop.f32.mrf.mxu0
  %v7553 = vadd.f32 0.0, %v7552
  %v7554 = vpop.f32.mrf.mxu0
  %v7555 = vadd.f32 0.0, %v7554
  %7556 = vmatmul.bf16.gmra.mxu0 %v7521
  %v7557 = vpop.f32.mrf.mxu0
  %v7558 = vadd.f32 0.0, %v7557
  %v7559 = vpop.f32.mrf.mxu0
  %v7560 = vadd.f32 0.0, %v7559
  %7561 = vmatmul.bf16.gmra.mxu0 %v7524
  %v7562 = vpop.f32.mrf.mxu0
  %v7563 = vadd.f32 0.0, %v7562
  %v7564 = vpop.f32.mrf.mxu0
  %v7565 = vadd.f32 0.0, %v7564
  %7566 = vmatmul.bf16.gmra.mxu0 %v7527
  %v7567 = vpop.f32.mrf.mxu0
  %v7568 = vadd.f32 0.0, %v7567
  %v7569 = vpop.f32.mrf.mxu0
  %v7570 = vadd.f32 0.0, %v7569
  %7571 = vmatmul.bf16.gmra.mxu0 %v7530
  %v7572 = vpop.f32.mrf.mxu0
  %v7573 = vadd.f32 0.0, %v7572
  %v7574 = vpop.f32.mrf.mxu0
  %v7575 = vadd.f32 0.0, %v7574
  %7576 = vmatmul.bf16.gmra.mxu0 %v7533
  %v7577 = vpop.f32.mrf.mxu0
  %v7578 = vadd.f32 0.0, %v7577
  %v7579 = vpop.f32.mrf.mxu0
  %v7580 = vadd.f32 0.0, %v7579
  %7581 = vmatmul.bf16.gmra.mxu0 %v7536
  %v7582 = vpop.f32.mrf.mxu0
  %v7583 = vadd.f32 0.0, %v7582
  %v7584 = vpop.f32.mrf.mxu0
  %v7585 = vadd.f32 0.0, %v7584
  %7586 = vdwg.mxu0
  %v7587 = vsel %vm6834, %v7548, 0.0
  %v7588 = vsel %vm6835, %v7550, 0.0
  %v7589 = vsel %vm6836, %v7553, 0.0
  %v7590 = vsel %vm6837, %v7555, 0.0
  %v7591 = vsel %vm6838, %v7558, 0.0
  %v7592 = vsel %vm6839, %v7560, 0.0
  %v7593 = vsel %vm6840, %v7563, 0.0
  %v7594 = vsel %vm6841, %v7565, 0.0
  %v7595 = vsel %vm6842, %v7568, 0.0
  %v7596 = vsel %vm6843, %v7570, 0.0
  %v7597 = vsel %vm6844, %v7573, 0.0
  %v7598 = vsel %vm6845, %v7575, 0.0
  %v7599 = vsel %vm6846, %v7578, 0.0
  %v7600 = vsel %vm6847, %v7580, 0.0
  %v7601 = vsel %vm6848, %v7583, 0.0
  %v7602 = vsel %vm6849, %v7585, 0.0
  %v7603 = vsel %vm1696, %v7587, 0.0
  %v7604 = vsel %vm1696, %v7588, 0.0
  %v7605 = vadd.f32 %v7603, %v7604
  %v7606 = vsel %vm1696, %v7589, 0.0
  %v7607 = vadd.f32 %v7605, %v7606
  %v7608 = vsel %vm1696, %v7590, 0.0
  %v7609 = vadd.f32 %v7607, %v7608
  %v7610 = vsel %vm1696, %v7591, 0.0
  %v7611 = vadd.f32 %v7609, %v7610
  %v7612 = vsel %vm1696, %v7592, 0.0
  %v7613 = vadd.f32 %v7611, %v7612
  %v7614 = vsel %vm1696, %v7593, 0.0
  %v7615 = vadd.f32 %v7613, %v7614
  %v7616 = vsel %vm1696, %v7594, 0.0
  %v7617 = vadd.f32 %v7615, %v7616
  %v7618 = vsel %vm1696, %v7595, 0.0
  %v7619 = vadd.f32 %v7617, %v7618
  %v7620 = vsel %vm1696, %v7596, 0.0
  %v7621 = vadd.f32 %v7619, %v7620
  %v7622 = vsel %vm1696, %v7597, 0.0
  %v7623 = vadd.f32 %v7621, %v7622
  %v7624 = vsel %vm1696, %v7598, 0.0
  %v7625 = vadd.f32 %v7623, %v7624
  %v7626 = vsel %vm1696, %v7599, 0.0
  %v7627 = vadd.f32 %v7625, %v7626
  %v7628 = vsel %vm1696, %v7600, 0.0
  %v7629 = vadd.f32 %v7627, %v7628
  %v7630 = vsel %vm1696, %v7601, 0.0
  %v7631 = vadd.f32 %v7629, %v7630
  %v7632 = vsel %vm1846, %v7602, 0.0
  %v7633 = vadd.f32 %v7631, %v7632
  %v7634 = vrot.slane %v7633, 4
  %v7635 = vadd.f32 %v7633, %v7634
  %v7636 = vrot.slane %v7635, 2
  %v7637 = vadd.f32 %v7635, %v7636
  %v7638 = vrot.slane %v7637, 1
  %v7639 = vadd.f32 %v7637, %v7638
  %v7640 = vmul.f32 %v7639, %v7077
  %v7641 = vsub.f32 %v7548, %v7640
  %v7642 = vsub.f32 %v7550, %v7640
  %v7643 = vsub.f32 %v7553, %v7640
  %v7644 = vsub.f32 %v7555, %v7640
  %v7645 = vsub.f32 %v7558, %v7640
  %v7646 = vsub.f32 %v7560, %v7640
  %v7647 = vsub.f32 %v7563, %v7640
  %v7648 = vsub.f32 %v7565, %v7640
  %v7649 = vsub.f32 %v7568, %v7640
  %v7650 = vsub.f32 %v7570, %v7640
  %v7651 = vsub.f32 %v7573, %v7640
  %v7652 = vsub.f32 %v7575, %v7640
  %v7653 = vsub.f32 %v7578, %v7640
  %v7654 = vsub.f32 %v7580, %v7640
  %v7655 = vsub.f32 %v7583, %v7640
  %v7656 = vsub.f32 %v7585, %v7640
  %v7657 = vmul.f32 %v7641, %v7641
  %v7658 = vmul.f32 %v7642, %v7642
  %v7659 = vmul.f32 %v7643, %v7643
  %v7660 = vmul.f32 %v7644, %v7644
  %v7661 = vmul.f32 %v7645, %v7645
  %v7662 = vmul.f32 %v7646, %v7646
  %v7663 = vmul.f32 %v7647, %v7647
  %v7664 = vmul.f32 %v7648, %v7648
  %v7665 = vmul.f32 %v7649, %v7649
  %v7666 = vmul.f32 %v7650, %v7650
  %v7667 = vmul.f32 %v7651, %v7651
  %v7668 = vmul.f32 %v7652, %v7652
  %v7669 = vmul.f32 %v7653, %v7653
  %v7670 = vmul.f32 %v7654, %v7654
  %v7671 = vmul.f32 %v7655, %v7655
  %v7672 = vmul.f32 %v7656, %v7656
  %v7673 = vsel %vm6834, %v7657, 0.0
  %v7674 = vsel %vm6835, %v7658, 0.0
  %v7675 = vsel %vm6836, %v7659, 0.0
  %v7676 = vsel %vm6837, %v7660, 0.0
  %v7677 = vsel %vm6838, %v7661, 0.0
  %v7678 = vsel %vm6839, %v7662, 0.0
  %v7679 = vsel %vm6840, %v7663, 0.0
  %v7680 = vsel %vm6841, %v7664, 0.0
  %v7681 = vsel %vm6842, %v7665, 0.0
  %v7682 = vsel %vm6843, %v7666, 0.0
  %v7683 = vsel %vm6844, %v7667, 0.0
  %v7684 = vsel %vm6845, %v7668, 0.0
  %v7685 = vsel %vm6846, %v7669, 0.0
  %v7686 = vsel %vm6847, %v7670, 0.0
  %v7687 = vsel %vm6848, %v7671, 0.0
  %v7688 = vsel %vm6849, %v7672, 0.0
  %v7689 = vsel %vm1696, %v7673, 0.0
  %v7690 = vsel %vm1696, %v7674, 0.0
  %v7691 = vadd.f32 %v7689, %v7690
  %v7692 = vsel %vm1696, %v7675, 0.0
  %v7693 = vadd.f32 %v7691, %v7692
  %v7694 = vsel %vm1696, %v7676, 0.0
  %v7695 = vadd.f32 %v7693, %v7694
  %v7696 = vsel %vm1696, %v7677, 0.0
  %v7697 = vadd.f32 %v7695, %v7696
  %v7698 = vsel %vm1696, %v7678, 0.0
  %v7699 = vadd.f32 %v7697, %v7698
  %v7700 = vsel %vm1696, %v7679, 0.0
  %v7701 = vadd.f32 %v7699, %v7700
  %v7702 = vsel %vm1696, %v7680, 0.0
  %v7703 = vadd.f32 %v7701, %v7702
  %v7704 = vsel %vm1696, %v7681, 0.0
  %v7705 = vadd.f32 %v7703, %v7704
  %v7706 = vsel %vm1696, %v7682, 0.0
  %v7707 = vadd.f32 %v7705, %v7706
  %v7708 = vsel %vm1696, %v7683, 0.0
  %v7709 = vadd.f32 %v7707, %v7708
  %v7710 = vsel %vm1696, %v7684, 0.0
  %v7711 = vadd.f32 %v7709, %v7710
  %v7712 = vsel %vm1696, %v7685, 0.0
  %v7713 = vadd.f32 %v7711, %v7712
  %v7714 = vsel %vm1696, %v7686, 0.0
  %v7715 = vadd.f32 %v7713, %v7714
  %v7716 = vsel %vm1696, %v7687, 0.0
  %v7717 = vadd.f32 %v7715, %v7716
  %v7718 = vsel %vm1846, %v7688, 0.0
  %v7719 = vadd.f32 %v7717, %v7718
  %v7720 = vrot.slane %v7719, 4
  %v7721 = vadd.f32 %v7719, %v7720
  %v7722 = vrot.slane %v7721, 2
  %v7723 = vadd.f32 %v7721, %v7722
  %v7724 = vrot.slane %v7723, 1
  %v7725 = vadd.f32 %v7723, %v7724
  %v7726 = vmul.f32 %v7725, %v7077
  %v7727 = vadd.f32 %v7726, 1e-05
  %v7728 = vrsqrt.pop %v7727
  %v7729 = vmul.f32 %v7728, %v7727
  %v7730 = vmul.f32 %v7729, %v7728
  %v7731 = vmul.f32 0.5, %v7730
  %v7732 = vsub.f32 1.5, %v7731
  %v7733 = vmul.f32 %v7728, %v7732
  %vm7734 = vweird.f32 %v7727
  %vm7735 = vweird.f32 %v7728
  %vm7736 = vmor %vm7734, %vm7735
  %v7737 = vsel %vm7736, %v7728, %v7733
  %v7738 = vmul.f32 %v7016, %v7737
  %v7739 = vmul.f32 %v7640, %v7738
  %v7740 = vsub.f32 %v7017, %v7739
  %v7741 = vperm.slane %v7738, 0
  %v7742 = vmul.f32 %v7548, %v7741
  %v7743 = vmul.f32 %v7550, %v7741
  %v7744 = vmul.f32 %v7553, %v7741
  %v7745 = vmul.f32 %v7555, %v7741
  %v7746 = vmul.f32 %v7558, %v7741
  %v7747 = vmul.f32 %v7560, %v7741
  %v7748 = vmul.f32 %v7563, %v7741
  %v7749 = vmul.f32 %v7565, %v7741
  %v7750 = vmul.f32 %v7568, %v7741
  %v7751 = vmul.f32 %v7570, %v7741
  %v7752 = vmul.f32 %v7573, %v7741
  %v7753 = vmul.f32 %v7575, %v7741
  %v7754 = vmul.f32 %v7578, %v7741
  %v7755 = vmul.f32 %v7580, %v7741
  %v7756 = vmul.f32 %v7583, %v7741
  %v7757 = vmul.f32 %v7585, %v7741
  %v7758 = vperm.slane %v7740, 0
  %v7759 = vadd.f32 %v7742, %v7758
  %v7760 = vadd.f32 %v7743, %v7758
  %v7761 = vadd.f32 %v7744, %v7758
  %v7762 = vadd.f32 %v7745, %v7758
  %v7763 = vadd.f32 %v7746, %v7758
  %v7764 = vadd.f32 %v7747, %v7758
  %v7765 = vadd.f32 %v7748, %v7758
  %v7766 = vadd.f32 %v7749, %v7758
  %v7767 = vadd.f32 %v7750, %v7758
  %v7768 = vadd.f32 %v7751, %v7758
  %v7769 = vadd.f32 %v7752, %v7758
  %v7770 = vadd.f32 %v7753, %v7758
  %v7771 = vadd.f32 %v7754, %v7758
  %v7772 = vadd.f32 %v7755, %v7758
  %v7773 = vadd.f32 %v7756, %v7758
  %v7774 = vadd.f32 %v7757, %v7758
  %v7775 = vmax.f32 %v7759, 0.0
  %v7776 = vmax.f32 %v7760, 0.0
  %v7777 = vmax.f32 %v7761, 0.0
  %v7778 = vmax.f32 %v7762, 0.0
  %v7779 = vmax.f32 %v7763, 0.0
  %v7780 = vmax.f32 %v7764, 0.0
  %v7781 = vmax.f32 %v7765, 0.0
  %v7782 = vmax.f32 %v7766, 0.0
  %v7783 = vmax.f32 %v7767, 0.0
  %v7784 = vmax.f32 %v7768, 0.0
  %v7785 = vmax.f32 %v7769, 0.0
  %v7786 = vmax.f32 %v7770, 0.0
  %v7787 = vmax.f32 %v7771, 0.0
  %v7788 = vmax.f32 %v7772, 0.0
  %v7789 = vmax.f32 %v7773, 0.0
  %v7790 = vmax.f32 %v7774, 0.0
  %vm7791 = vcmp.lt.s32.totalorder %v34, 30
  %vm7792 = vcmp.lt.s32.totalorder %v35, 30
  %vm7793 = vcmp.lt.s32.totalorder %v36, 30
  %vm7794 = vcmp.lt.s32.totalorder %v37, 30
  %vm7795 = vcmp.lt.s32.totalorder %v38, 30
  %vm7796 = vcmp.lt.s32.totalorder %v39, 30
  %vm7797 = vcmp.lt.s32.totalorder %v40, 30
  %vm7798 = vcmp.lt.s32.totalorder %v41, 30
  %vm7799 = vcmp.lt.s32.totalorder %v42, 30
  %vm7800 = vcmp.lt.s32.totalorder %v43, 30
  %vm7801 = vcmp.lt.s32.totalorder %v44, 30
  %vm7802 = vcmp.lt.s32.totalorder %v45, 30
  %vm7803 = vcmp.lt.s32.totalorder %v46, 30
  %vm7804 = vcmp.lt.s32.totalorder %v47, 30
  %vm7805 = vcmp.lt.s32.totalorder %v48, 30
  %vm7806 = vcmp.lt.s32.totalorder %v49, 30
  %vm7807 = vmand %vm4830, %vm7791
  %vm7808 = vmand %vm4831, %vm7792
  %vm7809 = vmand %vm4832, %vm7793
  %vm7810 = vmand %vm4833, %vm7794
  %vm7811 = vmand %vm4834, %vm7795
  %vm7812 = vmand %vm4835, %vm7796
  %vm7813 = vmand %vm4836, %vm7797
  %vm7814 = vmand %vm4837, %vm7798
  %vm7815 = vmand %vm4838, %vm7799
  %vm7816 = vmand %vm4839, %vm7800
  %vm7817 = vmand %vm4840, %vm7801
  %vm7818 = vmand %vm4841, %vm7802
  %vm7819 = vmand %vm4842, %vm7803
  %vm7820 = vmand %vm4843, %vm7804
  %vm7821 = vmand %vm4844, %vm7805
  %vm7822 = vmand %vm4845, %vm7806
  %v7823 = vsel %vm7807, %v7775, 0.0
  %v7824 = vsel %vm7808, %v7776, 0.0
  %v7825 = vsel %vm7809, %v7777, 0.0
  %v7826 = vsel %vm7810, %v7778, 0.0
  %v7827 = vsel %vm7811, %v7779, 0.0
  %v7828 = vsel %vm7812, %v7780, 0.0
  %v7829 = vsel %vm7813, %v7781, 0.0
  %v7830 = vsel %vm7814, %v7782, 0.0
  %v7831 = vsel %vm7815, %v7783, 0.0
  %v7832 = vsel %vm7816, %v7784, 0.0
  %v7833 = vsel %vm7817, %v7785, 0.0
  %v7834 = vsel %vm7818, %v7786, 0.0
  %v7835 = vsel %vm7819, %v7787, 0.0
  %v7836 = vsel %vm7820, %v7788, 0.0
  %v7837 = vsel %vm7821, %v7789, 0.0
  %v7838 = vsel %vm7822, %v7790, 0.0
  %v7839 = vsel %vm1696, %v7823, -inf
  %v7840 = vsel %vm1696, %v7824, -inf
  %v7841 = vsel %vm1696, %v7825, -inf
  %v7842 = vsel %vm1696, %v7826, -inf
  %v7843 = vsel %vm1696, %v7827, -inf
  %v7844 = vmax.f32 %v7839, %v7843
  %v7845 = vsel %vm1696, %v7828, -inf
  %v7846 = vmax.f32 %v7840, %v7845
  %v7847 = vsel %vm1696, %v7829, -inf
  %v7848 = vmax.f32 %v7841, %v7847
  %v7849 = vsel %vm1696, %v7830, -inf
  %v7850 = vmax.f32 %v7842, %v7849
  %v7851 = vsel %vm1696, %v7831, -inf
  %v7852 = vmax.f32 %v7844, %v7851
  %v7853 = vsel %vm1696, %v7832, -inf
  %v7854 = vmax.f32 %v7846, %v7853
  %v7855 = vsel %vm1696, %v7833, -inf
  %v7856 = vmax.f32 %v7848, %v7855
  %v7857 = vsel %vm1696, %v7834, -inf
  %v7858 = vmax.f32 %v7850, %v7857
  %v7859 = vsel %vm1696, %v7835, -inf
  %v7860 = vmax.f32 %v7852, %v7859
  %v7861 = vsel %vm1696, %v7836, -inf
  %v7862 = vmax.f32 %v7854, %v7861
  %v7863 = vsel %vm1696, %v7837, -inf
  %v7864 = vmax.f32 %v7856, %v7863
  %v7865 = vsel %vm1846, %v7838, -inf
  %v7866 = vmax.f32 %v7858, %v7865
  %v7867 = vmax.f32 %v7860, %v7862
  %v7868 = vmax.f32 %v7864, %v7866
  %v7869 = vmax.f32 %v7867, %v7868
  %v7870 = vrot.slane %v7869, 4
  %v7871 = vmax.f32 %v7869, %v7870
  %v7872 = vrot.slane %v7871, 2
  %v7873 = vmax.f32 %v7871, %v7872
  %v7874 = vrot.slane %v7873, 1
  %v7875 = vmax.f32 %v7873, %v7874
  %vm7876 = vcmp.ge.s32.totalorder %v34, 30
  %vm7877 = vcmp.ge.s32.totalorder %v35, 30
  %vm7878 = vcmp.ge.s32.totalorder %v36, 30
  %vm7879 = vcmp.ge.s32.totalorder %v37, 30
  %vm7880 = vcmp.ge.s32.totalorder %v38, 30
  %vm7881 = vcmp.ge.s32.totalorder %v39, 30
  %vm7882 = vcmp.ge.s32.totalorder %v40, 30
  %vm7883 = vcmp.ge.s32.totalorder %v41, 30
  %vm7884 = vcmp.ge.s32.totalorder %v42, 30
  %vm7885 = vcmp.ge.s32.totalorder %v43, 30
  %vm7886 = vcmp.ge.s32.totalorder %v44, 30
  %vm7887 = vcmp.ge.s32.totalorder %v45, 30
  %vm7888 = vcmp.ge.s32.totalorder %v46, 30
  %vm7889 = vcmp.ge.s32.totalorder %v47, 30
  %vm7890 = vcmp.ge.s32.totalorder %v48, 30
  %vm7891 = vcmp.ge.s32.totalorder %v49, 30
  %vm7892 = vcmp.lt.s32.totalorder %v34, 60
  %vm7893 = vcmp.lt.s32.totalorder %v35, 60
  %vm7894 = vcmp.lt.s32.totalorder %v36, 60
  %vm7895 = vcmp.lt.s32.totalorder %v37, 60
  %vm7896 = vcmp.lt.s32.totalorder %v38, 60
  %vm7897 = vcmp.lt.s32.totalorder %v39, 60
  %vm7898 = vcmp.lt.s32.totalorder %v40, 60
  %vm7899 = vcmp.lt.s32.totalorder %v41, 60
  %vm7900 = vcmp.lt.s32.totalorder %v42, 60
  %vm7901 = vcmp.lt.s32.totalorder %v43, 60
  %vm7902 = vcmp.lt.s32.totalorder %v44, 60
  %vm7903 = vcmp.lt.s32.totalorder %v45, 60
  %vm7904 = vcmp.lt.s32.totalorder %v46, 60
  %vm7905 = vcmp.lt.s32.totalorder %v47, 60
  %vm7906 = vcmp.lt.s32.totalorder %v48, 60
  %vm7907 = vcmp.lt.s32.totalorder %v49, 60
  %vm7908 = vmand %vm7876, %vm7892
  %vm7909 = vmand %vm7877, %vm7893
  %vm7910 = vmand %vm7878, %vm7894
  %vm7911 = vmand %vm7879, %vm7895
  %vm7912 = vmand %vm7880, %vm7896
  %vm7913 = vmand %vm7881, %vm7897
  %vm7914 = vmand %vm7882, %vm7898
  %vm7915 = vmand %vm7883, %vm7899
  %vm7916 = vmand %vm7884, %vm7900
  %vm7917 = vmand %vm7885, %vm7901
  %vm7918 = vmand %vm7886, %vm7902
  %vm7919 = vmand %vm7887, %vm7903
  %vm7920 = vmand %vm7888, %vm7904
  %vm7921 = vmand %vm7889, %vm7905
  %vm7922 = vmand %vm7890, %vm7906
  %vm7923 = vmand %vm7891, %vm7907
  %v7924 = vsel %vm7908, %v7775, 0.0
  %v7925 = vsel %vm7909, %v7776, 0.0
  %v7926 = vsel %vm7910, %v7777, 0.0
  %v7927 = vsel %vm7911, %v7778, 0.0
  %v7928 = vsel %vm7912, %v7779, 0.0
  %v7929 = vsel %vm7913, %v7780, 0.0
  %v7930 = vsel %vm7914, %v7781, 0.0
  %v7931 = vsel %vm7915, %v7782, 0.0
  %v7932 = vsel %vm7916, %v7783, 0.0
  %v7933 = vsel %vm7917, %v7784, 0.0
  %v7934 = vsel %vm7918, %v7785, 0.0
  %v7935 = vsel %vm7919, %v7786, 0.0
  %v7936 = vsel %vm7920, %v7787, 0.0
  %v7937 = vsel %vm7921, %v7788, 0.0
  %v7938 = vsel %vm7922, %v7789, 0.0
  %v7939 = vsel %vm7923, %v7790, 0.0
  %v7940 = vsel %vm1696, %v7924, -inf
  %v7941 = vsel %vm1696, %v7925, -inf
  %v7942 = vsel %vm1696, %v7926, -inf
  %v7943 = vsel %vm1696, %v7927, -inf
  %v7944 = vsel %vm1696, %v7928, -inf
  %v7945 = vmax.f32 %v7940, %v7944
  %v7946 = vsel %vm1696, %v7929, -inf
  %v7947 = vmax.f32 %v7941, %v7946
  %v7948 = vsel %vm1696, %v7930, -inf
  %v7949 = vmax.f32 %v7942, %v7948
  %v7950 = vsel %vm1696, %v7931, -inf
  %v7951 = vmax.f32 %v7943, %v7950
  %v7952 = vsel %vm1696, %v7932, -inf
  %v7953 = vmax.f32 %v7945, %v7952
  %v7954 = vsel %vm1696, %v7933, -inf
  %v7955 = vmax.f32 %v7947, %v7954
  %v7956 = vsel %vm1696, %v7934, -inf
  %v7957 = vmax.f32 %v7949, %v7956
  %v7958 = vsel %vm1696, %v7935, -inf
  %v7959 = vmax.f32 %v7951, %v7958
  %v7960 = vsel %vm1696, %v7936, -inf
  %v7961 = vmax.f32 %v7953, %v7960
  %v7962 = vsel %vm1696, %v7937, -inf
  %v7963 = vmax.f32 %v7955, %v7962
  %v7964 = vsel %vm1696, %v7938, -inf
  %v7965 = vmax.f32 %v7957, %v7964
  %v7966 = vsel %vm1846, %v7939, -inf
  %v7967 = vmax.f32 %v7959, %v7966
  %v7968 = vmax.f32 %v7961, %v7963
  %v7969 = vmax.f32 %v7965, %v7967
  %v7970 = vmax.f32 %v7968, %v7969
  %v7971 = vrot.slane %v7970, 4
  %v7972 = vmax.f32 %v7970, %v7971
  %v7973 = vrot.slane %v7972, 2
  %v7974 = vmax.f32 %v7972, %v7973
  %v7975 = vrot.slane %v7974, 1
  %v7976 = vmax.f32 %v7974, %v7975
  %vm7977 = vcmp.ge.s32.totalorder %v34, 62
  %vm7978 = vcmp.ge.s32.totalorder %v35, 62
  %vm7979 = vcmp.ge.s32.totalorder %v36, 62
  %vm7980 = vcmp.ge.s32.totalorder %v37, 62
  %vm7981 = vcmp.ge.s32.totalorder %v38, 62
  %vm7982 = vcmp.ge.s32.totalorder %v39, 62
  %vm7983 = vcmp.ge.s32.totalorder %v40, 62
  %vm7984 = vcmp.ge.s32.totalorder %v41, 62
  %vm7985 = vcmp.ge.s32.totalorder %v42, 62
  %vm7986 = vcmp.ge.s32.totalorder %v43, 62
  %vm7987 = vcmp.ge.s32.totalorder %v44, 62
  %vm7988 = vcmp.ge.s32.totalorder %v45, 62
  %vm7989 = vcmp.ge.s32.totalorder %v46, 62
  %vm7990 = vcmp.ge.s32.totalorder %v47, 62
  %vm7991 = vcmp.ge.s32.totalorder %v48, 62
  %vm7992 = vcmp.ge.s32.totalorder %v49, 62
  %vm7993 = vcmp.lt.s32.totalorder %v34, 92
  %vm7994 = vcmp.lt.s32.totalorder %v35, 92
  %vm7995 = vcmp.lt.s32.totalorder %v36, 92
  %vm7996 = vcmp.lt.s32.totalorder %v37, 92
  %vm7997 = vcmp.lt.s32.totalorder %v38, 92
  %vm7998 = vcmp.lt.s32.totalorder %v39, 92
  %vm7999 = vcmp.lt.s32.totalorder %v40, 92
  %vm8000 = vcmp.lt.s32.totalorder %v41, 92
  %vm8001 = vcmp.lt.s32.totalorder %v42, 92
  %vm8002 = vcmp.lt.s32.totalorder %v43, 92
  %vm8003 = vcmp.lt.s32.totalorder %v44, 92
  %vm8004 = vcmp.lt.s32.totalorder %v45, 92
  %vm8005 = vcmp.lt.s32.totalorder %v46, 92
  %vm8006 = vcmp.lt.s32.totalorder %v47, 92
  %vm8007 = vcmp.lt.s32.totalorder %v48, 92
  %vm8008 = vcmp.lt.s32.totalorder %v49, 92
  %vm8009 = vmand %vm7977, %vm7993
  %vm8010 = vmand %vm7978, %vm7994
  %vm8011 = vmand %vm7979, %vm7995
  %vm8012 = vmand %vm7980, %vm7996
  %vm8013 = vmand %vm7981, %vm7997
  %vm8014 = vmand %vm7982, %vm7998
  %vm8015 = vmand %vm7983, %vm7999
  %vm8016 = vmand %vm7984, %vm8000
  %vm8017 = vmand %vm7985, %vm8001
  %vm8018 = vmand %vm7986, %vm8002
  %vm8019 = vmand %vm7987, %vm8003
  %vm8020 = vmand %vm7988, %vm8004
  %vm8021 = vmand %vm7989, %vm8005
  %vm8022 = vmand %vm7990, %vm8006
  %vm8023 = vmand %vm7991, %vm8007
  %vm8024 = vmand %vm7992, %vm8008
  %v8025 = vsel %vm8009, %v7775, 0.0
  %v8026 = vsel %vm8010, %v7776, 0.0
  %v8027 = vsel %vm8011, %v7777, 0.0
  %v8028 = vsel %vm8012, %v7778, 0.0
  %v8029 = vsel %vm8013, %v7779, 0.0
  %v8030 = vsel %vm8014, %v7780, 0.0
  %v8031 = vsel %vm8015, %v7781, 0.0
  %v8032 = vsel %vm8016, %v7782, 0.0
  %v8033 = vsel %vm8017, %v7783, 0.0
  %v8034 = vsel %vm8018, %v7784, 0.0
  %v8035 = vsel %vm8019, %v7785, 0.0
  %v8036 = vsel %vm8020, %v7786, 0.0
  %v8037 = vsel %vm8021, %v7787, 0.0
  %v8038 = vsel %vm8022, %v7788, 0.0
  %v8039 = vsel %vm8023, %v7789, 0.0
  %v8040 = vsel %vm8024, %v7790, 0.0
  %v8041 = vsel %vm1696, %v8025, -inf
  %v8042 = vsel %vm1696, %v8026, -inf
  %v8043 = vsel %vm1696, %v8027, -inf
  %v8044 = vsel %vm1696, %v8028, -inf
  %v8045 = vsel %vm1696, %v8029, -inf
  %v8046 = vmax.f32 %v8041, %v8045
  %v8047 = vsel %vm1696, %v8030, -inf
  %v8048 = vmax.f32 %v8042, %v8047
  %v8049 = vsel %vm1696, %v8031, -inf
  %v8050 = vmax.f32 %v8043, %v8049
  %v8051 = vsel %vm1696, %v8032, -inf
  %v8052 = vmax.f32 %v8044, %v8051
  %v8053 = vsel %vm1696, %v8033, -inf
  %v8054 = vmax.f32 %v8046, %v8053
  %v8055 = vsel %vm1696, %v8034, -inf
  %v8056 = vmax.f32 %v8048, %v8055
  %v8057 = vsel %vm1696, %v8035, -inf
  %v8058 = vmax.f32 %v8050, %v8057
  %v8059 = vsel %vm1696, %v8036, -inf
  %v8060 = vmax.f32 %v8052, %v8059
  %v8061 = vsel %vm1696, %v8037, -inf
  %v8062 = vmax.f32 %v8054, %v8061
  %v8063 = vsel %vm1696, %v8038, -inf
  %v8064 = vmax.f32 %v8056, %v8063
  %v8065 = vsel %vm1696, %v8039, -inf
  %v8066 = vmax.f32 %v8058, %v8065
  %v8067 = vsel %vm1846, %v8040, -inf
  %v8068 = vmax.f32 %v8060, %v8067
  %v8069 = vmax.f32 %v8062, %v8064
  %v8070 = vmax.f32 %v8066, %v8068
  %v8071 = vmax.f32 %v8069, %v8070
  %v8072 = vrot.slane %v8071, 4
  %v8073 = vmax.f32 %v8071, %v8072
  %v8074 = vrot.slane %v8073, 2
  %v8075 = vmax.f32 %v8073, %v8074
  %v8076 = vrot.slane %v8075, 1
  %v8077 = vmax.f32 %v8075, %v8076
  %vm8078 = vcmp.ge.s32.totalorder %v34, 92
  %vm8079 = vcmp.ge.s32.totalorder %v35, 92
  %vm8080 = vcmp.ge.s32.totalorder %v36, 92
  %vm8081 = vcmp.ge.s32.totalorder %v37, 92
  %vm8082 = vcmp.ge.s32.totalorder %v38, 92
  %vm8083 = vcmp.ge.s32.totalorder %v39, 92
  %vm8084 = vcmp.ge.s32.totalorder %v40, 92
  %vm8085 = vcmp.ge.s32.totalorder %v41, 92
  %vm8086 = vcmp.ge.s32.totalorder %v42, 92
  %vm8087 = vcmp.ge.s32.totalorder %v43, 92
  %vm8088 = vcmp.ge.s32.totalorder %v44, 92
  %vm8089 = vcmp.ge.s32.totalorder %v45, 92
  %vm8090 = vcmp.ge.s32.totalorder %v46, 92
  %vm8091 = vcmp.ge.s32.totalorder %v47, 92
  %vm8092 = vcmp.ge.s32.totalorder %v48, 92
  %vm8093 = vcmp.ge.s32.totalorder %v49, 92
  %vm8094 = vcmp.lt.s32.totalorder %v34, 122
  %vm8095 = vcmp.lt.s32.totalorder %v35, 122
  %vm8096 = vcmp.lt.s32.totalorder %v36, 122
  %vm8097 = vcmp.lt.s32.totalorder %v37, 122
  %vm8098 = vcmp.lt.s32.totalorder %v38, 122
  %vm8099 = vcmp.lt.s32.totalorder %v39, 122
  %vm8100 = vcmp.lt.s32.totalorder %v40, 122
  %vm8101 = vcmp.lt.s32.totalorder %v41, 122
  %vm8102 = vcmp.lt.s32.totalorder %v42, 122
  %vm8103 = vcmp.lt.s32.totalorder %v43, 122
  %vm8104 = vcmp.lt.s32.totalorder %v44, 122
  %vm8105 = vcmp.lt.s32.totalorder %v45, 122
  %vm8106 = vcmp.lt.s32.totalorder %v46, 122
  %vm8107 = vcmp.lt.s32.totalorder %v47, 122
  %vm8108 = vcmp.lt.s32.totalorder %v48, 122
  %vm8109 = vcmp.lt.s32.totalorder %v49, 122
  %vm8110 = vmand %vm8078, %vm8094
  %vm8111 = vmand %vm8079, %vm8095
  %vm8112 = vmand %vm8080, %vm8096
  %vm8113 = vmand %vm8081, %vm8097
  %vm8114 = vmand %vm8082, %vm8098
  %vm8115 = vmand %vm8083, %vm8099
  %vm8116 = vmand %vm8084, %vm8100
  %vm8117 = vmand %vm8085, %vm8101
  %vm8118 = vmand %vm8086, %vm8102
  %vm8119 = vmand %vm8087, %vm8103
  %vm8120 = vmand %vm8088, %vm8104
  %vm8121 = vmand %vm8089, %vm8105
  %vm8122 = vmand %vm8090, %vm8106
  %vm8123 = vmand %vm8091, %vm8107
  %vm8124 = vmand %vm8092, %vm8108
  %vm8125 = vmand %vm8093, %vm8109
  %v8126 = vsel %vm8110, %v7775, 0.0
  %v8127 = vsel %vm8111, %v7776, 0.0
  %v8128 = vsel %vm8112, %v7777, 0.0
  %v8129 = vsel %vm8113, %v7778, 0.0
  %v8130 = vsel %vm8114, %v7779, 0.0
  %v8131 = vsel %vm8115, %v7780, 0.0
  %v8132 = vsel %vm8116, %v7781, 0.0
  %v8133 = vsel %vm8117, %v7782, 0.0
  %v8134 = vsel %vm8118, %v7783, 0.0
  %v8135 = vsel %vm8119, %v7784, 0.0
  %v8136 = vsel %vm8120, %v7785, 0.0
  %v8137 = vsel %vm8121, %v7786, 0.0
  %v8138 = vsel %vm8122, %v7787, 0.0
  %v8139 = vsel %vm8123, %v7788, 0.0
  %v8140 = vsel %vm8124, %v7789, 0.0
  %v8141 = vsel %vm8125, %v7790, 0.0
  %v8142 = vsel %vm1696, %v8126, -inf
  %v8143 = vsel %vm1696, %v8127, -inf
  %v8144 = vsel %vm1696, %v8128, -inf
  %v8145 = vsel %vm1696, %v8129, -inf
  %v8146 = vsel %vm1696, %v8130, -inf
  %v8147 = vmax.f32 %v8142, %v8146
  %v8148 = vsel %vm1696, %v8131, -inf
  %v8149 = vmax.f32 %v8143, %v8148
  %v8150 = vsel %vm1696, %v8132, -inf
  %v8151 = vmax.f32 %v8144, %v8150
  %v8152 = vsel %vm1696, %v8133, -inf
  %v8153 = vmax.f32 %v8145, %v8152
  %v8154 = vsel %vm1696, %v8134, -inf
  %v8155 = vmax.f32 %v8147, %v8154
  %v8156 = vsel %vm1696, %v8135, -inf
  %v8157 = vmax.f32 %v8149, %v8156
  %v8158 = vsel %vm1696, %v8136, -inf
  %v8159 = vmax.f32 %v8151, %v8158
  %v8160 = vsel %vm1696, %v8137, -inf
  %v8161 = vmax.f32 %v8153, %v8160
  %v8162 = vsel %vm1696, %v8138, -inf
  %v8163 = vmax.f32 %v8155, %v8162
  %v8164 = vsel %vm1696, %v8139, -inf
  %v8165 = vmax.f32 %v8157, %v8164
  %v8166 = vsel %vm1696, %v8140, -inf
  %v8167 = vmax.f32 %v8159, %v8166
  %v8168 = vsel %vm1846, %v8141, -inf
  %v8169 = vmax.f32 %v8161, %v8168
  %v8170 = vmax.f32 %v8163, %v8165
  %v8171 = vmax.f32 %v8167, %v8169
  %v8172 = vmax.f32 %v8170, %v8171
  %v8173 = vrot.slane %v8172, 4
  %v8174 = vmax.f32 %v8172, %v8173
  %v8175 = vrot.slane %v8174, 2
  %v8176 = vmax.f32 %v8174, %v8175
  %v8177 = vrot.slane %v8176, 1
  %v8178 = vmax.f32 %v8176, %v8177
  %vm8179 = vcmp.ne.s32.totalorder %v34, 31
  %vm8180 = vcmp.ne.s32.totalorder %v35, 31
  %vm8181 = vcmp.ne.s32.totalorder %v36, 31
  %vm8182 = vcmp.ne.s32.totalorder %v37, 31
  %vm8183 = vcmp.ne.s32.totalorder %v38, 31
  %vm8184 = vcmp.ne.s32.totalorder %v39, 31
  %vm8185 = vcmp.ne.s32.totalorder %v40, 31
  %vm8186 = vcmp.ne.s32.totalorder %v41, 31
  %vm8187 = vcmp.ne.s32.totalorder %v34, 30
  %vm8188 = vcmp.ne.s32.totalorder %v35, 30
  %vm8189 = vcmp.ne.s32.totalorder %v36, 30
  %vm8190 = vcmp.ne.s32.totalorder %v37, 30
  %vm8191 = vcmp.ne.s32.totalorder %v38, 30
  %vm8192 = vcmp.ne.s32.totalorder %v39, 30
  %vm8193 = vcmp.ne.s32.totalorder %v40, 30
  %vm8194 = vcmp.ne.s32.totalorder %v41, 30
  %vm8195 = vcmp.ne.s32.totalorder %v34, 32
  %vm8196 = vcmp.ne.s32.totalorder %v35, 32
  %vm8197 = vcmp.ne.s32.totalorder %v36, 32
  %vm8198 = vcmp.ne.s32.totalorder %v37, 32
  %vm8199 = vcmp.ne.s32.totalorder %v38, 32
  %vm8200 = vcmp.ne.s32.totalorder %v39, 32
  %vm8201 = vcmp.ne.s32.totalorder %v40, 32
  %vm8202 = vcmp.ne.s32.totalorder %v41, 32
  %vm8203 = vcmp.ne.s32.totalorder %v34, 63
  %vm8204 = vcmp.ne.s32.totalorder %v35, 63
  %vm8205 = vcmp.ne.s32.totalorder %v36, 63
  %vm8206 = vcmp.ne.s32.totalorder %v37, 63
  %vm8207 = vcmp.ne.s32.totalorder %v38, 63
  %vm8208 = vcmp.ne.s32.totalorder %v39, 63
  %vm8209 = vcmp.ne.s32.totalorder %v40, 63
  %vm8210 = vcmp.ne.s32.totalorder %v41, 63
  %vm8211 = vmand %vm110, %vm8179
  %vm8212 = vmand %vm111, %vm8180
  %vm8213 = vmand %vm112, %vm8181
  %vm8214 = vmand %vm113, %vm8182
  %vm8215 = vmand %vm114, %vm8183
  %vm8216 = vmand %vm115, %vm8184
  %vm8217 = vmand %vm116, %vm8185
  %vm8218 = vmand %vm117, %vm8186
  %vm8219 = vmand %vm8211, %vm8195
  %vm8220 = vmand %vm8212, %vm8196
  %vm8221 = vmand %vm8213, %vm8197
  %vm8222 = vmand %vm8214, %vm8198
  %vm8223 = vmand %vm8215, %vm8199
  %vm8224 = vmand %vm8216, %vm8200
  %vm8225 = vmand %vm8217, %vm8201
  %vm8226 = vmand %vm8218, %vm8202
  %vm8227 = vmand %vm8219, %vm8203
  %vm8228 = vmand %vm8220, %vm8204
  %vm8229 = vmand %vm8221, %vm8205
  %vm8230 = vmand %vm8222, %vm8206
  %vm8231 = vmand %vm8223, %vm8207
  %vm8232 = vmand %vm8224, %vm8208
  %vm8233 = vmand %vm8225, %vm8209
  %vm8234 = vmand %vm8226, %vm8210
  %vm8235 = vmand %vm8187, %vm8179
  %vm8236 = vmand %vm8188, %vm8180
  %vm8237 = vmand %vm8189, %vm8181
  %vm8238 = vmand %vm8190, %vm8182
  %vm8239 = vmand %vm8191, %vm8183
  %vm8240 = vmand %vm8192, %vm8184
  %vm8241 = vmand %vm8193, %vm8185
  %vm8242 = vmand %vm8194, %vm8186
  %vm8243 = vmand %vm8235, %vm6706
  %vm8244 = vmand %vm8236, %vm6707
  %vm8245 = vmand %vm8237, %vm6708
  %vm8246 = vmand %vm8238, %vm6709
  %vm8247 = vmand %vm8239, %vm6710
  %vm8248 = vmand %vm8240, %vm6711
  %vm8249 = vmand %vm8241, %vm6712
  %vm8250 = vmand %vm8242, %vm6713
  %vm8251 = vmand %vm8243, %vm8203
  %vm8252 = vmand %vm8244, %vm8204
  %vm8253 = vmand %vm8245, %vm8205
  %vm8254 = vmand %vm8246, %vm8206
  %vm8255 = vmand %vm8247, %vm8207
  %vm8256 = vmand %vm8248, %vm8208
  %vm8257 = vmand %vm8249, %vm8209
  %vm8258 = vmand %vm8250, %vm8210
  %v8259 = vld [vmem:[%s4] sm:$0xf]
  %v8260 = vld [vmem:[%s4 + $0x4] sm:$0xf]
  %v8261 = vld [vmem:[%s4 + $0x8] sm:$0xf]
  %v8262 = vld [vmem:[%s4 + $0xc] sm:$0xf]
  %v8263 = vld [vmem:[%s4 + $0x10] sm:$0xf]
  %v8264 = vld [vmem:[%s4 + $0x14] sm:$0xf]
  %v8265 = vld [vmem:[%s4 + $0x18] sm:$0xf]
  %v8266 = vld [vmem:[%s4 + $0x1c] sm:$0xf]
  %v8267 = vld [vmem:[%s5] sm:$0xf]
  %v8268 = vld [vmem:[%s5 + $0x4] sm:$0xf]
  %v8269 = vld [vmem:[%s5 + $0x8] sm:$0xf]
  %v8270 = vld [vmem:[%s5 + $0xc] sm:$0xf]
  %v8271 = vld [vmem:[%s5 + $0x10] sm:$0xf]
  %v8272 = vld [vmem:[%s5 + $0x14] sm:$0xf]
  %v8273 = vld [vmem:[%s5 + $0x18] sm:$0xf]
  %v8274 = vld [vmem:[%s5 + $0x1c] sm:$0xf]
  %v8275 = vld [vmem:[%s5 + $0x20] sm:$0xf]
  %v8276 = vld [vmem:[%s5 + $0x24] sm:$0xf]
  %v8277 = vld [vmem:[%s5 + $0x28] sm:$0xf]
  %v8278 = vld [vmem:[%s5 + $0x2c] sm:$0xf]
  %v8279 = vld [vmem:[%s5 + $0x30] sm:$0x7]
  %v8288 = vunpack.c.l.b16 %v8259
  %v8289 = vunpack.c.l.b16 %v8260
  %v8290 = vunpack.c.l.b16 %v8261
  %v8291 = vunpack.c.l.b16 %v8262
  %v8292 = vunpack.c.l.b16 %v8263
  %v8293 = vunpack.c.l.b16 %v8264
  %v8294 = vunpack.c.l.b16 %v8265
  %v8295 = vunpack.c.l.b16 %v8266
  %v8296 = vpack.c.b16 %v8289, %v8288
  %v8297 = vpack.c.b16 %v8291, %v8290
  %v8298 = vpack.c.b16 %v8293, %v8292
  %v8299 = vpack.c.b16 %v8295, %v8294
  %v8313 = vunpack.c.l.b16 %v8267
  %v8314 = vunpack.c.l.b16 %v8268
  %v8315 = vunpack.c.l.b16 %v8269
  %v8316 = vunpack.c.l.b16 %v8270
  %v8317 = vunpack.c.l.b16 %v8271
  %v8318 = vunpack.c.l.b16 %v8272
  %v8319 = vunpack.c.l.b16 %v8273
  %v8320 = vunpack.c.l.b16 %v8274
  %v8321 = vunpack.c.l.b16 %v8275
  %v8322 = vunpack.c.l.b16 %v8276
  %v8323 = vunpack.c.l.b16 %v8277
  %v8324 = vunpack.c.l.b16 %v8278
  %v8325 = vunpack.c.l.b16 %v8279
  %v8326 = vpack.c.b16 %v8314, %v8313
  %v8327 = vpack.c.b16 %v8316, %v8315
  %v8328 = vpack.c.b16 %v8318, %v8317
  %v8329 = vpack.c.b16 %v8320, %v8319
  %v8330 = vpack.c.b16 %v8322, %v8321
  %v8331 = vpack.c.b16 %v8324, %v8323
  %v8332 = vpack.c.b16 %v8325, %v8325
  %vm8339 = vcmask 826368
  %v8341 = vsel %vm8339, %v8296, 0
  %v8344 = vsel %vm8339, %v8297, 0
  %v8347 = vsel %vm8339, %v8298, 0
  %v8350 = vsel %vm8339, %v8299, 0
  %v8352 = vsel %vm2952, 4294967295, 65535
  %v8353 = vsel %vm2798, %v8352, 0
  %v8355 = vand.u32 %v8332, %v8353
  %8357 = vmatpush.bf16.msra.mxu0 0
  %8358 = vmatpush.bf16.msra.mxu0 %v8355
  %8359 = vmatpush.bf16.msra.mxu0 %v8331
  %8360 = vmatpush.bf16.msra.mxu0 %v8330
  %8361 = vmatpush.bf16.msra.mxu0 %v8329
  %8362 = vmatpush.bf16.msra.mxu0 %v8328
  %8363 = vmatpush.bf16.msra.mxu0 %v8327
  %8364 = vmatpush.bf16.msra.mxu0 %v8326
  %8365 = vmatmul.bf16.gmra.mxu0 %v8341
  %v8366 = vpop.f32.mrf.mxu0
  %v8367 = vadd.f32 0.0, %v8366
  %v8368 = vpop.f32.mrf.mxu0
  %v8369 = vadd.f32 0.0, %v8368
  %8370 = vmatmul.bf16.gmra.mxu0 %v8344
  %v8371 = vpop.f32.mrf.mxu0
  %v8372 = vadd.f32 0.0, %v8371
  %v8373 = vpop.f32.mrf.mxu0
  %v8374 = vadd.f32 0.0, %v8373
  %8375 = vmatmul.bf16.gmra.mxu0 %v8347
  %v8376 = vpop.f32.mrf.mxu0
  %v8377 = vadd.f32 0.0, %v8376
  %v8378 = vpop.f32.mrf.mxu0
  %v8379 = vadd.f32 0.0, %v8378
  %8380 = vmatmul.bf16.gmra.mxu0 %v8350
  %v8381 = vpop.f32.mrf.mxu0
  %v8382 = vadd.f32 0.0, %v8381
  %v8383 = vpop.f32.mrf.mxu0
  %v8384 = vadd.f32 0.0, %v8383
  %8385 = vdwg.mxu0
  %v8386 = vld [vmem:[%s6 + $0x8] sm:$0x1]
  %v8387 = vld [vmem:[%s6 + $0x9] sm:$0x1]
  %v8388 = vld [vmem:[%s6 + $0xa] sm:$0x1]
  %v8389 = vld [vmem:[%s6 + $0xb] sm:$0x1]
  %v8390 = vsel %vm8227, %v8367, 0.0
  %v8391 = vsel %vm8228, %v8369, 0.0
  %v8392 = vsel %vm8229, %v8372, 0.0
  %v8393 = vsel %vm8230, %v8374, 0.0
  %v8394 = vsel %vm8231, %v8377, 0.0
  %v8395 = vsel %vm8232, %v8379, 0.0
  %v8396 = vsel %vm8233, %v8382, 0.0
  %v8397 = vsel %vm8234, %v8384, 0.0
  %v8398 = vsel %vm1696, %v8390, 0.0
  %v8399 = vsel %vm1696, %v8391, 0.0
  %v8400 = vadd.f32 %v8398, %v8399
  %v8401 = vsel %vm1696, %v8392, 0.0
  %v8402 = vadd.f32 %v8400, %v8401
  %v8403 = vsel %vm1696, %v8393, 0.0
  %v8404 = vadd.f32 %v8402, %v8403
  %v8405 = vsel %vm1696, %v8394, 0.0
  %v8406 = vadd.f32 %v8404, %v8405
  %v8407 = vsel %vm1696, %v8395, 0.0
  %v8408 = vadd.f32 %v8406, %v8407
  %v8409 = vsel %vm1696, %v8396, 0.0
  %v8410 = vadd.f32 %v8408, %v8409
  %v8411 = vsel %vm1696, %v8397, 0.0
  %v8412 = vadd.f32 %v8410, %v8411
  %v8413 = vrot.slane %v8412, 4
  %v8414 = vadd.f32 %v8412, %v8413
  %v8415 = vrot.slane %v8414, 2
  %v8416 = vadd.f32 %v8414, %v8415
  %v8417 = vrot.slane %v8416, 1
  %v8418 = vadd.f32 %v8416, %v8417
  %v8419 = vrcp.pop 60.0
  %v8420 = vmul.f32 60.0, %v8419
  %v8421 = vsub.f32 1.0, %v8420
  %v8422 = vmul.f32 %v8419, %v8421
  %v8423 = vadd.f32 %v8419, %v8422
  %vm8424 = vweird.f32 %v8419
  %v8425 = vsel %vm8424, %v8419, %v8423
  %v8426 = vmul.f32 %v8418, %v8425
  %v8427 = vsub.f32 %v8367, %v8426
  %v8428 = vsub.f32 %v8369, %v8426
  %v8429 = vsub.f32 %v8372, %v8426
  %v8430 = vsub.f32 %v8374, %v8426
  %v8431 = vsub.f32 %v8377, %v8426
  %v8432 = vsub.f32 %v8379, %v8426
  %v8433 = vsub.f32 %v8382, %v8426
  %v8434 = vsub.f32 %v8384, %v8426
  %v8435 = vmul.f32 %v8427, %v8427
  %v8436 = vmul.f32 %v8428, %v8428
  %v8437 = vmul.f32 %v8429, %v8429
  %v8438 = vmul.f32 %v8430, %v8430
  %v8439 = vmul.f32 %v8431, %v8431
  %v8440 = vmul.f32 %v8432, %v8432
  %v8441 = vmul.f32 %v8433, %v8433
  %v8442 = vmul.f32 %v8434, %v8434
  %v8443 = vsel %vm8227, %v8435, 0.0
  %v8444 = vsel %vm8228, %v8436, 0.0
  %v8445 = vsel %vm8229, %v8437, 0.0
  %v8446 = vsel %vm8230, %v8438, 0.0
  %v8447 = vsel %vm8231, %v8439, 0.0
  %v8448 = vsel %vm8232, %v8440, 0.0
  %v8449 = vsel %vm8233, %v8441, 0.0
  %v8450 = vsel %vm8234, %v8442, 0.0
  %v8451 = vsel %vm1696, %v8443, 0.0
  %v8452 = vsel %vm1696, %v8444, 0.0
  %v8453 = vadd.f32 %v8451, %v8452
  %v8454 = vsel %vm1696, %v8445, 0.0
  %v8455 = vadd.f32 %v8453, %v8454
  %v8456 = vsel %vm1696, %v8446, 0.0
  %v8457 = vadd.f32 %v8455, %v8456
  %v8458 = vsel %vm1696, %v8447, 0.0
  %v8459 = vadd.f32 %v8457, %v8458
  %v8460 = vsel %vm1696, %v8448, 0.0
  %v8461 = vadd.f32 %v8459, %v8460
  %v8462 = vsel %vm1696, %v8449, 0.0
  %v8463 = vadd.f32 %v8461, %v8462
  %v8464 = vsel %vm1696, %v8450, 0.0
  %v8465 = vadd.f32 %v8463, %v8464
  %v8466 = vrot.slane %v8465, 4
  %v8467 = vadd.f32 %v8465, %v8466
  %v8468 = vrot.slane %v8467, 2
  %v8469 = vadd.f32 %v8467, %v8468
  %v8470 = vrot.slane %v8469, 1
  %v8471 = vadd.f32 %v8469, %v8470
  %v8472 = vmul.f32 %v8471, %v8425
  %v8473 = vadd.f32 %v8472, 1e-05
  %v8474 = vrsqrt.pop %v8473
  %v8475 = vmul.f32 %v8474, %v8473
  %v8476 = vmul.f32 %v8475, %v8474
  %v8477 = vmul.f32 0.5, %v8476
  %v8478 = vsub.f32 1.5, %v8477
  %v8479 = vmul.f32 %v8474, %v8478
  %vm8480 = vweird.f32 %v8473
  %vm8481 = vweird.f32 %v8474
  %vm8482 = vmor %vm8480, %vm8481
  %v8483 = vsel %vm8482, %v8474, %v8479
  %v8484 = vmul.f32 %v8386, %v8483
  %v8485 = vmul.f32 %v8426, %v8484
  %v8486 = vsub.f32 %v8387, %v8485
  %v8487 = vperm.slane %v8484, 0
  %v8488 = vmul.f32 %v8367, %v8487
  %v8489 = vmul.f32 %v8369, %v8487
  %v8490 = vmul.f32 %v8372, %v8487
  %v8491 = vmul.f32 %v8374, %v8487
  %v8492 = vmul.f32 %v8377, %v8487
  %v8493 = vmul.f32 %v8379, %v8487
  %v8494 = vmul.f32 %v8382, %v8487
  %v8495 = vmul.f32 %v8384, %v8487
  %v8496 = vperm.slane %v8486, 0
  %v8497 = vadd.f32 %v8488, %v8496
  %v8498 = vadd.f32 %v8489, %v8496
  %v8499 = vadd.f32 %v8490, %v8496
  %v8500 = vadd.f32 %v8491, %v8496
  %v8501 = vadd.f32 %v8492, %v8496
  %v8502 = vadd.f32 %v8493, %v8496
  %v8503 = vadd.f32 %v8494, %v8496
  %v8504 = vadd.f32 %v8495, %v8496
  %v8505 = vmax.f32 %v8497, 0.0
  %v8506 = vmax.f32 %v8498, 0.0
  %v8507 = vmax.f32 %v8499, 0.0
  %v8508 = vmax.f32 %v8500, 0.0
  %v8509 = vmax.f32 %v8501, 0.0
  %v8510 = vmax.f32 %v8502, 0.0
  %v8511 = vmax.f32 %v8503, 0.0
  %v8512 = vmax.f32 %v8504, 0.0
  %v8513 = vsel %vm8227, %v8505, 0.0
  %v8514 = vsel %vm8228, %v8506, 0.0
  %v8515 = vsel %vm8229, %v8507, 0.0
  %v8516 = vsel %vm8230, %v8508, 0.0
  %v8517 = vsel %vm8231, %v8509, 0.0
  %v8518 = vsel %vm8232, %v8510, 0.0
  %v8519 = vsel %vm8233, %v8511, 0.0
  %v8520 = vsel %vm8234, %v8512, 0.0
  %v8529 = vrot.slane %v8513, 1
  %v8530 = vrot.slane %v8514, 1
  %v8531 = vsel %vm2645, %v8529, %v8530
  %v8532 = vrot.slane %v8515, 1
  %v8533 = vsel %vm2645, %v8530, %v8532
  %v8534 = vrot.slane %v8516, 1
  %v8535 = vsel %vm2645, %v8532, %v8534
  %v8536 = vrot.slane %v8517, 1
  %v8537 = vsel %vm2645, %v8534, %v8536
  %v8538 = vrot.slane %v8518, 1
  %v8539 = vsel %vm2645, %v8536, %v8538
  %v8540 = vrot.slane %v8519, 1
  %v8541 = vsel %vm2645, %v8538, %v8540
  %v8542 = vrot.slane %v8520, 1
  %v8543 = vsel %vm2645, %v8540, %v8542
  %v8545 = vsel %vm2645, %v8542, 0.0
  %v8546 = vrot.slane %v8513, 2
  %v8547 = vrot.slane %v8514, 2
  %v8548 = vsel %vm1411, %v8546, %v8547
  %v8549 = vrot.slane %v8515, 2
  %v8550 = vsel %vm1411, %v8547, %v8549
  %v8551 = vrot.slane %v8516, 2
  %v8552 = vsel %vm1411, %v8549, %v8551
  %v8553 = vrot.slane %v8517, 2
  %v8554 = vsel %vm1411, %v8551, %v8553
  %v8555 = vrot.slane %v8518, 2
  %v8556 = vsel %vm1411, %v8553, %v8555
  %v8557 = vrot.slane %v8519, 2
  %v8558 = vsel %vm1411, %v8555, %v8557
  %v8559 = vrot.slane %v8520, 2
  %v8560 = vsel %vm1411, %v8557, %v8559
  %v8562 = vsel %vm1411, %v8559, 0.0
  %v8563 = vsel %vm2645, %v8562, 0.0
  %8565 = vrot.lane.b32.xlu0 %v8531, 32
  %v8566 = vpop.permute.xlu0 %8565
  %8567 = vrot.lane.b32.xlu0 %v8533, 32
  %v8568 = vpop.permute.xlu0 %8567
  %8569 = vrot.lane.b32.xlu0 %v8535, 32
  %v8570 = vpop.permute.xlu0 %8569
  %8571 = vrot.lane.b32.xlu0 %v8537, 32
  %v8572 = vpop.permute.xlu0 %8571
  %8573 = vrot.lane.b32.xlu0 %v8539, 32
  %v8574 = vpop.permute.xlu0 %8573
  %8575 = vrot.lane.b32.xlu0 %v8541, 32
  %v8576 = vpop.permute.xlu0 %8575
  %8577 = vrot.lane.b32.xlu0 %v8543, 32
  %v8578 = vpop.permute.xlu0 %8577
  %8579 = vrot.lane.b32.xlu0 %v8545, 32
  %v8580 = vpop.permute.xlu0 %8579
  %8590 = vrot.lane.b32.xlu0 %v8548, 64
  %v8591 = vpop.permute.xlu0 %8590
  %8592 = vrot.lane.b32.xlu0 %v8550, 64
  %v8593 = vpop.permute.xlu0 %8592
  %8594 = vrot.lane.b32.xlu0 %v8552, 64
  %v8595 = vpop.permute.xlu0 %8594
  %8596 = vrot.lane.b32.xlu0 %v8554, 64
  %v8597 = vpop.permute.xlu0 %8596
  %8598 = vrot.lane.b32.xlu0 %v8556, 64
  %v8599 = vpop.permute.xlu0 %8598
  %8600 = vrot.lane.b32.xlu0 %v8558, 64
  %v8601 = vpop.permute.xlu0 %8600
  %8602 = vrot.lane.b32.xlu0 %v8560, 64
  %v8603 = vpop.permute.xlu0 %8602
  %8604 = vrot.lane.b32.xlu0 %v8563, 64
  %v8605 = vpop.permute.xlu0 %8604
  %v8614 = vsel %vm1696, %v8513, %v8566
  %v8615 = vsel %vm1696, %v8514, %v8568
  %v8616 = vsel %vm1696, %v8515, %v8570
  %v8617 = vsel %vm1696, %v8516, %v8572
  %v8618 = vsel %vm1696, %v8517, %v8574
  %v8619 = vsel %vm1696, %v8518, %v8576
  %v8620 = vsel %vm1696, %v8519, %v8578
  %v8621 = vsel %vm1696, %v8520, %v8580
  %v8622 = vsel %vm3489, %v8614, %v8591
  %v8623 = vsel %vm3489, %v8615, %v8593
  %v8624 = vsel %vm3489, %v8616, %v8595
  %v8625 = vsel %vm3489, %v8617, %v8597
  %v8626 = vsel %vm3489, %v8618, %v8599
  %v8627 = vsel %vm3489, %v8619, %v8601
  %v8628 = vsel %vm3489, %v8620, %v8603
  %v8629 = vsel %vm3489, %v8621, %v8605
  %v8630 = vpack.c.bf16 %v8623, %v8622
  %v8631 = vpack.c.bf16 %v8625, %v8624
  %v8632 = vpack.c.bf16 %v8627, %v8626
  %v8633 = vpack.c.bf16 %v8629, %v8628
  %v8634 = vld [vmem:[%s7 + $0x60] sm:$0xf]
  %v8635 = vld [vmem:[%s7 + $0x64] sm:$0xf]
  %v8636 = vld [vmem:[%s7 + $0x68] sm:$0xf]
  %v8637 = vld [vmem:[%s7 + $0x6c] sm:$0xf]
  %v8638 = vld [vmem:[%s7 + $0x70] sm:$0xf]
  %v8639 = vld [vmem:[%s7 + $0x74] sm:$0xf]
  %v8640 = vld [vmem:[%s7 + $0x78] sm:$0xf]
  %v8641 = vld [vmem:[%s7 + $0x7c] sm:$0xf]
  %v8642 = vld [vmem:[%s7 + $0x80] sm:$0xf]
  %v8643 = vld [vmem:[%s7 + $0x84] sm:$0xf]
  %v8644 = vld [vmem:[%s7 + $0x88] sm:$0xf]
  %v8645 = vld [vmem:[%s7 + $0x8c] sm:$0xf]
  %v8658 = vunpack.c.l.b16 %v8634
  %v8659 = vunpack.c.l.b16 %v8635
  %v8660 = vunpack.c.l.b16 %v8636
  %v8661 = vunpack.c.l.b16 %v8637
  %v8662 = vunpack.c.l.b16 %v8638
  %v8663 = vunpack.c.l.b16 %v8639
  %v8664 = vunpack.c.l.b16 %v8640
  %v8665 = vunpack.c.l.b16 %v8641
  %v8666 = vunpack.c.l.b16 %v8642
  %v8667 = vunpack.c.l.b16 %v8643
  %v8668 = vunpack.c.l.b16 %v8644
  %v8669 = vunpack.c.l.b16 %v8645
  %v8670 = vpack.c.b16 %v8659, %v8658
  %v8671 = vpack.c.b16 %v8661, %v8660
  %v8672 = vpack.c.b16 %v8663, %v8662
  %v8673 = vpack.c.b16 %v8665, %v8664
  %v8674 = vpack.c.b16 %v8667, %v8666
  %v8675 = vpack.c.b16 %v8669, %v8668
  %v8683 = vsel %vm3652, %v8630, 0
  %v8686 = vsel %vm3652, %v8631, 0
  %v8689 = vsel %vm3652, %v8632, 0
  %v8692 = vsel %vm3652, %v8633, 0
  %8694 = vmatpush.bf16.msra.mxu0 0
  %8695 = vmatpush.bf16.msra.mxu0 0
  %8696 = vmatpush.bf16.msra.mxu0 %v8675
  %8697 = vmatpush.bf16.msra.mxu0 %v8674
  %8698 = vmatpush.bf16.msra.mxu0 %v8673
  %8699 = vmatpush.bf16.msra.mxu0 %v8672
  %8700 = vmatpush.bf16.msra.mxu0 %v8671
  %8701 = vmatpush.bf16.msra.mxu0 %v8670
  %8702 = vmatmul.bf16.gmra.mxu0 %v8683
  %v8703 = vpop.f32.mrf.mxu0
  %v8704 = vadd.f32 0.0, %v8703
  %v8705 = vpop.f32.mrf.mxu0
  %v8706 = vadd.f32 0.0, %v8705
  %8707 = vmatmul.bf16.gmra.mxu0 %v8686
  %v8708 = vpop.f32.mrf.mxu0
  %v8709 = vadd.f32 0.0, %v8708
  %v8710 = vpop.f32.mrf.mxu0
  %v8711 = vadd.f32 0.0, %v8710
  %8712 = vmatmul.bf16.gmra.mxu0 %v8689
  %v8713 = vpop.f32.mrf.mxu0
  %v8714 = vadd.f32 0.0, %v8713
  %v8715 = vpop.f32.mrf.mxu0
  %v8716 = vadd.f32 0.0, %v8715
  %8717 = vmatmul.bf16.gmra.mxu0 %v8692
  %v8718 = vpop.f32.mrf.mxu0
  %v8719 = vadd.f32 0.0, %v8718
  %v8720 = vpop.f32.mrf.mxu0
  %v8721 = vadd.f32 0.0, %v8720
  %8722 = vdwg.mxu0
  %v8723 = vsel %vm8251, %v8704, 0.0
  %v8724 = vsel %vm8252, %v8706, 0.0
  %v8725 = vsel %vm8253, %v8709, 0.0
  %v8726 = vsel %vm8254, %v8711, 0.0
  %v8727 = vsel %vm8255, %v8714, 0.0
  %v8728 = vsel %vm8256, %v8716, 0.0
  %v8729 = vsel %vm8257, %v8719, 0.0
  %v8730 = vsel %vm8258, %v8721, 0.0
  %v8731 = vsel %vm1696, %v8723, 0.0
  %v8732 = vsel %vm1696, %v8724, 0.0
  %v8733 = vadd.f32 %v8731, %v8732
  %v8734 = vsel %vm1696, %v8725, 0.0
  %v8735 = vadd.f32 %v8733, %v8734
  %v8736 = vsel %vm1696, %v8726, 0.0
  %v8737 = vadd.f32 %v8735, %v8736
  %v8738 = vsel %vm1696, %v8727, 0.0
  %v8739 = vadd.f32 %v8737, %v8738
  %v8740 = vsel %vm1696, %v8728, 0.0
  %v8741 = vadd.f32 %v8739, %v8740
  %v8742 = vsel %vm1696, %v8729, 0.0
  %v8743 = vadd.f32 %v8741, %v8742
  %v8744 = vsel %vm1696, %v8730, 0.0
  %v8745 = vadd.f32 %v8743, %v8744
  %v8746 = vrot.slane %v8745, 4
  %v8747 = vadd.f32 %v8745, %v8746
  %v8748 = vrot.slane %v8747, 2
  %v8749 = vadd.f32 %v8747, %v8748
  %v8750 = vrot.slane %v8749, 1
  %v8751 = vadd.f32 %v8749, %v8750
  %v8752 = vmul.f32 %v8751, %v8425
  %v8753 = vsub.f32 %v8704, %v8752
  %v8754 = vsub.f32 %v8706, %v8752
  %v8755 = vsub.f32 %v8709, %v8752
  %v8756 = vsub.f32 %v8711, %v8752
  %v8757 = vsub.f32 %v8714, %v8752
  %v8758 = vsub.f32 %v8716, %v8752
  %v8759 = vsub.f32 %v8719, %v8752
  %v8760 = vsub.f32 %v8721, %v8752
  %v8761 = vmul.f32 %v8753, %v8753
  %v8762 = vmul.f32 %v8754, %v8754
  %v8763 = vmul.f32 %v8755, %v8755
  %v8764 = vmul.f32 %v8756, %v8756
  %v8765 = vmul.f32 %v8757, %v8757
  %v8766 = vmul.f32 %v8758, %v8758
  %v8767 = vmul.f32 %v8759, %v8759
  %v8768 = vmul.f32 %v8760, %v8760
  %v8769 = vsel %vm8251, %v8761, 0.0
  %v8770 = vsel %vm8252, %v8762, 0.0
  %v8771 = vsel %vm8253, %v8763, 0.0
  %v8772 = vsel %vm8254, %v8764, 0.0
  %v8773 = vsel %vm8255, %v8765, 0.0
  %v8774 = vsel %vm8256, %v8766, 0.0
  %v8775 = vsel %vm8257, %v8767, 0.0
  %v8776 = vsel %vm8258, %v8768, 0.0
  %v8777 = vsel %vm1696, %v8769, 0.0
  %v8778 = vsel %vm1696, %v8770, 0.0
  %v8779 = vadd.f32 %v8777, %v8778
  %v8780 = vsel %vm1696, %v8771, 0.0
  %v8781 = vadd.f32 %v8779, %v8780
  %v8782 = vsel %vm1696, %v8772, 0.0
  %v8783 = vadd.f32 %v8781, %v8782
  %v8784 = vsel %vm1696, %v8773, 0.0
  %v8785 = vadd.f32 %v8783, %v8784
  %v8786 = vsel %vm1696, %v8774, 0.0
  %v8787 = vadd.f32 %v8785, %v8786
  %v8788 = vsel %vm1696, %v8775, 0.0
  %v8789 = vadd.f32 %v8787, %v8788
  %v8790 = vsel %vm1696, %v8776, 0.0
  %v8791 = vadd.f32 %v8789, %v8790
  %v8792 = vrot.slane %v8791, 4
  %v8793 = vadd.f32 %v8791, %v8792
  %v8794 = vrot.slane %v8793, 2
  %v8795 = vadd.f32 %v8793, %v8794
  %v8796 = vrot.slane %v8795, 1
  %v8797 = vadd.f32 %v8795, %v8796
  %v8798 = vmul.f32 %v8797, %v8425
  %v8799 = vadd.f32 %v8798, 1e-05
  %v8800 = vrsqrt.pop %v8799
  %v8801 = vmul.f32 %v8800, %v8799
  %v8802 = vmul.f32 %v8801, %v8800
  %v8803 = vmul.f32 0.5, %v8802
  %v8804 = vsub.f32 1.5, %v8803
  %v8805 = vmul.f32 %v8800, %v8804
  %vm8806 = vweird.f32 %v8799
  %vm8807 = vweird.f32 %v8800
  %vm8808 = vmor %vm8806, %vm8807
  %v8809 = vsel %vm8808, %v8800, %v8805
  %v8810 = vmul.f32 %v8388, %v8809
  %v8811 = vmul.f32 %v8752, %v8810
  %v8812 = vsub.f32 %v8389, %v8811
  %v8813 = vperm.slane %v8810, 0
  %v8814 = vmul.f32 %v8704, %v8813
  %v8815 = vmul.f32 %v8706, %v8813
  %v8816 = vmul.f32 %v8709, %v8813
  %v8817 = vmul.f32 %v8711, %v8813
  %v8818 = vmul.f32 %v8714, %v8813
  %v8819 = vmul.f32 %v8716, %v8813
  %v8820 = vmul.f32 %v8719, %v8813
  %v8821 = vmul.f32 %v8721, %v8813
  %v8822 = vperm.slane %v8812, 0
  %v8823 = vadd.f32 %v8814, %v8822
  %v8824 = vadd.f32 %v8815, %v8822
  %v8825 = vadd.f32 %v8816, %v8822
  %v8826 = vadd.f32 %v8817, %v8822
  %v8827 = vadd.f32 %v8818, %v8822
  %v8828 = vadd.f32 %v8819, %v8822
  %v8829 = vadd.f32 %v8820, %v8822
  %v8830 = vadd.f32 %v8821, %v8822
  %v8831 = vmax.f32 %v8823, 0.0
  %v8832 = vmax.f32 %v8824, 0.0
  %v8833 = vmax.f32 %v8825, 0.0
  %v8834 = vmax.f32 %v8826, 0.0
  %v8835 = vmax.f32 %v8827, 0.0
  %v8836 = vmax.f32 %v8828, 0.0
  %v8837 = vmax.f32 %v8829, 0.0
  %v8838 = vmax.f32 %v8830, 0.0
  %vm8839 = vcmp.lt.s32.totalorder %v34, 15
  %vm8840 = vcmp.lt.s32.totalorder %v35, 15
  %vm8841 = vcmp.lt.s32.totalorder %v36, 15
  %vm8842 = vcmp.lt.s32.totalorder %v37, 15
  %vm8843 = vcmp.lt.s32.totalorder %v38, 15
  %vm8844 = vcmp.lt.s32.totalorder %v39, 15
  %vm8845 = vcmp.lt.s32.totalorder %v40, 15
  %vm8846 = vcmp.lt.s32.totalorder %v41, 15
  %vm8847 = vmand %vm4830, %vm8839
  %vm8848 = vmand %vm4831, %vm8840
  %vm8849 = vmand %vm4832, %vm8841
  %vm8850 = vmand %vm4833, %vm8842
  %vm8851 = vmand %vm4834, %vm8843
  %vm8852 = vmand %vm4835, %vm8844
  %vm8853 = vmand %vm4836, %vm8845
  %vm8854 = vmand %vm4837, %vm8846
  %v8855 = vsel %vm8847, %v8831, 0.0
  %v8856 = vsel %vm8848, %v8832, 0.0
  %v8857 = vsel %vm8849, %v8833, 0.0
  %v8858 = vsel %vm8850, %v8834, 0.0
  %v8859 = vsel %vm8851, %v8835, 0.0
  %v8860 = vsel %vm8852, %v8836, 0.0
  %v8861 = vsel %vm8853, %v8837, 0.0
  %v8862 = vsel %vm8854, %v8838, 0.0
  %v8863 = vsel %vm1696, %v8855, -inf
  %v8864 = vsel %vm1696, %v8856, -inf
  %v8865 = vsel %vm1696, %v8857, -inf
  %v8866 = vsel %vm1696, %v8858, -inf
  %v8867 = vsel %vm1696, %v8859, -inf
  %v8868 = vmax.f32 %v8863, %v8867
  %v8869 = vsel %vm1696, %v8860, -inf
  %v8870 = vmax.f32 %v8864, %v8869
  %v8871 = vsel %vm1696, %v8861, -inf
  %v8872 = vmax.f32 %v8865, %v8871
  %v8873 = vsel %vm1696, %v8862, -inf
  %v8874 = vmax.f32 %v8866, %v8873
  %v8875 = vmax.f32 %v8868, %v8870
  %v8876 = vmax.f32 %v8872, %v8874
  %v8877 = vmax.f32 %v8875, %v8876
  %v8878 = vrot.slane %v8877, 4
  %v8879 = vmax.f32 %v8877, %v8878
  %v8880 = vrot.slane %v8879, 2
  %v8881 = vmax.f32 %v8879, %v8880
  %v8882 = vrot.slane %v8881, 1
  %v8883 = vmax.f32 %v8881, %v8882
  %vm8884 = vcmp.ge.s32.totalorder %v34, 15
  %vm8885 = vcmp.ge.s32.totalorder %v35, 15
  %vm8886 = vcmp.ge.s32.totalorder %v36, 15
  %vm8887 = vcmp.ge.s32.totalorder %v37, 15
  %vm8888 = vcmp.ge.s32.totalorder %v38, 15
  %vm8889 = vcmp.ge.s32.totalorder %v39, 15
  %vm8890 = vcmp.ge.s32.totalorder %v40, 15
  %vm8891 = vcmp.ge.s32.totalorder %v41, 15
  %vm8892 = vmand %vm8884, %vm7791
  %vm8893 = vmand %vm8885, %vm7792
  %vm8894 = vmand %vm8886, %vm7793
  %vm8895 = vmand %vm8887, %vm7794
  %vm8896 = vmand %vm8888, %vm7795
  %vm8897 = vmand %vm8889, %vm7796
  %vm8898 = vmand %vm8890, %vm7797
  %vm8899 = vmand %vm8891, %vm7798
  %v8900 = vsel %vm8892, %v8831, 0.0
  %v8901 = vsel %vm8893, %v8832, 0.0
  %v8902 = vsel %vm8894, %v8833, 0.0
  %v8903 = vsel %vm8895, %v8834, 0.0
  %v8904 = vsel %vm8896, %v8835, 0.0
  %v8905 = vsel %vm8897, %v8836, 0.0
  %v8906 = vsel %vm8898, %v8837, 0.0
  %v8907 = vsel %vm8899, %v8838, 0.0
  %v8908 = vsel %vm1696, %v8900, -inf
  %v8909 = vsel %vm1696, %v8901, -inf
  %v8910 = vsel %vm1696, %v8902, -inf
  %v8911 = vsel %vm1696, %v8903, -inf
  %v8912 = vsel %vm1696, %v8904, -inf
  %v8913 = vmax.f32 %v8908, %v8912
  %v8914 = vsel %vm1696, %v8905, -inf
  %v8915 = vmax.f32 %v8909, %v8914
  %v8916 = vsel %vm1696, %v8906, -inf
  %v8917 = vmax.f32 %v8910, %v8916
  %v8918 = vsel %vm1696, %v8907, -inf
  %v8919 = vmax.f32 %v8911, %v8918
  %v8920 = vmax.f32 %v8913, %v8915
  %v8921 = vmax.f32 %v8917, %v8919
  %v8922 = vmax.f32 %v8920, %v8921
  %v8923 = vrot.slane %v8922, 4
  %v8924 = vmax.f32 %v8922, %v8923
  %v8925 = vrot.slane %v8924, 2
  %v8926 = vmax.f32 %v8924, %v8925
  %v8927 = vrot.slane %v8926, 1
  %v8928 = vmax.f32 %v8926, %v8927
  %vm8929 = vcmp.ge.s32.totalorder %v34, 32
  %vm8930 = vcmp.ge.s32.totalorder %v35, 32
  %vm8931 = vcmp.ge.s32.totalorder %v36, 32
  %vm8932 = vcmp.ge.s32.totalorder %v37, 32
  %vm8933 = vcmp.ge.s32.totalorder %v38, 32
  %vm8934 = vcmp.ge.s32.totalorder %v39, 32
  %vm8935 = vcmp.ge.s32.totalorder %v40, 32
  %vm8936 = vcmp.ge.s32.totalorder %v41, 32
  %vm8937 = vcmp.lt.s32.totalorder %v34, 47
  %vm8938 = vcmp.lt.s32.totalorder %v35, 47
  %vm8939 = vcmp.lt.s32.totalorder %v36, 47
  %vm8940 = vcmp.lt.s32.totalorder %v37, 47
  %vm8941 = vcmp.lt.s32.totalorder %v38, 47
  %vm8942 = vcmp.lt.s32.totalorder %v39, 47
  %vm8943 = vcmp.lt.s32.totalorder %v40, 47
  %vm8944 = vcmp.lt.s32.totalorder %v41, 47
  %vm8945 = vmand %vm8929, %vm8937
  %vm8946 = vmand %vm8930, %vm8938
  %vm8947 = vmand %vm8931, %vm8939
  %vm8948 = vmand %vm8932, %vm8940
  %vm8949 = vmand %vm8933, %vm8941
  %vm8950 = vmand %vm8934, %vm8942
  %vm8951 = vmand %vm8935, %vm8943
  %vm8952 = vmand %vm8936, %vm8944
  %v8953 = vsel %vm8945, %v8831, 0.0
  %v8954 = vsel %vm8946, %v8832, 0.0
  %v8955 = vsel %vm8947, %v8833, 0.0
  %v8956 = vsel %vm8948, %v8834, 0.0
  %v8957 = vsel %vm8949, %v8835, 0.0
  %v8958 = vsel %vm8950, %v8836, 0.0
  %v8959 = vsel %vm8951, %v8837, 0.0
  %v8960 = vsel %vm8952, %v8838, 0.0
  %v8961 = vsel %vm1696, %v8953, -inf
  %v8962 = vsel %vm1696, %v8954, -inf
  %v8963 = vsel %vm1696, %v8955, -inf
  %v8964 = vsel %vm1696, %v8956, -inf
  %v8965 = vsel %vm1696, %v8957, -inf
  %v8966 = vmax.f32 %v8961, %v8965
  %v8967 = vsel %vm1696, %v8958, -inf
  %v8968 = vmax.f32 %v8962, %v8967
  %v8969 = vsel %vm1696, %v8959, -inf
  %v8970 = vmax.f32 %v8963, %v8969
  %v8971 = vsel %vm1696, %v8960, -inf
  %v8972 = vmax.f32 %v8964, %v8971
  %v8973 = vmax.f32 %v8966, %v8968
  %v8974 = vmax.f32 %v8970, %v8972
  %v8975 = vmax.f32 %v8973, %v8974
  %v8976 = vrot.slane %v8975, 4
  %v8977 = vmax.f32 %v8975, %v8976
  %v8978 = vrot.slane %v8977, 2
  %v8979 = vmax.f32 %v8977, %v8978
  %v8980 = vrot.slane %v8979, 1
  %v8981 = vmax.f32 %v8979, %v8980
  %vm8982 = vcmp.ge.s32.totalorder %v34, 47
  %vm8983 = vcmp.ge.s32.totalorder %v35, 47
  %vm8984 = vcmp.ge.s32.totalorder %v36, 47
  %vm8985 = vcmp.ge.s32.totalorder %v37, 47
  %vm8986 = vcmp.ge.s32.totalorder %v38, 47
  %vm8987 = vcmp.ge.s32.totalorder %v39, 47
  %vm8988 = vcmp.ge.s32.totalorder %v40, 47
  %vm8989 = vcmp.ge.s32.totalorder %v41, 47
  %vm8990 = vcmp.lt.s32.totalorder %v34, 62
  %vm8991 = vcmp.lt.s32.totalorder %v35, 62
  %vm8992 = vcmp.lt.s32.totalorder %v36, 62
  %vm8993 = vcmp.lt.s32.totalorder %v37, 62
  %vm8994 = vcmp.lt.s32.totalorder %v38, 62
  %vm8995 = vcmp.lt.s32.totalorder %v39, 62
  %vm8996 = vcmp.lt.s32.totalorder %v40, 62
  %vm8997 = vcmp.lt.s32.totalorder %v41, 62
  %vm8998 = vmand %vm8982, %vm8990
  %vm8999 = vmand %vm8983, %vm8991
  %vm9000 = vmand %vm8984, %vm8992
  %vm9001 = vmand %vm8985, %vm8993
  %vm9002 = vmand %vm8986, %vm8994
  %vm9003 = vmand %vm8987, %vm8995
  %vm9004 = vmand %vm8988, %vm8996
  %vm9005 = vmand %vm8989, %vm8997
  %v9006 = vsel %vm8998, %v8831, 0.0
  %v9007 = vsel %vm8999, %v8832, 0.0
  %v9008 = vsel %vm9000, %v8833, 0.0
  %v9009 = vsel %vm9001, %v8834, 0.0
  %v9010 = vsel %vm9002, %v8835, 0.0
  %v9011 = vsel %vm9003, %v8836, 0.0
  %v9012 = vsel %vm9004, %v8837, 0.0
  %v9013 = vsel %vm9005, %v8838, 0.0
  %v9014 = vsel %vm1696, %v9006, -inf
  %v9015 = vsel %vm1696, %v9007, -inf
  %v9016 = vsel %vm1696, %v9008, -inf
  %v9017 = vsel %vm1696, %v9009, -inf
  %v9018 = vsel %vm1696, %v9010, -inf
  %v9019 = vmax.f32 %v9014, %v9018
  %v9020 = vsel %vm1696, %v9011, -inf
  %v9021 = vmax.f32 %v9015, %v9020
  %v9022 = vsel %vm1696, %v9012, -inf
  %v9023 = vmax.f32 %v9016, %v9022
  %v9024 = vsel %vm1696, %v9013, -inf
  %v9025 = vmax.f32 %v9017, %v9024
  %v9026 = vmax.f32 %v9019, %v9021
  %v9027 = vmax.f32 %v9023, %v9025
  %v9028 = vmax.f32 %v9026, %v9027
  %v9029 = vrot.slane %v9028, 4
  %v9030 = vmax.f32 %v9028, %v9029
  %v9031 = vrot.slane %v9030, 2
  %v9032 = vmax.f32 %v9030, %v9031
  %v9033 = vrot.slane %v9032, 1
  %v9034 = vmax.f32 %v9032, %v9033
  %9036 = vrot.lane.b32.xlu0 %v7875, 32
  %v9037 = vpop.permute.xlu0 %9036
  %9040 = vrot.lane.b32.xlu0 %v8883, 64
  %v9041 = vpop.permute.xlu0 %9040
  %9044 = vrot.lane.b32.xlu0 %v5751, 96
  %v9045 = vpop.permute.xlu0 %9044
  %9048 = vrot.lane.b32.xlu0 %v8928, 32
  %v9049 = vpop.permute.xlu0 %9048
  %v9051 = vsel %vm1696, %v5290, %v9037
  %v9052 = vsel %vm3489, %v9051, %v9041
  %v9053 = vsel %vm3652, %v9052, %v9045
  %v9054 = vsel %vm1696, %v7976, %v9049
  %9056 = vrot.lane.b32.xlu0 %v8077, 32
  %v9057 = vpop.permute.xlu0 %9056
  %9060 = vrot.lane.b32.xlu0 %v8981, 64
  %v9061 = vpop.permute.xlu0 %9060
  %9064 = vrot.lane.b32.xlu0 %v6673, 96
  %v9065 = vpop.permute.xlu0 %9064
  %9068 = vrot.lane.b32.xlu0 %v9034, 32
  %v9069 = vpop.permute.xlu0 %9068
  %v9071 = vsel %vm1696, %v6212, %v9057
  %v9072 = vsel %vm3489, %v9071, %v9061
  %v9073 = vsel %vm3652, %v9072, %v9065
  %v9074 = vsel %vm1696, %v8178, %v9069
  %v9077 = vrot.slane %v9073, 7
  %v9078 = vrot.slane %v9074, 7
  %v9081 = vsel %vm6959, %v9053, %v9077
  %v9082 = vsel %vm6959, %v9054, %v9078
  %v9083 = vpack.c.bf16 %v9081, %v9081
  %v9084 = vpack.c.bf16 %v9082, %v9082
  %v9085 = vld [vmem:[%s8] sm:$0xff]
  %v9086 = vld [vmem:[%s8 + $0x8] sm:$0xff]
  %v9087 = vld [vmem:[%s8 + $0x10] sm:$0xff]
  %v9088 = vld [vmem:[%s8 + $0x18] sm:$0xff]
  %v9089 = vld [vmem:[%s8 + $0x20] sm:$0xff]
  %v9090 = vld [vmem:[%s8 + $0x28] sm:$0xff]
  %v9091 = vld [vmem:[%s8 + $0x30] sm:$0xff]
  %v9092 = vld [vmem:[%s8 + $0x38] sm:$0xff]
  %v9093 = vld [vmem:[%s8 + $0x40] sm:$0xff]
  %v9094 = vld [vmem:[%s8 + $0x48] sm:$0xff]
  %v9095 = vld [vmem:[%s8 + $0x50] sm:$0xff]
  %v9096 = vld [vmem:[%s8 + $0x58] sm:$0xff]
  %v9097 = vld [vmem:[%s8 + $0x60] sm:$0xff]
  %v9098 = vld [vmem:[%s8 + $0x68] sm:$0xff]
  %v9099 = vld [vmem:[%s8 + $0x70] sm:$0xff]
  %v9100 = vld [vmem:[%s8 + $0x78] sm:$0xff]
  %v9101 = vld [vmem:[%s8 + $0x80] sm:$0xff]
  %v9102 = vld [vmem:[%s8 + $0x88] sm:$0xff]
  %v9103 = vld [vmem:[%s8 + $0x90] sm:$0xff]
  %v9104 = vld [vmem:[%s8 + $0x98] sm:$0xff]
  %v9105 = vld [vmem:[%s8 + $0xa0] sm:$0xff]
  %v9106 = vld [vmem:[%s8 + $0xa8] sm:$0xff]
  %v9107 = vld [vmem:[%s8 + $0xb0] sm:$0xff]
  %v9108 = vld [vmem:[%s8 + $0xb8] sm:$0xff]
  %v9109 = vld [vmem:[%s8 + $0xc0] sm:$0xff]
  %v9110 = vld [vmem:[%s8 + $0xc8] sm:$0xff]
  %v9111 = vld [vmem:[%s8 + $0xd0] sm:$0xff]
  %v9112 = vld [vmem:[%s8 + $0xd8] sm:$0xff]
  %v9113 = vld [vmem:[%s8 + $0xe0] sm:$0xff]
  %v9114 = vld [vmem:[%s8 + $0xe8] sm:$0xff]
  %v9115 = vld [vmem:[%s8 + $0xf0] sm:$0xff]
  %v9116 = vld [vmem:[%s8 + $0xf8] sm:$0xff]
  %v9117 = vld [vmem:[%s8 + $0x100] sm:$0xff]
  %v9118 = vld [vmem:[%s8 + $0x108] sm:$0xff]
  %v9119 = vld [vmem:[%s8 + $0x110] sm:$0xff]
  %v9120 = vld [vmem:[%s8 + $0x118] sm:$0xff]
  %v9121 = vld [vmem:[%s8 + $0x120] sm:$0xff]
  %v9122 = vld [vmem:[%s8 + $0x128] sm:$0xff]
  %v9123 = vld [vmem:[%s8 + $0x130] sm:$0xff]
  %v9124 = vld [vmem:[%s8 + $0x138] sm:$0xff]
  %v9125 = vld [vmem:[%s8 + $0x140] sm:$0xff]
  %v9126 = vld [vmem:[%s8 + $0x148] sm:$0xff]
  %v9127 = vld [vmem:[%s8 + $0x150] sm:$0xff]
  %v9128 = vld [vmem:[%s8 + $0x158] sm:$0xff]
  %v9129 = vld [vmem:[%s8 + $0x160] sm:$0xff]
  %v9130 = vld [vmem:[%s8 + $0x168] sm:$0xff]
  %v9131 = vld [vmem:[%s8 + $0x170] sm:$0xff]
  %v9132 = vld [vmem:[%s8 + $0x178] sm:$0xff]
  %v9133 = vld [vmem:[%s8 + $0x180] sm:$0xff]
  %v9134 = vld [vmem:[%s8 + $0x188] sm:$0xff]
  %v9135 = vld [vmem:[%s8 + $0x190] sm:$0xff]
  %v9136 = vld [vmem:[%s8 + $0x198] sm:$0xff]
  %v9137 = vld [vmem:[%s8 + $0x1a0] sm:$0xff]
  %v9138 = vld [vmem:[%s8 + $0x1a8] sm:$0xff]
  %v9139 = vld [vmem:[%s8 + $0x1b0] sm:$0xff]
  %v9140 = vld [vmem:[%s8 + $0x1b8] sm:$0xff]
  %v9141 = vld [vmem:[%s8 + $0x1c0] sm:$0xff]
  %v9142 = vld [vmem:[%s8 + $0x1c8] sm:$0xff]
  %v9143 = vld [vmem:[%s8 + $0x1d0] sm:$0xff]
  %v9144 = vld [vmem:[%s8 + $0x1d8] sm:$0xff]
  %v9145 = vld [vmem:[%s8 + $0x1e0] sm:$0xff]
  %v9146 = vld [vmem:[%s8 + $0x1e8] sm:$0xff]
  %v9147 = vld [vmem:[%s8 + $0x1f0] sm:$0xff]
  %v9148 = vld [vmem:[%s8 + $0x1f8] sm:$0xff]
  %v9149 = vld [vmem:[%s8 + $0x200] sm:$0xff]
  %v9150 = vld [vmem:[%s8 + $0x208] sm:$0xff]
  %v9151 = vld [vmem:[%s8 + $0x210] sm:$0xff]
  %v9152 = vld [vmem:[%s8 + $0x218] sm:$0xff]
  %v9153 = vld [vmem:[%s8 + $0x220] sm:$0xff]
  %v9154 = vld [vmem:[%s8 + $0x228] sm:$0xff]
  %v9155 = vld [vmem:[%s8 + $0x230] sm:$0xff]
  %v9156 = vld [vmem:[%s8 + $0x238] sm:$0xff]
  %v9157 = vld [vmem:[%s8 + $0x240] sm:$0xff]
  %v9158 = vld [vmem:[%s8 + $0x248] sm:$0xff]
  %v9159 = vld [vmem:[%s8 + $0x250] sm:$0xff]
  %v9160 = vld [vmem:[%s8 + $0x258] sm:$0xff]
  %v9161 = vld [vmem:[%s8 + $0x260] sm:$0xff]
  %v9162 = vld [vmem:[%s8 + $0x268] sm:$0xff]
  %v9163 = vld [vmem:[%s8 + $0x270] sm:$0xff]
  %v9164 = vld [vmem:[%s8 + $0x278] sm:$0xff]
  %v9165 = vld [vmem:[%s8 + $0x280] sm:$0xff]
  %v9166 = vld [vmem:[%s8 + $0x288] sm:$0xff]
  %v9167 = vld [vmem:[%s8 + $0x290] sm:$0xff]
  %v9168 = vld [vmem:[%s8 + $0x298] sm:$0xff]
  %v9169 = vld [vmem:[%s8 + $0x2a0] sm:$0xff]
  %v9170 = vld [vmem:[%s8 + $0x2a8] sm:$0xff]
  %v9171 = vld [vmem:[%s8 + $0x2b0] sm:$0xff]
  %v9172 = vld [vmem:[%s8 + $0x2b8] sm:$0xff]
  %v9173 = vld [vmem:[%s8 + $0x2c0] sm:$0xff]
  %v9174 = vld [vmem:[%s8 + $0x2c8] sm:$0xff]
  %v9175 = vld [vmem:[%s8 + $0x2d0] sm:$0xff]
  %v9176 = vld [vmem:[%s8 + $0x2d8] sm:$0xff]
  %v9177 = vld [vmem:[%s8 + $0x2e0] sm:$0xff]
  %v9178 = vld [vmem:[%s8 + $0x2e8] sm:$0xff]
  %v9179 = vld [vmem:[%s8 + $0x2f0] sm:$0xff]
  %v9180 = vld [vmem:[%s8 + $0x2f8] sm:$0xff]
  %v9181 = vld [vmem:[%s8 + $0x300] sm:$0xff]
  %v9182 = vld [vmem:[%s8 + $0x308] sm:$0xff]
  %v9183 = vld [vmem:[%s8 + $0x310] sm:$0xff]
  %v9184 = vld [vmem:[%s8 + $0x318] sm:$0xff]
  %v9185 = vld [vmem:[%s8 + $0x320] sm:$0xff]
  %v9186 = vld [vmem:[%s8 + $0x328] sm:$0xff]
  %v9187 = vld [vmem:[%s8 + $0x330] sm:$0xff]
  %v9188 = vld [vmem:[%s8 + $0x338] sm:$0xff]
  %v9189 = vld [vmem:[%s8 + $0x340] sm:$0xff]
  %v9190 = vld [vmem:[%s8 + $0x348] sm:$0xff]
  %v9191 = vld [vmem:[%s8 + $0x350] sm:$0xff]
  %v9192 = vld [vmem:[%s8 + $0x358] sm:$0xff]
  %v9193 = vld [vmem:[%s8 + $0x360] sm:$0xff]
  %v9194 = vld [vmem:[%s8 + $0x368] sm:$0xff]
  %v9195 = vld [vmem:[%s8 + $0x370] sm:$0xff]
  %v9196 = vld [vmem:[%s8 + $0x378] sm:$0xff]
  %v9197 = vld [vmem:[%s8 + $0x380] sm:$0xff]
  %v9198 = vld [vmem:[%s8 + $0x388] sm:$0xff]
  %v9199 = vld [vmem:[%s8 + $0x390] sm:$0xff]
  %v9200 = vld [vmem:[%s8 + $0x398] sm:$0xff]
  %v9201 = vld [vmem:[%s8 + $0x3a0] sm:$0xff]
  %v9202 = vld [vmem:[%s8 + $0x3a8] sm:$0xff]
  %v9203 = vld [vmem:[%s8 + $0x3b0] sm:$0xff]
  %v9204 = vld [vmem:[%s8 + $0x3b8] sm:$0xff]
  %v9205 = vld [vmem:[%s8 + $0x3c0] sm:$0xff]
  %v9206 = vld [vmem:[%s8 + $0x3c8] sm:$0xff]
  %v9207 = vld [vmem:[%s8 + $0x3d0] sm:$0xff]
  %v9208 = vld [vmem:[%s8 + $0x3d8] sm:$0xff]
  %v9209 = vld [vmem:[%s8 + $0x3e0] sm:$0xff]
  %v9210 = vld [vmem:[%s8 + $0x3e8] sm:$0xff]
  %v9211 = vld [vmem:[%s8 + $0x3f0] sm:$0xff]
  %v9212 = vld [vmem:[%s8 + $0x3f8] sm:$0xff]
  %v9213 = vld [vmem:[%s8 + $0x400] sm:$0xff]
  %v9214 = vld [vmem:[%s8 + $0x408] sm:$0xff]
  %v9215 = vld [vmem:[%s8 + $0x410] sm:$0xff]
  %v9216 = vld [vmem:[%s8 + $0x418] sm:$0xff]
  %v9217 = vld [vmem:[%s8 + $0x420] sm:$0xff]
  %v9218 = vld [vmem:[%s8 + $0x428] sm:$0xff]
  %v9219 = vld [vmem:[%s8 + $0x430] sm:$0xff]
  %v9220 = vld [vmem:[%s8 + $0x438] sm:$0xff]
  %v9221 = vld [vmem:[%s8 + $0x440] sm:$0xff]
  %v9222 = vld [vmem:[%s8 + $0x448] sm:$0xff]
  %v9223 = vld [vmem:[%s8 + $0x450] sm:$0xff]
  %v9224 = vld [vmem:[%s8 + $0x458] sm:$0xff]
  %v9225 = vld [vmem:[%s8 + $0x460] sm:$0xff]
  %v9226 = vld [vmem:[%s8 + $0x468] sm:$0xff]
  %v9227 = vld [vmem:[%s8 + $0x470] sm:$0xff]
  %v9228 = vld [vmem:[%s8 + $0x478] sm:$0xff]
  %v9373 = vunpack.c.l.b16 %v9085
  %v9374 = vunpack.c.h.b16 %v9085
  %v9375 = vunpack.c.l.b16 %v9086
  %v9376 = vunpack.c.h.b16 %v9086
  %v9377 = vunpack.c.l.b16 %v9087
  %v9378 = vunpack.c.h.b16 %v9087
  %v9379 = vunpack.c.l.b16 %v9088
  %v9380 = vunpack.c.h.b16 %v9088
  %v9381 = vunpack.c.l.b16 %v9089
  %v9382 = vunpack.c.h.b16 %v9089
  %v9383 = vunpack.c.l.b16 %v9090
  %v9384 = vunpack.c.h.b16 %v9090
  %v9385 = vunpack.c.l.b16 %v9091
  %v9386 = vunpack.c.h.b16 %v9091
  %v9387 = vunpack.c.l.b16 %v9092
  %v9388 = vunpack.c.h.b16 %v9092
  %v9389 = vunpack.c.l.b16 %v9093
  %v9390 = vunpack.c.h.b16 %v9093
  %v9391 = vunpack.c.l.b16 %v9094
  %v9392 = vunpack.c.h.b16 %v9094
  %v9393 = vunpack.c.l.b16 %v9095
  %v9394 = vunpack.c.h.b16 %v9095
  %v9395 = vunpack.c.l.b16 %v9096
  %v9396 = vunpack.c.h.b16 %v9096
  %v9397 = vunpack.c.l.b16 %v9097
  %v9398 = vunpack.c.h.b16 %v9097
  %v9399 = vunpack.c.l.b16 %v9098
  %v9400 = vunpack.c.h.b16 %v9098
  %v9401 = vunpack.c.l.b16 %v9099
  %v9402 = vunpack.c.h.b16 %v9099
  %v9403 = vunpack.c.l.b16 %v9100
  %v9404 = vunpack.c.h.b16 %v9100
  %v9405 = vunpack.c.l.b16 %v9101
  %v9406 = vunpack.c.h.b16 %v9101
  %v9407 = vunpack.c.l.b16 %v9102
  %v9408 = vunpack.c.h.b16 %v9102
  %v9409 = vunpack.c.l.b16 %v9103
  %v9410 = vunpack.c.h.b16 %v9103
  %v9411 = vunpack.c.l.b16 %v9104
  %v9412 = vunpack.c.h.b16 %v9104
  %v9413 = vunpack.c.l.b16 %v9105
  %v9414 = vunpack.c.h.b16 %v9105
  %v9415 = vunpack.c.l.b16 %v9106
  %v9416 = vunpack.c.h.b16 %v9106
  %v9417 = vunpack.c.l.b16 %v9107
  %v9418 = vunpack.c.h.b16 %v9107
  %v9419 = vunpack.c.l.b16 %v9108
  %v9420 = vunpack.c.h.b16 %v9108
  %v9421 = vunpack.c.l.b16 %v9109
  %v9422 = vunpack.c.h.b16 %v9109
  %v9423 = vunpack.c.l.b16 %v9110
  %v9424 = vunpack.c.h.b16 %v9110
  %v9425 = vunpack.c.l.b16 %v9111
  %v9426 = vunpack.c.h.b16 %v9111
  %v9427 = vunpack.c.l.b16 %v9112
  %v9428 = vunpack.c.h.b16 %v9112
  %v9429 = vunpack.c.l.b16 %v9113
  %v9430 = vunpack.c.h.b16 %v9113
  %v9431 = vunpack.c.l.b16 %v9114
  %v9432 = vunpack.c.h.b16 %v9114
  %v9433 = vunpack.c.l.b16 %v9115
  %v9434 = vunpack.c.h.b16 %v9115
  %v9435 = vunpack.c.l.b16 %v9116
  %v9436 = vunpack.c.h.b16 %v9116
  %v9437 = vunpack.c.l.b16 %v9117
  %v9438 = vunpack.c.h.b16 %v9117
  %v9439 = vunpack.c.l.b16 %v9118
  %v9440 = vunpack.c.h.b16 %v9118
  %v9441 = vunpack.c.l.b16 %v9119
  %v9442 = vunpack.c.h.b16 %v9119
  %v9443 = vunpack.c.l.b16 %v9120
  %v9444 = vunpack.c.h.b16 %v9120
  %v9445 = vunpack.c.l.b16 %v9121
  %v9446 = vunpack.c.h.b16 %v9121
  %v9447 = vunpack.c.l.b16 %v9122
  %v9448 = vunpack.c.h.b16 %v9122
  %v9449 = vunpack.c.l.b16 %v9123
  %v9450 = vunpack.c.h.b16 %v9123
  %v9451 = vunpack.c.l.b16 %v9124
  %v9452 = vunpack.c.h.b16 %v9124
  %v9453 = vunpack.c.l.b16 %v9125
  %v9454 = vunpack.c.h.b16 %v9125
  %v9455 = vunpack.c.l.b16 %v9126
  %v9456 = vunpack.c.h.b16 %v9126
  %v9457 = vunpack.c.l.b16 %v9127
  %v9458 = vunpack.c.h.b16 %v9127
  %v9459 = vunpack.c.l.b16 %v9128
  %v9460 = vunpack.c.h.b16 %v9128
  %v9461 = vunpack.c.l.b16 %v9129
  %v9462 = vunpack.c.h.b16 %v9129
  %v9463 = vunpack.c.l.b16 %v9130
  %v9464 = vunpack.c.h.b16 %v9130
  %v9465 = vunpack.c.l.b16 %v9131
  %v9466 = vunpack.c.h.b16 %v9131
  %v9467 = vunpack.c.l.b16 %v9132
  %v9468 = vunpack.c.h.b16 %v9132
  %v9469 = vunpack.c.l.b16 %v9133
  %v9470 = vunpack.c.h.b16 %v9133
  %v9471 = vunpack.c.l.b16 %v9134
  %v9472 = vunpack.c.h.b16 %v9134
  %v9473 = vunpack.c.l.b16 %v9135
  %v9474 = vunpack.c.h.b16 %v9135
  %v9475 = vunpack.c.l.b16 %v9136
  %v9476 = vunpack.c.h.b16 %v9136
  %v9477 = vunpack.c.l.b16 %v9137
  %v9478 = vunpack.c.h.b16 %v9137
  %v9479 = vunpack.c.l.b16 %v9138
  %v9480 = vunpack.c.h.b16 %v9138
  %v9481 = vunpack.c.l.b16 %v9139
  %v9482 = vunpack.c.h.b16 %v9139
  %v9483 = vunpack.c.l.b16 %v9140
  %v9484 = vunpack.c.h.b16 %v9140
  %v9485 = vunpack.c.l.b16 %v9141
  %v9486 = vunpack.c.h.b16 %v9141
  %v9487 = vunpack.c.l.b16 %v9142
  %v9488 = vunpack.c.h.b16 %v9142
  %v9489 = vunpack.c.l.b16 %v9143
  %v9490 = vunpack.c.h.b16 %v9143
  %v9491 = vunpack.c.l.b16 %v9144
  %v9492 = vunpack.c.h.b16 %v9144
  %v9493 = vunpack.c.l.b16 %v9145
  %v9494 = vunpack.c.h.b16 %v9145
  %v9495 = vunpack.c.l.b16 %v9146
  %v9496 = vunpack.c.h.b16 %v9146
  %v9497 = vunpack.c.l.b16 %v9147
  %v9498 = vunpack.c.h.b16 %v9147
  %v9499 = vunpack.c.l.b16 %v9148
  %v9500 = vunpack.c.h.b16 %v9148
  %v9501 = vunpack.c.l.b16 %v9149
  %v9502 = vunpack.c.h.b16 %v9149
  %v9503 = vunpack.c.l.b16 %v9150
  %v9504 = vunpack.c.h.b16 %v9150
  %v9505 = vunpack.c.l.b16 %v9151
  %v9506 = vunpack.c.h.b16 %v9151
  %v9507 = vunpack.c.l.b16 %v9152
  %v9508 = vunpack.c.h.b16 %v9152
  %v9509 = vunpack.c.l.b16 %v9153
  %v9510 = vunpack.c.h.b16 %v9153
  %v9511 = vunpack.c.l.b16 %v9154
  %v9512 = vunpack.c.h.b16 %v9154
  %v9513 = vunpack.c.l.b16 %v9155
  %v9514 = vunpack.c.h.b16 %v9155
  %v9515 = vunpack.c.l.b16 %v9156
  %v9516 = vunpack.c.h.b16 %v9156
  %v9517 = vunpack.c.l.b16 %v9157
  %v9518 = vunpack.c.h.b16 %v9157
  %v9519 = vunpack.c.l.b16 %v9158
  %v9520 = vunpack.c.h.b16 %v9158
  %v9521 = vunpack.c.l.b16 %v9159
  %v9522 = vunpack.c.h.b16 %v9159
  %v9523 = vunpack.c.l.b16 %v9160
  %v9524 = vunpack.c.h.b16 %v9160
  %v9525 = vunpack.c.l.b16 %v9161
  %v9526 = vunpack.c.h.b16 %v9161
  %v9527 = vunpack.c.l.b16 %v9162
  %v9528 = vunpack.c.h.b16 %v9162
  %v9529 = vunpack.c.l.b16 %v9163
  %v9530 = vunpack.c.h.b16 %v9163
  %v9531 = vunpack.c.l.b16 %v9164
  %v9532 = vunpack.c.h.b16 %v9164
  %v9533 = vunpack.c.l.b16 %v9165
  %v9534 = vunpack.c.h.b16 %v9165
  %v9535 = vunpack.c.l.b16 %v9166
  %v9536 = vunpack.c.h.b16 %v9166
  %v9537 = vunpack.c.l.b16 %v9167
  %v9538 = vunpack.c.h.b16 %v9167
  %v9539 = vunpack.c.l.b16 %v9168
  %v9540 = vunpack.c.h.b16 %v9168
  %v9541 = vunpack.c.l.b16 %v9169
  %v9542 = vunpack.c.h.b16 %v9169
  %v9543 = vunpack.c.l.b16 %v9170
  %v9544 = vunpack.c.h.b16 %v9170
  %v9545 = vunpack.c.l.b16 %v9171
  %v9546 = vunpack.c.h.b16 %v9171
  %v9547 = vunpack.c.l.b16 %v9172
  %v9548 = vunpack.c.h.b16 %v9172
  %v9549 = vunpack.c.l.b16 %v9173
  %v9550 = vunpack.c.h.b16 %v9173
  %v9551 = vunpack.c.l.b16 %v9174
  %v9552 = vunpack.c.h.b16 %v9174
  %v9553 = vunpack.c.l.b16 %v9175
  %v9554 = vunpack.c.h.b16 %v9175
  %v9555 = vunpack.c.l.b16 %v9176
  %v9556 = vunpack.c.h.b16 %v9176
  %v9557 = vunpack.c.l.b16 %v9177
  %v9558 = vunpack.c.h.b16 %v9177
  %v9559 = vunpack.c.l.b16 %v9178
  %v9560 = vunpack.c.h.b16 %v9178
  %v9561 = vunpack.c.l.b16 %v9179
  %v9562 = vunpack.c.h.b16 %v9179
  %v9563 = vunpack.c.l.b16 %v9180
  %v9564 = vunpack.c.h.b16 %v9180
  %v9565 = vunpack.c.l.b16 %v9181
  %v9566 = vunpack.c.h.b16 %v9181
  %v9567 = vunpack.c.l.b16 %v9182
  %v9568 = vunpack.c.h.b16 %v9182
  %v9569 = vunpack.c.l.b16 %v9183
  %v9570 = vunpack.c.h.b16 %v9183
  %v9571 = vunpack.c.l.b16 %v9184
  %v9572 = vunpack.c.h.b16 %v9184
  %v9573 = vunpack.c.l.b16 %v9185
  %v9574 = vunpack.c.h.b16 %v9185
  %v9575 = vunpack.c.l.b16 %v9186
  %v9576 = vunpack.c.h.b16 %v9186
  %v9577 = vunpack.c.l.b16 %v9187
  %v9578 = vunpack.c.h.b16 %v9187
  %v9579 = vunpack.c.l.b16 %v9188
  %v9580 = vunpack.c.h.b16 %v9188
  %v9581 = vunpack.c.l.b16 %v9189
  %v9582 = vunpack.c.h.b16 %v9189
  %v9583 = vunpack.c.l.b16 %v9190
  %v9584 = vunpack.c.h.b16 %v9190
  %v9585 = vunpack.c.l.b16 %v9191
  %v9586 = vunpack.c.h.b16 %v9191
  %v9587 = vunpack.c.l.b16 %v9192
  %v9588 = vunpack.c.h.b16 %v9192
  %v9589 = vunpack.c.l.b16 %v9193
  %v9590 = vunpack.c.h.b16 %v9193
  %v9591 = vunpack.c.l.b16 %v9194
  %v9592 = vunpack.c.h.b16 %v9194
  %v9593 = vunpack.c.l.b16 %v9195
  %v9594 = vunpack.c.h.b16 %v9195
  %v9595 = vunpack.c.l.b16 %v9196
  %v9596 = vunpack.c.h.b16 %v9196
  %v9597 = vunpack.c.l.b16 %v9197
  %v9598 = vunpack.c.h.b16 %v9197
  %v9599 = vunpack.c.l.b16 %v9198
  %v9600 = vunpack.c.h.b16 %v9198
  %v9601 = vunpack.c.l.b16 %v9199
  %v9602 = vunpack.c.h.b16 %v9199
  %v9603 = vunpack.c.l.b16 %v9200
  %v9604 = vunpack.c.h.b16 %v9200
  %v9605 = vunpack.c.l.b16 %v9201
  %v9606 = vunpack.c.h.b16 %v9201
  %v9607 = vunpack.c.l.b16 %v9202
  %v9608 = vunpack.c.h.b16 %v9202
  %v9609 = vunpack.c.l.b16 %v9203
  %v9610 = vunpack.c.h.b16 %v9203
  %v9611 = vunpack.c.l.b16 %v9204
  %v9612 = vunpack.c.h.b16 %v9204
  %v9613 = vunpack.c.l.b16 %v9205
  %v9614 = vunpack.c.h.b16 %v9205
  %v9615 = vunpack.c.l.b16 %v9206
  %v9616 = vunpack.c.h.b16 %v9206
  %v9617 = vunpack.c.l.b16 %v9207
  %v9618 = vunpack.c.h.b16 %v9207
  %v9619 = vunpack.c.l.b16 %v9208
  %v9620 = vunpack.c.h.b16 %v9208
  %v9621 = vunpack.c.l.b16 %v9209
  %v9622 = vunpack.c.h.b16 %v9209
  %v9623 = vunpack.c.l.b16 %v9210
  %v9624 = vunpack.c.h.b16 %v9210
  %v9625 = vunpack.c.l.b16 %v9211
  %v9626 = vunpack.c.h.b16 %v9211
  %v9627 = vunpack.c.l.b16 %v9212
  %v9628 = vunpack.c.h.b16 %v9212
  %v9629 = vunpack.c.l.b16 %v9213
  %v9630 = vunpack.c.h.b16 %v9213
  %v9631 = vunpack.c.l.b16 %v9214
  %v9632 = vunpack.c.h.b16 %v9214
  %v9633 = vunpack.c.l.b16 %v9215
  %v9634 = vunpack.c.h.b16 %v9215
  %v9635 = vunpack.c.l.b16 %v9216
  %v9636 = vunpack.c.h.b16 %v9216
  %v9637 = vunpack.c.l.b16 %v9217
  %v9638 = vunpack.c.h.b16 %v9217
  %v9639 = vunpack.c.l.b16 %v9218
  %v9640 = vunpack.c.h.b16 %v9218
  %v9641 = vunpack.c.l.b16 %v9219
  %v9642 = vunpack.c.h.b16 %v9219
  %v9643 = vunpack.c.l.b16 %v9220
  %v9644 = vunpack.c.h.b16 %v9220
  %v9645 = vunpack.c.l.b16 %v9221
  %v9646 = vunpack.c.h.b16 %v9221
  %v9647 = vunpack.c.l.b16 %v9222
  %v9648 = vunpack.c.h.b16 %v9222
  %v9649 = vunpack.c.l.b16 %v9223
  %v9650 = vunpack.c.h.b16 %v9223
  %v9651 = vunpack.c.l.b16 %v9224
  %v9652 = vunpack.c.h.b16 %v9224
  %v9653 = vunpack.c.l.b16 %v9225
  %v9654 = vunpack.c.h.b16 %v9225
  %v9655 = vunpack.c.l.b16 %v9226
  %v9656 = vunpack.c.h.b16 %v9226
  %v9657 = vunpack.c.l.b16 %v9227
  %v9658 = vunpack.c.h.b16 %v9227
  %v9659 = vunpack.c.l.b16 %v9228
  %v9660 = vunpack.c.h.b16 %v9228
  %v9661 = vpack.c.b16 %v9385, %v9373
  %v9662 = vpack.c.b16 %v9386, %v9374
  %v9663 = vpack.c.b16 %v9387, %v9375
  %v9664 = vpack.c.b16 %v9388, %v9376
  %v9665 = vpack.c.b16 %v9389, %v9377
  %v9666 = vpack.c.b16 %v9390, %v9378
  %v9667 = vpack.c.b16 %v9391, %v9379
  %v9668 = vpack.c.b16 %v9392, %v9380
  %v9669 = vpack.c.b16 %v9393, %v9381
  %v9670 = vpack.c.b16 %v9394, %v9382
  %v9671 = vpack.c.b16 %v9395, %v9383
  %v9672 = vpack.c.b16 %v9396, %v9384
  %v9673 = vpack.c.b16 %v9409, %v9397
  %v9674 = vpack.c.b16 %v9410, %v9398
  %v9675 = vpack.c.b16 %v9411, %v9399
  %v9676 = vpack.c.b16 %v9412, %v9400
  %v9677 = vpack.c.b16 %v9413, %v9401
  %v9678 = vpack.c.b16 %v9414, %v9402
  %v9679 = vpack.c.b16 %v9415, %v9403
  %v9680 = vpack.c.b16 %v9416, %v9404
  %v9681 = vpack.c.b16 %v9417, %v9405
  %v9682 = vpack.c.b16 %v9418, %v9406
  %v9683 = vpack.c.b16 %v9419, %v9407
  %v9684 = vpack.c.b16 %v9420, %v9408
  %v9685 = vpack.c.b16 %v9433, %v9421
  %v9686 = vpack.c.b16 %v9434, %v9422
  %v9687 = vpack.c.b16 %v9435, %v9423
  %v9688 = vpack.c.b16 %v9436, %v9424
  %v9689 = vpack.c.b16 %v9437, %v9425
  %v9690 = vpack.c.b16 %v9438, %v9426
  %v9691 = vpack.c.b16 %v9439, %v9427
  %v9692 = vpack.c.b16 %v9440, %v9428
  %v9693 = vpack.c.b16 %v9441, %v9429
  %v9694 = vpack.c.b16 %v9442, %v9430
  %v9695 = vpack.c.b16 %v9443, %v9431
  %v9696 = vpack.c.b16 %v9444, %v9432
  %v9697 = vpack.c.b16 %v9457, %v9445
  %v9698 = vpack.c.b16 %v9458, %v9446
  %v9699 = vpack.c.b16 %v9459, %v9447
  %v9700 = vpack.c.b16 %v9460, %v9448
  %v9701 = vpack.c.b16 %v9461, %v9449
  %v9702 = vpack.c.b16 %v9462, %v9450
  %v9703 = vpack.c.b16 %v9463, %v9451
  %v9704 = vpack.c.b16 %v9464, %v9452
  %v9705 = vpack.c.b16 %v9465, %v9453
  %v9706 = vpack.c.b16 %v9466, %v9454
  %v9707 = vpack.c.b16 %v9467, %v9455
  %v9708 = vpack.c.b16 %v9468, %v9456
  %v9709 = vpack.c.b16 %v9481, %v9469
  %v9710 = vpack.c.b16 %v9482, %v9470
  %v9711 = vpack.c.b16 %v9483, %v9471
  %v9712 = vpack.c.b16 %v9484, %v9472
  %v9713 = vpack.c.b16 %v9485, %v9473
  %v9714 = vpack.c.b16 %v9486, %v9474
  %v9715 = vpack.c.b16 %v9487, %v9475
  %v9716 = vpack.c.b16 %v9488, %v9476
  %v9717 = vpack.c.b16 %v9489, %v9477
  %v9718 = vpack.c.b16 %v9490, %v9478
  %v9719 = vpack.c.b16 %v9491, %v9479
  %v9720 = vpack.c.b16 %v9492, %v9480
  %v9721 = vpack.c.b16 %v9505, %v9493
  %v9722 = vpack.c.b16 %v9506, %v9494
  %v9723 = vpack.c.b16 %v9507, %v9495
  %v9724 = vpack.c.b16 %v9508, %v9496
  %v9725 = vpack.c.b16 %v9509, %v9497
  %v9726 = vpack.c.b16 %v9510, %v9498
  %v9727 = vpack.c.b16 %v9511, %v9499
  %v9728 = vpack.c.b16 %v9512, %v9500
  %v9729 = vpack.c.b16 %v9513, %v9501
  %v9730 = vpack.c.b16 %v9514, %v9502
  %v9731 = vpack.c.b16 %v9515, %v9503
  %v9732 = vpack.c.b16 %v9516, %v9504
  %v9733 = vpack.c.b16 %v9529, %v9517
  %v9734 = vpack.c.b16 %v9530, %v9518
  %v9735 = vpack.c.b16 %v9531, %v9519
  %v9736 = vpack.c.b16 %v9532, %v9520
  %v9737 = vpack.c.b16 %v9533, %v9521
  %v9738 = vpack.c.b16 %v9534, %v9522
  %v9739 = vpack.c.b16 %v9535, %v9523
  %v9740 = vpack.c.b16 %v9536, %v9524
  %v9741 = vpack.c.b16 %v9537, %v9525
  %v9742 = vpack.c.b16 %v9538, %v9526
  %v9743 = vpack.c.b16 %v9539, %v9527
  %v9744 = vpack.c.b16 %v9540, %v9528
  %v9745 = vpack.c.b16 %v9553, %v9541
  %v9746 = vpack.c.b16 %v9554, %v9542
  %v9747 = vpack.c.b16 %v9555, %v9543
  %v9748 = vpack.c.b16 %v9556, %v9544
  %v9749 = vpack.c.b16 %v9557, %v9545
  %v9750 = vpack.c.b16 %v9558, %v9546
  %v9751 = vpack.c.b16 %v9559, %v9547
  %v9752 = vpack.c.b16 %v9560, %v9548
  %v9753 = vpack.c.b16 %v9561, %v9549
  %v9754 = vpack.c.b16 %v9562, %v9550
  %v9755 = vpack.c.b16 %v9563, %v9551
  %v9756 = vpack.c.b16 %v9564, %v9552
  %v9757 = vpack.c.b16 %v9577, %v9565
  %v9758 = vpack.c.b16 %v9578, %v9566
  %v9759 = vpack.c.b16 %v9579, %v9567
  %v9760 = vpack.c.b16 %v9580, %v9568
  %v9761 = vpack.c.b16 %v9581, %v9569
  %v9762 = vpack.c.b16 %v9582, %v9570
  %v9763 = vpack.c.b16 %v9583, %v9571
  %v9764 = vpack.c.b16 %v9584, %v9572
  %v9765 = vpack.c.b16 %v9585, %v9573
  %v9766 = vpack.c.b16 %v9586, %v9574
  %v9767 = vpack.c.b16 %v9587, %v9575
  %v9768 = vpack.c.b16 %v9588, %v9576
  %v9769 = vpack.c.b16 %v9601, %v9589
  %v9770 = vpack.c.b16 %v9602, %v9590
  %v9771 = vpack.c.b16 %v9603, %v9591
  %v9772 = vpack.c.b16 %v9604, %v9592
  %v9773 = vpack.c.b16 %v9605, %v9593
  %v9774 = vpack.c.b16 %v9606, %v9594
  %v9775 = vpack.c.b16 %v9607, %v9595
  %v9776 = vpack.c.b16 %v9608, %v9596
  %v9777 = vpack.c.b16 %v9609, %v9597
  %v9778 = vpack.c.b16 %v9610, %v9598
  %v9779 = vpack.c.b16 %v9611, %v9599
  %v9780 = vpack.c.b16 %v9612, %v9600
  %v9781 = vpack.c.b16 %v9625, %v9613
  %v9782 = vpack.c.b16 %v9626, %v9614
  %v9783 = vpack.c.b16 %v9627, %v9615
  %v9784 = vpack.c.b16 %v9628, %v9616
  %v9785 = vpack.c.b16 %v9629, %v9617
  %v9786 = vpack.c.b16 %v9630, %v9618
  %v9787 = vpack.c.b16 %v9631, %v9619
  %v9788 = vpack.c.b16 %v9632, %v9620
  %v9789 = vpack.c.b16 %v9633, %v9621
  %v9790 = vpack.c.b16 %v9634, %v9622
  %v9791 = vpack.c.b16 %v9635, %v9623
  %v9792 = vpack.c.b16 %v9636, %v9624
  %v9793 = vpack.c.b16 %v9649, %v9637
  %v9794 = vpack.c.b16 %v9650, %v9638
  %v9795 = vpack.c.b16 %v9651, %v9639
  %v9796 = vpack.c.b16 %v9652, %v9640
  %v9797 = vpack.c.b16 %v9653, %v9641
  %v9798 = vpack.c.b16 %v9654, %v9642
  %v9799 = vpack.c.b16 %v9655, %v9643
  %v9800 = vpack.c.b16 %v9656, %v9644
  %v9801 = vpack.c.b16 %v9657, %v9645
  %v9802 = vpack.c.b16 %v9658, %v9646
  %v9803 = vpack.c.b16 %v9659, %v9647
  %v9804 = vpack.c.b16 %v9660, %v9648
  %v9950 = vsel %vm3489, %v9084, 0
  %9952 = vmatpush.bf16.msra.mxu0 %v9745
  %9953 = vmatpush.bf16.msra.mxu0 %v9733
  %9954 = vmatpush.bf16.msra.mxu0 %v9721
  %9955 = vmatpush.bf16.msra.mxu0 %v9709
  %9956 = vmatpush.bf16.msra.mxu0 %v9697
  %9957 = vmatpush.bf16.msra.mxu0 %v9685
  %9958 = vmatpush.bf16.msra.mxu0 %v9673
  %9959 = vmatpush.bf16.msra.mxu0 %v9661
  %9960 = vmatmul.bf16.gmra.mxu0 %v9083
  %v9961 = vpop.f32.mrf.mxu0
  %v9962 = vadd.f32 0.0, %v9961
  %v9963 = vpop.f32.mrf.mxu0
  %9964 = vdwg.mxu0
  %9965 = vmatpush.bf16.msra.mxu0 0
  %9966 = vmatpush.bf16.msra.mxu0 0
  %9967 = vmatpush.bf16.msra.mxu0 0
  %9968 = vmatpush.bf16.msra.mxu0 0
  %9969 = vmatpush.bf16.msra.mxu0 %v9793
  %9970 = vmatpush.bf16.msra.mxu0 %v9781
  %9971 = vmatpush.bf16.msra.mxu0 %v9769
  %9972 = vmatpush.bf16.msra.mxu0 %v9757
  %9973 = vmatmul.bf16.gmra.mxu0 %v9950
  %v9974 = vpop.f32.mrf.mxu0
  %v9975 = vadd.f32 %v9962, %v9974
  %v9976 = vpop.f32.mrf.mxu0
  %9977 = vdwg.mxu0
  %9978 = vmatpush.bf16.msra.mxu0 %v9746
  %9979 = vmatpush.bf16.msra.mxu0 %v9734
  %9980 = vmatpush.bf16.msra.mxu0 %v9722
  %9981 = vmatpush.bf16.msra.mxu0 %v9710
  %9982 = vmatpush.bf16.msra.mxu0 %v9698
  %9983 = vmatpush.bf16.msra.mxu0 %v9686
  %9984 = vmatpush.bf16.msra.mxu0 %v9674
  %9985 = vmatpush.bf16.msra.mxu0 %v9662
  %9986 = vmatmul.bf16.gmra.mxu0 %v9083
  %v9987 = vpop.f32.mrf.mxu0
  %v9988 = vadd.f32 0.0, %v9987
  %v9989 = vpop.f32.mrf.mxu0
  %9990 = vdwg.mxu0
  %9991 = vmatpush.bf16.msra.mxu0 0
  %9992 = vmatpush.bf16.msra.mxu0 0
  %9993 = vmatpush.bf16.msra.mxu0 0
  %9994 = vmatpush.bf16.msra.mxu0 0
  %9995 = vmatpush.bf16.msra.mxu0 %v9794
  %9996 = vmatpush.bf16.msra.mxu0 %v9782
  %9997 = vmatpush.bf16.msra.mxu0 %v9770
  %9998 = vmatpush.bf16.msra.mxu0 %v9758
  %9999 = vmatmul.bf16.gmra.mxu0 %v9950
  %v10000 = vpop.f32.mrf.mxu0
  %v10001 = vadd.f32 %v9988, %v10000
  %v10002 = vpop.f32.mrf.mxu0
  %10003 = vdwg.mxu0
  %10004 = vmatpush.bf16.msra.mxu0 %v9747
  %10005 = vmatpush.bf16.msra.mxu0 %v9735
  %10006 = vmatpush.bf16.msra.mxu0 %v9723
  %10007 = vmatpush.bf16.msra.mxu0 %v9711
  %10008 = vmatpush.bf16.msra.mxu0 %v9699
  %10009 = vmatpush.bf16.msra.mxu0 %v9687
  %10010 = vmatpush.bf16.msra.mxu0 %v9675
  %10011 = vmatpush.bf16.msra.mxu0 %v9663
  %10012 = vmatmul.bf16.gmra.mxu0 %v9083
  %v10013 = vpop.f32.mrf.mxu0
  %v10014 = vadd.f32 0.0, %v10013
  %v10015 = vpop.f32.mrf.mxu0
  %10016 = vdwg.mxu0
  %10017 = vmatpush.bf16.msra.mxu0 0
  %10018 = vmatpush.bf16.msra.mxu0 0
  %10019 = vmatpush.bf16.msra.mxu0 0
  %10020 = vmatpush.bf16.msra.mxu0 0
  %10021 = vmatpush.bf16.msra.mxu0 %v9795
  %10022 = vmatpush.bf16.msra.mxu0 %v9783
  %10023 = vmatpush.bf16.msra.mxu0 %v9771
  %10024 = vmatpush.bf16.msra.mxu0 %v9759
  %10025 = vmatmul.bf16.gmra.mxu0 %v9950
  %v10026 = vpop.f32.mrf.mxu0
  %v10027 = vadd.f32 %v10014, %v10026
  %v10028 = vpop.f32.mrf.mxu0
  %10029 = vdwg.mxu0
  %10030 = vmatpush.bf16.msra.mxu0 %v9748
  %10031 = vmatpush.bf16.msra.mxu0 %v9736
  %10032 = vmatpush.bf16.msra.mxu0 %v9724
  %10033 = vmatpush.bf16.msra.mxu0 %v9712
  %10034 = vmatpush.bf16.msra.mxu0 %v9700
  %10035 = vmatpush.bf16.msra.mxu0 %v9688
  %10036 = vmatpush.bf16.msra.mxu0 %v9676
  %10037 = vmatpush.bf16.msra.mxu0 %v9664
  %10038 = vmatmul.bf16.gmra.mxu0 %v9083
  %v10039 = vpop.f32.mrf.mxu0
  %v10040 = vadd.f32 0.0, %v10039
  %v10041 = vpop.f32.mrf.mxu0
  %10042 = vdwg.mxu0
  %10043 = vmatpush.bf16.msra.mxu0 0
  %10044 = vmatpush.bf16.msra.mxu0 0
  %10045 = vmatpush.bf16.msra.mxu0 0
  %10046 = vmatpush.bf16.msra.mxu0 0
  %10047 = vmatpush.bf16.msra.mxu0 %v9796
  %10048 = vmatpush.bf16.msra.mxu0 %v9784
  %10049 = vmatpush.bf16.msra.mxu0 %v9772
  %10050 = vmatpush.bf16.msra.mxu0 %v9760
  %10051 = vmatmul.bf16.gmra.mxu0 %v9950
  %v10052 = vpop.f32.mrf.mxu0
  %v10053 = vadd.f32 %v10040, %v10052
  %v10054 = vpop.f32.mrf.mxu0
  %10055 = vdwg.mxu0
  %10056 = vmatpush.bf16.msra.mxu0 %v9749
  %10057 = vmatpush.bf16.msra.mxu0 %v9737
  %10058 = vmatpush.bf16.msra.mxu0 %v9725
  %10059 = vmatpush.bf16.msra.mxu0 %v9713
  %10060 = vmatpush.bf16.msra.mxu0 %v9701
  %10061 = vmatpush.bf16.msra.mxu0 %v9689
  %10062 = vmatpush.bf16.msra.mxu0 %v9677
  %10063 = vmatpush.bf16.msra.mxu0 %v9665
  %10064 = vmatmul.bf16.gmra.mxu0 %v9083
  %v10065 = vpop.f32.mrf.mxu0
  %v10066 = vadd.f32 0.0, %v10065
  %v10067 = vpop.f32.mrf.mxu0
  %10068 = vdwg.mxu0
  %10069 = vmatpush.bf16.msra.mxu0 0
  %10070 = vmatpush.bf16.msra.mxu0 0
  %10071 = vmatpush.bf16.msra.mxu0 0
  %10072 = vmatpush.bf16.msra.mxu0 0
  %10073 = vmatpush.bf16.msra.mxu0 %v9797
  %10074 = vmatpush.bf16.msra.mxu0 %v9785
  %10075 = vmatpush.bf16.msra.mxu0 %v9773
  %10076 = vmatpush.bf16.msra.mxu0 %v9761
  %10077 = vmatmul.bf16.gmra.mxu0 %v9950
  %v10078 = vpop.f32.mrf.mxu0
  %v10079 = vadd.f32 %v10066, %v10078
  %v10080 = vpop.f32.mrf.mxu0
  %10081 = vdwg.mxu0
  %10082 = vmatpush.bf16.msra.mxu0 %v9750
  %10083 = vmatpush.bf16.msra.mxu0 %v9738
  %10084 = vmatpush.bf16.msra.mxu0 %v9726
  %10085 = vmatpush.bf16.msra.mxu0 %v9714
  %10086 = vmatpush.bf16.msra.mxu0 %v9702
  %10087 = vmatpush.bf16.msra.mxu0 %v9690
  %10088 = vmatpush.bf16.msra.mxu0 %v9678
  %10089 = vmatpush.bf16.msra.mxu0 %v9666
  %10090 = vmatmul.bf16.gmra.mxu0 %v9083
  %v10091 = vpop.f32.mrf.mxu0
  %v10092 = vadd.f32 0.0, %v10091
  %v10093 = vpop.f32.mrf.mxu0
  %10094 = vdwg.mxu0
  %10095 = vmatpush.bf16.msra.mxu0 0
  %10096 = vmatpush.bf16.msra.mxu0 0
  %10097 = vmatpush.bf16.msra.mxu0 0
  %10098 = vmatpush.bf16.msra.mxu0 0
  %10099 = vmatpush.bf16.msra.mxu0 %v9798
  %10100 = vmatpush.bf16.msra.mxu0 %v9786
  %10101 = vmatpush.bf16.msra.mxu0 %v9774
  %10102 = vmatpush.bf16.msra.mxu0 %v9762
  %10103 = vmatmul.bf16.gmra.mxu0 %v9950
  %v10104 = vpop.f32.mrf.mxu0
  %v10105 = vadd.f32 %v10092, %v10104
  %v10106 = vpop.f32.mrf.mxu0
  %10107 = vdwg.mxu0
  %10108 = vmatpush.bf16.msra.mxu0 %v9751
  %10109 = vmatpush.bf16.msra.mxu0 %v9739
  %10110 = vmatpush.bf16.msra.mxu0 %v9727
  %10111 = vmatpush.bf16.msra.mxu0 %v9715
  %10112 = vmatpush.bf16.msra.mxu0 %v9703
  %10113 = vmatpush.bf16.msra.mxu0 %v9691
  %10114 = vmatpush.bf16.msra.mxu0 %v9679
  %10115 = vmatpush.bf16.msra.mxu0 %v9667
  %10116 = vmatmul.bf16.gmra.mxu0 %v9083
  %v10117 = vpop.f32.mrf.mxu0
  %v10118 = vadd.f32 0.0, %v10117
  %v10119 = vpop.f32.mrf.mxu0
  %10120 = vdwg.mxu0
  %10121 = vmatpush.bf16.msra.mxu0 0
  %10122 = vmatpush.bf16.msra.mxu0 0
  %10123 = vmatpush.bf16.msra.mxu0 0
  %10124 = vmatpush.bf16.msra.mxu0 0
  %10125 = vmatpush.bf16.msra.mxu0 %v9799
  %10126 = vmatpush.bf16.msra.mxu0 %v9787
  %10127 = vmatpush.bf16.msra.mxu0 %v9775
  %10128 = vmatpush.bf16.msra.mxu0 %v9763
  %10129 = vmatmul.bf16.gmra.mxu0 %v9950
  %v10130 = vpop.f32.mrf.mxu0
  %v10131 = vadd.f32 %v10118, %v10130
  %v10132 = vpop.f32.mrf.mxu0
  %10133 = vdwg.mxu0
  %10134 = vmatpush.bf16.msra.mxu0 %v9752
  %10135 = vmatpush.bf16.msra.mxu0 %v9740
  %10136 = vmatpush.bf16.msra.mxu0 %v9728
  %10137 = vmatpush.bf16.msra.mxu0 %v9716
  %10138 = vmatpush.bf16.msra.mxu0 %v9704
  %10139 = vmatpush.bf16.msra.mxu0 %v9692
  %10140 = vmatpush.bf16.msra.mxu0 %v9680
  %10141 = vmatpush.bf16.msra.mxu0 %v9668
  %10142 = vmatmul.bf16.gmra.mxu0 %v9083
  %v10143 = vpop.f32.mrf.mxu0
  %v10144 = vadd.f32 0.0, %v10143
  %v10145 = vpop.f32.mrf.mxu0
  %10146 = vdwg.mxu0
  %10147 = vmatpush.bf16.msra.mxu0 0
  %10148 = vmatpush.bf16.msra.mxu0 0
  %10149 = vmatpush.bf16.msra.mxu0 0
  %10150 = vmatpush.bf16.msra.mxu0 0
  %10151 = vmatpush.bf16.msra.mxu0 %v9800
  %10152 = vmatpush.bf16.msra.mxu0 %v9788
  %10153 = vmatpush.bf16.msra.mxu0 %v9776
  %10154 = vmatpush.bf16.msra.mxu0 %v9764
  %10155 = vmatmul.bf16.gmra.mxu0 %v9950
  %v10156 = vpop.f32.mrf.mxu0
  %v10157 = vadd.f32 %v10144, %v10156
  %v10158 = vpop.f32.mrf.mxu0
  %10159 = vdwg.mxu0
  %10160 = vmatpush.bf16.msra.mxu0 %v9753
  %10161 = vmatpush.bf16.msra.mxu0 %v9741
  %10162 = vmatpush.bf16.msra.mxu0 %v9729
  %10163 = vmatpush.bf16.msra.mxu0 %v9717
  %10164 = vmatpush.bf16.msra.mxu0 %v9705
  %10165 = vmatpush.bf16.msra.mxu0 %v9693
  %10166 = vmatpush.bf16.msra.mxu0 %v9681
  %10167 = vmatpush.bf16.msra.mxu0 %v9669
  %10168 = vmatmul.bf16.gmra.mxu0 %v9083
  %v10169 = vpop.f32.mrf.mxu0
  %v10170 = vadd.f32 0.0, %v10169
  %v10171 = vpop.f32.mrf.mxu0
  %10172 = vdwg.mxu0
  %10173 = vmatpush.bf16.msra.mxu0 0
  %10174 = vmatpush.bf16.msra.mxu0 0
  %10175 = vmatpush.bf16.msra.mxu0 0
  %10176 = vmatpush.bf16.msra.mxu0 0
  %10177 = vmatpush.bf16.msra.mxu0 %v9801
  %10178 = vmatpush.bf16.msra.mxu0 %v9789
  %10179 = vmatpush.bf16.msra.mxu0 %v9777
  %10180 = vmatpush.bf16.msra.mxu0 %v9765
  %10181 = vmatmul.bf16.gmra.mxu0 %v9950
  %v10182 = vpop.f32.mrf.mxu0
  %v10183 = vadd.f32 %v10170, %v10182
  %v10184 = vpop.f32.mrf.mxu0
  %10185 = vdwg.mxu0
  %10186 = vmatpush.bf16.msra.mxu0 %v9754
  %10187 = vmatpush.bf16.msra.mxu0 %v9742
  %10188 = vmatpush.bf16.msra.mxu0 %v9730
  %10189 = vmatpush.bf16.msra.mxu0 %v9718
  %10190 = vmatpush.bf16.msra.mxu0 %v9706
  %10191 = vmatpush.bf16.msra.mxu0 %v9694
  %10192 = vmatpush.bf16.msra.mxu0 %v9682
  %10193 = vmatpush.bf16.msra.mxu0 %v9670
  %10194 = vmatmul.bf16.gmra.mxu0 %v9083
  %v10195 = vpop.f32.mrf.mxu0
  %v10196 = vadd.f32 0.0, %v10195
  %v10197 = vpop.f32.mrf.mxu0
  %10198 = vdwg.mxu0
  %10199 = vmatpush.bf16.msra.mxu0 0
  %10200 = vmatpush.bf16.msra.mxu0 0
  %10201 = vmatpush.bf16.msra.mxu0 0
  %10202 = vmatpush.bf16.msra.mxu0 0
  %10203 = vmatpush.bf16.msra.mxu0 %v9802
  %10204 = vmatpush.bf16.msra.mxu0 %v9790
  %10205 = vmatpush.bf16.msra.mxu0 %v9778
  %10206 = vmatpush.bf16.msra.mxu0 %v9766
  %10207 = vmatmul.bf16.gmra.mxu0 %v9950
  %v10208 = vpop.f32.mrf.mxu0
  %v10209 = vadd.f32 %v10196, %v10208
  %v10210 = vpop.f32.mrf.mxu0
  %10211 = vdwg.mxu0
  %10212 = vmatpush.bf16.msra.mxu0 %v9755
  %10213 = vmatpush.bf16.msra.mxu0 %v9743
  %10214 = vmatpush.bf16.msra.mxu0 %v9731
  %10215 = vmatpush.bf16.msra.mxu0 %v9719
  %10216 = vmatpush.bf16.msra.mxu0 %v9707
  %10217 = vmatpush.bf16.msra.mxu0 %v9695
  %10218 = vmatpush.bf16.msra.mxu0 %v9683
  %10219 = vmatpush.bf16.msra.mxu0 %v9671
  %10220 = vmatmul.bf16.gmra.mxu0 %v9083
  %v10221 = vpop.f32.mrf.mxu0
  %v10222 = vadd.f32 0.0, %v10221
  %v10223 = vpop.f32.mrf.mxu0
  %10224 = vdwg.mxu0
  %10225 = vmatpush.bf16.msra.mxu0 0
  %10226 = vmatpush.bf16.msra.mxu0 0
  %10227 = vmatpush.bf16.msra.mxu0 0
  %10228 = vmatpush.bf16.msra.mxu0 0
  %10229 = vmatpush.bf16.msra.mxu0 %v9803
  %10230 = vmatpush.bf16.msra.mxu0 %v9791
  %10231 = vmatpush.bf16.msra.mxu0 %v9779
  %10232 = vmatpush.bf16.msra.mxu0 %v9767
  %10233 = vmatmul.bf16.gmra.mxu0 %v9950
  %v10234 = vpop.f32.mrf.mxu0
  %v10235 = vadd.f32 %v10222, %v10234
  %v10236 = vpop.f32.mrf.mxu0
  %10237 = vdwg.mxu0
  %10238 = vmatpush.bf16.msra.mxu0 %v9756
  %10239 = vmatpush.bf16.msra.mxu0 %v9744
  %10240 = vmatpush.bf16.msra.mxu0 %v9732
  %10241 = vmatpush.bf16.msra.mxu0 %v9720
  %10242 = vmatpush.bf16.msra.mxu0 %v9708
  %10243 = vmatpush.bf16.msra.mxu0 %v9696
  %10244 = vmatpush.bf16.msra.mxu0 %v9684
  %10245 = vmatpush.bf16.msra.mxu0 %v9672
  %10246 = vmatmul.bf16.gmra.mxu0 %v9083
  %v10247 = vpop.f32.mrf.mxu0
  %v10248 = vadd.f32 0.0, %v10247
  %v10249 = vpop.f32.mrf.mxu0
  %10250 = vdwg.mxu0
  %10251 = vmatpush.bf16.msra.mxu0 0
  %10252 = vmatpush.bf16.msra.mxu0 0
  %10253 = vmatpush.bf16.msra.mxu0 0
  %10254 = vmatpush.bf16.msra.mxu0 0
  %10255 = vmatpush.bf16.msra.mxu0 %v9804
  %10256 = vmatpush.bf16.msra.mxu0 %v9792
  %10257 = vmatpush.bf16.msra.mxu0 %v9780
  %10258 = vmatpush.bf16.msra.mxu0 %v9768
  %10259 = vmatmul.bf16.gmra.mxu0 %v9950
  %v10260 = vpop.f32.mrf.mxu0
  %v10261 = vadd.f32 %v10248, %v10260
  %v10262 = vpop.f32.mrf.mxu0
  %10263 = vdwg.mxu0
  %v10276 = vrot.slane %v10001, 6
  %v10277 = vrot.slane %v10027, 4
  %v10278 = vrot.slane %v10053, 2
  %v10279 = vrot.slane %v10105, 6
  %v10280 = vrot.slane %v10131, 4
  %v10281 = vrot.slane %v10157, 2
  %v10282 = vrot.slane %v10209, 6
  %v10283 = vrot.slane %v10235, 4
  %v10284 = vrot.slane %v10261, 2
  %v10285 = vsel %vm2952, %v9975, %v10276
  %vm10286 = vcmask 1045508
  %v10287 = vsel %vm10286, %v10277, %v10278
  %vm10288 = vcmask 1043456
  %v10289 = vsel %vm10288, %v10285, %v10287
  %v10290 = vsel %vm2952, %v10079, %v10279
  %v10291 = vsel %vm10286, %v10280, %v10281
  %v10292 = vsel %vm10288, %v10290, %v10291
  %v10293 = vsel %vm2952, %v10183, %v10282
  %v10294 = vsel %vm10286, %v10283, %v10284
  %v10295 = vsel %vm10288, %v10293, %v10294
  %10299 = vst [vmem:[%s9] sm:$0xff] %v10289
  %10300 = vst [vmem:[%s9 + $0x8] sm:$0xff] %v10292
  %10301 = vst [vmem:[%s9 + $0x10] sm:$0xff] %v10295
  // Predicated region
  $region38: #{mto_wave_cnn_forward.2} parent=0 // pred_check
    _
  $region39: #{mto_wave_cnn_forward.2} parent=0 // pred_check_branch
    %10303 = sbr.rel (0) target = $region41
  $region40: #{mto_wave_cnn_forward.2} parent=0 // pred_region
    _
  $region41: #{mto_wave_cnn_forward.2} parent=0 // pred_fallthru
    _
  // Predicated region
  $region42: #{mto_wave_cnn_forward.2} parent=0 // pred_check
    _
  $region43: #{mto_wave_cnn_forward.2} parent=0 // pred_check_branch
    %10305 = sbr.rel (0) target = $region45
  $region44: #{mto_wave_cnn_forward.2} parent=0 // pred_region
    _
  $region45: #{mto_wave_cnn_forward.2} parent=0 // pred_fallthru
    _

</llo_original>
